<compile_context>
chip_gen: v6e
topology: v6e:2x2x1
jax: 0.10.0
libtpu: 0.0.40
codegen_flags: <defaults>
</compile_context>

<pallas_src>
import inspect
import math

import jax
import jax.numpy as jnp
from jax.experimental import pallas as pl
from jax.experimental.pallas import tpu as pltpu

_SQRT1_2 = 0.7071067811865476
_LANE = 128     # TPU lane width: channel-padding target
_ALIGN = 16     # bf16 packed-sublane tile rows: scratch store alignment


# ---------------- in-kernel math helpers ----------------
def _make_recip():
    """EUP reciprocal (approx if available, per perf review); robust fallbacks."""
    if not hasattr(pl, "reciprocal"):
        return lambda x: 1.0 / x
    try:
        if "approx" in inspect.signature(pl.reciprocal).parameters:
            return lambda x: pl.reciprocal(x, approx=True)
    except (TypeError, ValueError):
        pass
    return lambda x: pl.reciprocal(x)


_recip = _make_recip()


def _erf(x):
    # float32-accurate polynomial erf (A&S 7.1.26); exp / recip ride the EUP.
    p = 0.3275911
    a1, a2, a3, a4, a5 = 0.254829592, -0.284496736, 1.421413741, -1.453152027, 1.061405429
    sgn = jnp.where(x >= 0.0, 1.0, -1.0)
    ax = jnp.abs(x)
    t = _recip(1.0 + p * ax)
    poly = ((((a5 * t + a4) * t + a3) * t + a2) * t + a1) * t
    return sgn * (1.0 - poly * jnp.exp(-ax * ax))


def _gelu(x):
    # exact (erf-based) GELU, matching torch.nn.GELU() default
    return 0.5 * x * (1.0 + _erf(x * _SQRT1_2))


def _sigmoid(x):
    return _recip(1.0 + jnp.exp(-x))


# ---------------- flattened padded-row layout ----------------
def _layout(H, W):
    """Flattened channels-last layout: a (H+2, W+2, Cp) zero-padded sample becomes a
    (SCR, Cp) slab of rows.  OFF junk rows at the top make the interior start (INT0) a
    multiple of 16, so every bf16 scratch store is packed-word aligned."""
    W2 = W + 2
    M = H * W2                                   # flattened (h, w-with-pad) working rows
    OFF = (-(W2 + 1)) % _ALIGN                   # top alignment offset (never read)
    INT0 = OFF + W2 + 1                          # flat row of interior (h=0, w=0)
    NEED = OFF + (H + 2) * W2 + 2                # +2 slack rows so every tap slice fits
    SCR = -(-NEED // _ALIGN) * _ALIGN            # scratch/input rows (16-row aligned)
    return W2, M, OFF, INT0, SCR


# ---------------- the Pallas kernel ----------------
def _make_kernel(H, W, C, Cp):
    """One grid step = one batch sample."""
    W2, M, OFF, INT0, SCR = _layout(H, W)
    TAIL = SCR - INT0 - M                        # bottom zero-padding rows in the scratch
    inv_cw = 1.0 / float(C * W)                  # true-channel divisor for the fwSE mean

    def conv3x3(load_patch, w_ref):
        # 9 taps, each an (M, Cp) @ (Cp, Cp) bf16 MXU matmul with f32 accumulation.
        acc = None
        for t in range(9):
            kh, kw = divmod(t, 3)
            patch = load_patch(OFF + kh * W2 + kw)                     # (M, Cp) bf16
            part = jnp.dot(patch, w_ref[t], preferred_element_type=jnp.float32)
            acc = part if acc is None else acc + part
        return acc                                                     # (M, Cp) f32

    def kernel(xpad_ref, w1_ref, w2_ref,
               bn1s_ref, bn1b_ref, bn2s_ref, bn2b_ref,
               mask_ref, sel_ref, selt_ref,
               sw1_ref, sb1_ref, sw2t_ref, sb2_ref,
               out_ref, act_scr, y2_scr):
        # ---- conv1 (3x3, pad 1, stride 1) + BN1(eval) + GELU ----
        y1 = conv3x3(lambda s: xpad_ref[0, pl.ds(s, M), :], w1_ref)    # bf16 taps, f32 acc
        a1 = _gelu(y1 * bn1s_ref[...] + bn1b_ref[...]) * mask_ref[...]  # zero the pad cols

        # ---- re-pad the conv1 activation into the bf16 scratch (aligned stores only) ----
        act_scr[pl.ds(0, INT0), :] = jnp.zeros((INT0, Cp), jnp.bfloat16)
        act_scr[pl.ds(INT0 + M, TAIL), :] = jnp.zeros((TAIL, Cp), jnp.bfloat16)
        act_scr[pl.ds(INT0, M), :] = a1.astype(jnp.bfloat16)           # single cast pass

        # ---- conv2 (3x3, pad 1) + BN2(eval) ----
        y2 = conv3x3(lambda s: act_scr[pl.ds(s, M), :], w2_ref)
        y2_scr[...] = y2 * bn2s_ref[...] + bn2b_ref[...]

        # ---- fwSE: mean over (channels, valid time cols) per frequency row ----
        pooled_hc = jnp.dot(sel_ref[...], y2_scr[...],
                            preferred_element_type=jnp.float32)        # (H, Cp)
        pooled = jnp.sum(pooled_hc, axis=1, keepdims=True) * inv_cw    # (H, 1)
        hid = _gelu(jnp.sum(sw1_ref[...] * pooled, axis=0, keepdims=True)
                    + sb1_ref[...])                                    # (1, B)
        logits = (jnp.sum(sw2t_ref[...] * hid, axis=1, keepdims=True)
                  + sb2_ref[...])                                      # (H, 1)
        gates = _sigmoid(logits)                                       # per-frequency gate

        # ---- gate expansion + residual add + final GELU: single fused slab pass ----
        gate_mc = jnp.dot(selt_ref[...], jnp.broadcast_to(gates, (H, Cp)),
                          preferred_element_type=jnp.float32)          # (M, Cp); 0 in pad cols
        resid = xpad_ref[0, pl.ds(INT0, M), :].astype(jnp.float32)     # pad cols are 0
        out_ref[0, :, :] = _gelu(y2_scr[...] * gate_mc + resid)        # one dense store

    return kernel


# ---------------- wrapper (layout glue + pallas_call) ----------------
def _vmem_limit_bytes():
    cap = 0
    try:
        cap = int(pltpu.get_tpu_info().vmem_capacity_bytes)
    except Exception:
        cap = 0
    if cap <= 0:
        cap = 64 * 1024 * 1024                    # conservative default (v7x per-core VMEM)
    return max(32 * 1024 * 1024, min(cap - 16 * 1024 * 1024, 100 * 1024 * 1024))


def se_basic_block_forward(x, params):
    """x: (N, C, H, W) float32 in NCHW (PyTorch convention).  Returns the same shape."""
    (w1, w2, bn1_scale, bn1_bias, bn2_scale, bn2_bias,
     se_w1, se_b1, se_w2, se_b2) = params
    N, C, H, W = x.shape
    B = se_w1.shape[1]
    W2, M, OFF, INT0, SCR = _layout(H, W)
    Cp = -(-C // _LANE) * _LANE                   # lane-dense channel padding
    # TODO(synk): odd-H x odd-W shapes need even-length bf16 scratch stores; not needed here.
    assert M % 2 == 0, "bf16 activation staging requires H*(W+2) to be even"

    # NCHW -> channels-last, zero-pad spatially + channels once, flatten rows, cast bf16.
    x_nhwc = jnp.transpose(x, (0, 2, 3, 1)).astype(jnp.float32)               # (N,H,W,C)
    x_pad = jnp.pad(x_nhwc, ((0, 0), (1, 1), (1, 1), (0, Cp - C)))            # (N,H+2,W2,Cp)
    x_flat = x_pad.reshape(N, (H + 2) * W2, Cp)
    x_flat = jnp.pad(x_flat, ((0, 0), (OFF, SCR - OFF - (H + 2) * W2), (0, 0)))
    x_flat = x_flat.astype(jnp.bfloat16)                                      # (N, SCR, Cp)

    # conv weights as 9 per-tap (Cp, Cp) bf16 matrices (OIHW -> tap, I, O, zero-padded)
    def prep_w(w):
        wt = jnp.transpose(w, (2, 3, 1, 0)).reshape(9, C, C)
        return jnp.pad(wt, ((0, 0), (0, Cp - C), (0, Cp - C))).astype(jnp.bfloat16)

    w1_t, w2_t = prep_w(w1), prep_w(w2)

    def prep_c(v):                                 # (C,) -> (1, Cp) f32, zero-padded
        return jnp.pad(v.astype(jnp.float32), (0, Cp - C)).reshape(1, Cp)

    bn1s, bn1b = prep_c(bn1_scale), prep_c(bn1_bias)
    bn2s, bn2b = prep_c(bn2_scale), prep_c(bn2_bias)

    # validity mask of the non-pad time columns inside each flattened row
    m_idx = jnp.arange(M)
    valid = (m_idx % W2) < W
    colmask = valid.astype(jnp.float32).reshape(M, 1)
    # (H, M) frequency-row selector over valid columns (fwSE pooling + gate expansion)
    sel = ((m_idx[None, :] // W2 == jnp.arange(H)[:, None]) & valid[None, :]
           ).astype(jnp.float32)                                              # (H, M)
    selt = jnp.transpose(sel)                                                 # (M, H)

    sw1 = se_w1.astype(jnp.float32)                # (H, B)
    sb1 = se_b1.reshape(1, B).astype(jnp.float32)
    sw2t = jnp.transpose(se_w2).astype(jnp.float32)  # (H, B)
    sb2 = se_b2.reshape(H, 1).astype(jnp.float32)

    def inv(shape):                                # grid-invariant (fully resident) block
        zeros = (0,) * len(shape)
        return pl.BlockSpec(shape, lambda n, _z=zeros: _z)

    cost = pl.CostEstimate(
        flops=2 * 2 * 9 * N * M * Cp * Cp + 4 * N * H * M * Cp,
        transcendentals=3 * N * M * Cp,
        bytes_accessed=N * (2 * SCR * Cp + 4 * M * Cp) + 2 * 2 * 9 * Cp * Cp,
    )

    out_flat = pl.pallas_call(
        _make_kernel(H, W, C, Cp),
        out_shape=jax.ShapeDtypeStruct((N, M, Cp), jnp.float32),
        grid_spec=pltpu.PrefetchScalarGridSpec(
            num_scalar_prefetch=0,
            grid=(N,),                                              # one sample per step
            in_specs=[
                pl.BlockSpec((1, SCR, Cp), lambda n: (n, 0, 0)),    # padded input (bf16)
                inv((9, Cp, Cp)), inv((9, Cp, Cp)),                 # conv1 / conv2 taps (bf16)
                inv((1, Cp)), inv((1, Cp)),                         # bn1 scale / bias
                inv((1, Cp)), inv((1, Cp)),                         # bn2 scale / bias
                inv((M, 1)),                                        # column validity mask
                inv((H, M)), inv((M, H)),                           # fwSE row selectors
                inv((H, B)), inv((1, B)),                           # fwSE fc1 weight / bias
                inv((H, B)), inv((H, 1)),                           # fwSE fc2 weight^T / bias
            ],
            out_specs=pl.BlockSpec((1, M, Cp), lambda n: (n, 0, 0)),
            scratch_shapes=[
                pltpu.VMEM((SCR, Cp), jnp.bfloat16),                # padded conv1 act (bf16)
                pltpu.VMEM((M, Cp), jnp.float32),                   # conv2 + bn2 output
            ],
        ),
        compiler_params=pltpu.CompilerParams(
            dimension_semantics=("parallel",),                      # megacore sharding
            vmem_limit_bytes=_vmem_limit_bytes(),
        ),
        cost_estimate=cost,
    )(x_flat, w1_t, w2_t, bn1s, bn1b, bn2s, bn2b,
      colmask, sel, selt, sw1, sb1, sw2t, sb2)

    out = out_flat.reshape(N, H, W2, Cp)[:, :, :W, :C]              # strip pad cols / chans
    return jnp.transpose(out, (0, 3, 1, 2))                         # back to NCHW


# ---------------- deterministic parameter init ----------------
def init_params(key, C, H, B):
    planes, inplanes, frequency = C, C, H
    ks = jax.random.split(key, 14)
    eps = 1e-5

    w1 = jax.random.normal(ks[0], (planes, inplanes, 3, 3), jnp.float32) / math.sqrt(inplanes * 9)
    w2 = jax.random.normal(ks[1], (planes, planes, 3, 3), jnp.float32) / math.sqrt(planes * 9)

    g1 = 1.0 + 0.1 * jax.random.normal(ks[2], (planes,), jnp.float32)
    b1 = 0.1 * jax.random.normal(ks[3], (planes,), jnp.float32)
    m1 = 0.1 * jax.random.normal(ks[4], (planes,), jnp.float32)
    v1 = jax.random.uniform(ks[5], (planes,), jnp.float32, 0.5, 1.5)
    g2 = 1.0 + 0.1 * jax.random.normal(ks[6], (planes,), jnp.float32)
    b2 = 0.1 * jax.random.normal(ks[7], (planes,), jnp.float32)
    m2 = 0.1 * jax.random.normal(ks[8], (planes,), jnp.float32)
    v2 = jax.random.uniform(ks[9], (planes,), jnp.float32, 0.5, 1.5)
    bn1_scale = g1 / jnp.sqrt(v1 + eps)
    bn1_bias = b1 - m1 * bn1_scale
    bn2_scale = g2 / jnp.sqrt(v2 + eps)
    bn2_bias = b2 - m2 * bn2_scale

    # fwSE 1x1 Conv1d weights, stored as matmul matrices (== torch weight[:, :, 0].T)
    se_w1 = jax.random.normal(ks[10], (frequency, B), jnp.float32) / math.sqrt(frequency)
    se_b1 = 0.1 * jax.random.normal(ks[11], (B,), jnp.float32)
    se_w2 = jax.random.normal(ks[12], (B, frequency), jnp.float32) / math.sqrt(B)
    se_b2 = 0.1 * jax.random.normal(ks[13], (frequency,), jnp.float32)

    return (w1, w2, bn1_scale, bn1_bias, bn2_scale, bn2_bias,
            se_w1, se_b1, se_w2, se_b2)


# ---------------- pure-JAX reference ----------------
def reference_forward(x, params, conv_dtype=jnp.float32):
    """conv_dtype=float32: exact (eval-mode) module semantics.
       conv_dtype=bfloat16: mirrors the kernel (bf16 conv operands + bf16 residual,
       f32 accumulation / BN / activations)."""
    (w1, w2, bn1_scale, bn1_bias, bn2_scale, bn2_bias,
     se_w1, se_b1, se_w2, se_b2) = params

    def conv3x3(inp, w):
        return jax.lax.conv_general_dilated(
            inp.astype(conv_dtype), w.astype(conv_dtype),
            window_strides=(1, 1), padding=((1, 1), (1, 1)),
            dimension_numbers=("NCHW", "OIHW", "NCHW"),
            preferred_element_type=jnp.float32)

    def bn(inp, scale, bias):
        return inp * scale[None, :, None, None] + bias[None, :, None, None]

    gelu = lambda v: jax.nn.gelu(v, approximate=False)

    residual = x
    if conv_dtype == jnp.bfloat16:
        residual = x.astype(jnp.bfloat16).astype(jnp.float32)

    out = gelu(bn(conv3x3(x, w1), bn1_scale, bn1_bias))
    out = bn(conv3x3(out, w2), bn2_scale, bn2_bias)
    pooled = jnp.mean(out, axis=(1, 3))                    # (N, F): mean over channel & time
    hid = gelu(pooled @ se_w1 + se_b1)
    s = jax.nn.sigmoid(hid @ se_w2 + se_b2)                # (N, F)
    out = out * s[:, None, :, None]
    return gelu(out + residual)


if __name__ == "__main__":
    # batch=2, inplanes=planes=4, frequency(H)=16, time(W)=16, bottleneck=8
    N, C, H, W, B = 2, 4, 16, 16, 8
    key = jax.random.PRNGKey(0)
    kx, kp = jax.random.split(key)
    x = jax.random.normal(kx, (N, C, H, W), jnp.float32)
    params = init_params(kp, C, H, B)

    out = jax.block_until_ready(jax.jit(se_basic_block_forward)(x, params))
    assert out.shape == x.shape, f"bad output shape {out.shape}"

    # check vs a reference that mirrors the kernel's bf16 conv operands and bf16 residual
    ref_bf16 = reference_forward(x, params, conv_dtype=jnp.bfloat16)
    err_bf16 = float(jnp.max(jnp.abs(out - ref_bf16)))
    assert err_bf16 < 2e-2, f"mismatch vs bf16-conv reference: max abs err {err_bf16}"

    # looser check vs exact f32 module semantics (bf16 conv/residual operands bound the gap)
    ref_f32 = reference_forward(x, params, conv_dtype=jnp.float32)
    err_f32 = float(jnp.max(jnp.abs(out - ref_f32)))
    assert err_f32 < 6e-2, f"mismatch vs f32 reference: max abs err {err_f32}"

    print("KERNEL_OK")
</pallas_src>

<mosaic_0001>
module attributes {stable_mosaic.version = 11 : i64} {
  func.func @kernel(%arg0: i32, %arg1: memref<1x352x128xbf16, #tpu.memory_space<vmem>>, %arg2: memref<9x128x128xbf16, #tpu.memory_space<vmem>>, %arg3: memref<9x128x128xbf16, #tpu.memory_space<vmem>>, %arg4: memref<1x128xf32, #tpu.memory_space<vmem>>, %arg5: memref<1x128xf32, #tpu.memory_space<vmem>>, %arg6: memref<1x128xf32, #tpu.memory_space<vmem>>, %arg7: memref<1x128xf32, #tpu.memory_space<vmem>>, %arg8: memref<288x1xf32, #tpu.memory_space<vmem>>, %arg9: memref<16x288xf32, #tpu.memory_space<vmem>>, %arg10: memref<288x16xf32, #tpu.memory_space<vmem>>, %arg11: memref<16x8xf32, #tpu.memory_space<vmem>>, %arg12: memref<1x8xf32, #tpu.memory_space<vmem>>, %arg13: memref<16x8xf32, #tpu.memory_space<vmem>>, %arg14: memref<16x1xf32, #tpu.memory_space<vmem>>, %arg15: memref<1x288x128xf32, #tpu.memory_space<vmem>>, %arg16: memref<352x128xbf16, #tpu.memory_space<vmem>>, %arg17: memref<288x128xf32, #tpu.memory_space<vmem>>) attributes {dimension_semantics = [#tpu.dimension_semantics<parallel>], iteration_bounds = array<i64: 2>, scalar_prefetch = 0 : i64, scratch_operands = 2 : i64, tpu.core_type = #tpu.core_type<tc>, window_params = [{transform_indices = @transform_0, window_bounds = array<i64: 1, 352, 128>}, {pipeline_mode = #tpu.pipeline_mode<synchronous>, transform_indices = @transform_1, window_bounds = array<i64: 9, 128, 128>}, {pipeline_mode = #tpu.pipeline_mode<synchronous>, transform_indices = @transform_2, window_bounds = array<i64: 9, 128, 128>}, {pipeline_mode = #tpu.pipeline_mode<synchronous>, transform_indices = @transform_3, window_bounds = array<i64: 1, 128>}, {pipeline_mode = #tpu.pipeline_mode<synchronous>, transform_indices = @transform_4, window_bounds = array<i64: 1, 128>}, {pipeline_mode = #tpu.pipeline_mode<synchronous>, transform_indices = @transform_5, window_bounds = array<i64: 1, 128>}, {pipeline_mode = #tpu.pipeline_mode<synchronous>, transform_indices = @transform_6, window_bounds = array<i64: 1, 128>}, {pipeline_mode = #tpu.pipeline_mode<synchronous>, transform_indices = @transform_7, window_bounds = array<i64: 288, 1>}, {pipeline_mode = #tpu.pipeline_mode<synchronous>, transform_indices = @transform_8, window_bounds = array<i64: 16, 288>}, {pipeline_mode = #tpu.pipeline_mode<synchronous>, transform_indices = @transform_9, window_bounds = array<i64: 288, 16>}, {pipeline_mode = #tpu.pipeline_mode<synchronous>, transform_indices = @transform_10, window_bounds = array<i64: 16, 8>}, {pipeline_mode = #tpu.pipeline_mode<synchronous>, transform_indices = @transform_11, window_bounds = array<i64: 1, 8>}, {pipeline_mode = #tpu.pipeline_mode<synchronous>, transform_indices = @transform_12, window_bounds = array<i64: 16, 8>}, {pipeline_mode = #tpu.pipeline_mode<synchronous>, transform_indices = @transform_13, window_bounds = array<i64: 16, 1>}, {transform_indices = @transform_14, window_bounds = array<i64: 1, 288, 128>}]} {
    %c0 = arith.constant 0 : index
    %c13 = arith.constant 13 : index
    %c0_0 = arith.constant 0 : index
    %0 = vector.load %arg1[%c0, %c13, %c0_0] : memref<1x352x128xbf16, #tpu.memory_space<vmem>>, vector<1x288x128xbf16>
    %1 = vector.shape_cast %0 : vector<1x288x128xbf16> to vector<288x128xbf16>
    %c0_1 = arith.constant 0 : index
    %c0_2 = arith.constant 0 : index
    %c0_3 = arith.constant 0 : index
    %2 = vector.load %arg2[%c0_1, %c0_2, %c0_3] : memref<9x128x128xbf16, #tpu.memory_space<vmem>>, vector<1x128x128xbf16>
    %3 = vector.shape_cast %2 : vector<1x128x128xbf16> to vector<128x128xbf16>
    %cst = arith.constant dense<0.000000e+00> : vector<288x128xf32>
    %4 = tpu.matmul %1, %3, %cst {dimension_numbers = #tpu.dot_dimension_numbers<[1], [0], [0], [1], [0, 0, 1, 1], [], []>} : vector<288x128xbf16>, vector<128x128xbf16>, vector<288x128xf32> -> vector<288x128xf32>
    %c0_4 = arith.constant 0 : index
    %c14 = arith.constant 14 : index
    %c0_5 = arith.constant 0 : index
    %5 = vector.load %arg1[%c0_4, %c14, %c0_5] : memref<1x352x128xbf16, #tpu.memory_space<vmem>>, vector<1x288x128xbf16>
    %6 = vector.shape_cast %5 : vector<1x288x128xbf16> to vector<288x128xbf16>
    %c1 = arith.constant 1 : index
    %c0_6 = arith.constant 0 : index
    %c0_7 = arith.constant 0 : index
    %7 = vector.load %arg2[%c1, %c0_6, %c0_7] : memref<9x128x128xbf16, #tpu.memory_space<vmem>>, vector<1x128x128xbf16>
    %8 = vector.shape_cast %7 : vector<1x128x128xbf16> to vector<128x128xbf16>
    %cst_8 = arith.constant dense<0.000000e+00> : vector<288x128xf32>
    %9 = tpu.matmul %6, %8, %cst_8 {dimension_numbers = #tpu.dot_dimension_numbers<[1], [0], [0], [1], [0, 0, 1, 1], [], []>} : vector<288x128xbf16>, vector<128x128xbf16>, vector<288x128xf32> -> vector<288x128xf32>
    %10 = arith.addf %4, %9 : vector<288x128xf32>
    %c0_9 = arith.constant 0 : index
    %c15 = arith.constant 15 : index
    %c0_10 = arith.constant 0 : index
    %11 = vector.load %arg1[%c0_9, %c15, %c0_10] : memref<1x352x128xbf16, #tpu.memory_space<vmem>>, vector<1x288x128xbf16>
    %12 = vector.shape_cast %11 : vector<1x288x128xbf16> to vector<288x128xbf16>
    %c2 = arith.constant 2 : index
    %c0_11 = arith.constant 0 : index
    %c0_12 = arith.constant 0 : index
    %13 = vector.load %arg2[%c2, %c0_11, %c0_12] : memref<9x128x128xbf16, #tpu.memory_space<vmem>>, vector<1x128x128xbf16>
    %14 = vector.shape_cast %13 : vector<1x128x128xbf16> to vector<128x128xbf16>
    %cst_13 = arith.constant dense<0.000000e+00> : vector<288x128xf32>
    %15 = tpu.matmul %12, %14, %cst_13 {dimension_numbers = #tpu.dot_dimension_numbers<[1], [0], [0], [1], [0, 0, 1, 1], [], []>} : vector<288x128xbf16>, vector<128x128xbf16>, vector<288x128xf32> -> vector<288x128xf32>
    %16 = arith.addf %10, %15 : vector<288x128xf32>
    %c0_14 = arith.constant 0 : index
    %c31 = arith.constant 31 : index
    %c0_15 = arith.constant 0 : index
    %17 = vector.load %arg1[%c0_14, %c31, %c0_15] : memref<1x352x128xbf16, #tpu.memory_space<vmem>>, vector<1x288x128xbf16>
    %18 = vector.shape_cast %17 : vector<1x288x128xbf16> to vector<288x128xbf16>
    %c3 = arith.constant 3 : index
    %c0_16 = arith.constant 0 : index
    %c0_17 = arith.constant 0 : index
    %19 = vector.load %arg2[%c3, %c0_16, %c0_17] : memref<9x128x128xbf16, #tpu.memory_space<vmem>>, vector<1x128x128xbf16>
    %20 = vector.shape_cast %19 : vector<1x128x128xbf16> to vector<128x128xbf16>
    %cst_18 = arith.constant dense<0.000000e+00> : vector<288x128xf32>
    %21 = tpu.matmul %18, %20, %cst_18 {dimension_numbers = #tpu.dot_dimension_numbers<[1], [0], [0], [1], [0, 0, 1, 1], [], []>} : vector<288x128xbf16>, vector<128x128xbf16>, vector<288x128xf32> -> vector<288x128xf32>
    %22 = arith.addf %16, %21 : vector<288x128xf32>
    %c0_19 = arith.constant 0 : index
    %c32 = arith.constant 32 : index
    %c0_20 = arith.constant 0 : index
    %23 = vector.load %arg1[%c0_19, %c32, %c0_20] : memref<1x352x128xbf16, #tpu.memory_space<vmem>>, vector<1x288x128xbf16>
    %24 = vector.shape_cast %23 : vector<1x288x128xbf16> to vector<288x128xbf16>
    %c4 = arith.constant 4 : index
    %c0_21 = arith.constant 0 : index
    %c0_22 = arith.constant 0 : index
    %25 = vector.load %arg2[%c4, %c0_21, %c0_22] : memref<9x128x128xbf16, #tpu.memory_space<vmem>>, vector<1x128x128xbf16>
    %26 = vector.shape_cast %25 : vector<1x128x128xbf16> to vector<128x128xbf16>
    %cst_23 = arith.constant dense<0.000000e+00> : vector<288x128xf32>
    %27 = tpu.matmul %24, %26, %cst_23 {dimension_numbers = #tpu.dot_dimension_numbers<[1], [0], [0], [1], [0, 0, 1, 1], [], []>} : vector<288x128xbf16>, vector<128x128xbf16>, vector<288x128xf32> -> vector<288x128xf32>
    %28 = arith.addf %22, %27 : vector<288x128xf32>
    %c0_24 = arith.constant 0 : index
    %c33 = arith.constant 33 : index
    %c0_25 = arith.constant 0 : index
    %29 = vector.load %arg1[%c0_24, %c33, %c0_25] : memref<1x352x128xbf16, #tpu.memory_space<vmem>>, vector<1x288x128xbf16>
    %30 = vector.shape_cast %29 : vector<1x288x128xbf16> to vector<288x128xbf16>
    %c5 = arith.constant 5 : index
    %c0_26 = arith.constant 0 : index
    %c0_27 = arith.constant 0 : index
    %31 = vector.load %arg2[%c5, %c0_26, %c0_27] : memref<9x128x128xbf16, #tpu.memory_space<vmem>>, vector<1x128x128xbf16>
    %32 = vector.shape_cast %31 : vector<1x128x128xbf16> to vector<128x128xbf16>
    %cst_28 = arith.constant dense<0.000000e+00> : vector<288x128xf32>
    %33 = tpu.matmul %30, %32, %cst_28 {dimension_numbers = #tpu.dot_dimension_numbers<[1], [0], [0], [1], [0, 0, 1, 1], [], []>} : vector<288x128xbf16>, vector<128x128xbf16>, vector<288x128xf32> -> vector<288x128xf32>
    %34 = arith.addf %28, %33 : vector<288x128xf32>
    %c0_29 = arith.constant 0 : index
    %c49 = arith.constant 49 : index
    %c0_30 = arith.constant 0 : index
    %35 = vector.load %arg1[%c0_29, %c49, %c0_30] : memref<1x352x128xbf16, #tpu.memory_space<vmem>>, vector<1x288x128xbf16>
    %36 = vector.shape_cast %35 : vector<1x288x128xbf16> to vector<288x128xbf16>
    %c6 = arith.constant 6 : index
    %c0_31 = arith.constant 0 : index
    %c0_32 = arith.constant 0 : index
    %37 = vector.load %arg2[%c6, %c0_31, %c0_32] : memref<9x128x128xbf16, #tpu.memory_space<vmem>>, vector<1x128x128xbf16>
    %38 = vector.shape_cast %37 : vector<1x128x128xbf16> to vector<128x128xbf16>
    %cst_33 = arith.constant dense<0.000000e+00> : vector<288x128xf32>
    %39 = tpu.matmul %36, %38, %cst_33 {dimension_numbers = #tpu.dot_dimension_numbers<[1], [0], [0], [1], [0, 0, 1, 1], [], []>} : vector<288x128xbf16>, vector<128x128xbf16>, vector<288x128xf32> -> vector<288x128xf32>
    %40 = arith.addf %34, %39 : vector<288x128xf32>
    %c0_34 = arith.constant 0 : index
    %c50 = arith.constant 50 : index
    %c0_35 = arith.constant 0 : index
    %41 = vector.load %arg1[%c0_34, %c50, %c0_35] : memref<1x352x128xbf16, #tpu.memory_space<vmem>>, vector<1x288x128xbf16>
    %42 = vector.shape_cast %41 : vector<1x288x128xbf16> to vector<288x128xbf16>
    %c7 = arith.constant 7 : index
    %c0_36 = arith.constant 0 : index
    %c0_37 = arith.constant 0 : index
    %43 = vector.load %arg2[%c7, %c0_36, %c0_37] : memref<9x128x128xbf16, #tpu.memory_space<vmem>>, vector<1x128x128xbf16>
    %44 = vector.shape_cast %43 : vector<1x128x128xbf16> to vector<128x128xbf16>
    %cst_38 = arith.constant dense<0.000000e+00> : vector<288x128xf32>
    %45 = tpu.matmul %42, %44, %cst_38 {dimension_numbers = #tpu.dot_dimension_numbers<[1], [0], [0], [1], [0, 0, 1, 1], [], []>} : vector<288x128xbf16>, vector<128x128xbf16>, vector<288x128xf32> -> vector<288x128xf32>
    %46 = arith.addf %40, %45 : vector<288x128xf32>
    %c0_39 = arith.constant 0 : index
    %c51 = arith.constant 51 : index
    %c0_40 = arith.constant 0 : index
    %47 = vector.load %arg1[%c0_39, %c51, %c0_40] : memref<1x352x128xbf16, #tpu.memory_space<vmem>>, vector<1x288x128xbf16>
    %48 = vector.shape_cast %47 : vector<1x288x128xbf16> to vector<288x128xbf16>
    %c8 = arith.constant 8 : index
    %c0_41 = arith.constant 0 : index
    %c0_42 = arith.constant 0 : index
    %49 = vector.load %arg2[%c8, %c0_41, %c0_42] : memref<9x128x128xbf16, #tpu.memory_space<vmem>>, vector<1x128x128xbf16>
    %50 = vector.shape_cast %49 : vector<1x128x128xbf16> to vector<128x128xbf16>
    %cst_43 = arith.constant dense<0.000000e+00> : vector<288x128xf32>
    %51 = tpu.matmul %48, %50, %cst_43 {dimension_numbers = #tpu.dot_dimension_numbers<[1], [0], [0], [1], [0, 0, 1, 1], [], []>} : vector<288x128xbf16>, vector<128x128xbf16>, vector<288x128xf32> -> vector<288x128xf32>
    %52 = arith.addf %46, %51 : vector<288x128xf32>
    %c0_44 = arith.constant 0 : index
    %c0_45 = arith.constant 0 : index
    %53 = vector.load %arg4[%c0_44, %c0_45] : memref<1x128xf32, #tpu.memory_space<vmem>>, vector<1x128xf32>
    %54 = vector.broadcast %53 : vector<1x128xf32> to vector<288x128xf32>
    %55 = arith.mulf %52, %54 : vector<288x128xf32>
    %c0_46 = arith.constant 0 : index
    %c0_47 = arith.constant 0 : index
    %56 = vector.load %arg5[%c0_46, %c0_47] : memref<1x128xf32, #tpu.memory_space<vmem>>, vector<1x128xf32>
    %57 = vector.broadcast %56 : vector<1x128xf32> to vector<288x128xf32>
    %58 = arith.addf %55, %57 : vector<288x128xf32>
    %cst_48 = arith.constant 5.000000e-01 : f32
    %59 = vector.broadcast %cst_48 : f32 to vector<288x128xf32>
    %60 = arith.mulf %59, %58 : vector<288x128xf32>
    %cst_49 = arith.constant 0.707106769 : f32
    %61 = vector.broadcast %cst_49 : f32 to vector<288x128xf32>
    %62 = arith.mulf %58, %61 : vector<288x128xf32>
    %cst_50 = arith.constant 0.000000e+00 : f32
    %63 = vector.broadcast %cst_50 : f32 to vector<288x128xf32>
    %64 = arith.cmpf oge, %62, %63 : vector<288x128xf32>
    %cst_51 = arith.constant 1.000000e+00 : f32
    %cst_52 = arith.constant -1.000000e+00 : f32
    %65 = vector.broadcast %cst_51 : f32 to vector<288x128xf32>
    %66 = vector.broadcast %cst_52 : f32 to vector<288x128xf32>
    %67 = arith.select %64, %65, %66 : vector<288x128xi1>, vector<288x128xf32>
    %68 = math.absf %62 : vector<288x128xf32>
    %cst_53 = arith.constant 0.327591091 : f32
    %69 = vector.broadcast %cst_53 : f32 to vector<288x128xf32>
    %70 = arith.mulf %69, %68 : vector<288x128xf32>
    %cst_54 = arith.constant 1.000000e+00 : f32
    %71 = vector.broadcast %cst_54 : f32 to vector<288x128xf32>
    %72 = arith.addf %71, %70 : vector<288x128xf32>
    %73 = tpu.reciprocal %72 {approx = true} : vector<288x128xf32> -> vector<288x128xf32>
    %cst_55 = arith.constant 1.06140542 : f32
    %74 = vector.broadcast %cst_55 : f32 to vector<288x128xf32>
    %75 = arith.mulf %74, %73 : vector<288x128xf32>
    %cst_56 = arith.constant -1.45315206 : f32
    %76 = vector.broadcast %cst_56 : f32 to vector<288x128xf32>
    %77 = arith.addf %75, %76 : vector<288x128xf32>
    %78 = arith.mulf %77, %73 : vector<288x128xf32>
    %cst_57 = arith.constant 1.42141378 : f32
    %79 = vector.broadcast %cst_57 : f32 to vector<288x128xf32>
    %80 = arith.addf %78, %79 : vector<288x128xf32>
    %81 = arith.mulf %80, %73 : vector<288x128xf32>
    %cst_58 = arith.constant -0.284496725 : f32
    %82 = vector.broadcast %cst_58 : f32 to vector<288x128xf32>
    %83 = arith.addf %81, %82 : vector<288x128xf32>
    %84 = arith.mulf %83, %73 : vector<288x128xf32>
    %cst_59 = arith.constant 0.254829586 : f32
    %85 = vector.broadcast %cst_59 : f32 to vector<288x128xf32>
    %86 = arith.addf %84, %85 : vector<288x128xf32>
    %87 = arith.mulf %86, %73 : vector<288x128xf32>
    %cst_60 = arith.constant 0.000000e+00 : f32
    %88 = vector.broadcast %cst_60 : f32 to vector<288x128xf32>
    %89 = arith.subf %88, %68 : vector<288x128xf32>
    %90 = arith.mulf %89, %68 : vector<288x128xf32>
    %91 = math.exp %90 : vector<288x128xf32>
    %92 = arith.mulf %87, %91 : vector<288x128xf32>
    %cst_61 = arith.constant 1.000000e+00 : f32
    %93 = vector.broadcast %cst_61 : f32 to vector<288x128xf32>
    %94 = arith.subf %93, %92 : vector<288x128xf32>
    %95 = arith.mulf %67, %94 : vector<288x128xf32>
    %cst_62 = arith.constant 1.000000e+00 : f32
    %96 = vector.broadcast %cst_62 : f32 to vector<288x128xf32>
    %97 = arith.addf %96, %95 : vector<288x128xf32>
    %98 = arith.mulf %60, %97 : vector<288x128xf32>
    %c0_63 = arith.constant 0 : index
    %c0_64 = arith.constant 0 : index
    %99 = vector.load %arg8[%c0_63, %c0_64] : memref<288x1xf32, #tpu.memory_space<vmem>>, vector<288x1xf32>
    %100 = vector.broadcast %99 : vector<288x1xf32> to vector<288x128xf32>
    %101 = arith.mulf %98, %100 : vector<288x128xf32>
    %cst_65 = arith.constant 0.000000e+00 : bf16
    %102 = vector.broadcast %cst_65 : bf16 to vector<32x128xbf16>
    %c0_66 = arith.constant 0 : index
    %c0_67 = arith.constant 0 : index
    %103 = vector.load %arg16[%c0_66, %c0_67] : memref<352x128xbf16, #tpu.memory_space<vmem>>, vector<32x128xbf16>
    tpu.vector_store %arg16[%c0_66, %c0_67], %102 {strides = array<i32>} : memref<352x128xbf16, #tpu.memory_space<vmem>>, vector<32x128xbf16>,
    %cst_68 = arith.constant 0.000000e+00 : bf16
    %104 = vector.broadcast %cst_68 : bf16 to vector<32x128xbf16>
    %c320 = arith.constant 320 : index
    %c0_69 = arith.constant 0 : index
    %105 = vector.load %arg16[%c320, %c0_69] : memref<352x128xbf16, #tpu.memory_space<vmem>>, vector<32x128xbf16>
    tpu.vector_store %arg16[%c320, %c0_69], %104 {strides = array<i32>} : memref<352x128xbf16, #tpu.memory_space<vmem>>, vector<32x128xbf16>,
    %106 = arith.truncf %101 : vector<288x128xf32> to vector<288x128xbf16>
    %c32_70 = arith.constant 32 : index
    %c0_71 = arith.constant 0 : index
    %107 = vector.load %arg16[%c32_70, %c0_71] : memref<352x128xbf16, #tpu.memory_space<vmem>>, vector<288x128xbf16>
    tpu.vector_store %arg16[%c32_70, %c0_71], %106 {strides = array<i32>} : memref<352x128xbf16, #tpu.memory_space<vmem>>, vector<288x128xbf16>,
    %c13_72 = arith.constant 13 : index
    %c0_73 = arith.constant 0 : index
    %108 = vector.load %arg16[%c13_72, %c0_73] : memref<352x128xbf16, #tpu.memory_space<vmem>>, vector<288x128xbf16>
    %c0_74 = arith.constant 0 : index
    %c0_75 = arith.constant 0 : index
    %c0_76 = arith.constant 0 : index
    %109 = vector.load %arg3[%c0_74, %c0_75, %c0_76] : memref<9x128x128xbf16, #tpu.memory_space<vmem>>, vector<1x128x128xbf16>
    %110 = vector.shape_cast %109 : vector<1x128x128xbf16> to vector<128x128xbf16>
    %cst_77 = arith.constant dense<0.000000e+00> : vector<288x128xf32>
    %111 = tpu.matmul %108, %110, %cst_77 {dimension_numbers = #tpu.dot_dimension_numbers<[1], [0], [0], [1], [0, 0, 1, 1], [], []>} : vector<288x128xbf16>, vector<128x128xbf16>, vector<288x128xf32> -> vector<288x128xf32>
    %c14_78 = arith.constant 14 : index
    %c0_79 = arith.constant 0 : index
    %112 = vector.load %arg16[%c14_78, %c0_79] : memref<352x128xbf16, #tpu.memory_space<vmem>>, vector<288x128xbf16>
    %c1_80 = arith.constant 1 : index
    %c0_81 = arith.constant 0 : index
    %c0_82 = arith.constant 0 : index
    %113 = vector.load %arg3[%c1_80, %c0_81, %c0_82] : memref<9x128x128xbf16, #tpu.memory_space<vmem>>, vector<1x128x128xbf16>
    %114 = vector.shape_cast %113 : vector<1x128x128xbf16> to vector<128x128xbf16>
    %cst_83 = arith.constant dense<0.000000e+00> : vector<288x128xf32>
    %115 = tpu.matmul %112, %114, %cst_83 {dimension_numbers = #tpu.dot_dimension_numbers<[1], [0], [0], [1], [0, 0, 1, 1], [], []>} : vector<288x128xbf16>, vector<128x128xbf16>, vector<288x128xf32> -> vector<288x128xf32>
    %116 = arith.addf %111, %115 : vector<288x128xf32>
    %c15_84 = arith.constant 15 : index
    %c0_85 = arith.constant 0 : index
    %117 = vector.load %arg16[%c15_84, %c0_85] : memref<352x128xbf16, #tpu.memory_space<vmem>>, vector<288x128xbf16>
    %c2_86 = arith.constant 2 : index
    %c0_87 = arith.constant 0 : index
    %c0_88 = arith.constant 0 : index
    %118 = vector.load %arg3[%c2_86, %c0_87, %c0_88] : memref<9x128x128xbf16, #tpu.memory_space<vmem>>, vector<1x128x128xbf16>
    %119 = vector.shape_cast %118 : vector<1x128x128xbf16> to vector<128x128xbf16>
    %cst_89 = arith.constant dense<0.000000e+00> : vector<288x128xf32>
    %120 = tpu.matmul %117, %119, %cst_89 {dimension_numbers = #tpu.dot_dimension_numbers<[1], [0], [0], [1], [0, 0, 1, 1], [], []>} : vector<288x128xbf16>, vector<128x128xbf16>, vector<288x128xf32> -> vector<288x128xf32>
    %121 = arith.addf %116, %120 : vector<288x128xf32>
    %c31_90 = arith.constant 31 : index
    %c0_91 = arith.constant 0 : index
    %122 = vector.load %arg16[%c31_90, %c0_91] : memref<352x128xbf16, #tpu.memory_space<vmem>>, vector<288x128xbf16>
    %c3_92 = arith.constant 3 : index
    %c0_93 = arith.constant 0 : index
    %c0_94 = arith.constant 0 : index
    %123 = vector.load %arg3[%c3_92, %c0_93, %c0_94] : memref<9x128x128xbf16, #tpu.memory_space<vmem>>, vector<1x128x128xbf16>
    %124 = vector.shape_cast %123 : vector<1x128x128xbf16> to vector<128x128xbf16>
    %cst_95 = arith.constant dense<0.000000e+00> : vector<288x128xf32>
    %125 = tpu.matmul %122, %124, %cst_95 {dimension_numbers = #tpu.dot_dimension_numbers<[1], [0], [0], [1], [0, 0, 1, 1], [], []>} : vector<288x128xbf16>, vector<128x128xbf16>, vector<288x128xf32> -> vector<288x128xf32>
    %126 = arith.addf %121, %125 : vector<288x128xf32>
    %c32_96 = arith.constant 32 : index
    %c0_97 = arith.constant 0 : index
    %127 = vector.load %arg16[%c32_96, %c0_97] : memref<352x128xbf16, #tpu.memory_space<vmem>>, vector<288x128xbf16>
    %c4_98 = arith.constant 4 : index
    %c0_99 = arith.constant 0 : index
    %c0_100 = arith.constant 0 : index
    %128 = vector.load %arg3[%c4_98, %c0_99, %c0_100] : memref<9x128x128xbf16, #tpu.memory_space<vmem>>, vector<1x128x128xbf16>
    %129 = vector.shape_cast %128 : vector<1x128x128xbf16> to vector<128x128xbf16>
    %cst_101 = arith.constant dense<0.000000e+00> : vector<288x128xf32>
    %130 = tpu.matmul %127, %129, %cst_101 {dimension_numbers = #tpu.dot_dimension_numbers<[1], [0], [0], [1], [0, 0, 1, 1], [], []>} : vector<288x128xbf16>, vector<128x128xbf16>, vector<288x128xf32> -> vector<288x128xf32>
    %131 = arith.addf %126, %130 : vector<288x128xf32>
    %c33_102 = arith.constant 33 : index
    %c0_103 = arith.constant 0 : index
    %132 = vector.load %arg16[%c33_102, %c0_103] : memref<352x128xbf16, #tpu.memory_space<vmem>>, vector<288x128xbf16>
    %c5_104 = arith.constant 5 : index
    %c0_105 = arith.constant 0 : index
    %c0_106 = arith.constant 0 : index
    %133 = vector.load %arg3[%c5_104, %c0_105, %c0_106] : memref<9x128x128xbf16, #tpu.memory_space<vmem>>, vector<1x128x128xbf16>
    %134 = vector.shape_cast %133 : vector<1x128x128xbf16> to vector<128x128xbf16>
    %cst_107 = arith.constant dense<0.000000e+00> : vector<288x128xf32>
    %135 = tpu.matmul %132, %134, %cst_107 {dimension_numbers = #tpu.dot_dimension_numbers<[1], [0], [0], [1], [0, 0, 1, 1], [], []>} : vector<288x128xbf16>, vector<128x128xbf16>, vector<288x128xf32> -> vector<288x128xf32>
    %136 = arith.addf %131, %135 : vector<288x128xf32>
    %c49_108 = arith.constant 49 : index
    %c0_109 = arith.constant 0 : index
    %137 = vector.load %arg16[%c49_108, %c0_109] : memref<352x128xbf16, #tpu.memory_space<vmem>>, vector<288x128xbf16>
    %c6_110 = arith.constant 6 : index
    %c0_111 = arith.constant 0 : index
    %c0_112 = arith.constant 0 : index
    %138 = vector.load %arg3[%c6_110, %c0_111, %c0_112] : memref<9x128x128xbf16, #tpu.memory_space<vmem>>, vector<1x128x128xbf16>
    %139 = vector.shape_cast %138 : vector<1x128x128xbf16> to vector<128x128xbf16>
    %cst_113 = arith.constant dense<0.000000e+00> : vector<288x128xf32>
    %140 = tpu.matmul %137, %139, %cst_113 {dimension_numbers = #tpu.dot_dimension_numbers<[1], [0], [0], [1], [0, 0, 1, 1], [], []>} : vector<288x128xbf16>, vector<128x128xbf16>, vector<288x128xf32> -> vector<288x128xf32>
    %141 = arith.addf %136, %140 : vector<288x128xf32>
    %c50_114 = arith.constant 50 : index
    %c0_115 = arith.constant 0 : index
    %142 = vector.load %arg16[%c50_114, %c0_115] : memref<352x128xbf16, #tpu.memory_space<vmem>>, vector<288x128xbf16>
    %c7_116 = arith.constant 7 : index
    %c0_117 = arith.constant 0 : index
    %c0_118 = arith.constant 0 : index
    %143 = vector.load %arg3[%c7_116, %c0_117, %c0_118] : memref<9x128x128xbf16, #tpu.memory_space<vmem>>, vector<1x128x128xbf16>
    %144 = vector.shape_cast %143 : vector<1x128x128xbf16> to vector<128x128xbf16>
    %cst_119 = arith.constant dense<0.000000e+00> : vector<288x128xf32>
    %145 = tpu.matmul %142, %144, %cst_119 {dimension_numbers = #tpu.dot_dimension_numbers<[1], [0], [0], [1], [0, 0, 1, 1], [], []>} : vector<288x128xbf16>, vector<128x128xbf16>, vector<288x128xf32> -> vector<288x128xf32>
    %146 = arith.addf %141, %145 : vector<288x128xf32>
    %c51_120 = arith.constant 51 : index
    %c0_121 = arith.constant 0 : index
    %147 = vector.load %arg16[%c51_120, %c0_121] : memref<352x128xbf16, #tpu.memory_space<vmem>>, vector<288x128xbf16>
    %c8_122 = arith.constant 8 : index
    %c0_123 = arith.constant 0 : index
    %c0_124 = arith.constant 0 : index
    %148 = vector.load %arg3[%c8_122, %c0_123, %c0_124] : memref<9x128x128xbf16, #tpu.memory_space<vmem>>, vector<1x128x128xbf16>
    %149 = vector.shape_cast %148 : vector<1x128x128xbf16> to vector<128x128xbf16>
    %cst_125 = arith.constant dense<0.000000e+00> : vector<288x128xf32>
    %150 = tpu.matmul %147, %149, %cst_125 {dimension_numbers = #tpu.dot_dimension_numbers<[1], [0], [0], [1], [0, 0, 1, 1], [], []>} : vector<288x128xbf16>, vector<128x128xbf16>, vector<288x128xf32> -> vector<288x128xf32>
    %151 = arith.addf %146, %150 : vector<288x128xf32>
    %c0_126 = arith.constant 0 : index
    %c0_127 = arith.constant 0 : index
    %152 = vector.load %arg6[%c0_126, %c0_127] : memref<1x128xf32, #tpu.memory_space<vmem>>, vector<1x128xf32>
    %153 = vector.broadcast %152 : vector<1x128xf32> to vector<288x128xf32>
    %154 = arith.mulf %151, %153 : vector<288x128xf32>
    %c0_128 = arith.constant 0 : index
    %c0_129 = arith.constant 0 : index
    %155 = vector.load %arg7[%c0_128, %c0_129] : memref<1x128xf32, #tpu.memory_space<vmem>>, vector<1x128xf32>
    %156 = vector.broadcast %155 : vector<1x128xf32> to vector<288x128xf32>
    %157 = arith.addf %154, %156 : vector<288x128xf32>
    %c0_130 = arith.constant 0 : index
    %c0_131 = arith.constant 0 : index
    %158 = vector.load %arg17[%c0_130, %c0_131] : memref<288x128xf32, #tpu.memory_space<vmem>>, vector<288x128xf32>
    tpu.vector_store %arg17[%c0_130, %c0_131], %157 {strides = array<i32>} : memref<288x128xf32, #tpu.memory_space<vmem>>, vector<288x128xf32>,
    %c0_132 = arith.constant 0 : index
    %c0_133 = arith.constant 0 : index
    %159 = vector.load %arg9[%c0_132, %c0_133] : memref<16x288xf32, #tpu.memory_space<vmem>>, vector<16x288xf32>
    %c0_134 = arith.constant 0 : index
    %c0_135 = arith.constant 0 : index
    %160 = vector.load %arg17[%c0_134, %c0_135] : memref<288x128xf32, #tpu.memory_space<vmem>>, vector<288x128xf32>
    %cst_136 = arith.constant dense<0.000000e+00> : vector<16x128xf32>
    %161 = tpu.matmul %159, %160, %cst_136 {dimension_numbers = #tpu.dot_dimension_numbers<[1], [0], [0], [1], [0, 0, 1, 1], [], []>} : vector<16x288xf32>, vector<288x128xf32>, vector<16x128xf32> -> vector<16x128xf32>
    %cst_137 = arith.constant dense<0.000000e+00> : vector<16xf32>
    %162 = vector.multi_reduction <add>, %161, %cst_137 [1] : vector<16x128xf32> to vector<16xf32>
    %163 = vector.shape_cast %162 : vector<16xf32> to vector<16x1xf32>
    %cst_138 = arith.constant 1.562500e-02 : f32
    %164 = vector.broadcast %cst_138 : f32 to vector<16x1xf32>
    %165 = arith.mulf %163, %164 : vector<16x1xf32>
    %c0_139 = arith.constant 0 : index
    %c0_140 = arith.constant 0 : index
    %166 = vector.load %arg11[%c0_139, %c0_140] : memref<16x8xf32, #tpu.memory_space<vmem>>, vector<16x8xf32>
    %167 = vector.broadcast %165 : vector<16x1xf32> to vector<16x8xf32>
    %168 = arith.mulf %166, %167 : vector<16x8xf32>
    %cst_141 = arith.constant dense<0.000000e+00> : vector<8xf32>
    %169 = vector.multi_reduction <add>, %168, %cst_141 [0] : vector<16x8xf32> to vector<8xf32>
    %170 = vector.shape_cast %169 : vector<8xf32> to vector<1x8xf32>
    %c0_142 = arith.constant 0 : index
    %c0_143 = arith.constant 0 : index
    %171 = vector.load %arg12[%c0_142, %c0_143] : memref<1x8xf32, #tpu.memory_space<vmem>>, vector<1x8xf32>
    %172 = arith.addf %170, %171 : vector<1x8xf32>
    %cst_144 = arith.constant 5.000000e-01 : f32
    %173 = vector.broadcast %cst_144 : f32 to vector<1x8xf32>
    %174 = arith.mulf %173, %172 : vector<1x8xf32>
    %cst_145 = arith.constant 0.707106769 : f32
    %175 = vector.broadcast %cst_145 : f32 to vector<1x8xf32>
    %176 = arith.mulf %172, %175 : vector<1x8xf32>
    %cst_146 = arith.constant 0.000000e+00 : f32
    %177 = vector.broadcast %cst_146 : f32 to vector<1x8xf32>
    %178 = arith.cmpf oge, %176, %177 : vector<1x8xf32>
    %cst_147 = arith.constant 1.000000e+00 : f32
    %cst_148 = arith.constant -1.000000e+00 : f32
    %179 = vector.broadcast %cst_147 : f32 to vector<1x8xf32>
    %180 = vector.broadcast %cst_148 : f32 to vector<1x8xf32>
    %181 = arith.select %178, %179, %180 : vector<1x8xi1>, vector<1x8xf32>
    %182 = math.absf %176 : vector<1x8xf32>
    %cst_149 = arith.constant 0.327591091 : f32
    %183 = vector.broadcast %cst_149 : f32 to vector<1x8xf32>
    %184 = arith.mulf %183, %182 : vector<1x8xf32>
    %cst_150 = arith.constant 1.000000e+00 : f32
    %185 = vector.broadcast %cst_150 : f32 to vector<1x8xf32>
    %186 = arith.addf %185, %184 : vector<1x8xf32>
    %187 = tpu.reciprocal %186 {approx = true} : vector<1x8xf32> -> vector<1x8xf32>
    %cst_151 = arith.constant 1.06140542 : f32
    %188 = vector.broadcast %cst_151 : f32 to vector<1x8xf32>
    %189 = arith.mulf %188, %187 : vector<1x8xf32>
    %cst_152 = arith.constant -1.45315206 : f32
    %190 = vector.broadcast %cst_152 : f32 to vector<1x8xf32>
    %191 = arith.addf %189, %190 : vector<1x8xf32>
    %192 = arith.mulf %191, %187 : vector<1x8xf32>
    %cst_153 = arith.constant 1.42141378 : f32
    %193 = vector.broadcast %cst_153 : f32 to vector<1x8xf32>
    %194 = arith.addf %192, %193 : vector<1x8xf32>
    %195 = arith.mulf %194, %187 : vector<1x8xf32>
    %cst_154 = arith.constant -0.284496725 : f32
    %196 = vector.broadcast %cst_154 : f32 to vector<1x8xf32>
    %197 = arith.addf %195, %196 : vector<1x8xf32>
    %198 = arith.mulf %197, %187 : vector<1x8xf32>
    %cst_155 = arith.constant 0.254829586 : f32
    %199 = vector.broadcast %cst_155 : f32 to vector<1x8xf32>
    %200 = arith.addf %198, %199 : vector<1x8xf32>
    %201 = arith.mulf %200, %187 : vector<1x8xf32>
    %cst_156 = arith.constant 0.000000e+00 : f32
    %202 = vector.broadcast %cst_156 : f32 to vector<1x8xf32>
    %203 = arith.subf %202, %182 : vector<1x8xf32>
    %204 = arith.mulf %203, %182 : vector<1x8xf32>
    %205 = math.exp %204 : vector<1x8xf32>
    %206 = arith.mulf %201, %205 : vector<1x8xf32>
    %cst_157 = arith.constant 1.000000e+00 : f32
    %207 = vector.broadcast %cst_157 : f32 to vector<1x8xf32>
    %208 = arith.subf %207, %206 : vector<1x8xf32>
    %209 = arith.mulf %181, %208 : vector<1x8xf32>
    %cst_158 = arith.constant 1.000000e+00 : f32
    %210 = vector.broadcast %cst_158 : f32 to vector<1x8xf32>
    %211 = arith.addf %210, %209 : vector<1x8xf32>
    %212 = arith.mulf %174, %211 : vector<1x8xf32>
    %c0_159 = arith.constant 0 : index
    %c0_160 = arith.constant 0 : index
    %213 = vector.load %arg13[%c0_159, %c0_160] : memref<16x8xf32, #tpu.memory_space<vmem>>, vector<16x8xf32>
    %214 = vector.broadcast %212 : vector<1x8xf32> to vector<16x8xf32>
    %215 = arith.mulf %213, %214 : vector<16x8xf32>
    %cst_161 = arith.constant dense<0.000000e+00> : vector<16xf32>
    %216 = vector.multi_reduction <add>, %215, %cst_161 [1] : vector<16x8xf32> to vector<16xf32>
    %217 = vector.shape_cast %216 : vector<16xf32> to vector<16x1xf32>
    %c0_162 = arith.constant 0 : index
    %c0_163 = arith.constant 0 : index
    %218 = vector.load %arg14[%c0_162, %c0_163] : memref<16x1xf32, #tpu.memory_space<vmem>>, vector<16x1xf32>
    %219 = arith.addf %217, %218 : vector<16x1xf32>
    %cst_164 = arith.constant 0.000000e+00 : f32
    %220 = vector.broadcast %cst_164 : f32 to vector<16x1xf32>
    %221 = arith.subf %220, %219 : vector<16x1xf32>
    %222 = math.exp %221 : vector<16x1xf32>
    %cst_165 = arith.constant 1.000000e+00 : f32
    %223 = vector.broadcast %cst_165 : f32 to vector<16x1xf32>
    %224 = arith.addf %223, %222 : vector<16x1xf32>
    %225 = tpu.reciprocal %224 {approx = true} : vector<16x1xf32> -> vector<16x1xf32>
    %c0_166 = arith.constant 0 : index
    %c0_167 = arith.constant 0 : index
    %226 = vector.load %arg10[%c0_166, %c0_167] : memref<288x16xf32, #tpu.memory_space<vmem>>, vector<288x16xf32>
    %227 = vector.shape_cast %225 : vector<16x1xf32> to vector<16x1xf32>
    %228 = vector.broadcast %227 : vector<16x1xf32> to vector<16x128xf32>
    %cst_168 = arith.constant dense<0.000000e+00> : vector<288x128xf32>
    %229 = tpu.matmul %226, %228, %cst_168 {dimension_numbers = #tpu.dot_dimension_numbers<[1], [0], [0], [1], [0, 0, 1, 1], [], []>} : vector<288x16xf32>, vector<16x128xf32>, vector<288x128xf32> -> vector<288x128xf32>
    %c0_169 = arith.constant 0 : index
    %c32_170 = arith.constant 32 : index
    %c0_171 = arith.constant 0 : index
    %230 = vector.load %arg1[%c0_169, %c32_170, %c0_171] : memref<1x352x128xbf16, #tpu.memory_space<vmem>>, vector<1x288x128xbf16>
    %231 = vector.shape_cast %230 : vector<1x288x128xbf16> to vector<288x128xbf16>
    %232 = arith.extf %231 : vector<288x128xbf16> to vector<288x128xf32>
    %c0_172 = arith.constant 0 : index
    %c0_173 = arith.constant 0 : index
    %233 = vector.load %arg17[%c0_172, %c0_173] : memref<288x128xf32, #tpu.memory_space<vmem>>, vector<288x128xf32>
    %234 = arith.mulf %233, %229 : vector<288x128xf32>
    %235 = arith.addf %234, %232 : vector<288x128xf32>
    %cst_174 = arith.constant 5.000000e-01 : f32
    %236 = vector.broadcast %cst_174 : f32 to vector<288x128xf32>
    %237 = arith.mulf %236, %235 : vector<288x128xf32>
    %cst_175 = arith.constant 0.707106769 : f32
    %238 = vector.broadcast %cst_175 : f32 to vector<288x128xf32>
    %239 = arith.mulf %235, %238 : vector<288x128xf32>
    %cst_176 = arith.constant 0.000000e+00 : f32
    %240 = vector.broadcast %cst_176 : f32 to vector<288x128xf32>
    %241 = arith.cmpf oge, %239, %240 : vector<288x128xf32>
    %cst_177 = arith.constant 1.000000e+00 : f32
    %cst_178 = arith.constant -1.000000e+00 : f32
    %242 = vector.broadcast %cst_177 : f32 to vector<288x128xf32>
    %243 = vector.broadcast %cst_178 : f32 to vector<288x128xf32>
    %244 = arith.select %241, %242, %243 : vector<288x128xi1>, vector<288x128xf32>
    %245 = math.absf %239 : vector<288x128xf32>
    %cst_179 = arith.constant 0.327591091 : f32
    %246 = vector.broadcast %cst_179 : f32 to vector<288x128xf32>
    %247 = arith.mulf %246, %245 : vector<288x128xf32>
    %cst_180 = arith.constant 1.000000e+00 : f32
    %248 = vector.broadcast %cst_180 : f32 to vector<288x128xf32>
    %249 = arith.addf %248, %247 : vector<288x128xf32>
    %250 = tpu.reciprocal %249 {approx = true} : vector<288x128xf32> -> vector<288x128xf32>
    %cst_181 = arith.constant 1.06140542 : f32
    %251 = vector.broadcast %cst_181 : f32 to vector<288x128xf32>
    %252 = arith.mulf %251, %250 : vector<288x128xf32>
    %cst_182 = arith.constant -1.45315206 : f32
    %253 = vector.broadcast %cst_182 : f32 to vector<288x128xf32>
    %254 = arith.addf %252, %253 : vector<288x128xf32>
    %255 = arith.mulf %254, %250 : vector<288x128xf32>
    %cst_183 = arith.constant 1.42141378 : f32
    %256 = vector.broadcast %cst_183 : f32 to vector<288x128xf32>
    %257 = arith.addf %255, %256 : vector<288x128xf32>
    %258 = arith.mulf %257, %250 : vector<288x128xf32>
    %cst_184 = arith.constant -0.284496725 : f32
    %259 = vector.broadcast %cst_184 : f32 to vector<288x128xf32>
    %260 = arith.addf %258, %259 : vector<288x128xf32>
    %261 = arith.mulf %260, %250 : vector<288x128xf32>
    %cst_185 = arith.constant 0.254829586 : f32
    %262 = vector.broadcast %cst_185 : f32 to vector<288x128xf32>
    %263 = arith.addf %261, %262 : vector<288x128xf32>
    %264 = arith.mulf %263, %250 : vector<288x128xf32>
    %cst_186 = arith.constant 0.000000e+00 : f32
    %265 = vector.broadcast %cst_186 : f32 to vector<288x128xf32>
    %266 = arith.subf %265, %245 : vector<288x128xf32>
    %267 = arith.mulf %266, %245 : vector<288x128xf32>
    %268 = math.exp %267 : vector<288x128xf32>
    %269 = arith.mulf %264, %268 : vector<288x128xf32>
    %cst_187 = arith.constant 1.000000e+00 : f32
    %270 = vector.broadcast %cst_187 : f32 to vector<288x128xf32>
    %271 = arith.subf %270, %269 : vector<288x128xf32>
    %272 = arith.mulf %244, %271 : vector<288x128xf32>
    %cst_188 = arith.constant 1.000000e+00 : f32
    %273 = vector.broadcast %cst_188 : f32 to vector<288x128xf32>
    %274 = arith.addf %273, %272 : vector<288x128xf32>
    %275 = arith.mulf %237, %274 : vector<288x128xf32>
    %c0_189 = arith.constant 0 : index
    %c0_190 = arith.constant 0 : index
    %c0_191 = arith.constant 0 : index
    %276 = vector.load %arg15[%c0_189, %c0_190, %c0_191] : memref<1x288x128xf32, #tpu.memory_space<vmem>>, vector<1x288x128xf32>
    %277 = vector.shape_cast %276 : vector<1x288x128xf32> to vector<288x128xf32>
    %278 = vector.shape_cast %275 : vector<288x128xf32> to vector<1x288x128xf32>
    tpu.vector_store %arg15[%c0_189, %c0_190, %c0_191], %278 {strides = array<i32>} : memref<1x288x128xf32, #tpu.memory_space<vmem>>, vector<1x288x128xf32>,
    return
  }
  func.func @transform_0(%arg0: i32) -> (i32, i32, i32) {
    %c0_i32 = arith.constant 0 : i32
    %c0_i32_0 = arith.constant 0 : i32
    %c0_i32_1 = arith.constant 0 : i32
    return %arg0, %c0_i32, %c0_i32_0 : i32, i32, i32
  }
  func.func @transform_1(%arg0: i32) -> (i32, i32, i32) {
    %c0_i32 = arith.constant 0 : i32
    %c0_i32_0 = arith.constant 0 : i32
    %c0_i32_1 = arith.constant 0 : i32
    %c0_i32_2 = arith.constant 0 : i32
    return %c0_i32, %c0_i32_0, %c0_i32_1 : i32, i32, i32
  }
  func.func @transform_2(%arg0: i32) -> (i32, i32, i32) {
    %c0_i32 = arith.constant 0 : i32
    %c0_i32_0 = arith.constant 0 : i32
    %c0_i32_1 = arith.constant 0 : i32
    %c0_i32_2 = arith.constant 0 : i32
    return %c0_i32, %c0_i32_0, %c0_i32_1 : i32, i32, i32
  }
  func.func @transform_3(%arg0: i32) -> (i32, i32) {
    %c0_i32 = arith.constant 0 : i32
    %c0_i32_0 = arith.constant 0 : i32
    %c0_i32_1 = arith.constant 0 : i32
    return %c0_i32, %c0_i32_0 : i32, i32
  }
  func.func @transform_4(%arg0: i32) -> (i32, i32) {
    %c0_i32 = arith.constant 0 : i32
    %c0_i32_0 = arith.constant 0 : i32
    %c0_i32_1 = arith.constant 0 : i32
    return %c0_i32, %c0_i32_0 : i32, i32
  }
  func.func @transform_5(%arg0: i32) -> (i32, i32) {
    %c0_i32 = arith.constant 0 : i32
    %c0_i32_0 = arith.constant 0 : i32
    %c0_i32_1 = arith.constant 0 : i32
    return %c0_i32, %c0_i32_0 : i32, i32
  }
  func.func @transform_6(%arg0: i32) -> (i32, i32) {
    %c0_i32 = arith.constant 0 : i32
    %c0_i32_0 = arith.constant 0 : i32
    %c0_i32_1 = arith.constant 0 : i32
    return %c0_i32, %c0_i32_0 : i32, i32
  }
  func.func @transform_7(%arg0: i32) -> (i32, i32) {
    %c0_i32 = arith.constant 0 : i32
    %c0_i32_0 = arith.constant 0 : i32
    %c0_i32_1 = arith.constant 0 : i32
    return %c0_i32, %c0_i32_0 : i32, i32
  }
  func.func @transform_8(%arg0: i32) -> (i32, i32) {
    %c0_i32 = arith.constant 0 : i32
    %c0_i32_0 = arith.constant 0 : i32
    %c0_i32_1 = arith.constant 0 : i32
    return %c0_i32, %c0_i32_0 : i32, i32
  }
  func.func @transform_9(%arg0: i32) -> (i32, i32) {
    %c0_i32 = arith.constant 0 : i32
    %c0_i32_0 = arith.constant 0 : i32
    %c0_i32_1 = arith.constant 0 : i32
    return %c0_i32, %c0_i32_0 : i32, i32
  }
  func.func @transform_10(%arg0: i32) -> (i32, i32) {
    %c0_i32 = arith.constant 0 : i32
    %c0_i32_0 = arith.constant 0 : i32
    %c0_i32_1 = arith.constant 0 : i32
    return %c0_i32, %c0_i32_0 : i32, i32
  }
  func.func @transform_11(%arg0: i32) -> (i32, i32) {
    %c0_i32 = arith.constant 0 : i32
    %c0_i32_0 = arith.constant 0 : i32
    %c0_i32_1 = arith.constant 0 : i32
    return %c0_i32, %c0_i32_0 : i32, i32
  }
  func.func @transform_12(%arg0: i32) -> (i32, i32) {
    %c0_i32 = arith.constant 0 : i32
    %c0_i32_0 = arith.constant 0 : i32
    %c0_i32_1 = arith.constant 0 : i32
    return %c0_i32, %c0_i32_0 : i32, i32
  }
  func.func @transform_13(%arg0: i32) -> (i32, i32) {
    %c0_i32 = arith.constant 0 : i32
    %c0_i32_0 = arith.constant 0 : i32
    %c0_i32_1 = arith.constant 0 : i32
    return %c0_i32, %c0_i32_0 : i32, i32
  }
  func.func @transform_14(%arg0: i32) -> (i32, i32, i32) {
    %c0_i32 = arith.constant 0 : i32
    %c0_i32_0 = arith.constant 0 : i32
    %c0_i32_1 = arith.constant 0 : i32
    return %arg0, %c0_i32, %c0_i32_0 : i32, i32, i32
  }
}

</mosaic_0001>

<llo_original>
// kernel: se_basic_block_forward.1
$region0: #{se_basic_block_forward.1}
  #allocation0 [shape = 'u32[]', space=smem, size = 0x4, offset = 0x4, fixed_abs, tag = 'smem constant byte address 0x4 - core index']
  #allocation1 [shape = 'u32[144,128]{1,0:T(1,128)}', space=vmem, size = 0x12000, scoped, tag = 'internal scratch']
  #allocation2 [shape = 'bf16[352,128]{1,0:T(8,128)(2,1)}', space=vmem, size = 0x16000, scoped, tag = 'scratch operand']
  #allocation3 [shape = 'f32[288,128]{1,0:T(8,128)}', space=vmem, size = 0x24000, scoped, tag = 'scratch operand']
  %s0 = inlined_call_operand.vmem [shape: bf16[2,352,128], index: 0, kind: input, shape index: {}]
  %s1 = inlined_call_operand.vmem [shape: bf16[9,128,128], index: 1, kind: input, shape index: {}]
  %s2 = inlined_call_operand.vmem [shape: bf16[9,128,128], index: 2, kind: input, shape index: {}]
  %s3 = inlined_call_operand.vmem [shape: f32[1,128], index: 3, kind: input, shape index: {}]
  %s4 = inlined_call_operand.vmem [shape: f32[1,128], index: 4, kind: input, shape index: {}]
  %s5 = inlined_call_operand.vmem [shape: f32[1,128], index: 5, kind: input, shape index: {}]
  %s6 = inlined_call_operand.vmem [shape: f32[1,128], index: 6, kind: input, shape index: {}]
  %s7 = inlined_call_operand.vmem [shape: f32[288,1], index: 7, kind: input, shape index: {}]
  %s8 = inlined_call_operand.vmem [shape: f32[16,288], index: 8, kind: input, shape index: {}]
  %s9 = inlined_call_operand.vmem [shape: f32[288,16], index: 9, kind: input, shape index: {}]
  %s10 = inlined_call_operand.vmem [shape: f32[16,8], index: 10, kind: input, shape index: {}]
  %s11 = inlined_call_operand.vmem [shape: f32[1,8], index: 11, kind: input, shape index: {}]
  %s12 = inlined_call_operand.vmem [shape: f32[16,8], index: 12, kind: input, shape index: {}]
  %s13 = inlined_call_operand.vmem [shape: f32[16,1], index: 13, kind: input, shape index: {}]
  %s14 = inlined_call_operand.vmem [shape: f32[2,288,128], index: 14, kind: output, shape index: {}]
  %s15 = sld [smem:[#allocation0]]
  $region89: #{se_basic_block_forward.1} parent=0
    _
  %s17 = ssub.s32 1, %s15
  %s18 = scalar_select 0, %s17, %s15
  loop: start=0, step=1, limit=4
  $region2: #{se_basic_block_forward.1} parent=0 // loop_pre_header
    _
  $region3: #{se_basic_block_forward.1} parent=0 // loop_header
    %s20 = sphi 0, %s24
    %p21 = scmp.ge.s32.totalorder %s20, 4
    %s30 = sphi 0, %s32
    %s33 = sphi 0, %s30
    %s34 = sphi 0, %s33
    %s50 = sphi 0, %s34
    %s54 = sphi 0, %s54
    %s56 = sphi 0, %s54
    %s57 = sphi 0, %s56
    %s71 = sphi 0, %s57
    %s75 = sphi 0, %s75
    %s77 = sphi 0, %s75
    %s78 = sphi 0, %s77
    %s92 = sphi 0, %s78
    %s96 = sphi 0, %s96
    %s98 = sphi 0, %s96
    %s99 = sphi 0, %s98
    %s113 = sphi 0, %s99
    %s117 = sphi 0, %s117
    %s119 = sphi 0, %s117
    %s120 = sphi 0, %s119
    %s134 = sphi 0, %s120
    %s138 = sphi 0, %s138
    %s140 = sphi 0, %s138
    %s141 = sphi 0, %s140
    %s155 = sphi 0, %s141
    %s159 = sphi 0, %s159
    %s161 = sphi 0, %s159
    %s162 = sphi 0, %s161
    %s176 = sphi 0, %s162
    %s180 = sphi 0, %s180
    %s182 = sphi 0, %s180
    %s183 = sphi 0, %s182
    %s197 = sphi 0, %s183
    %s201 = sphi 0, %s201
    %s203 = sphi 0, %s201
    %s204 = sphi 0, %s203
    %s218 = sphi 0, %s204
    %s222 = sphi 0, %s222
    %s224 = sphi 0, %s222
    %s225 = sphi 0, %s224
    %s239 = sphi 0, %s225
    %s243 = sphi 0, %s243
    %s245 = sphi 0, %s243
    %s246 = sphi 0, %s245
    %s260 = sphi 0, %s246
    %s264 = sphi 0, %s264
    %s266 = sphi 0, %s264
    %s267 = sphi 0, %s266
    %s281 = sphi 0, %s267
    %s285 = sphi 0, %s285
    %s287 = sphi 0, %s285
    %s288 = sphi 0, %s287
    %s302 = sphi 0, %s288
    %s306 = sphi 0, %s306
    %s308 = sphi 0, %s306
    %s309 = sphi 0, %s308
    %s323 = sphi 0, %s309
    %s329 = sphi 0, %s331
    %s332 = sphi 0, %s329
    %s333 = sphi 0, %s332
    %s349 = sphi 0, %s333
  $region4: #{se_basic_block_forward.1} parent=0 // loop_header_branch
    %23 = sbr.rel (%p21) target = $region8
  $region5: #{se_basic_block_forward.1} parent=0 // loop_body
    %s25 = ssub.s32 %s20, 1
    %s26 = ssub.s32 %s20, 2
    %s27 = sadd.s32 %s20, 1
    %s28 = ssub.s32 %s20, %s27
    %p29 = scmp.eq.s32.totalorder %s28, 0
    %s31 = sadd.s32 %s30, 1
    %s32 = scalar_select %p29, %s30, %s31
    %p35 = pneg %p29
    %p36 = scmp.eq.s32.totalorder %s20, 1
    %p37 = por %p35, %p36
    %p38 = scmp.ne.s32.totalorder %s30, %s33
    %p39 = scmp.eq.s32.totalorder %s20, 0
    %p40 = por %p38, %p39
    %p41 = scmp.ne.s32.totalorder %s30, %s33
    %p42 = scmp.eq.s32.totalorder %s25, 1
    %p43 = por %p41, %p42
    %p44 = scmp.ne.s32.totalorder %s33, %s34
    %p45 = scmp.eq.s32.totalorder %s25, 0
    %p46 = por %p44, %p45
    %p47 = scmp.ne.s32.totalorder %s33, %s34
    %p48 = scmp.eq.s32.totalorder %s26, 1
    %p49 = por %p47, %p48
    %p51 = scmp.ne.s32.totalorder %s34, %s50
    %p52 = scmp.eq.s32.totalorder %s26, 0
    %p53 = por %p51, %p52
    %s55 = sadd.s32 %s54, 1
    %p58 = scmp.eq.s32.totalorder %s20, 1
    %p59 = scmp.ne.s32.totalorder %s54, %s56
    %p60 = scmp.eq.s32.totalorder %s20, 0
    %p61 = por %p59, %p60
    %p62 = scmp.ne.s32.totalorder %s54, %s56
    %p63 = scmp.eq.s32.totalorder %s25, 1
    %p64 = por %p62, %p63
    %p65 = scmp.ne.s32.totalorder %s56, %s57
    %p66 = scmp.eq.s32.totalorder %s25, 0
    %p67 = por %p65, %p66
    %p68 = scmp.ne.s32.totalorder %s56, %s57
    %p69 = scmp.eq.s32.totalorder %s26, 1
    %p70 = por %p68, %p69
    %p72 = scmp.ne.s32.totalorder %s57, %s71
    %p73 = scmp.eq.s32.totalorder %s26, 0
    %p74 = por %p72, %p73
    %s76 = sadd.s32 %s75, 1
    %p79 = scmp.eq.s32.totalorder %s20, 1
    %p80 = scmp.ne.s32.totalorder %s75, %s77
    %p81 = scmp.eq.s32.totalorder %s20, 0
    %p82 = por %p80, %p81
    %p83 = scmp.ne.s32.totalorder %s75, %s77
    %p84 = scmp.eq.s32.totalorder %s25, 1
    %p85 = por %p83, %p84
    %p86 = scmp.ne.s32.totalorder %s77, %s78
    %p87 = scmp.eq.s32.totalorder %s25, 0
    %p88 = por %p86, %p87
    %p89 = scmp.ne.s32.totalorder %s77, %s78
    %p90 = scmp.eq.s32.totalorder %s26, 1
    %p91 = por %p89, %p90
    %p93 = scmp.ne.s32.totalorder %s78, %s92
    %p94 = scmp.eq.s32.totalorder %s26, 0
    %p95 = por %p93, %p94
    %s97 = sadd.s32 %s96, 1
    %p100 = scmp.eq.s32.totalorder %s20, 1
    %p101 = scmp.ne.s32.totalorder %s96, %s98
    %p102 = scmp.eq.s32.totalorder %s20, 0
    %p103 = por %p101, %p102
    %p104 = scmp.ne.s32.totalorder %s96, %s98
    %p105 = scmp.eq.s32.totalorder %s25, 1
    %p106 = por %p104, %p105
    %p107 = scmp.ne.s32.totalorder %s98, %s99
    %p108 = scmp.eq.s32.totalorder %s25, 0
    %p109 = por %p107, %p108
    %p110 = scmp.ne.s32.totalorder %s98, %s99
    %p111 = scmp.eq.s32.totalorder %s26, 1
    %p112 = por %p110, %p111
    %p114 = scmp.ne.s32.totalorder %s99, %s113
    %p115 = scmp.eq.s32.totalorder %s26, 0
    %p116 = por %p114, %p115
    %s118 = sadd.s32 %s117, 1
    %p121 = scmp.eq.s32.totalorder %s20, 1
    %p122 = scmp.ne.s32.totalorder %s117, %s119
    %p123 = scmp.eq.s32.totalorder %s20, 0
    %p124 = por %p122, %p123
    %p125 = scmp.ne.s32.totalorder %s117, %s119
    %p126 = scmp.eq.s32.totalorder %s25, 1
    %p127 = por %p125, %p126
    %p128 = scmp.ne.s32.totalorder %s119, %s120
    %p129 = scmp.eq.s32.totalorder %s25, 0
    %p130 = por %p128, %p129
    %p131 = scmp.ne.s32.totalorder %s119, %s120
    %p132 = scmp.eq.s32.totalorder %s26, 1
    %p133 = por %p131, %p132
    %p135 = scmp.ne.s32.totalorder %s120, %s134
    %p136 = scmp.eq.s32.totalorder %s26, 0
    %p137 = por %p135, %p136
    %s139 = sadd.s32 %s138, 1
    %p142 = scmp.eq.s32.totalorder %s20, 1
    %p143 = scmp.ne.s32.totalorder %s138, %s140
    %p144 = scmp.eq.s32.totalorder %s20, 0
    %p145 = por %p143, %p144
    %p146 = scmp.ne.s32.totalorder %s138, %s140
    %p147 = scmp.eq.s32.totalorder %s25, 1
    %p148 = por %p146, %p147
    %p149 = scmp.ne.s32.totalorder %s140, %s141
    %p150 = scmp.eq.s32.totalorder %s25, 0
    %p151 = por %p149, %p150
    %p152 = scmp.ne.s32.totalorder %s140, %s141
    %p153 = scmp.eq.s32.totalorder %s26, 1
    %p154 = por %p152, %p153
    %p156 = scmp.ne.s32.totalorder %s141, %s155
    %p157 = scmp.eq.s32.totalorder %s26, 0
    %p158 = por %p156, %p157
    %s160 = sadd.s32 %s159, 1
    %p163 = scmp.eq.s32.totalorder %s20, 1
    %p164 = scmp.ne.s32.totalorder %s159, %s161
    %p165 = scmp.eq.s32.totalorder %s20, 0
    %p166 = por %p164, %p165
    %p167 = scmp.ne.s32.totalorder %s159, %s161
    %p168 = scmp.eq.s32.totalorder %s25, 1
    %p169 = por %p167, %p168
    %p170 = scmp.ne.s32.totalorder %s161, %s162
    %p171 = scmp.eq.s32.totalorder %s25, 0
    %p172 = por %p170, %p171
    %p173 = scmp.ne.s32.totalorder %s161, %s162
    %p174 = scmp.eq.s32.totalorder %s26, 1
    %p175 = por %p173, %p174
    %p177 = scmp.ne.s32.totalorder %s162, %s176
    %p178 = scmp.eq.s32.totalorder %s26, 0
    %p179 = por %p177, %p178
    %s181 = sadd.s32 %s180, 1
    %p184 = scmp.eq.s32.totalorder %s20, 1
    %p185 = scmp.ne.s32.totalorder %s180, %s182
    %p186 = scmp.eq.s32.totalorder %s20, 0
    %p187 = por %p185, %p186
    %p188 = scmp.ne.s32.totalorder %s180, %s182
    %p189 = scmp.eq.s32.totalorder %s25, 1
    %p190 = por %p188, %p189
    %p191 = scmp.ne.s32.totalorder %s182, %s183
    %p192 = scmp.eq.s32.totalorder %s25, 0
    %p193 = por %p191, %p192
    %p194 = scmp.ne.s32.totalorder %s182, %s183
    %p195 = scmp.eq.s32.totalorder %s26, 1
    %p196 = por %p194, %p195
    %p198 = scmp.ne.s32.totalorder %s183, %s197
    %p199 = scmp.eq.s32.totalorder %s26, 0
    %p200 = por %p198, %p199
    %s202 = sadd.s32 %s201, 1
    %p205 = scmp.eq.s32.totalorder %s20, 1
    %p206 = scmp.ne.s32.totalorder %s201, %s203
    %p207 = scmp.eq.s32.totalorder %s20, 0
    %p208 = por %p206, %p207
    %p209 = scmp.ne.s32.totalorder %s201, %s203
    %p210 = scmp.eq.s32.totalorder %s25, 1
    %p211 = por %p209, %p210
    %p212 = scmp.ne.s32.totalorder %s203, %s204
    %p213 = scmp.eq.s32.totalorder %s25, 0
    %p214 = por %p212, %p213
    %p215 = scmp.ne.s32.totalorder %s203, %s204
    %p216 = scmp.eq.s32.totalorder %s26, 1
    %p217 = por %p215, %p216
    %p219 = scmp.ne.s32.totalorder %s204, %s218
    %p220 = scmp.eq.s32.totalorder %s26, 0
    %p221 = por %p219, %p220
    %s223 = sadd.s32 %s222, 1
    %p226 = scmp.eq.s32.totalorder %s20, 1
    %p227 = scmp.ne.s32.totalorder %s222, %s224
    %p228 = scmp.eq.s32.totalorder %s20, 0
    %p229 = por %p227, %p228
    %p230 = scmp.ne.s32.totalorder %s222, %s224
    %p231 = scmp.eq.s32.totalorder %s25, 1
    %p232 = por %p230, %p231
    %p233 = scmp.ne.s32.totalorder %s224, %s225
    %p234 = scmp.eq.s32.totalorder %s25, 0
    %p235 = por %p233, %p234
    %p236 = scmp.ne.s32.totalorder %s224, %s225
    %p237 = scmp.eq.s32.totalorder %s26, 1
    %p238 = por %p236, %p237
    %p240 = scmp.ne.s32.totalorder %s225, %s239
    %p241 = scmp.eq.s32.totalorder %s26, 0
    %p242 = por %p240, %p241
    %s244 = sadd.s32 %s243, 1
    %p247 = scmp.eq.s32.totalorder %s20, 1
    %p248 = scmp.ne.s32.totalorder %s243, %s245
    %p249 = scmp.eq.s32.totalorder %s20, 0
    %p250 = por %p248, %p249
    %p251 = scmp.ne.s32.totalorder %s243, %s245
    %p252 = scmp.eq.s32.totalorder %s25, 1
    %p253 = por %p251, %p252
    %p254 = scmp.ne.s32.totalorder %s245, %s246
    %p255 = scmp.eq.s32.totalorder %s25, 0
    %p256 = por %p254, %p255
    %p257 = scmp.ne.s32.totalorder %s245, %s246
    %p258 = scmp.eq.s32.totalorder %s26, 1
    %p259 = por %p257, %p258
    %p261 = scmp.ne.s32.totalorder %s246, %s260
    %p262 = scmp.eq.s32.totalorder %s26, 0
    %p263 = por %p261, %p262
    %s265 = sadd.s32 %s264, 1
    %p268 = scmp.eq.s32.totalorder %s20, 1
    %p269 = scmp.ne.s32.totalorder %s264, %s266
    %p270 = scmp.eq.s32.totalorder %s20, 0
    %p271 = por %p269, %p270
    %p272 = scmp.ne.s32.totalorder %s264, %s266
    %p273 = scmp.eq.s32.totalorder %s25, 1
    %p274 = por %p272, %p273
    %p275 = scmp.ne.s32.totalorder %s266, %s267
    %p276 = scmp.eq.s32.totalorder %s25, 0
    %p277 = por %p275, %p276
    %p278 = scmp.ne.s32.totalorder %s266, %s267
    %p279 = scmp.eq.s32.totalorder %s26, 1
    %p280 = por %p278, %p279
    %p282 = scmp.ne.s32.totalorder %s267, %s281
    %p283 = scmp.eq.s32.totalorder %s26, 0
    %p284 = por %p282, %p283
    %s286 = sadd.s32 %s285, 1
    %p289 = scmp.eq.s32.totalorder %s20, 1
    %p290 = scmp.ne.s32.totalorder %s285, %s287
    %p291 = scmp.eq.s32.totalorder %s20, 0
    %p292 = por %p290, %p291
    %p293 = scmp.ne.s32.totalorder %s285, %s287
    %p294 = scmp.eq.s32.totalorder %s25, 1
    %p295 = por %p293, %p294
    %p296 = scmp.ne.s32.totalorder %s287, %s288
    %p297 = scmp.eq.s32.totalorder %s25, 0
    %p298 = por %p296, %p297
    %p299 = scmp.ne.s32.totalorder %s287, %s288
    %p300 = scmp.eq.s32.totalorder %s26, 1
    %p301 = por %p299, %p300
    %p303 = scmp.ne.s32.totalorder %s288, %s302
    %p304 = scmp.eq.s32.totalorder %s26, 0
    %p305 = por %p303, %p304
    %s307 = sadd.s32 %s306, 1
    %p310 = scmp.eq.s32.totalorder %s20, 1
    %p311 = scmp.ne.s32.totalorder %s306, %s308
    %p312 = scmp.eq.s32.totalorder %s20, 0
    %p313 = por %p311, %p312
    %p314 = scmp.ne.s32.totalorder %s306, %s308
    %p315 = scmp.eq.s32.totalorder %s25, 1
    %p316 = por %p314, %p315
    %p317 = scmp.ne.s32.totalorder %s308, %s309
    %p318 = scmp.eq.s32.totalorder %s25, 0
    %p319 = por %p317, %p318
    %p320 = scmp.ne.s32.totalorder %s308, %s309
    %p321 = scmp.eq.s32.totalorder %s26, 1
    %p322 = por %p320, %p321
    %p324 = scmp.ne.s32.totalorder %s309, %s323
    %p325 = scmp.eq.s32.totalorder %s26, 0
    %p326 = por %p324, %p325
    %s327 = ssub.s32 %s20, %s27
    %p328 = scmp.eq.s32.totalorder %s327, 0
    %s330 = sadd.s32 %s329, 1
    %s331 = scalar_select %p328, %s329, %s330
    %p334 = pneg %p328
    %p335 = scmp.eq.s32.totalorder %s20, 1
    %p336 = por %p334, %p335
    %p337 = scmp.ne.s32.totalorder %s329, %s332
    %p338 = scmp.eq.s32.totalorder %s20, 0
    %p339 = por %p337, %p338
    %p340 = scmp.ne.s32.totalorder %s329, %s332
    %p341 = scmp.eq.s32.totalorder %s25, 1
    %p342 = por %p340, %p341
    %p343 = scmp.ne.s32.totalorder %s332, %s333
    %p344 = scmp.eq.s32.totalorder %s25, 0
    %p345 = por %p343, %p344
    %p346 = scmp.ne.s32.totalorder %s332, %s333
    %p347 = scmp.eq.s32.totalorder %s26, 1
    %p348 = por %p346, %p347
    %p350 = scmp.ne.s32.totalorder %s333, %s349
    %p351 = scmp.eq.s32.totalorder %s26, 0
    %p352 = por %p350, %p351
    %p353 = scmp.le.s32.totalorder 1, %s20
    %p354 = scmp.lt.s32.totalorder %s20, 3
    %p355 = pnand %p353, %p354
    %p356 = pneg %p355
    // Predicated region
    $region9: #{se_basic_block_forward.1} parent=5 // pred_check
      _
    $region10: #{se_basic_block_forward.1} parent=5 // pred_check_branch
      %358 = sbr.rel (%p355) target = $region12
    $region11: #{se_basic_block_forward.1} parent=5 // pred_region
      %s359 = ssub.s32 %s20, 1
      // Predicated region
      $region13: #{se_basic_block_forward.1} parent=11 // pred_check
        %p360 = pneg %p67
      $region14: #{se_basic_block_forward.1} parent=11 // pred_check_branch
        %362 = sbr.rel (%p360) target = $region16
      $region15: #{se_basic_block_forward.1} parent=11 // pred_region
        _
      $region16: #{se_basic_block_forward.1} parent=11 // pred_fallthru
        _
      // Predicated region
      $region17: #{se_basic_block_forward.1} parent=11 // pred_check
        %p363 = pneg %p88
      $region18: #{se_basic_block_forward.1} parent=11 // pred_check_branch
        %365 = sbr.rel (%p363) target = $region20
      $region19: #{se_basic_block_forward.1} parent=11 // pred_region
        _
      $region20: #{se_basic_block_forward.1} parent=11 // pred_fallthru
        _
      // Predicated region
      $region21: #{se_basic_block_forward.1} parent=11 // pred_check
        %p366 = pneg %p109
      $region22: #{se_basic_block_forward.1} parent=11 // pred_check_branch
        %368 = sbr.rel (%p366) target = $region24
      $region23: #{se_basic_block_forward.1} parent=11 // pred_region
        _
      $region24: #{se_basic_block_forward.1} parent=11 // pred_fallthru
        _
      // Predicated region
      $region25: #{se_basic_block_forward.1} parent=11 // pred_check
        %p369 = pneg %p130
      $region26: #{se_basic_block_forward.1} parent=11 // pred_check_branch
        %371 = sbr.rel (%p369) target = $region28
      $region27: #{se_basic_block_forward.1} parent=11 // pred_region
        _
      $region28: #{se_basic_block_forward.1} parent=11 // pred_fallthru
        _
      // Predicated region
      $region29: #{se_basic_block_forward.1} parent=11 // pred_check
        %p372 = pneg %p151
      $region30: #{se_basic_block_forward.1} parent=11 // pred_check_branch
        %374 = sbr.rel (%p372) target = $region32
      $region31: #{se_basic_block_forward.1} parent=11 // pred_region
        _
      $region32: #{se_basic_block_forward.1} parent=11 // pred_fallthru
        _
      // Predicated region
      $region33: #{se_basic_block_forward.1} parent=11 // pred_check
        %p375 = pneg %p172
      $region34: #{se_basic_block_forward.1} parent=11 // pred_check_branch
        %377 = sbr.rel (%p375) target = $region36
      $region35: #{se_basic_block_forward.1} parent=11 // pred_region
        _
      $region36: #{se_basic_block_forward.1} parent=11 // pred_fallthru
        _
      // Predicated region
      $region37: #{se_basic_block_forward.1} parent=11 // pred_check
        %p378 = pneg %p193
      $region38: #{se_basic_block_forward.1} parent=11 // pred_check_branch
        %380 = sbr.rel (%p378) target = $region40
      $region39: #{se_basic_block_forward.1} parent=11 // pred_region
        _
      $region40: #{se_basic_block_forward.1} parent=11 // pred_fallthru
        _
      // Predicated region
      $region41: #{se_basic_block_forward.1} parent=11 // pred_check
        %p381 = pneg %p214
      $region42: #{se_basic_block_forward.1} parent=11 // pred_check_branch
        %383 = sbr.rel (%p381) target = $region44
      $region43: #{se_basic_block_forward.1} parent=11 // pred_region
        _
      $region44: #{se_basic_block_forward.1} parent=11 // pred_fallthru
        _
      // Predicated region
      $region45: #{se_basic_block_forward.1} parent=11 // pred_check
        %p384 = pneg %p235
      $region46: #{se_basic_block_forward.1} parent=11 // pred_check_branch
        %386 = sbr.rel (%p384) target = $region48
      $region47: #{se_basic_block_forward.1} parent=11 // pred_region
        _
      $region48: #{se_basic_block_forward.1} parent=11 // pred_fallthru
        _
      // Predicated region
      $region49: #{se_basic_block_forward.1} parent=11 // pred_check
        %p387 = pneg %p256
      $region50: #{se_basic_block_forward.1} parent=11 // pred_check_branch
        %389 = sbr.rel (%p387) target = $region52
      $region51: #{se_basic_block_forward.1} parent=11 // pred_region
        _
      $region52: #{se_basic_block_forward.1} parent=11 // pred_fallthru
        _
      // Predicated region
      $region53: #{se_basic_block_forward.1} parent=11 // pred_check
        %p390 = pneg %p277
      $region54: #{se_basic_block_forward.1} parent=11 // pred_check_branch
        %392 = sbr.rel (%p390) target = $region56
      $region55: #{se_basic_block_forward.1} parent=11 // pred_region
        _
      $region56: #{se_basic_block_forward.1} parent=11 // pred_fallthru
        _
      // Predicated region
      $region57: #{se_basic_block_forward.1} parent=11 // pred_check
        %p393 = pneg %p298
      $region58: #{se_basic_block_forward.1} parent=11 // pred_check_branch
        %395 = sbr.rel (%p393) target = $region60
      $region59: #{se_basic_block_forward.1} parent=11 // pred_region
        _
      $region60: #{se_basic_block_forward.1} parent=11 // pred_fallthru
        _
      // Predicated region
      $region61: #{se_basic_block_forward.1} parent=11 // pred_check
        %p396 = pneg %p319
      $region62: #{se_basic_block_forward.1} parent=11 // pred_check_branch
        %398 = sbr.rel (%p396) target = $region64
      $region63: #{se_basic_block_forward.1} parent=11 // pred_region
        _
      $region64: #{se_basic_block_forward.1} parent=11 // pred_fallthru
        _
    $region12: #{se_basic_block_forward.1} parent=5 // pred_fallthru
      _
    %p399 = scmp.lt.s32.totalorder %s20, 2
    // Predicated region
    $region65: #{se_basic_block_forward.1} parent=5 // pred_check
      %p400 = pneg %p399
    $region66: #{se_basic_block_forward.1} parent=5 // pred_check_branch
      %402 = sbr.rel (%p400) target = $region68
    $region67: #{se_basic_block_forward.1} parent=5 // pred_region
      // Predicated region
      $region69: #{se_basic_block_forward.1} parent=67 // pred_check
        %p403 = pneg %p40
      $region70: #{se_basic_block_forward.1} parent=67 // pred_check_branch
        %405 = sbr.rel (%p403) target = $region72
      $region71: #{se_basic_block_forward.1} parent=67 // pred_region
        %p406 = scmp.lt.s32.totalorder %s20, 1
        %s407 = scalar_select %p406, %s20, 1
        %s408 = smul.addr %s407, 44
        %s409 = smul.addr %s408, 4
        %s410 = scalar_lea.vmem %s0, %s409
      $region72: #{se_basic_block_forward.1} parent=67 // pred_fallthru
        _
    $region68: #{se_basic_block_forward.1} parent=5 // pred_fallthru
      _
    %p411 = scmp.le.s32.totalorder 1, %s20
    %p412 = scmp.lt.s32.totalorder %s20, 3
    %p413 = pnand %p411, %p412
    %p414 = pneg %p413
    // Predicated region
    $region73: #{se_basic_block_forward.1} parent=5 // pred_check
      _
    $region74: #{se_basic_block_forward.1} parent=5 // pred_check_branch
      %416 = sbr.rel (%p413) target = $region76
    $region75: #{se_basic_block_forward.1} parent=5 // pred_region
      %s417 = ssub.s32 %s20, 1
      %p418 = scmp.lt.s32.totalorder %s25, 1
      %s419 = scalar_select %p418, %s25, 1
      %s420 = smul.addr %s419, 44
      %s421 = smul.addr %s420, 4
      %s422 = scalar_lea.vmem %s0, %s421
      %p423 = pneg %p46
      %p424 = pneg %p43
      %p425 = pneg %p67
      %p426 = pneg %p64
      %p427 = pneg %p88
      %p428 = pneg %p85
      %p429 = pneg %p109
      %p430 = pneg %p106
      %p431 = pneg %p130
      %p432 = pneg %p127
      %p433 = pneg %p151
      %p434 = pneg %p148
      %p435 = pneg %p172
      %p436 = pneg %p169
      %p437 = pneg %p193
      %p438 = pneg %p190
      %p439 = pneg %p214
      %p440 = pneg %p211
      %p441 = pneg %p235
      %p442 = pneg %p232
      %p443 = pneg %p256
      %p444 = pneg %p253
      %p445 = pneg %p277
      %p446 = pneg %p274
      %p447 = pneg %p298
      %p448 = pneg %p295
      %p449 = pneg %p319
      %p450 = pneg %p316
      %p451 = pneg %p345
      %p452 = pneg %p342
      %p453 = scmp.lt.s32.totalorder %s25, 1
      %s454 = scalar_select %p453, %s25, 1
      %s455 = smul.addr %s454, 36
      %s456 = smul.addr %s455, 8
      %s457 = scalar_lea.vmem %s14, %s456
      %p458 = scmp.lt.s32.totalorder %s25, 1
      %s459 = scalar_select %p458, %s25, 1
      %s460 = smul.addr %s459, 44
      %s461 = smul.addr %s460, 4
      %s462 = scalar_lea.vmem %s0, %s461
      %p463 = scmp.lt.s32.totalorder %s25, 1
      %s464 = scalar_select %p463, %s25, 1
      %s465 = smul.addr %s464, 36
      %s466 = smul.addr %s465, 8
      %s467 = scalar_lea.vmem %s14, %s466
      %v469 = vld [vmem:[%s462 + $0x4] sm:$0xc]
      %v470 = vld [vmem:[%s462 + $0x8] sm:$0xf]
      %v471 = vld [vmem:[%s462 + $0xc] sm:$0xf]
      %v472 = vld [vmem:[%s462 + $0x10] sm:$0xf]
      %v473 = vld [vmem:[%s462 + $0x14] sm:$0xf]
      %v474 = vld [vmem:[%s462 + $0x18] sm:$0xf]
      %v475 = vld [vmem:[%s462 + $0x1c] sm:$0xf]
      %v476 = vld [vmem:[%s462 + $0x20] sm:$0xf]
      %v477 = vld [vmem:[%s462 + $0x24] sm:$0xf]
      %v478 = vld [vmem:[%s462 + $0x28] sm:$0xf]
      %v479 = vld [vmem:[%s462 + $0x2c] sm:$0xf]
      %v480 = vld [vmem:[%s462 + $0x30] sm:$0xf]
      %v481 = vld [vmem:[%s462 + $0x34] sm:$0xf]
      %v482 = vld [vmem:[%s462 + $0x38] sm:$0xf]
      %v483 = vld [vmem:[%s462 + $0x3c] sm:$0xf]
      %v484 = vld [vmem:[%s462 + $0x40] sm:$0xf]
      %v485 = vld [vmem:[%s462 + $0x44] sm:$0xf]
      %v486 = vld [vmem:[%s462 + $0x48] sm:$0xf]
      %v487 = vld [vmem:[%s462 + $0x4c] sm:$0xf]
      %v488 = vld [vmem:[%s462 + $0x50] sm:$0xf]
      %v489 = vld [vmem:[%s462 + $0x54] sm:$0xf]
      %v490 = vld [vmem:[%s462 + $0x58] sm:$0xf]
      %v491 = vld [vmem:[%s462 + $0x5c] sm:$0xf]
      %v492 = vld [vmem:[%s462 + $0x60] sm:$0xf]
      %v493 = vld [vmem:[%s462 + $0x64] sm:$0xf]
      %v494 = vld [vmem:[%s462 + $0x68] sm:$0xf]
      %v495 = vld [vmem:[%s462 + $0x6c] sm:$0xf]
      %v496 = vld [vmem:[%s462 + $0x70] sm:$0xf]
      %v497 = vld [vmem:[%s462 + $0x74] sm:$0xf]
      %v498 = vld [vmem:[%s462 + $0x78] sm:$0xf]
      %v499 = vld [vmem:[%s462 + $0x7c] sm:$0xf]
      %v500 = vld [vmem:[%s462 + $0x80] sm:$0xf]
      %v501 = vld [vmem:[%s462 + $0x84] sm:$0xf]
      %v502 = vld [vmem:[%s462 + $0x88] sm:$0xf]
      %v503 = vld [vmem:[%s462 + $0x8c] sm:$0xf]
      %v504 = vld [vmem:[%s462 + $0x90] sm:$0xf]
      %v505 = vld [vmem:[%s462 + $0x94] sm:$0x7]
      %v506 = vld [vmem:[%s1] sm:$0xf]
      %v507 = vld [vmem:[%s1 + $0x4] sm:$0xf]
      %v508 = vld [vmem:[%s1 + $0x8] sm:$0xf]
      %v509 = vld [vmem:[%s1 + $0xc] sm:$0xf]
      %v510 = vld [vmem:[%s1 + $0x10] sm:$0xf]
      %v511 = vld [vmem:[%s1 + $0x14] sm:$0xf]
      %v512 = vld [vmem:[%s1 + $0x18] sm:$0xf]
      %v513 = vld [vmem:[%s1 + $0x1c] sm:$0xf]
      %v514 = vld [vmem:[%s1 + $0x20] sm:$0xf]
      %v515 = vld [vmem:[%s1 + $0x24] sm:$0xf]
      %v516 = vld [vmem:[%s1 + $0x28] sm:$0xf]
      %v517 = vld [vmem:[%s1 + $0x2c] sm:$0xf]
      %v518 = vld [vmem:[%s1 + $0x30] sm:$0xf]
      %v519 = vld [vmem:[%s1 + $0x34] sm:$0xf]
      %v520 = vld [vmem:[%s1 + $0x38] sm:$0xf]
      %v521 = vld [vmem:[%s1 + $0x3c] sm:$0xf]
      %v522 = vld [vmem:[%s462 + $0x4] sm:$0x8]
      %s523 = scalar_lea.vmem %s1, 64
      %v524 = vld [vmem:[%s523] sm:$0xf]
      %v525 = vld [vmem:[%s523 + $0x4] sm:$0xf]
      %v526 = vld [vmem:[%s523 + $0x8] sm:$0xf]
      %v527 = vld [vmem:[%s523 + $0xc] sm:$0xf]
      %v528 = vld [vmem:[%s523 + $0x10] sm:$0xf]
      %v529 = vld [vmem:[%s523 + $0x14] sm:$0xf]
      %v530 = vld [vmem:[%s523 + $0x18] sm:$0xf]
      %v531 = vld [vmem:[%s523 + $0x1c] sm:$0xf]
      %v532 = vld [vmem:[%s523 + $0x20] sm:$0xf]
      %v533 = vld [vmem:[%s523 + $0x24] sm:$0xf]
      %v534 = vld [vmem:[%s523 + $0x28] sm:$0xf]
      %v535 = vld [vmem:[%s523 + $0x2c] sm:$0xf]
      %v536 = vld [vmem:[%s523 + $0x30] sm:$0xf]
      %v537 = vld [vmem:[%s523 + $0x34] sm:$0xf]
      %v538 = vld [vmem:[%s523 + $0x38] sm:$0xf]
      %v539 = vld [vmem:[%s523 + $0x3c] sm:$0xf]
      %v577 = vunpack.c.l.b16 %v522
      %v578 = vunpack.c.l.b16 %v470
      %v579 = vunpack.c.l.b16 %v471
      %v580 = vunpack.c.l.b16 %v472
      %v581 = vunpack.c.l.b16 %v473
      %v582 = vunpack.c.l.b16 %v474
      %v583 = vunpack.c.l.b16 %v475
      %v584 = vunpack.c.l.b16 %v476
      %v585 = vunpack.c.l.b16 %v477
      %v586 = vunpack.c.l.b16 %v478
      %v587 = vunpack.c.l.b16 %v479
      %v588 = vunpack.c.l.b16 %v480
      %v589 = vunpack.c.l.b16 %v481
      %v590 = vunpack.c.l.b16 %v482
      %v591 = vunpack.c.l.b16 %v483
      %v592 = vunpack.c.l.b16 %v484
      %v593 = vunpack.c.l.b16 %v485
      %v594 = vunpack.c.l.b16 %v486
      %v595 = vunpack.c.l.b16 %v487
      %v596 = vunpack.c.l.b16 %v488
      %v597 = vunpack.c.l.b16 %v489
      %v598 = vunpack.c.l.b16 %v490
      %v599 = vunpack.c.l.b16 %v491
      %v600 = vunpack.c.l.b16 %v492
      %v601 = vunpack.c.l.b16 %v493
      %v602 = vunpack.c.l.b16 %v494
      %v603 = vunpack.c.l.b16 %v495
      %v604 = vunpack.c.l.b16 %v496
      %v605 = vunpack.c.l.b16 %v497
      %v606 = vunpack.c.l.b16 %v498
      %v607 = vunpack.c.l.b16 %v499
      %v608 = vunpack.c.l.b16 %v500
      %v609 = vunpack.c.l.b16 %v501
      %v610 = vunpack.c.l.b16 %v502
      %v611 = vunpack.c.l.b16 %v503
      %v612 = vunpack.c.l.b16 %v504
      %v613 = vunpack.c.l.b16 %v505
      %v614 = vpack.c.b16 %v578, %v577
      %v615 = vpack.c.b16 %v580, %v579
      %v616 = vpack.c.b16 %v582, %v581
      %v617 = vpack.c.b16 %v584, %v583
      %v618 = vpack.c.b16 %v586, %v585
      %v619 = vpack.c.b16 %v588, %v587
      %v620 = vpack.c.b16 %v590, %v589
      %v621 = vpack.c.b16 %v592, %v591
      %v622 = vpack.c.b16 %v594, %v593
      %v623 = vpack.c.b16 %v596, %v595
      %v624 = vpack.c.b16 %v598, %v597
      %v625 = vpack.c.b16 %v600, %v599
      %v626 = vpack.c.b16 %v602, %v601
      %v627 = vpack.c.b16 %v604, %v603
      %v628 = vpack.c.b16 %v606, %v605
      %v629 = vpack.c.b16 %v608, %v607
      %v630 = vpack.c.b16 %v610, %v609
      %v631 = vpack.c.b16 %v612, %v611
      %v632 = vpack.c.b16 %v613, %v613
      %vm633 = vcmask 1044480
      %v634 = vrot.slane %v614, 3
      %v635 = vrot.slane %v615, 3
      %v636 = vsel %vm633, %v634, %v635
      %v637 = vrot.slane %v616, 3
      %v638 = vsel %vm633, %v635, %v637
      %v639 = vrot.slane %v617, 3
      %v640 = vsel %vm633, %v637, %v639
      %v641 = vrot.slane %v618, 3
      %v642 = vsel %vm633, %v639, %v641
      %v643 = vrot.slane %v619, 3
      %v644 = vsel %vm633, %v641, %v643
      %v645 = vrot.slane %v620, 3
      %v646 = vsel %vm633, %v643, %v645
      %v647 = vrot.slane %v621, 3
      %v648 = vsel %vm633, %v645, %v647
      %v649 = vrot.slane %v622, 3
      %v650 = vsel %vm633, %v647, %v649
      %v651 = vrot.slane %v623, 3
      %v652 = vsel %vm633, %v649, %v651
      %v653 = vrot.slane %v624, 3
      %v654 = vsel %vm633, %v651, %v653
      %v655 = vrot.slane %v625, 3
      %v656 = vsel %vm633, %v653, %v655
      %v657 = vrot.slane %v626, 3
      %v658 = vsel %vm633, %v655, %v657
      %v659 = vrot.slane %v627, 3
      %v660 = vsel %vm633, %v657, %v659
      %v661 = vrot.slane %v628, 3
      %v662 = vsel %vm633, %v659, %v661
      %v663 = vrot.slane %v629, 3
      %v664 = vsel %vm633, %v661, %v663
      %v665 = vrot.slane %v630, 3
      %v666 = vsel %vm633, %v663, %v665
      %v667 = vrot.slane %v631, 3
      %v668 = vsel %vm633, %v665, %v667
      %v669 = vrot.slane %v632, 3
      %v670 = vsel %vm633, %v667, %v669
      %v705 = vunpack.c.l.b16 %v524
      %v706 = vunpack.c.l.b16 %v525
      %v707 = vunpack.c.l.b16 %v526
      %v708 = vunpack.c.l.b16 %v527
      %v709 = vunpack.c.l.b16 %v528
      %v710 = vunpack.c.l.b16 %v529
      %v711 = vunpack.c.l.b16 %v530
      %v712 = vunpack.c.l.b16 %v531
      %v713 = vunpack.c.l.b16 %v532
      %v714 = vunpack.c.l.b16 %v533
      %v715 = vunpack.c.l.b16 %v534
      %v716 = vunpack.c.l.b16 %v535
      %v717 = vunpack.c.l.b16 %v536
      %v718 = vunpack.c.l.b16 %v537
      %v719 = vunpack.c.l.b16 %v538
      %v720 = vunpack.c.l.b16 %v539
      %v721 = vpack.c.b16 %v706, %v705
      %v722 = vpack.c.b16 %v708, %v707
      %v723 = vpack.c.b16 %v710, %v709
      %v724 = vpack.c.b16 %v712, %v711
      %v725 = vpack.c.b16 %v714, %v713
      %v726 = vpack.c.b16 %v716, %v715
      %v727 = vpack.c.b16 %v718, %v717
      %v728 = vpack.c.b16 %v720, %v719
      %737 = vmatprep.subr.bf16.mxu0 0
      %738 = vmatpush1.bf16.msra.mxu0 %v728
      %739 = vmatprep.subr.bf16.mxu0 0
      %740 = vmatpush1.bf16.msra.mxu0 %v727
      %741 = vmatprep.subr.bf16.mxu0 0
      %742 = vmatpush1.bf16.msra.mxu0 %v726
      %743 = vmatprep.subr.bf16.mxu0 0
      %744 = vmatpush1.bf16.msra.mxu0 %v725
      %745 = vmatprep.subr.bf16.mxu0 0
      %746 = vmatpush1.bf16.msra.mxu0 %v724
      %747 = vmatprep.subr.bf16.mxu0 0
      %748 = vmatpush1.bf16.msra.mxu0 %v723
      %749 = vmatprep.subr.bf16.mxu0 0
      %750 = vmatpush1.bf16.msra.mxu0 %v722
      %751 = vmatprep.subr.bf16.mxu0 0
      %752 = vmatpush1.bf16.msra.mxu0 %v721
      %753 = vmatprep.subr.bf16.mxu0 0
      %754 = vmatpush2.bf16.msra.mxu0 0
      %755 = vmatprep.subr.bf16.mxu0 0
      %756 = vmatpush2.bf16.msra.mxu0 0
      %757 = vmatprep.subr.bf16.mxu0 0
      %758 = vmatpush2.bf16.msra.mxu0 0
      %759 = vmatprep.subr.bf16.mxu0 0
      %760 = vmatpush2.bf16.msra.mxu0 0
      %761 = vmatprep.subr.bf16.mxu0 0
      %762 = vmatpush2.bf16.msra.mxu0 0
      %763 = vmatprep.subr.bf16.mxu0 0
      %764 = vmatpush2.bf16.msra.mxu0 0
      %765 = vmatprep.subr.bf16.mxu0 0
      %766 = vmatpush2.bf16.msra.mxu0 0
      %767 = vmatprep.subr.bf16.mxu0 0
      %768 = vmatpush2.bf16.msra.mxu0 0
      %769 = vmatprep.mubr.bf16.mxu0 0
      %770 = vmatmul.mubr.bf16.gmra.mxu0 %v636
      %v771 = vpop.f32.mrf.mxu0
      %v772 = vadd.f32 0.0, %v771
      %v773 = vpop.f32.mrf.mxu0
      %v774 = vpop.f32.mrf.mxu0
      %v775 = vadd.f32 0.0, %v774
      %v776 = vpop.f32.mrf.mxu0
      %777 = vmatprep.mubr.bf16.mxu0 0
      %778 = vmatmul.mubr.bf16.gmra.mxu0 %v638
      %v779 = vpop.f32.mrf.mxu0
      %v780 = vadd.f32 0.0, %v779
      %v781 = vpop.f32.mrf.mxu0
      %v782 = vpop.f32.mrf.mxu0
      %v783 = vadd.f32 0.0, %v782
      %v784 = vpop.f32.mrf.mxu0
      %785 = vmatprep.mubr.bf16.mxu0 0
      %786 = vmatmul.mubr.bf16.gmra.mxu0 %v640
      %v787 = vpop.f32.mrf.mxu0
      %v788 = vadd.f32 0.0, %v787
      %v789 = vpop.f32.mrf.mxu0
      %v790 = vpop.f32.mrf.mxu0
      %v791 = vadd.f32 0.0, %v790
      %v792 = vpop.f32.mrf.mxu0
      %793 = vmatprep.mubr.bf16.mxu0 0
      %794 = vmatmul.mubr.bf16.gmra.mxu0 %v642
      %v795 = vpop.f32.mrf.mxu0
      %v796 = vadd.f32 0.0, %v795
      %v797 = vpop.f32.mrf.mxu0
      %v798 = vpop.f32.mrf.mxu0
      %v799 = vadd.f32 0.0, %v798
      %v800 = vpop.f32.mrf.mxu0
      %801 = vmatprep.mubr.bf16.mxu0 0
      %802 = vmatmul.mubr.bf16.gmra.mxu0 %v644
      %v803 = vpop.f32.mrf.mxu0
      %v804 = vadd.f32 0.0, %v803
      %v805 = vpop.f32.mrf.mxu0
      %v806 = vpop.f32.mrf.mxu0
      %v807 = vadd.f32 0.0, %v806
      %v808 = vpop.f32.mrf.mxu0
      %809 = vmatprep.mubr.bf16.mxu0 0
      %810 = vmatmul.mubr.bf16.gmra.mxu0 %v646
      %v811 = vpop.f32.mrf.mxu0
      %v812 = vadd.f32 0.0, %v811
      %v813 = vpop.f32.mrf.mxu0
      %v814 = vpop.f32.mrf.mxu0
      %v815 = vadd.f32 0.0, %v814
      %v816 = vpop.f32.mrf.mxu0
      %817 = vmatprep.mubr.bf16.mxu0 0
      %818 = vmatmul.mubr.bf16.gmra.mxu0 %v648
      %v819 = vpop.f32.mrf.mxu0
      %v820 = vadd.f32 0.0, %v819
      %v821 = vpop.f32.mrf.mxu0
      %v822 = vpop.f32.mrf.mxu0
      %v823 = vadd.f32 0.0, %v822
      %v824 = vpop.f32.mrf.mxu0
      %825 = vmatprep.mubr.bf16.mxu0 0
      %826 = vmatmul.mubr.bf16.gmra.mxu0 %v650
      %v827 = vpop.f32.mrf.mxu0
      %v828 = vadd.f32 0.0, %v827
      %v829 = vpop.f32.mrf.mxu0
      %v830 = vpop.f32.mrf.mxu0
      %v831 = vadd.f32 0.0, %v830
      %v832 = vpop.f32.mrf.mxu0
      %833 = vmatprep.mubr.bf16.mxu0 0
      %834 = vmatmul.mubr.bf16.gmra.mxu0 %v652
      %v835 = vpop.f32.mrf.mxu0
      %v836 = vadd.f32 0.0, %v835
      %v837 = vpop.f32.mrf.mxu0
      %v838 = vpop.f32.mrf.mxu0
      %v839 = vadd.f32 0.0, %v838
      %v840 = vpop.f32.mrf.mxu0
      %841 = vmatprep.mubr.bf16.mxu0 0
      %842 = vmatmul.mubr.bf16.gmra.mxu0 %v654
      %v843 = vpop.f32.mrf.mxu0
      %v844 = vadd.f32 0.0, %v843
      %v845 = vpop.f32.mrf.mxu0
      %v846 = vpop.f32.mrf.mxu0
      %v847 = vadd.f32 0.0, %v846
      %v848 = vpop.f32.mrf.mxu0
      %849 = vmatprep.mubr.bf16.mxu0 0
      %850 = vmatmul.mubr.bf16.gmra.mxu0 %v656
      %v851 = vpop.f32.mrf.mxu0
      %v852 = vadd.f32 0.0, %v851
      %v853 = vpop.f32.mrf.mxu0
      %v854 = vpop.f32.mrf.mxu0
      %v855 = vadd.f32 0.0, %v854
      %v856 = vpop.f32.mrf.mxu0
      %857 = vmatprep.mubr.bf16.mxu0 0
      %858 = vmatmul.mubr.bf16.gmra.mxu0 %v658
      %v859 = vpop.f32.mrf.mxu0
      %v860 = vadd.f32 0.0, %v859
      %v861 = vpop.f32.mrf.mxu0
      %v862 = vpop.f32.mrf.mxu0
      %v863 = vadd.f32 0.0, %v862
      %v864 = vpop.f32.mrf.mxu0
      %865 = vmatprep.mubr.bf16.mxu0 0
      %866 = vmatmul.mubr.bf16.gmra.mxu0 %v660
      %v867 = vpop.f32.mrf.mxu0
      %v868 = vadd.f32 0.0, %v867
      %v869 = vpop.f32.mrf.mxu0
      %v870 = vpop.f32.mrf.mxu0
      %v871 = vadd.f32 0.0, %v870
      %v872 = vpop.f32.mrf.mxu0
      %873 = vmatprep.mubr.bf16.mxu0 0
      %874 = vmatmul.mubr.bf16.gmra.mxu0 %v662
      %v875 = vpop.f32.mrf.mxu0
      %v876 = vadd.f32 0.0, %v875
      %v877 = vpop.f32.mrf.mxu0
      %v878 = vpop.f32.mrf.mxu0
      %v879 = vadd.f32 0.0, %v878
      %v880 = vpop.f32.mrf.mxu0
      %881 = vmatprep.mubr.bf16.mxu0 0
      %882 = vmatmul.mubr.bf16.gmra.mxu0 %v664
      %v883 = vpop.f32.mrf.mxu0
      %v884 = vadd.f32 0.0, %v883
      %v885 = vpop.f32.mrf.mxu0
      %v886 = vpop.f32.mrf.mxu0
      %v887 = vadd.f32 0.0, %v886
      %v888 = vpop.f32.mrf.mxu0
      %889 = vmatprep.mubr.bf16.mxu0 0
      %890 = vmatmul.mubr.bf16.gmra.mxu0 %v666
      %v891 = vpop.f32.mrf.mxu0
      %v892 = vadd.f32 0.0, %v891
      %v893 = vpop.f32.mrf.mxu0
      %v894 = vpop.f32.mrf.mxu0
      %v895 = vadd.f32 0.0, %v894
      %v896 = vpop.f32.mrf.mxu0
      %897 = vmatprep.mubr.bf16.mxu0 0
      %898 = vmatmul.mubr.bf16.gmra.mxu0 %v668
      %v899 = vpop.f32.mrf.mxu0
      %v900 = vadd.f32 0.0, %v899
      %v901 = vpop.f32.mrf.mxu0
      %v902 = vpop.f32.mrf.mxu0
      %v903 = vadd.f32 0.0, %v902
      %v904 = vpop.f32.mrf.mxu0
      %905 = vmatprep.mubr.bf16.mxu0 0
      %906 = vmatmul.mubr.bf16.gmra.mxu0 %v670
      %v907 = vpop.f32.mrf.mxu0
      %v908 = vadd.f32 0.0, %v907
      %v909 = vpop.f32.mrf.mxu0
      %v910 = vpop.f32.mrf.mxu0
      %v911 = vadd.f32 0.0, %v910
      %v912 = vpop.f32.mrf.mxu0
      %913 = vdwg.mxu0
      %v915 = vunpack.c.l.b16 %v469
      %v916 = vpack.c.b16 %v578, %v915
      %vm917 = vsmask.f32 5376
      %v919 = vshrl.u32 %v916, 16
      %v921 = vrot.slane %v919, 2
      %v922 = vshll.u32 %v916, 16
      %v924 = vrot.slane %v922, 3
      %v925 = vor.u32 %v921, %v924
      %v927 = vshrl.u32 %v615, 16
      %v929 = vrot.slane %v927, 2
      %v930 = vshll.u32 %v615, 16
      %v932 = vrot.slane %v930, 3
      %v933 = vor.u32 %v929, %v932
      %v934 = vsel %vm917, %v925, %v933
      %v936 = vshrl.u32 %v616, 16
      %v938 = vrot.slane %v936, 2
      %v939 = vshll.u32 %v616, 16
      %v941 = vrot.slane %v939, 3
      %v942 = vor.u32 %v938, %v941
      %v943 = vsel %vm917, %v933, %v942
      %v945 = vshrl.u32 %v617, 16
      %v947 = vrot.slane %v945, 2
      %v948 = vshll.u32 %v617, 16
      %v950 = vrot.slane %v948, 3
      %v951 = vor.u32 %v947, %v950
      %v952 = vsel %vm917, %v942, %v951
      %v954 = vshrl.u32 %v618, 16
      %v956 = vrot.slane %v954, 2
      %v957 = vshll.u32 %v618, 16
      %v959 = vrot.slane %v957, 3
      %v960 = vor.u32 %v956, %v959
      %v961 = vsel %vm917, %v951, %v960
      %v963 = vshrl.u32 %v619, 16
      %v965 = vrot.slane %v963, 2
      %v966 = vshll.u32 %v619, 16
      %v968 = vrot.slane %v966, 3
      %v969 = vor.u32 %v965, %v968
      %v970 = vsel %vm917, %v960, %v969
      %v972 = vshrl.u32 %v620, 16
      %v974 = vrot.slane %v972, 2
      %v975 = vshll.u32 %v620, 16
      %v977 = vrot.slane %v975, 3
      %v978 = vor.u32 %v974, %v977
      %v979 = vsel %vm917, %v969, %v978
      %v981 = vshrl.u32 %v621, 16
      %v983 = vrot.slane %v981, 2
      %v984 = vshll.u32 %v621, 16
      %v986 = vrot.slane %v984, 3
      %v987 = vor.u32 %v983, %v986
      %v988 = vsel %vm917, %v978, %v987
      %v990 = vshrl.u32 %v622, 16
      %v992 = vrot.slane %v990, 2
      %v993 = vshll.u32 %v622, 16
      %v995 = vrot.slane %v993, 3
      %v996 = vor.u32 %v992, %v995
      %v997 = vsel %vm917, %v987, %v996
      %v999 = vshrl.u32 %v623, 16
      %v1001 = vrot.slane %v999, 2
      %v1002 = vshll.u32 %v623, 16
      %v1004 = vrot.slane %v1002, 3
      %v1005 = vor.u32 %v1001, %v1004
      %v1006 = vsel %vm917, %v996, %v1005
      %v1008 = vshrl.u32 %v624, 16
      %v1010 = vrot.slane %v1008, 2
      %v1011 = vshll.u32 %v624, 16
      %v1013 = vrot.slane %v1011, 3
      %v1014 = vor.u32 %v1010, %v1013
      %v1015 = vsel %vm917, %v1005, %v1014
      %v1017 = vshrl.u32 %v625, 16
      %v1019 = vrot.slane %v1017, 2
      %v1020 = vshll.u32 %v625, 16
      %v1022 = vrot.slane %v1020, 3
      %v1023 = vor.u32 %v1019, %v1022
      %v1024 = vsel %vm917, %v1014, %v1023
      %v1026 = vshrl.u32 %v626, 16
      %v1028 = vrot.slane %v1026, 2
      %v1029 = vshll.u32 %v626, 16
      %v1031 = vrot.slane %v1029, 3
      %v1032 = vor.u32 %v1028, %v1031
      %v1033 = vsel %vm917, %v1023, %v1032
      %v1035 = vshrl.u32 %v627, 16
      %v1037 = vrot.slane %v1035, 2
      %v1038 = vshll.u32 %v627, 16
      %v1040 = vrot.slane %v1038, 3
      %v1041 = vor.u32 %v1037, %v1040
      %v1042 = vsel %vm917, %v1032, %v1041
      %v1044 = vshrl.u32 %v628, 16
      %v1046 = vrot.slane %v1044, 2
      %v1047 = vshll.u32 %v628, 16
      %v1049 = vrot.slane %v1047, 3
      %v1050 = vor.u32 %v1046, %v1049
      %v1051 = vsel %vm917, %v1041, %v1050
      %v1053 = vshrl.u32 %v629, 16
      %v1055 = vrot.slane %v1053, 2
      %v1056 = vshll.u32 %v629, 16
      %v1058 = vrot.slane %v1056, 3
      %v1059 = vor.u32 %v1055, %v1058
      %v1060 = vsel %vm917, %v1050, %v1059
      %v1062 = vshrl.u32 %v630, 16
      %v1064 = vrot.slane %v1062, 2
      %v1065 = vshll.u32 %v630, 16
      %v1067 = vrot.slane %v1065, 3
      %v1068 = vor.u32 %v1064, %v1067
      %v1069 = vsel %vm917, %v1059, %v1068
      %v1071 = vshrl.u32 %v631, 16
      %v1073 = vrot.slane %v1071, 2
      %v1074 = vshll.u32 %v631, 16
      %v1076 = vrot.slane %v1074, 3
      %v1077 = vor.u32 %v1073, %v1076
      %v1078 = vsel %vm917, %v1068, %v1077
      %v1080 = vshrl.u32 %v632, 16
      %v1082 = vrot.slane %v1080, 2
      %v1083 = vshll.u32 %v632, 16
      %v1085 = vrot.slane %v1083, 3
      %v1086 = vor.u32 %v1082, %v1085
      %v1087 = vsel %vm917, %v1077, %v1086
      %v1122 = vunpack.c.l.b16 %v506
      %v1123 = vunpack.c.l.b16 %v507
      %v1124 = vunpack.c.l.b16 %v508
      %v1125 = vunpack.c.l.b16 %v509
      %v1126 = vunpack.c.l.b16 %v510
      %v1127 = vunpack.c.l.b16 %v511
      %v1128 = vunpack.c.l.b16 %v512
      %v1129 = vunpack.c.l.b16 %v513
      %v1130 = vunpack.c.l.b16 %v514
      %v1131 = vunpack.c.l.b16 %v515
      %v1132 = vunpack.c.l.b16 %v516
      %v1133 = vunpack.c.l.b16 %v517
      %v1134 = vunpack.c.l.b16 %v518
      %v1135 = vunpack.c.l.b16 %v519
      %v1136 = vunpack.c.l.b16 %v520
      %v1137 = vunpack.c.l.b16 %v521
      %v1138 = vpack.c.b16 %v1123, %v1122
      %v1139 = vpack.c.b16 %v1125, %v1124
      %v1140 = vpack.c.b16 %v1127, %v1126
      %v1141 = vpack.c.b16 %v1129, %v1128
      %v1142 = vpack.c.b16 %v1131, %v1130
      %v1143 = vpack.c.b16 %v1133, %v1132
      %v1144 = vpack.c.b16 %v1135, %v1134
      %v1145 = vpack.c.b16 %v1137, %v1136
      %1154 = vmatprep.subr.bf16.mxu0 0
      %1155 = vmatpush1.bf16.msra.mxu0 %v1145
      %1156 = vmatprep.subr.bf16.mxu0 0
      %1157 = vmatpush1.bf16.msra.mxu0 %v1144
      %1158 = vmatprep.subr.bf16.mxu0 0
      %1159 = vmatpush1.bf16.msra.mxu0 %v1143
      %1160 = vmatprep.subr.bf16.mxu0 0
      %1161 = vmatpush1.bf16.msra.mxu0 %v1142
      %1162 = vmatprep.subr.bf16.mxu0 0
      %1163 = vmatpush1.bf16.msra.mxu0 %v1141
      %1164 = vmatprep.subr.bf16.mxu0 0
      %1165 = vmatpush1.bf16.msra.mxu0 %v1140
      %1166 = vmatprep.subr.bf16.mxu0 0
      %1167 = vmatpush1.bf16.msra.mxu0 %v1139
      %1168 = vmatprep.subr.bf16.mxu0 0
      %1169 = vmatpush1.bf16.msra.mxu0 %v1138
      %1170 = vmatprep.subr.bf16.mxu0 0
      %1171 = vmatpush2.bf16.msra.mxu0 0
      %1172 = vmatprep.subr.bf16.mxu0 0
      %1173 = vmatpush2.bf16.msra.mxu0 0
      %1174 = vmatprep.subr.bf16.mxu0 0
      %1175 = vmatpush2.bf16.msra.mxu0 0
      %1176 = vmatprep.subr.bf16.mxu0 0
      %1177 = vmatpush2.bf16.msra.mxu0 0
      %1178 = vmatprep.subr.bf16.mxu0 0
      %1179 = vmatpush2.bf16.msra.mxu0 0
      %1180 = vmatprep.subr.bf16.mxu0 0
      %1181 = vmatpush2.bf16.msra.mxu0 0
      %1182 = vmatprep.subr.bf16.mxu0 0
      %1183 = vmatpush2.bf16.msra.mxu0 0
      %1184 = vmatprep.subr.bf16.mxu0 0
      %1185 = vmatpush2.bf16.msra.mxu0 0
      %1186 = vmatprep.mubr.bf16.mxu0 0
      %1187 = vmatmul.mubr.bf16.gmra.mxu0 %v934
      %v1188 = vpop.f32.mrf.mxu0
      %v1189 = vadd.f32 %v772, %v1188
      %v1190 = vpop.f32.mrf.mxu0
      %v1191 = vpop.f32.mrf.mxu0
      %v1192 = vadd.f32 %v775, %v1191
      %v1193 = vpop.f32.mrf.mxu0
      %1194 = vmatprep.mubr.bf16.mxu0 0
      %1195 = vmatmul.mubr.bf16.gmra.mxu0 %v943
      %v1196 = vpop.f32.mrf.mxu0
      %v1197 = vadd.f32 %v780, %v1196
      %v1198 = vpop.f32.mrf.mxu0
      %v1199 = vpop.f32.mrf.mxu0
      %v1200 = vadd.f32 %v783, %v1199
      %v1201 = vpop.f32.mrf.mxu0
      %1202 = vmatprep.mubr.bf16.mxu0 0
      %1203 = vmatmul.mubr.bf16.gmra.mxu0 %v952
      %v1204 = vpop.f32.mrf.mxu0
      %v1205 = vadd.f32 %v788, %v1204
      %v1206 = vpop.f32.mrf.mxu0
      %v1207 = vpop.f32.mrf.mxu0
      %v1208 = vadd.f32 %v791, %v1207
      %v1209 = vpop.f32.mrf.mxu0
      %1210 = vmatprep.mubr.bf16.mxu0 0
      %1211 = vmatmul.mubr.bf16.gmra.mxu0 %v961
      %v1212 = vpop.f32.mrf.mxu0
      %v1213 = vadd.f32 %v796, %v1212
      %v1214 = vpop.f32.mrf.mxu0
      %v1215 = vpop.f32.mrf.mxu0
      %v1216 = vadd.f32 %v799, %v1215
      %v1217 = vpop.f32.mrf.mxu0
      %1218 = vmatprep.mubr.bf16.mxu0 0
      %1219 = vmatmul.mubr.bf16.gmra.mxu0 %v970
      %v1220 = vpop.f32.mrf.mxu0
      %v1221 = vadd.f32 %v804, %v1220
      %v1222 = vpop.f32.mrf.mxu0
      %v1223 = vpop.f32.mrf.mxu0
      %v1224 = vadd.f32 %v807, %v1223
      %v1225 = vpop.f32.mrf.mxu0
      %1226 = vmatprep.mubr.bf16.mxu0 0
      %1227 = vmatmul.mubr.bf16.gmra.mxu0 %v979
      %v1228 = vpop.f32.mrf.mxu0
      %v1229 = vadd.f32 %v812, %v1228
      %v1230 = vpop.f32.mrf.mxu0
      %v1231 = vpop.f32.mrf.mxu0
      %v1232 = vadd.f32 %v815, %v1231
      %v1233 = vpop.f32.mrf.mxu0
      %1234 = vmatprep.mubr.bf16.mxu0 0
      %1235 = vmatmul.mubr.bf16.gmra.mxu0 %v988
      %v1236 = vpop.f32.mrf.mxu0
      %v1237 = vadd.f32 %v820, %v1236
      %v1238 = vpop.f32.mrf.mxu0
      %v1239 = vpop.f32.mrf.mxu0
      %v1240 = vadd.f32 %v823, %v1239
      %v1241 = vpop.f32.mrf.mxu0
      %1242 = vmatprep.mubr.bf16.mxu0 0
      %1243 = vmatmul.mubr.bf16.gmra.mxu0 %v997
      %v1244 = vpop.f32.mrf.mxu0
      %v1245 = vadd.f32 %v828, %v1244
      %v1246 = vpop.f32.mrf.mxu0
      %v1247 = vpop.f32.mrf.mxu0
      %v1248 = vadd.f32 %v831, %v1247
      %v1249 = vpop.f32.mrf.mxu0
      %1250 = vmatprep.mubr.bf16.mxu0 0
      %1251 = vmatmul.mubr.bf16.gmra.mxu0 %v1006
      %v1252 = vpop.f32.mrf.mxu0
      %v1253 = vadd.f32 %v836, %v1252
      %v1254 = vpop.f32.mrf.mxu0
      %v1255 = vpop.f32.mrf.mxu0
      %v1256 = vadd.f32 %v839, %v1255
      %v1257 = vpop.f32.mrf.mxu0
      %1258 = vmatprep.mubr.bf16.mxu0 0
      %1259 = vmatmul.mubr.bf16.gmra.mxu0 %v1015
      %v1260 = vpop.f32.mrf.mxu0
      %v1261 = vadd.f32 %v844, %v1260
      %v1262 = vpop.f32.mrf.mxu0
      %v1263 = vpop.f32.mrf.mxu0
      %v1264 = vadd.f32 %v847, %v1263
      %v1265 = vpop.f32.mrf.mxu0
      %1266 = vmatprep.mubr.bf16.mxu0 0
      %1267 = vmatmul.mubr.bf16.gmra.mxu0 %v1024
      %v1268 = vpop.f32.mrf.mxu0
      %v1269 = vadd.f32 %v852, %v1268
      %v1270 = vpop.f32.mrf.mxu0
      %v1271 = vpop.f32.mrf.mxu0
      %v1272 = vadd.f32 %v855, %v1271
      %v1273 = vpop.f32.mrf.mxu0
      %1274 = vmatprep.mubr.bf16.mxu0 0
      %1275 = vmatmul.mubr.bf16.gmra.mxu0 %v1033
      %v1276 = vpop.f32.mrf.mxu0
      %v1277 = vadd.f32 %v860, %v1276
      %v1278 = vpop.f32.mrf.mxu0
      %v1279 = vpop.f32.mrf.mxu0
      %v1280 = vadd.f32 %v863, %v1279
      %v1281 = vpop.f32.mrf.mxu0
      %1282 = vmatprep.mubr.bf16.mxu0 0
      %1283 = vmatmul.mubr.bf16.gmra.mxu0 %v1042
      %v1284 = vpop.f32.mrf.mxu0
      %v1285 = vadd.f32 %v868, %v1284
      %v1286 = vpop.f32.mrf.mxu0
      %v1287 = vpop.f32.mrf.mxu0
      %v1288 = vadd.f32 %v871, %v1287
      %v1289 = vpop.f32.mrf.mxu0
      %1290 = vmatprep.mubr.bf16.mxu0 0
      %1291 = vmatmul.mubr.bf16.gmra.mxu0 %v1051
      %v1292 = vpop.f32.mrf.mxu0
      %v1293 = vadd.f32 %v876, %v1292
      %v1294 = vpop.f32.mrf.mxu0
      %v1295 = vpop.f32.mrf.mxu0
      %v1296 = vadd.f32 %v879, %v1295
      %v1297 = vpop.f32.mrf.mxu0
      %1298 = vmatprep.mubr.bf16.mxu0 0
      %1299 = vmatmul.mubr.bf16.gmra.mxu0 %v1060
      %v1300 = vpop.f32.mrf.mxu0
      %v1301 = vadd.f32 %v884, %v1300
      %v1302 = vpop.f32.mrf.mxu0
      %v1303 = vpop.f32.mrf.mxu0
      %v1304 = vadd.f32 %v887, %v1303
      %v1305 = vpop.f32.mrf.mxu0
      %1306 = vmatprep.mubr.bf16.mxu0 0
      %1307 = vmatmul.mubr.bf16.gmra.mxu0 %v1069
      %v1308 = vpop.f32.mrf.mxu0
      %v1309 = vadd.f32 %v892, %v1308
      %v1310 = vpop.f32.mrf.mxu0
      %v1311 = vpop.f32.mrf.mxu0
      %v1312 = vadd.f32 %v895, %v1311
      %v1313 = vpop.f32.mrf.mxu0
      %1314 = vmatprep.mubr.bf16.mxu0 0
      %1315 = vmatmul.mubr.bf16.gmra.mxu0 %v1078
      %v1316 = vpop.f32.mrf.mxu0
      %v1317 = vadd.f32 %v900, %v1316
      %v1318 = vpop.f32.mrf.mxu0
      %v1319 = vpop.f32.mrf.mxu0
      %v1320 = vadd.f32 %v903, %v1319
      %v1321 = vpop.f32.mrf.mxu0
      %1322 = vmatprep.mubr.bf16.mxu0 0
      %1323 = vmatmul.mubr.bf16.gmra.mxu0 %v1087
      %v1324 = vpop.f32.mrf.mxu0
      %v1325 = vadd.f32 %v908, %v1324
      %v1326 = vpop.f32.mrf.mxu0
      %v1327 = vpop.f32.mrf.mxu0
      %v1328 = vadd.f32 %v911, %v1327
      %v1329 = vpop.f32.mrf.mxu0
      %1330 = vdwg.mxu0
      %v1331 = vld [vmem:[%s462 + $0x94] sm:$0xf]
      %s1332 = scalar_lea.vmem %s1, 128
      %v1333 = vld [vmem:[%s1332] sm:$0xf]
      %v1334 = vld [vmem:[%s1332 + $0x4] sm:$0xf]
      %v1335 = vld [vmem:[%s1332 + $0x8] sm:$0xf]
      %v1336 = vld [vmem:[%s1332 + $0xc] sm:$0xf]
      %v1337 = vld [vmem:[%s1332 + $0x10] sm:$0xf]
      %v1338 = vld [vmem:[%s1332 + $0x14] sm:$0xf]
      %v1339 = vld [vmem:[%s1332 + $0x18] sm:$0xf]
      %v1340 = vld [vmem:[%s1332 + $0x1c] sm:$0xf]
      %v1341 = vld [vmem:[%s1332 + $0x20] sm:$0xf]
      %v1342 = vld [vmem:[%s1332 + $0x24] sm:$0xf]
      %v1343 = vld [vmem:[%s1332 + $0x28] sm:$0xf]
      %v1344 = vld [vmem:[%s1332 + $0x2c] sm:$0xf]
      %v1345 = vld [vmem:[%s1332 + $0x30] sm:$0xf]
      %v1346 = vld [vmem:[%s1332 + $0x34] sm:$0xf]
      %v1347 = vld [vmem:[%s1332 + $0x38] sm:$0xf]
      %v1348 = vld [vmem:[%s1332 + $0x3c] sm:$0xf]
      %v1350 = vunpack.c.l.b16 %v1331
      %v1351 = vpack.c.b16 %v1350, %v1350
      %vm1352 = vsmask.f32 4352
      %v1354 = vshrl.u32 %v614, 16
      %v1356 = vrot.slane %v1354, 3
      %v1357 = vshll.u32 %v614, 16
      %v1359 = vrot.slane %v1357, 4
      %v1360 = vor.u32 %v1356, %v1359
      %v1361 = vrot.slane %v927, 3
      %v1362 = vrot.slane %v930, 4
      %v1363 = vor.u32 %v1361, %v1362
      %v1364 = vsel %vm1352, %v1360, %v1363
      %v1365 = vrot.slane %v936, 3
      %v1366 = vrot.slane %v939, 4
      %v1367 = vor.u32 %v1365, %v1366
      %v1368 = vsel %vm1352, %v1363, %v1367
      %v1369 = vrot.slane %v945, 3
      %v1370 = vrot.slane %v948, 4
      %v1371 = vor.u32 %v1369, %v1370
      %v1372 = vsel %vm1352, %v1367, %v1371
      %v1373 = vrot.slane %v954, 3
      %v1374 = vrot.slane %v957, 4
      %v1375 = vor.u32 %v1373, %v1374
      %v1376 = vsel %vm1352, %v1371, %v1375
      %v1377 = vrot.slane %v963, 3
      %v1378 = vrot.slane %v966, 4
      %v1379 = vor.u32 %v1377, %v1378
      %v1380 = vsel %vm1352, %v1375, %v1379
      %v1381 = vrot.slane %v972, 3
      %v1382 = vrot.slane %v975, 4
      %v1383 = vor.u32 %v1381, %v1382
      %v1384 = vsel %vm1352, %v1379, %v1383
      %v1385 = vrot.slane %v981, 3
      %v1386 = vrot.slane %v984, 4
      %v1387 = vor.u32 %v1385, %v1386
      %v1388 = vsel %vm1352, %v1383, %v1387
      %v1389 = vrot.slane %v990, 3
      %v1390 = vrot.slane %v993, 4
      %v1391 = vor.u32 %v1389, %v1390
      %v1392 = vsel %vm1352, %v1387, %v1391
      %v1393 = vrot.slane %v999, 3
      %v1394 = vrot.slane %v1002, 4
      %v1395 = vor.u32 %v1393, %v1394
      %v1396 = vsel %vm1352, %v1391, %v1395
      %v1397 = vrot.slane %v1008, 3
      %v1398 = vrot.slane %v1011, 4
      %v1399 = vor.u32 %v1397, %v1398
      %v1400 = vsel %vm1352, %v1395, %v1399
      %v1401 = vrot.slane %v1017, 3
      %v1402 = vrot.slane %v1020, 4
      %v1403 = vor.u32 %v1401, %v1402
      %v1404 = vsel %vm1352, %v1399, %v1403
      %v1405 = vrot.slane %v1026, 3
      %v1406 = vrot.slane %v1029, 4
      %v1407 = vor.u32 %v1405, %v1406
      %v1408 = vsel %vm1352, %v1403, %v1407
      %v1409 = vrot.slane %v1035, 3
      %v1410 = vrot.slane %v1038, 4
      %v1411 = vor.u32 %v1409, %v1410
      %v1412 = vsel %vm1352, %v1407, %v1411
      %v1413 = vrot.slane %v1044, 3
      %v1414 = vrot.slane %v1047, 4
      %v1415 = vor.u32 %v1413, %v1414
      %v1416 = vsel %vm1352, %v1411, %v1415
      %v1417 = vrot.slane %v1053, 3
      %v1418 = vrot.slane %v1056, 4
      %v1419 = vor.u32 %v1417, %v1418
      %v1420 = vsel %vm1352, %v1415, %v1419
      %v1421 = vrot.slane %v1062, 3
      %v1422 = vrot.slane %v1065, 4
      %v1423 = vor.u32 %v1421, %v1422
      %v1424 = vsel %vm1352, %v1419, %v1423
      %v1425 = vrot.slane %v1071, 3
      %v1426 = vrot.slane %v1074, 4
      %v1427 = vor.u32 %v1425, %v1426
      %v1428 = vsel %vm1352, %v1423, %v1427
      %v1430 = vshrl.u32 %v1351, 16
      %v1432 = vrot.slane %v1430, 3
      %v1433 = vshll.u32 %v1351, 16
      %v1435 = vrot.slane %v1433, 4
      %v1436 = vor.u32 %v1432, %v1435
      %v1437 = vsel %vm1352, %v1427, %v1436
      %v1472 = vunpack.c.l.b16 %v1333
      %v1473 = vunpack.c.l.b16 %v1334
      %v1474 = vunpack.c.l.b16 %v1335
      %v1475 = vunpack.c.l.b16 %v1336
      %v1476 = vunpack.c.l.b16 %v1337
      %v1477 = vunpack.c.l.b16 %v1338
      %v1478 = vunpack.c.l.b16 %v1339
      %v1479 = vunpack.c.l.b16 %v1340
      %v1480 = vunpack.c.l.b16 %v1341
      %v1481 = vunpack.c.l.b16 %v1342
      %v1482 = vunpack.c.l.b16 %v1343
      %v1483 = vunpack.c.l.b16 %v1344
      %v1484 = vunpack.c.l.b16 %v1345
      %v1485 = vunpack.c.l.b16 %v1346
      %v1486 = vunpack.c.l.b16 %v1347
      %v1487 = vunpack.c.l.b16 %v1348
      %v1488 = vpack.c.b16 %v1473, %v1472
      %v1489 = vpack.c.b16 %v1475, %v1474
      %v1490 = vpack.c.b16 %v1477, %v1476
      %v1491 = vpack.c.b16 %v1479, %v1478
      %v1492 = vpack.c.b16 %v1481, %v1480
      %v1493 = vpack.c.b16 %v1483, %v1482
      %v1494 = vpack.c.b16 %v1485, %v1484
      %v1495 = vpack.c.b16 %v1487, %v1486
      %1504 = vmatprep.subr.bf16.mxu0 0
      %1505 = vmatpush1.bf16.msra.mxu0 %v1495
      %1506 = vmatprep.subr.bf16.mxu0 0
      %1507 = vmatpush1.bf16.msra.mxu0 %v1494
      %1508 = vmatprep.subr.bf16.mxu0 0
      %1509 = vmatpush1.bf16.msra.mxu0 %v1493
      %1510 = vmatprep.subr.bf16.mxu0 0
      %1511 = vmatpush1.bf16.msra.mxu0 %v1492
      %1512 = vmatprep.subr.bf16.mxu0 0
      %1513 = vmatpush1.bf16.msra.mxu0 %v1491
      %1514 = vmatprep.subr.bf16.mxu0 0
      %1515 = vmatpush1.bf16.msra.mxu0 %v1490
      %1516 = vmatprep.subr.bf16.mxu0 0
      %1517 = vmatpush1.bf16.msra.mxu0 %v1489
      %1518 = vmatprep.subr.bf16.mxu0 0
      %1519 = vmatpush1.bf16.msra.mxu0 %v1488
      %1520 = vmatprep.subr.bf16.mxu0 0
      %1521 = vmatpush2.bf16.msra.mxu0 0
      %1522 = vmatprep.subr.bf16.mxu0 0
      %1523 = vmatpush2.bf16.msra.mxu0 0
      %1524 = vmatprep.subr.bf16.mxu0 0
      %1525 = vmatpush2.bf16.msra.mxu0 0
      %1526 = vmatprep.subr.bf16.mxu0 0
      %1527 = vmatpush2.bf16.msra.mxu0 0
      %1528 = vmatprep.subr.bf16.mxu0 0
      %1529 = vmatpush2.bf16.msra.mxu0 0
      %1530 = vmatprep.subr.bf16.mxu0 0
      %1531 = vmatpush2.bf16.msra.mxu0 0
      %1532 = vmatprep.subr.bf16.mxu0 0
      %1533 = vmatpush2.bf16.msra.mxu0 0
      %1534 = vmatprep.subr.bf16.mxu0 0
      %1535 = vmatpush2.bf16.msra.mxu0 0
      %1536 = vmatprep.mubr.bf16.mxu0 0
      %1537 = vmatmul.mubr.bf16.gmra.mxu0 %v1364
      %v1538 = vpop.f32.mrf.mxu0
      %v1539 = vadd.f32 0.0, %v1538
      %v1540 = vpop.f32.mrf.mxu0
      %v1541 = vpop.f32.mrf.mxu0
      %v1542 = vadd.f32 0.0, %v1541
      %v1543 = vpop.f32.mrf.mxu0
      %1544 = vmatprep.mubr.bf16.mxu0 0
      %1545 = vmatmul.mubr.bf16.gmra.mxu0 %v1368
      %v1546 = vpop.f32.mrf.mxu0
      %v1547 = vadd.f32 0.0, %v1546
      %v1548 = vpop.f32.mrf.mxu0
      %v1549 = vpop.f32.mrf.mxu0
      %v1550 = vadd.f32 0.0, %v1549
      %v1551 = vpop.f32.mrf.mxu0
      %1552 = vmatprep.mubr.bf16.mxu0 0
      %1553 = vmatmul.mubr.bf16.gmra.mxu0 %v1372
      %v1554 = vpop.f32.mrf.mxu0
      %v1555 = vadd.f32 0.0, %v1554
      %v1556 = vpop.f32.mrf.mxu0
      %v1557 = vpop.f32.mrf.mxu0
      %v1558 = vadd.f32 0.0, %v1557
      %v1559 = vpop.f32.mrf.mxu0
      %1560 = vmatprep.mubr.bf16.mxu0 0
      %1561 = vmatmul.mubr.bf16.gmra.mxu0 %v1376
      %v1562 = vpop.f32.mrf.mxu0
      %v1563 = vadd.f32 0.0, %v1562
      %v1564 = vpop.f32.mrf.mxu0
      %v1565 = vpop.f32.mrf.mxu0
      %v1566 = vadd.f32 0.0, %v1565
      %v1567 = vpop.f32.mrf.mxu0
      %1568 = vmatprep.mubr.bf16.mxu0 0
      %1569 = vmatmul.mubr.bf16.gmra.mxu0 %v1380
      %v1570 = vpop.f32.mrf.mxu0
      %v1571 = vadd.f32 0.0, %v1570
      %v1572 = vpop.f32.mrf.mxu0
      %v1573 = vpop.f32.mrf.mxu0
      %v1574 = vadd.f32 0.0, %v1573
      %v1575 = vpop.f32.mrf.mxu0
      %1576 = vmatprep.mubr.bf16.mxu0 0
      %1577 = vmatmul.mubr.bf16.gmra.mxu0 %v1384
      %v1578 = vpop.f32.mrf.mxu0
      %v1579 = vadd.f32 0.0, %v1578
      %v1580 = vpop.f32.mrf.mxu0
      %v1581 = vpop.f32.mrf.mxu0
      %v1582 = vadd.f32 0.0, %v1581
      %v1583 = vpop.f32.mrf.mxu0
      %1584 = vmatprep.mubr.bf16.mxu0 0
      %1585 = vmatmul.mubr.bf16.gmra.mxu0 %v1388
      %v1586 = vpop.f32.mrf.mxu0
      %v1587 = vadd.f32 0.0, %v1586
      %v1588 = vpop.f32.mrf.mxu0
      %v1589 = vpop.f32.mrf.mxu0
      %v1590 = vadd.f32 0.0, %v1589
      %v1591 = vpop.f32.mrf.mxu0
      %1592 = vmatprep.mubr.bf16.mxu0 0
      %1593 = vmatmul.mubr.bf16.gmra.mxu0 %v1392
      %v1594 = vpop.f32.mrf.mxu0
      %v1595 = vadd.f32 0.0, %v1594
      %v1596 = vpop.f32.mrf.mxu0
      %v1597 = vpop.f32.mrf.mxu0
      %v1598 = vadd.f32 0.0, %v1597
      %v1599 = vpop.f32.mrf.mxu0
      %1600 = vmatprep.mubr.bf16.mxu0 0
      %1601 = vmatmul.mubr.bf16.gmra.mxu0 %v1396
      %v1602 = vpop.f32.mrf.mxu0
      %v1603 = vadd.f32 0.0, %v1602
      %v1604 = vpop.f32.mrf.mxu0
      %v1605 = vpop.f32.mrf.mxu0
      %v1606 = vadd.f32 0.0, %v1605
      %v1607 = vpop.f32.mrf.mxu0
      %1608 = vmatprep.mubr.bf16.mxu0 0
      %1609 = vmatmul.mubr.bf16.gmra.mxu0 %v1400
      %v1610 = vpop.f32.mrf.mxu0
      %v1611 = vadd.f32 0.0, %v1610
      %v1612 = vpop.f32.mrf.mxu0
      %v1613 = vpop.f32.mrf.mxu0
      %v1614 = vadd.f32 0.0, %v1613
      %v1615 = vpop.f32.mrf.mxu0
      %1616 = vmatprep.mubr.bf16.mxu0 0
      %1617 = vmatmul.mubr.bf16.gmra.mxu0 %v1404
      %v1618 = vpop.f32.mrf.mxu0
      %v1619 = vadd.f32 0.0, %v1618
      %v1620 = vpop.f32.mrf.mxu0
      %v1621 = vpop.f32.mrf.mxu0
      %v1622 = vadd.f32 0.0, %v1621
      %v1623 = vpop.f32.mrf.mxu0
      %1624 = vmatprep.mubr.bf16.mxu0 0
      %1625 = vmatmul.mubr.bf16.gmra.mxu0 %v1408
      %v1626 = vpop.f32.mrf.mxu0
      %v1627 = vadd.f32 0.0, %v1626
      %v1628 = vpop.f32.mrf.mxu0
      %v1629 = vpop.f32.mrf.mxu0
      %v1630 = vadd.f32 0.0, %v1629
      %v1631 = vpop.f32.mrf.mxu0
      %1632 = vmatprep.mubr.bf16.mxu0 0
      %1633 = vmatmul.mubr.bf16.gmra.mxu0 %v1412
      %v1634 = vpop.f32.mrf.mxu0
      %v1635 = vadd.f32 0.0, %v1634
      %v1636 = vpop.f32.mrf.mxu0
      %v1637 = vpop.f32.mrf.mxu0
      %v1638 = vadd.f32 0.0, %v1637
      %v1639 = vpop.f32.mrf.mxu0
      %1640 = vmatprep.mubr.bf16.mxu0 0
      %1641 = vmatmul.mubr.bf16.gmra.mxu0 %v1416
      %v1642 = vpop.f32.mrf.mxu0
      %v1643 = vadd.f32 0.0, %v1642
      %v1644 = vpop.f32.mrf.mxu0
      %v1645 = vpop.f32.mrf.mxu0
      %v1646 = vadd.f32 0.0, %v1645
      %v1647 = vpop.f32.mrf.mxu0
      %1648 = vmatprep.mubr.bf16.mxu0 0
      %1649 = vmatmul.mubr.bf16.gmra.mxu0 %v1420
      %v1650 = vpop.f32.mrf.mxu0
      %v1651 = vadd.f32 0.0, %v1650
      %v1652 = vpop.f32.mrf.mxu0
      %v1653 = vpop.f32.mrf.mxu0
      %v1654 = vadd.f32 0.0, %v1653
      %v1655 = vpop.f32.mrf.mxu0
      %1656 = vmatprep.mubr.bf16.mxu0 0
      %1657 = vmatmul.mubr.bf16.gmra.mxu0 %v1424
      %v1658 = vpop.f32.mrf.mxu0
      %v1659 = vadd.f32 0.0, %v1658
      %v1660 = vpop.f32.mrf.mxu0
      %v1661 = vpop.f32.mrf.mxu0
      %v1662 = vadd.f32 0.0, %v1661
      %v1663 = vpop.f32.mrf.mxu0
      %1664 = vmatprep.mubr.bf16.mxu0 0
      %1665 = vmatmul.mubr.bf16.gmra.mxu0 %v1428
      %v1666 = vpop.f32.mrf.mxu0
      %v1667 = vadd.f32 0.0, %v1666
      %v1668 = vpop.f32.mrf.mxu0
      %v1669 = vpop.f32.mrf.mxu0
      %v1670 = vadd.f32 0.0, %v1669
      %v1671 = vpop.f32.mrf.mxu0
      %1672 = vmatprep.mubr.bf16.mxu0 0
      %1673 = vmatmul.mubr.bf16.gmra.mxu0 %v1437
      %v1674 = vpop.f32.mrf.mxu0
      %v1675 = vadd.f32 0.0, %v1674
      %v1676 = vpop.f32.mrf.mxu0
      %v1677 = vpop.f32.mrf.mxu0
      %v1678 = vadd.f32 0.0, %v1677
      %v1679 = vpop.f32.mrf.mxu0
      %1680 = vdwg.mxu0
      %v1681 = vadd.f32 %v1189, %v1539
      %v1682 = vadd.f32 %v1192, %v1542
      %v1683 = vadd.f32 %v1197, %v1547
      %v1684 = vadd.f32 %v1200, %v1550
      %v1685 = vadd.f32 %v1205, %v1555
      %v1686 = vadd.f32 %v1208, %v1558
      %v1687 = vadd.f32 %v1213, %v1563
      %v1688 = vadd.f32 %v1216, %v1566
      %v1689 = vadd.f32 %v1221, %v1571
      %v1690 = vadd.f32 %v1224, %v1574
      %v1691 = vadd.f32 %v1229, %v1579
      %v1692 = vadd.f32 %v1232, %v1582
      %v1693 = vadd.f32 %v1237, %v1587
      %v1694 = vadd.f32 %v1240, %v1590
      %v1695 = vadd.f32 %v1245, %v1595
      %v1696 = vadd.f32 %v1248, %v1598
      %v1697 = vadd.f32 %v1253, %v1603
      %v1698 = vadd.f32 %v1256, %v1606
      %v1699 = vadd.f32 %v1261, %v1611
      %v1700 = vadd.f32 %v1264, %v1614
      %v1701 = vadd.f32 %v1269, %v1619
      %v1702 = vadd.f32 %v1272, %v1622
      %v1703 = vadd.f32 %v1277, %v1627
      %v1704 = vadd.f32 %v1280, %v1630
      %v1705 = vadd.f32 %v1285, %v1635
      %v1706 = vadd.f32 %v1288, %v1638
      %v1707 = vadd.f32 %v1293, %v1643
      %v1708 = vadd.f32 %v1296, %v1646
      %v1709 = vadd.f32 %v1301, %v1651
      %v1710 = vadd.f32 %v1304, %v1654
      %v1711 = vadd.f32 %v1309, %v1659
      %v1712 = vadd.f32 %v1312, %v1662
      %v1713 = vadd.f32 %v1317, %v1667
      %v1714 = vadd.f32 %v1320, %v1670
      %v1715 = vadd.f32 %v1325, %v1675
      %v1716 = vadd.f32 %v1328, %v1678
      %v1717 = vld [vmem:[%s462 + $0xc] sm:$0x8]
      %v1718 = vld [vmem:[%s462 + $0x10] sm:$0xf]
      %v1719 = vld [vmem:[%s462 + $0x14] sm:$0xf]
      %v1720 = vld [vmem:[%s462 + $0x18] sm:$0xf]
      %v1721 = vld [vmem:[%s462 + $0x1c] sm:$0xf]
      %v1722 = vld [vmem:[%s462 + $0x20] sm:$0xf]
      %v1723 = vld [vmem:[%s462 + $0x24] sm:$0xf]
      %v1724 = vld [vmem:[%s462 + $0x28] sm:$0xf]
      %v1725 = vld [vmem:[%s462 + $0x2c] sm:$0xf]
      %v1726 = vld [vmem:[%s462 + $0x30] sm:$0xf]
      %v1727 = vld [vmem:[%s462 + $0x34] sm:$0xf]
      %v1728 = vld [vmem:[%s462 + $0x38] sm:$0xf]
      %v1729 = vld [vmem:[%s462 + $0x3c] sm:$0xf]
      %v1730 = vld [vmem:[%s462 + $0x40] sm:$0xf]
      %v1731 = vld [vmem:[%s462 + $0x44] sm:$0xf]
      %v1732 = vld [vmem:[%s462 + $0x48] sm:$0xf]
      %v1733 = vld [vmem:[%s462 + $0x4c] sm:$0xf]
      %v1734 = vld [vmem:[%s462 + $0x50] sm:$0xf]
      %v1735 = vld [vmem:[%s462 + $0x54] sm:$0xf]
      %v1736 = vld [vmem:[%s462 + $0x58] sm:$0xf]
      %v1737 = vld [vmem:[%s462 + $0x5c] sm:$0xf]
      %v1738 = vld [vmem:[%s462 + $0x60] sm:$0xf]
      %v1739 = vld [vmem:[%s462 + $0x64] sm:$0xf]
      %v1740 = vld [vmem:[%s462 + $0x68] sm:$0xf]
      %v1741 = vld [vmem:[%s462 + $0x6c] sm:$0xf]
      %v1742 = vld [vmem:[%s462 + $0x70] sm:$0xf]
      %v1743 = vld [vmem:[%s462 + $0x74] sm:$0xf]
      %v1744 = vld [vmem:[%s462 + $0x78] sm:$0xf]
      %v1745 = vld [vmem:[%s462 + $0x7c] sm:$0xf]
      %v1746 = vld [vmem:[%s462 + $0x80] sm:$0xf]
      %v1747 = vld [vmem:[%s462 + $0x84] sm:$0xf]
      %v1748 = vld [vmem:[%s462 + $0x88] sm:$0xf]
      %v1749 = vld [vmem:[%s462 + $0x8c] sm:$0xf]
      %v1750 = vld [vmem:[%s462 + $0x90] sm:$0xf]
      %v1751 = vld [vmem:[%s462 + $0x94] sm:$0xf]
      %v1752 = vld [vmem:[%s462 + $0x98] sm:$0xf]
      %v1753 = vld [vmem:[%s462 + $0x9c] sm:$0xf]
      %s1754 = scalar_lea.vmem %s1, 192
      %v1755 = vld [vmem:[%s1754] sm:$0xf]
      %v1756 = vld [vmem:[%s1754 + $0x4] sm:$0xf]
      %v1757 = vld [vmem:[%s1754 + $0x8] sm:$0xf]
      %v1758 = vld [vmem:[%s1754 + $0xc] sm:$0xf]
      %v1759 = vld [vmem:[%s1754 + $0x10] sm:$0xf]
      %v1760 = vld [vmem:[%s1754 + $0x14] sm:$0xf]
      %v1761 = vld [vmem:[%s1754 + $0x18] sm:$0xf]
      %v1762 = vld [vmem:[%s1754 + $0x1c] sm:$0xf]
      %v1763 = vld [vmem:[%s1754 + $0x20] sm:$0xf]
      %v1764 = vld [vmem:[%s1754 + $0x24] sm:$0xf]
      %v1765 = vld [vmem:[%s1754 + $0x28] sm:$0xf]
      %v1766 = vld [vmem:[%s1754 + $0x2c] sm:$0xf]
      %v1767 = vld [vmem:[%s1754 + $0x30] sm:$0xf]
      %v1768 = vld [vmem:[%s1754 + $0x34] sm:$0xf]
      %v1769 = vld [vmem:[%s1754 + $0x38] sm:$0xf]
      %v1770 = vld [vmem:[%s1754 + $0x3c] sm:$0xf]
      %v1808 = vunpack.c.l.b16 %v1717
      %v1809 = vunpack.c.l.b16 %v1718
      %v1810 = vunpack.c.l.b16 %v1719
      %v1811 = vunpack.c.l.b16 %v1720
      %v1812 = vunpack.c.l.b16 %v1721
      %v1813 = vunpack.c.l.b16 %v1722
      %v1814 = vunpack.c.l.b16 %v1723
      %v1815 = vunpack.c.l.b16 %v1724
      %v1816 = vunpack.c.l.b16 %v1725
      %v1817 = vunpack.c.l.b16 %v1726
      %v1818 = vunpack.c.l.b16 %v1727
      %v1819 = vunpack.c.l.b16 %v1728
      %v1820 = vunpack.c.l.b16 %v1729
      %v1821 = vunpack.c.l.b16 %v1730
      %v1822 = vunpack.c.l.b16 %v1731
      %v1823 = vunpack.c.l.b16 %v1732
      %v1824 = vunpack.c.l.b16 %v1733
      %v1825 = vunpack.c.l.b16 %v1734
      %v1826 = vunpack.c.l.b16 %v1735
      %v1827 = vunpack.c.l.b16 %v1736
      %v1828 = vunpack.c.l.b16 %v1737
      %v1829 = vunpack.c.l.b16 %v1738
      %v1830 = vunpack.c.l.b16 %v1739
      %v1831 = vunpack.c.l.b16 %v1740
      %v1832 = vunpack.c.l.b16 %v1741
      %v1833 = vunpack.c.l.b16 %v1742
      %v1834 = vunpack.c.l.b16 %v1743
      %v1835 = vunpack.c.l.b16 %v1744
      %v1836 = vunpack.c.l.b16 %v1745
      %v1837 = vunpack.c.l.b16 %v1746
      %v1838 = vunpack.c.l.b16 %v1747
      %v1839 = vunpack.c.l.b16 %v1748
      %v1840 = vunpack.c.l.b16 %v1749
      %v1841 = vunpack.c.l.b16 %v1750
      %v1842 = vunpack.c.l.b16 %v1751
      %v1843 = vunpack.c.l.b16 %v1752
      %v1844 = vunpack.c.l.b16 %v1753
      %v1845 = vpack.c.b16 %v1809, %v1808
      %v1846 = vpack.c.b16 %v1811, %v1810
      %v1847 = vpack.c.b16 %v1813, %v1812
      %v1848 = vpack.c.b16 %v1815, %v1814
      %v1849 = vpack.c.b16 %v1817, %v1816
      %v1850 = vpack.c.b16 %v1819, %v1818
      %v1851 = vpack.c.b16 %v1821, %v1820
      %v1852 = vpack.c.b16 %v1823, %v1822
      %v1853 = vpack.c.b16 %v1825, %v1824
      %v1854 = vpack.c.b16 %v1827, %v1826
      %v1855 = vpack.c.b16 %v1829, %v1828
      %v1856 = vpack.c.b16 %v1831, %v1830
      %v1857 = vpack.c.b16 %v1833, %v1832
      %v1858 = vpack.c.b16 %v1835, %v1834
      %v1859 = vpack.c.b16 %v1837, %v1836
      %v1860 = vpack.c.b16 %v1839, %v1838
      %v1861 = vpack.c.b16 %v1841, %v1840
      %v1862 = vpack.c.b16 %v1843, %v1842
      %v1863 = vpack.c.b16 %v1844, %v1844
      %v1865 = vshrl.u32 %v1845, 16
      %v1867 = vrot.slane %v1865, 3
      %v1868 = vshll.u32 %v1845, 16
      %v1870 = vrot.slane %v1868, 4
      %v1871 = vor.u32 %v1867, %v1870
      %v1873 = vshrl.u32 %v1846, 16
      %v1875 = vrot.slane %v1873, 3
      %v1876 = vshll.u32 %v1846, 16
      %v1878 = vrot.slane %v1876, 4
      %v1879 = vor.u32 %v1875, %v1878
      %v1880 = vsel %vm1352, %v1871, %v1879
      %v1882 = vshrl.u32 %v1847, 16
      %v1884 = vrot.slane %v1882, 3
      %v1885 = vshll.u32 %v1847, 16
      %v1887 = vrot.slane %v1885, 4
      %v1888 = vor.u32 %v1884, %v1887
      %v1889 = vsel %vm1352, %v1879, %v1888
      %v1891 = vshrl.u32 %v1848, 16
      %v1893 = vrot.slane %v1891, 3
      %v1894 = vshll.u32 %v1848, 16
      %v1896 = vrot.slane %v1894, 4
      %v1897 = vor.u32 %v1893, %v1896
      %v1898 = vsel %vm1352, %v1888, %v1897
      %v1900 = vshrl.u32 %v1849, 16
      %v1902 = vrot.slane %v1900, 3
      %v1903 = vshll.u32 %v1849, 16
      %v1905 = vrot.slane %v1903, 4
      %v1906 = vor.u32 %v1902, %v1905
      %v1907 = vsel %vm1352, %v1897, %v1906
      %v1909 = vshrl.u32 %v1850, 16
      %v1911 = vrot.slane %v1909, 3
      %v1912 = vshll.u32 %v1850, 16
      %v1914 = vrot.slane %v1912, 4
      %v1915 = vor.u32 %v1911, %v1914
      %v1916 = vsel %vm1352, %v1906, %v1915
      %v1918 = vshrl.u32 %v1851, 16
      %v1920 = vrot.slane %v1918, 3
      %v1921 = vshll.u32 %v1851, 16
      %v1923 = vrot.slane %v1921, 4
      %v1924 = vor.u32 %v1920, %v1923
      %v1925 = vsel %vm1352, %v1915, %v1924
      %v1927 = vshrl.u32 %v1852, 16
      %v1929 = vrot.slane %v1927, 3
      %v1930 = vshll.u32 %v1852, 16
      %v1932 = vrot.slane %v1930, 4
      %v1933 = vor.u32 %v1929, %v1932
      %v1934 = vsel %vm1352, %v1924, %v1933
      %v1936 = vshrl.u32 %v1853, 16
      %v1938 = vrot.slane %v1936, 3
      %v1939 = vshll.u32 %v1853, 16
      %v1941 = vrot.slane %v1939, 4
      %v1942 = vor.u32 %v1938, %v1941
      %v1943 = vsel %vm1352, %v1933, %v1942
      %v1945 = vshrl.u32 %v1854, 16
      %v1947 = vrot.slane %v1945, 3
      %v1948 = vshll.u32 %v1854, 16
      %v1950 = vrot.slane %v1948, 4
      %v1951 = vor.u32 %v1947, %v1950
      %v1952 = vsel %vm1352, %v1942, %v1951
      %v1954 = vshrl.u32 %v1855, 16
      %v1956 = vrot.slane %v1954, 3
      %v1957 = vshll.u32 %v1855, 16
      %v1959 = vrot.slane %v1957, 4
      %v1960 = vor.u32 %v1956, %v1959
      %v1961 = vsel %vm1352, %v1951, %v1960
      %v1963 = vshrl.u32 %v1856, 16
      %v1965 = vrot.slane %v1963, 3
      %v1966 = vshll.u32 %v1856, 16
      %v1968 = vrot.slane %v1966, 4
      %v1969 = vor.u32 %v1965, %v1968
      %v1970 = vsel %vm1352, %v1960, %v1969
      %v1972 = vshrl.u32 %v1857, 16
      %v1974 = vrot.slane %v1972, 3
      %v1975 = vshll.u32 %v1857, 16
      %v1977 = vrot.slane %v1975, 4
      %v1978 = vor.u32 %v1974, %v1977
      %v1979 = vsel %vm1352, %v1969, %v1978
      %v1981 = vshrl.u32 %v1858, 16
      %v1983 = vrot.slane %v1981, 3
      %v1984 = vshll.u32 %v1858, 16
      %v1986 = vrot.slane %v1984, 4
      %v1987 = vor.u32 %v1983, %v1986
      %v1988 = vsel %vm1352, %v1978, %v1987
      %v1990 = vshrl.u32 %v1859, 16
      %v1992 = vrot.slane %v1990, 3
      %v1993 = vshll.u32 %v1859, 16
      %v1995 = vrot.slane %v1993, 4
      %v1996 = vor.u32 %v1992, %v1995
      %v1997 = vsel %vm1352, %v1987, %v1996
      %v1999 = vshrl.u32 %v1860, 16
      %v2001 = vrot.slane %v1999, 3
      %v2002 = vshll.u32 %v1860, 16
      %v2004 = vrot.slane %v2002, 4
      %v2005 = vor.u32 %v2001, %v2004
      %v2006 = vsel %vm1352, %v1996, %v2005
      %v2008 = vshrl.u32 %v1861, 16
      %v2010 = vrot.slane %v2008, 3
      %v2011 = vshll.u32 %v1861, 16
      %v2013 = vrot.slane %v2011, 4
      %v2014 = vor.u32 %v2010, %v2013
      %v2015 = vsel %vm1352, %v2005, %v2014
      %v2017 = vshrl.u32 %v1862, 16
      %v2019 = vrot.slane %v2017, 3
      %v2020 = vshll.u32 %v1862, 16
      %v2022 = vrot.slane %v2020, 4
      %v2023 = vor.u32 %v2019, %v2022
      %v2024 = vsel %vm1352, %v2014, %v2023
      %v2026 = vshrl.u32 %v1863, 16
      %v2028 = vrot.slane %v2026, 3
      %v2029 = vshll.u32 %v1863, 16
      %v2031 = vrot.slane %v2029, 4
      %v2032 = vor.u32 %v2028, %v2031
      %v2033 = vsel %vm1352, %v2023, %v2032
      %v2068 = vunpack.c.l.b16 %v1755
      %v2069 = vunpack.c.l.b16 %v1756
      %v2070 = vunpack.c.l.b16 %v1757
      %v2071 = vunpack.c.l.b16 %v1758
      %v2072 = vunpack.c.l.b16 %v1759
      %v2073 = vunpack.c.l.b16 %v1760
      %v2074 = vunpack.c.l.b16 %v1761
      %v2075 = vunpack.c.l.b16 %v1762
      %v2076 = vunpack.c.l.b16 %v1763
      %v2077 = vunpack.c.l.b16 %v1764
      %v2078 = vunpack.c.l.b16 %v1765
      %v2079 = vunpack.c.l.b16 %v1766
      %v2080 = vunpack.c.l.b16 %v1767
      %v2081 = vunpack.c.l.b16 %v1768
      %v2082 = vunpack.c.l.b16 %v1769
      %v2083 = vunpack.c.l.b16 %v1770
      %v2084 = vpack.c.b16 %v2069, %v2068
      %v2085 = vpack.c.b16 %v2071, %v2070
      %v2086 = vpack.c.b16 %v2073, %v2072
      %v2087 = vpack.c.b16 %v2075, %v2074
      %v2088 = vpack.c.b16 %v2077, %v2076
      %v2089 = vpack.c.b16 %v2079, %v2078
      %v2090 = vpack.c.b16 %v2081, %v2080
      %v2091 = vpack.c.b16 %v2083, %v2082
      %2100 = vmatprep.subr.bf16.mxu0 0
      %2101 = vmatpush1.bf16.msra.mxu0 %v2091
      %2102 = vmatprep.subr.bf16.mxu0 0
      %2103 = vmatpush1.bf16.msra.mxu0 %v2090
      %2104 = vmatprep.subr.bf16.mxu0 0
      %2105 = vmatpush1.bf16.msra.mxu0 %v2089
      %2106 = vmatprep.subr.bf16.mxu0 0
      %2107 = vmatpush1.bf16.msra.mxu0 %v2088
      %2108 = vmatprep.subr.bf16.mxu0 0
      %2109 = vmatpush1.bf16.msra.mxu0 %v2087
      %2110 = vmatprep.subr.bf16.mxu0 0
      %2111 = vmatpush1.bf16.msra.mxu0 %v2086
      %2112 = vmatprep.subr.bf16.mxu0 0
      %2113 = vmatpush1.bf16.msra.mxu0 %v2085
      %2114 = vmatprep.subr.bf16.mxu0 0
      %2115 = vmatpush1.bf16.msra.mxu0 %v2084
      %2116 = vmatprep.subr.bf16.mxu0 0
      %2117 = vmatpush2.bf16.msra.mxu0 0
      %2118 = vmatprep.subr.bf16.mxu0 0
      %2119 = vmatpush2.bf16.msra.mxu0 0
      %2120 = vmatprep.subr.bf16.mxu0 0
      %2121 = vmatpush2.bf16.msra.mxu0 0
      %2122 = vmatprep.subr.bf16.mxu0 0
      %2123 = vmatpush2.bf16.msra.mxu0 0
      %2124 = vmatprep.subr.bf16.mxu0 0
      %2125 = vmatpush2.bf16.msra.mxu0 0
      %2126 = vmatprep.subr.bf16.mxu0 0
      %2127 = vmatpush2.bf16.msra.mxu0 0
      %2128 = vmatprep.subr.bf16.mxu0 0
      %2129 = vmatpush2.bf16.msra.mxu0 0
      %2130 = vmatprep.subr.bf16.mxu0 0
      %2131 = vmatpush2.bf16.msra.mxu0 0
      %2132 = vmatprep.mubr.bf16.mxu0 0
      %2133 = vmatmul.mubr.bf16.gmra.mxu0 %v1880
      %v2134 = vpop.f32.mrf.mxu0
      %v2135 = vadd.f32 0.0, %v2134
      %v2136 = vpop.f32.mrf.mxu0
      %v2137 = vpop.f32.mrf.mxu0
      %v2138 = vadd.f32 0.0, %v2137
      %v2139 = vpop.f32.mrf.mxu0
      %2140 = vmatprep.mubr.bf16.mxu0 0
      %2141 = vmatmul.mubr.bf16.gmra.mxu0 %v1889
      %v2142 = vpop.f32.mrf.mxu0
      %v2143 = vadd.f32 0.0, %v2142
      %v2144 = vpop.f32.mrf.mxu0
      %v2145 = vpop.f32.mrf.mxu0
      %v2146 = vadd.f32 0.0, %v2145
      %v2147 = vpop.f32.mrf.mxu0
      %2148 = vmatprep.mubr.bf16.mxu0 0
      %2149 = vmatmul.mubr.bf16.gmra.mxu0 %v1898
      %v2150 = vpop.f32.mrf.mxu0
      %v2151 = vadd.f32 0.0, %v2150
      %v2152 = vpop.f32.mrf.mxu0
      %v2153 = vpop.f32.mrf.mxu0
      %v2154 = vadd.f32 0.0, %v2153
      %v2155 = vpop.f32.mrf.mxu0
      %2156 = vmatprep.mubr.bf16.mxu0 0
      %2157 = vmatmul.mubr.bf16.gmra.mxu0 %v1907
      %v2158 = vpop.f32.mrf.mxu0
      %v2159 = vadd.f32 0.0, %v2158
      %v2160 = vpop.f32.mrf.mxu0
      %v2161 = vpop.f32.mrf.mxu0
      %v2162 = vadd.f32 0.0, %v2161
      %v2163 = vpop.f32.mrf.mxu0
      %2164 = vmatprep.mubr.bf16.mxu0 0
      %2165 = vmatmul.mubr.bf16.gmra.mxu0 %v1916
      %v2166 = vpop.f32.mrf.mxu0
      %v2167 = vadd.f32 0.0, %v2166
      %v2168 = vpop.f32.mrf.mxu0
      %v2169 = vpop.f32.mrf.mxu0
      %v2170 = vadd.f32 0.0, %v2169
      %v2171 = vpop.f32.mrf.mxu0
      %2172 = vmatprep.mubr.bf16.mxu0 0
      %2173 = vmatmul.mubr.bf16.gmra.mxu0 %v1925
      %v2174 = vpop.f32.mrf.mxu0
      %v2175 = vadd.f32 0.0, %v2174
      %v2176 = vpop.f32.mrf.mxu0
      %v2177 = vpop.f32.mrf.mxu0
      %v2178 = vadd.f32 0.0, %v2177
      %v2179 = vpop.f32.mrf.mxu0
      %2180 = vmatprep.mubr.bf16.mxu0 0
      %2181 = vmatmul.mubr.bf16.gmra.mxu0 %v1934
      %v2182 = vpop.f32.mrf.mxu0
      %v2183 = vadd.f32 0.0, %v2182
      %v2184 = vpop.f32.mrf.mxu0
      %v2185 = vpop.f32.mrf.mxu0
      %v2186 = vadd.f32 0.0, %v2185
      %v2187 = vpop.f32.mrf.mxu0
      %2188 = vmatprep.mubr.bf16.mxu0 0
      %2189 = vmatmul.mubr.bf16.gmra.mxu0 %v1943
      %v2190 = vpop.f32.mrf.mxu0
      %v2191 = vadd.f32 0.0, %v2190
      %v2192 = vpop.f32.mrf.mxu0
      %v2193 = vpop.f32.mrf.mxu0
      %v2194 = vadd.f32 0.0, %v2193
      %v2195 = vpop.f32.mrf.mxu0
      %2196 = vmatprep.mubr.bf16.mxu0 0
      %2197 = vmatmul.mubr.bf16.gmra.mxu0 %v1952
      %v2198 = vpop.f32.mrf.mxu0
      %v2199 = vadd.f32 0.0, %v2198
      %v2200 = vpop.f32.mrf.mxu0
      %v2201 = vpop.f32.mrf.mxu0
      %v2202 = vadd.f32 0.0, %v2201
      %v2203 = vpop.f32.mrf.mxu0
      %2204 = vmatprep.mubr.bf16.mxu0 0
      %2205 = vmatmul.mubr.bf16.gmra.mxu0 %v1961
      %v2206 = vpop.f32.mrf.mxu0
      %v2207 = vadd.f32 0.0, %v2206
      %v2208 = vpop.f32.mrf.mxu0
      %v2209 = vpop.f32.mrf.mxu0
      %v2210 = vadd.f32 0.0, %v2209
      %v2211 = vpop.f32.mrf.mxu0
      %2212 = vmatprep.mubr.bf16.mxu0 0
      %2213 = vmatmul.mubr.bf16.gmra.mxu0 %v1970
      %v2214 = vpop.f32.mrf.mxu0
      %v2215 = vadd.f32 0.0, %v2214
      %v2216 = vpop.f32.mrf.mxu0
      %v2217 = vpop.f32.mrf.mxu0
      %v2218 = vadd.f32 0.0, %v2217
      %v2219 = vpop.f32.mrf.mxu0
      %2220 = vmatprep.mubr.bf16.mxu0 0
      %2221 = vmatmul.mubr.bf16.gmra.mxu0 %v1979
      %v2222 = vpop.f32.mrf.mxu0
      %v2223 = vadd.f32 0.0, %v2222
      %v2224 = vpop.f32.mrf.mxu0
      %v2225 = vpop.f32.mrf.mxu0
      %v2226 = vadd.f32 0.0, %v2225
      %v2227 = vpop.f32.mrf.mxu0
      %2228 = vmatprep.mubr.bf16.mxu0 0
      %2229 = vmatmul.mubr.bf16.gmra.mxu0 %v1988
      %v2230 = vpop.f32.mrf.mxu0
      %v2231 = vadd.f32 0.0, %v2230
      %v2232 = vpop.f32.mrf.mxu0
      %v2233 = vpop.f32.mrf.mxu0
      %v2234 = vadd.f32 0.0, %v2233
      %v2235 = vpop.f32.mrf.mxu0
      %2236 = vmatprep.mubr.bf16.mxu0 0
      %2237 = vmatmul.mubr.bf16.gmra.mxu0 %v1997
      %v2238 = vpop.f32.mrf.mxu0
      %v2239 = vadd.f32 0.0, %v2238
      %v2240 = vpop.f32.mrf.mxu0
      %v2241 = vpop.f32.mrf.mxu0
      %v2242 = vadd.f32 0.0, %v2241
      %v2243 = vpop.f32.mrf.mxu0
      %2244 = vmatprep.mubr.bf16.mxu0 0
      %2245 = vmatmul.mubr.bf16.gmra.mxu0 %v2006
      %v2246 = vpop.f32.mrf.mxu0
      %v2247 = vadd.f32 0.0, %v2246
      %v2248 = vpop.f32.mrf.mxu0
      %v2249 = vpop.f32.mrf.mxu0
      %v2250 = vadd.f32 0.0, %v2249
      %v2251 = vpop.f32.mrf.mxu0
      %2252 = vmatprep.mubr.bf16.mxu0 0
      %2253 = vmatmul.mubr.bf16.gmra.mxu0 %v2015
      %v2254 = vpop.f32.mrf.mxu0
      %v2255 = vadd.f32 0.0, %v2254
      %v2256 = vpop.f32.mrf.mxu0
      %v2257 = vpop.f32.mrf.mxu0
      %v2258 = vadd.f32 0.0, %v2257
      %v2259 = vpop.f32.mrf.mxu0
      %2260 = vmatprep.mubr.bf16.mxu0 0
      %2261 = vmatmul.mubr.bf16.gmra.mxu0 %v2024
      %v2262 = vpop.f32.mrf.mxu0
      %v2263 = vadd.f32 0.0, %v2262
      %v2264 = vpop.f32.mrf.mxu0
      %v2265 = vpop.f32.mrf.mxu0
      %v2266 = vadd.f32 0.0, %v2265
      %v2267 = vpop.f32.mrf.mxu0
      %2268 = vmatprep.mubr.bf16.mxu0 0
      %2269 = vmatmul.mubr.bf16.gmra.mxu0 %v2033
      %v2270 = vpop.f32.mrf.mxu0
      %v2271 = vadd.f32 0.0, %v2270
      %v2272 = vpop.f32.mrf.mxu0
      %v2273 = vpop.f32.mrf.mxu0
      %v2274 = vadd.f32 0.0, %v2273
      %v2275 = vpop.f32.mrf.mxu0
      %2276 = vdwg.mxu0
      %v2277 = vadd.f32 %v1681, %v2135
      %v2278 = vadd.f32 %v1682, %v2138
      %v2279 = vadd.f32 %v1683, %v2143
      %v2280 = vadd.f32 %v1684, %v2146
      %v2281 = vadd.f32 %v1685, %v2151
      %v2282 = vadd.f32 %v1686, %v2154
      %v2283 = vadd.f32 %v1687, %v2159
      %v2284 = vadd.f32 %v1688, %v2162
      %v2285 = vadd.f32 %v1689, %v2167
      %v2286 = vadd.f32 %v1690, %v2170
      %v2287 = vadd.f32 %v1691, %v2175
      %v2288 = vadd.f32 %v1692, %v2178
      %v2289 = vadd.f32 %v1693, %v2183
      %v2290 = vadd.f32 %v1694, %v2186
      %v2291 = vadd.f32 %v1695, %v2191
      %v2292 = vadd.f32 %v1696, %v2194
      %v2293 = vadd.f32 %v1697, %v2199
      %v2294 = vadd.f32 %v1698, %v2202
      %v2295 = vadd.f32 %v1699, %v2207
      %v2296 = vadd.f32 %v1700, %v2210
      %v2297 = vadd.f32 %v1701, %v2215
      %v2298 = vadd.f32 %v1702, %v2218
      %v2299 = vadd.f32 %v1703, %v2223
      %v2300 = vadd.f32 %v1704, %v2226
      %v2301 = vadd.f32 %v1705, %v2231
      %v2302 = vadd.f32 %v1706, %v2234
      %v2303 = vadd.f32 %v1707, %v2239
      %v2304 = vadd.f32 %v1708, %v2242
      %v2305 = vadd.f32 %v1709, %v2247
      %v2306 = vadd.f32 %v1710, %v2250
      %v2307 = vadd.f32 %v1711, %v2255
      %v2308 = vadd.f32 %v1712, %v2258
      %v2309 = vadd.f32 %v1713, %v2263
      %v2310 = vadd.f32 %v1714, %v2266
      %v2311 = vadd.f32 %v1715, %v2271
      %v2312 = vadd.f32 %v1716, %v2274
      %s2313 = scalar_lea.vmem %s1, 256
      %v2314 = vld [vmem:[%s2313] sm:$0xf]
      %v2315 = vld [vmem:[%s2313 + $0x4] sm:$0xf]
      %v2316 = vld [vmem:[%s2313 + $0x8] sm:$0xf]
      %v2317 = vld [vmem:[%s2313 + $0xc] sm:$0xf]
      %v2318 = vld [vmem:[%s2313 + $0x10] sm:$0xf]
      %v2319 = vld [vmem:[%s2313 + $0x14] sm:$0xf]
      %v2320 = vld [vmem:[%s2313 + $0x18] sm:$0xf]
      %v2321 = vld [vmem:[%s2313 + $0x1c] sm:$0xf]
      %v2322 = vld [vmem:[%s2313 + $0x20] sm:$0xf]
      %v2323 = vld [vmem:[%s2313 + $0x24] sm:$0xf]
      %v2324 = vld [vmem:[%s2313 + $0x28] sm:$0xf]
      %v2325 = vld [vmem:[%s2313 + $0x2c] sm:$0xf]
      %v2326 = vld [vmem:[%s2313 + $0x30] sm:$0xf]
      %v2327 = vld [vmem:[%s2313 + $0x34] sm:$0xf]
      %v2328 = vld [vmem:[%s2313 + $0x38] sm:$0xf]
      %v2329 = vld [vmem:[%s2313 + $0x3c] sm:$0xf]
      %v2330 = vpack.c.b16 %v1810, %v1809
      %v2331 = vpack.c.b16 %v1812, %v1811
      %v2332 = vpack.c.b16 %v1814, %v1813
      %v2333 = vpack.c.b16 %v1816, %v1815
      %v2334 = vpack.c.b16 %v1818, %v1817
      %v2335 = vpack.c.b16 %v1820, %v1819
      %v2336 = vpack.c.b16 %v1822, %v1821
      %v2337 = vpack.c.b16 %v1824, %v1823
      %v2338 = vpack.c.b16 %v1826, %v1825
      %v2339 = vpack.c.b16 %v1828, %v1827
      %v2340 = vpack.c.b16 %v1830, %v1829
      %v2341 = vpack.c.b16 %v1832, %v1831
      %v2342 = vpack.c.b16 %v1834, %v1833
      %v2343 = vpack.c.b16 %v1836, %v1835
      %v2344 = vpack.c.b16 %v1838, %v1837
      %v2345 = vpack.c.b16 %v1840, %v1839
      %v2346 = vpack.c.b16 %v1842, %v1841
      %v2347 = vpack.c.b16 %v1844, %v1843
      %v2382 = vunpack.c.l.b16 %v2314
      %v2383 = vunpack.c.l.b16 %v2315
      %v2384 = vunpack.c.l.b16 %v2316
      %v2385 = vunpack.c.l.b16 %v2317
      %v2386 = vunpack.c.l.b16 %v2318
      %v2387 = vunpack.c.l.b16 %v2319
      %v2388 = vunpack.c.l.b16 %v2320
      %v2389 = vunpack.c.l.b16 %v2321
      %v2390 = vunpack.c.l.b16 %v2322
      %v2391 = vunpack.c.l.b16 %v2323
      %v2392 = vunpack.c.l.b16 %v2324
      %v2393 = vunpack.c.l.b16 %v2325
      %v2394 = vunpack.c.l.b16 %v2326
      %v2395 = vunpack.c.l.b16 %v2327
      %v2396 = vunpack.c.l.b16 %v2328
      %v2397 = vunpack.c.l.b16 %v2329
      %v2398 = vpack.c.b16 %v2383, %v2382
      %v2399 = vpack.c.b16 %v2385, %v2384
      %v2400 = vpack.c.b16 %v2387, %v2386
      %v2401 = vpack.c.b16 %v2389, %v2388
      %v2402 = vpack.c.b16 %v2391, %v2390
      %v2403 = vpack.c.b16 %v2393, %v2392
      %v2404 = vpack.c.b16 %v2395, %v2394
      %v2405 = vpack.c.b16 %v2397, %v2396
      %2414 = vmatprep.subr.bf16.mxu0 0
      %2415 = vmatpush1.bf16.msra.mxu0 %v2405
      %2416 = vmatprep.subr.bf16.mxu0 0
      %2417 = vmatpush1.bf16.msra.mxu0 %v2404
      %2418 = vmatprep.subr.bf16.mxu0 0
      %2419 = vmatpush1.bf16.msra.mxu0 %v2403
      %2420 = vmatprep.subr.bf16.mxu0 0
      %2421 = vmatpush1.bf16.msra.mxu0 %v2402
      %2422 = vmatprep.subr.bf16.mxu0 0
      %2423 = vmatpush1.bf16.msra.mxu0 %v2401
      %2424 = vmatprep.subr.bf16.mxu0 0
      %2425 = vmatpush1.bf16.msra.mxu0 %v2400
      %2426 = vmatprep.subr.bf16.mxu0 0
      %2427 = vmatpush1.bf16.msra.mxu0 %v2399
      %2428 = vmatprep.subr.bf16.mxu0 0
      %2429 = vmatpush1.bf16.msra.mxu0 %v2398
      %2430 = vmatprep.subr.bf16.mxu0 0
      %2431 = vmatpush2.bf16.msra.mxu0 0
      %2432 = vmatprep.subr.bf16.mxu0 0
      %2433 = vmatpush2.bf16.msra.mxu0 0
      %2434 = vmatprep.subr.bf16.mxu0 0
      %2435 = vmatpush2.bf16.msra.mxu0 0
      %2436 = vmatprep.subr.bf16.mxu0 0
      %2437 = vmatpush2.bf16.msra.mxu0 0
      %2438 = vmatprep.subr.bf16.mxu0 0
      %2439 = vmatpush2.bf16.msra.mxu0 0
      %2440 = vmatprep.subr.bf16.mxu0 0
      %2441 = vmatpush2.bf16.msra.mxu0 0
      %2442 = vmatprep.subr.bf16.mxu0 0
      %2443 = vmatpush2.bf16.msra.mxu0 0
      %2444 = vmatprep.subr.bf16.mxu0 0
      %2445 = vmatpush2.bf16.msra.mxu0 0
      %2446 = vmatprep.mubr.bf16.mxu0 0
      %2447 = vmatmul.mubr.bf16.gmra.mxu0 %v2330
      %v2448 = vpop.f32.mrf.mxu0
      %v2449 = vadd.f32 0.0, %v2448
      %v2450 = vpop.f32.mrf.mxu0
      %v2451 = vpop.f32.mrf.mxu0
      %v2452 = vadd.f32 0.0, %v2451
      %v2453 = vpop.f32.mrf.mxu0
      %2454 = vmatprep.mubr.bf16.mxu0 0
      %2455 = vmatmul.mubr.bf16.gmra.mxu0 %v2331
      %v2456 = vpop.f32.mrf.mxu0
      %v2457 = vadd.f32 0.0, %v2456
      %v2458 = vpop.f32.mrf.mxu0
      %v2459 = vpop.f32.mrf.mxu0
      %v2460 = vadd.f32 0.0, %v2459
      %v2461 = vpop.f32.mrf.mxu0
      %2462 = vmatprep.mubr.bf16.mxu0 0
      %2463 = vmatmul.mubr.bf16.gmra.mxu0 %v2332
      %v2464 = vpop.f32.mrf.mxu0
      %v2465 = vadd.f32 0.0, %v2464
      %v2466 = vpop.f32.mrf.mxu0
      %v2467 = vpop.f32.mrf.mxu0
      %v2468 = vadd.f32 0.0, %v2467
      %v2469 = vpop.f32.mrf.mxu0
      %2470 = vmatprep.mubr.bf16.mxu0 0
      %2471 = vmatmul.mubr.bf16.gmra.mxu0 %v2333
      %v2472 = vpop.f32.mrf.mxu0
      %v2473 = vadd.f32 0.0, %v2472
      %v2474 = vpop.f32.mrf.mxu0
      %v2475 = vpop.f32.mrf.mxu0
      %v2476 = vadd.f32 0.0, %v2475
      %v2477 = vpop.f32.mrf.mxu0
      %2478 = vmatprep.mubr.bf16.mxu0 0
      %2479 = vmatmul.mubr.bf16.gmra.mxu0 %v2334
      %v2480 = vpop.f32.mrf.mxu0
      %v2481 = vadd.f32 0.0, %v2480
      %v2482 = vpop.f32.mrf.mxu0
      %v2483 = vpop.f32.mrf.mxu0
      %v2484 = vadd.f32 0.0, %v2483
      %v2485 = vpop.f32.mrf.mxu0
      %2486 = vmatprep.mubr.bf16.mxu0 0
      %2487 = vmatmul.mubr.bf16.gmra.mxu0 %v2335
      %v2488 = vpop.f32.mrf.mxu0
      %v2489 = vadd.f32 0.0, %v2488
      %v2490 = vpop.f32.mrf.mxu0
      %v2491 = vpop.f32.mrf.mxu0
      %v2492 = vadd.f32 0.0, %v2491
      %v2493 = vpop.f32.mrf.mxu0
      %2494 = vmatprep.mubr.bf16.mxu0 0
      %2495 = vmatmul.mubr.bf16.gmra.mxu0 %v2336
      %v2496 = vpop.f32.mrf.mxu0
      %v2497 = vadd.f32 0.0, %v2496
      %v2498 = vpop.f32.mrf.mxu0
      %v2499 = vpop.f32.mrf.mxu0
      %v2500 = vadd.f32 0.0, %v2499
      %v2501 = vpop.f32.mrf.mxu0
      %2502 = vmatprep.mubr.bf16.mxu0 0
      %2503 = vmatmul.mubr.bf16.gmra.mxu0 %v2337
      %v2504 = vpop.f32.mrf.mxu0
      %v2505 = vadd.f32 0.0, %v2504
      %v2506 = vpop.f32.mrf.mxu0
      %v2507 = vpop.f32.mrf.mxu0
      %v2508 = vadd.f32 0.0, %v2507
      %v2509 = vpop.f32.mrf.mxu0
      %2510 = vmatprep.mubr.bf16.mxu0 0
      %2511 = vmatmul.mubr.bf16.gmra.mxu0 %v2338
      %v2512 = vpop.f32.mrf.mxu0
      %v2513 = vadd.f32 0.0, %v2512
      %v2514 = vpop.f32.mrf.mxu0
      %v2515 = vpop.f32.mrf.mxu0
      %v2516 = vadd.f32 0.0, %v2515
      %v2517 = vpop.f32.mrf.mxu0
      %2518 = vmatprep.mubr.bf16.mxu0 0
      %2519 = vmatmul.mubr.bf16.gmra.mxu0 %v2339
      %v2520 = vpop.f32.mrf.mxu0
      %v2521 = vadd.f32 0.0, %v2520
      %v2522 = vpop.f32.mrf.mxu0
      %v2523 = vpop.f32.mrf.mxu0
      %v2524 = vadd.f32 0.0, %v2523
      %v2525 = vpop.f32.mrf.mxu0
      %2526 = vmatprep.mubr.bf16.mxu0 0
      %2527 = vmatmul.mubr.bf16.gmra.mxu0 %v2340
      %v2528 = vpop.f32.mrf.mxu0
      %v2529 = vadd.f32 0.0, %v2528
      %v2530 = vpop.f32.mrf.mxu0
      %v2531 = vpop.f32.mrf.mxu0
      %v2532 = vadd.f32 0.0, %v2531
      %v2533 = vpop.f32.mrf.mxu0
      %2534 = vmatprep.mubr.bf16.mxu0 0
      %2535 = vmatmul.mubr.bf16.gmra.mxu0 %v2341
      %v2536 = vpop.f32.mrf.mxu0
      %v2537 = vadd.f32 0.0, %v2536
      %v2538 = vpop.f32.mrf.mxu0
      %v2539 = vpop.f32.mrf.mxu0
      %v2540 = vadd.f32 0.0, %v2539
      %v2541 = vpop.f32.mrf.mxu0
      %2542 = vmatprep.mubr.bf16.mxu0 0
      %2543 = vmatmul.mubr.bf16.gmra.mxu0 %v2342
      %v2544 = vpop.f32.mrf.mxu0
      %v2545 = vadd.f32 0.0, %v2544
      %v2546 = vpop.f32.mrf.mxu0
      %v2547 = vpop.f32.mrf.mxu0
      %v2548 = vadd.f32 0.0, %v2547
      %v2549 = vpop.f32.mrf.mxu0
      %2550 = vmatprep.mubr.bf16.mxu0 0
      %2551 = vmatmul.mubr.bf16.gmra.mxu0 %v2343
      %v2552 = vpop.f32.mrf.mxu0
      %v2553 = vadd.f32 0.0, %v2552
      %v2554 = vpop.f32.mrf.mxu0
      %v2555 = vpop.f32.mrf.mxu0
      %v2556 = vadd.f32 0.0, %v2555
      %v2557 = vpop.f32.mrf.mxu0
      %2558 = vmatprep.mubr.bf16.mxu0 0
      %2559 = vmatmul.mubr.bf16.gmra.mxu0 %v2344
      %v2560 = vpop.f32.mrf.mxu0
      %v2561 = vadd.f32 0.0, %v2560
      %v2562 = vpop.f32.mrf.mxu0
      %v2563 = vpop.f32.mrf.mxu0
      %v2564 = vadd.f32 0.0, %v2563
      %v2565 = vpop.f32.mrf.mxu0
      %2566 = vmatprep.mubr.bf16.mxu0 0
      %2567 = vmatmul.mubr.bf16.gmra.mxu0 %v2345
      %v2568 = vpop.f32.mrf.mxu0
      %v2569 = vadd.f32 0.0, %v2568
      %v2570 = vpop.f32.mrf.mxu0
      %v2571 = vpop.f32.mrf.mxu0
      %v2572 = vadd.f32 0.0, %v2571
      %v2573 = vpop.f32.mrf.mxu0
      %2574 = vmatprep.mubr.bf16.mxu0 0
      %2575 = vmatmul.mubr.bf16.gmra.mxu0 %v2346
      %v2576 = vpop.f32.mrf.mxu0
      %v2577 = vadd.f32 0.0, %v2576
      %v2578 = vpop.f32.mrf.mxu0
      %v2579 = vpop.f32.mrf.mxu0
      %v2580 = vadd.f32 0.0, %v2579
      %v2581 = vpop.f32.mrf.mxu0
      %2582 = vmatprep.mubr.bf16.mxu0 0
      %2583 = vmatmul.mubr.bf16.gmra.mxu0 %v2347
      %v2584 = vpop.f32.mrf.mxu0
      %v2585 = vadd.f32 0.0, %v2584
      %v2586 = vpop.f32.mrf.mxu0
      %v2587 = vpop.f32.mrf.mxu0
      %v2588 = vadd.f32 0.0, %v2587
      %v2589 = vpop.f32.mrf.mxu0
      %2590 = vdwg.mxu0
      %v2591 = vadd.f32 %v2277, %v2449
      %v2592 = vadd.f32 %v2278, %v2452
      %v2593 = vadd.f32 %v2279, %v2457
      %v2594 = vadd.f32 %v2280, %v2460
      %v2595 = vadd.f32 %v2281, %v2465
      %v2596 = vadd.f32 %v2282, %v2468
      %v2597 = vadd.f32 %v2283, %v2473
      %v2598 = vadd.f32 %v2284, %v2476
      %v2599 = vadd.f32 %v2285, %v2481
      %v2600 = vadd.f32 %v2286, %v2484
      %v2601 = vadd.f32 %v2287, %v2489
      %v2602 = vadd.f32 %v2288, %v2492
      %v2603 = vadd.f32 %v2289, %v2497
      %v2604 = vadd.f32 %v2290, %v2500
      %v2605 = vadd.f32 %v2291, %v2505
      %v2606 = vadd.f32 %v2292, %v2508
      %v2607 = vadd.f32 %v2293, %v2513
      %v2608 = vadd.f32 %v2294, %v2516
      %v2609 = vadd.f32 %v2295, %v2521
      %v2610 = vadd.f32 %v2296, %v2524
      %v2611 = vadd.f32 %v2297, %v2529
      %v2612 = vadd.f32 %v2298, %v2532
      %v2613 = vadd.f32 %v2299, %v2537
      %v2614 = vadd.f32 %v2300, %v2540
      %v2615 = vadd.f32 %v2301, %v2545
      %v2616 = vadd.f32 %v2302, %v2548
      %v2617 = vadd.f32 %v2303, %v2553
      %v2618 = vadd.f32 %v2304, %v2556
      %v2619 = vadd.f32 %v2305, %v2561
      %v2620 = vadd.f32 %v2306, %v2564
      %v2621 = vadd.f32 %v2307, %v2569
      %v2622 = vadd.f32 %v2308, %v2572
      %v2623 = vadd.f32 %v2309, %v2577
      %v2624 = vadd.f32 %v2310, %v2580
      %v2625 = vadd.f32 %v2311, %v2585
      %v2626 = vadd.f32 %v2312, %v2588
      %v2627 = vld [vmem:[%s462 + $0x10] sm:$0xf]
      %v2628 = vld [vmem:[%s462 + $0x14] sm:$0xf]
      %v2629 = vld [vmem:[%s462 + $0x18] sm:$0xf]
      %v2630 = vld [vmem:[%s462 + $0x1c] sm:$0xf]
      %v2631 = vld [vmem:[%s462 + $0x20] sm:$0xf]
      %v2632 = vld [vmem:[%s462 + $0x24] sm:$0xf]
      %v2633 = vld [vmem:[%s462 + $0x28] sm:$0xf]
      %v2634 = vld [vmem:[%s462 + $0x2c] sm:$0xf]
      %v2635 = vld [vmem:[%s462 + $0x30] sm:$0xf]
      %v2636 = vld [vmem:[%s462 + $0x34] sm:$0xf]
      %v2637 = vld [vmem:[%s462 + $0x38] sm:$0xf]
      %v2638 = vld [vmem:[%s462 + $0x3c] sm:$0xf]
      %v2639 = vld [vmem:[%s462 + $0x40] sm:$0xf]
      %v2640 = vld [vmem:[%s462 + $0x44] sm:$0xf]
      %v2641 = vld [vmem:[%s462 + $0x48] sm:$0xf]
      %v2642 = vld [vmem:[%s462 + $0x4c] sm:$0xf]
      %v2643 = vld [vmem:[%s462 + $0x50] sm:$0xf]
      %v2644 = vld [vmem:[%s462 + $0x54] sm:$0xf]
      %v2645 = vld [vmem:[%s462 + $0x58] sm:$0xf]
      %v2646 = vld [vmem:[%s462 + $0x5c] sm:$0xf]
      %v2647 = vld [vmem:[%s462 + $0x60] sm:$0xf]
      %v2648 = vld [vmem:[%s462 + $0x64] sm:$0xf]
      %v2649 = vld [vmem:[%s462 + $0x68] sm:$0xf]
      %v2650 = vld [vmem:[%s462 + $0x6c] sm:$0xf]
      %v2651 = vld [vmem:[%s462 + $0x70] sm:$0xf]
      %v2652 = vld [vmem:[%s462 + $0x74] sm:$0xf]
      %v2653 = vld [vmem:[%s462 + $0x78] sm:$0xf]
      %v2654 = vld [vmem:[%s462 + $0x7c] sm:$0xf]
      %v2655 = vld [vmem:[%s462 + $0x80] sm:$0xf]
      %v2656 = vld [vmem:[%s462 + $0x84] sm:$0xf]
      %v2657 = vld [vmem:[%s462 + $0x88] sm:$0xf]
      %v2658 = vld [vmem:[%s462 + $0x8c] sm:$0xf]
      %v2659 = vld [vmem:[%s462 + $0x90] sm:$0xf]
      %v2660 = vld [vmem:[%s462 + $0x94] sm:$0xf]
      %v2661 = vld [vmem:[%s462 + $0x98] sm:$0xf]
      %v2662 = vld [vmem:[%s462 + $0x9c] sm:$0xf]
      %v2663 = vld [vmem:[%s462 + $0xa0] sm:$0x1]
      %s2664 = scalar_lea.vmem %s1, 320
      %v2665 = vld [vmem:[%s2664] sm:$0xf]
      %v2666 = vld [vmem:[%s2664 + $0x4] sm:$0xf]
      %v2667 = vld [vmem:[%s2664 + $0x8] sm:$0xf]
      %v2668 = vld [vmem:[%s2664 + $0xc] sm:$0xf]
      %v2669 = vld [vmem:[%s2664 + $0x10] sm:$0xf]
      %v2670 = vld [vmem:[%s2664 + $0x14] sm:$0xf]
      %v2671 = vld [vmem:[%s2664 + $0x18] sm:$0xf]
      %v2672 = vld [vmem:[%s2664 + $0x1c] sm:$0xf]
      %v2673 = vld [vmem:[%s2664 + $0x20] sm:$0xf]
      %v2674 = vld [vmem:[%s2664 + $0x24] sm:$0xf]
      %v2675 = vld [vmem:[%s2664 + $0x28] sm:$0xf]
      %v2676 = vld [vmem:[%s2664 + $0x2c] sm:$0xf]
      %v2677 = vld [vmem:[%s2664 + $0x30] sm:$0xf]
      %v2678 = vld [vmem:[%s2664 + $0x34] sm:$0xf]
      %v2679 = vld [vmem:[%s2664 + $0x38] sm:$0xf]
      %v2680 = vld [vmem:[%s2664 + $0x3c] sm:$0xf]
      %v2718 = vunpack.c.l.b16 %v2627
      %v2719 = vunpack.c.l.b16 %v2628
      %v2720 = vunpack.c.l.b16 %v2629
      %v2721 = vunpack.c.l.b16 %v2630
      %v2722 = vunpack.c.l.b16 %v2631
      %v2723 = vunpack.c.l.b16 %v2632
      %v2724 = vunpack.c.l.b16 %v2633
      %v2725 = vunpack.c.l.b16 %v2634
      %v2726 = vunpack.c.l.b16 %v2635
      %v2727 = vunpack.c.l.b16 %v2636
      %v2728 = vunpack.c.l.b16 %v2637
      %v2729 = vunpack.c.l.b16 %v2638
      %v2730 = vunpack.c.l.b16 %v2639
      %v2731 = vunpack.c.l.b16 %v2640
      %v2732 = vunpack.c.l.b16 %v2641
      %v2733 = vunpack.c.l.b16 %v2642
      %v2734 = vunpack.c.l.b16 %v2643
      %v2735 = vunpack.c.l.b16 %v2644
      %v2736 = vunpack.c.l.b16 %v2645
      %v2737 = vunpack.c.l.b16 %v2646
      %v2738 = vunpack.c.l.b16 %v2647
      %v2739 = vunpack.c.l.b16 %v2648
      %v2740 = vunpack.c.l.b16 %v2649
      %v2741 = vunpack.c.l.b16 %v2650
      %v2742 = vunpack.c.l.b16 %v2651
      %v2743 = vunpack.c.l.b16 %v2652
      %v2744 = vunpack.c.l.b16 %v2653
      %v2745 = vunpack.c.l.b16 %v2654
      %v2746 = vunpack.c.l.b16 %v2655
      %v2747 = vunpack.c.l.b16 %v2656
      %v2748 = vunpack.c.l.b16 %v2657
      %v2749 = vunpack.c.l.b16 %v2658
      %v2750 = vunpack.c.l.b16 %v2659
      %v2751 = vunpack.c.l.b16 %v2660
      %v2752 = vunpack.c.l.b16 %v2661
      %v2753 = vunpack.c.l.b16 %v2662
      %v2754 = vunpack.c.l.b16 %v2663
      %v2755 = vpack.c.b16 %v2719, %v2718
      %v2756 = vpack.c.b16 %v2721, %v2720
      %v2757 = vpack.c.b16 %v2723, %v2722
      %v2758 = vpack.c.b16 %v2725, %v2724
      %v2759 = vpack.c.b16 %v2727, %v2726
      %v2760 = vpack.c.b16 %v2729, %v2728
      %v2761 = vpack.c.b16 %v2731, %v2730
      %v2762 = vpack.c.b16 %v2733, %v2732
      %v2763 = vpack.c.b16 %v2735, %v2734
      %v2764 = vpack.c.b16 %v2737, %v2736
      %v2765 = vpack.c.b16 %v2739, %v2738
      %v2766 = vpack.c.b16 %v2741, %v2740
      %v2767 = vpack.c.b16 %v2743, %v2742
      %v2768 = vpack.c.b16 %v2745, %v2744
      %v2769 = vpack.c.b16 %v2747, %v2746
      %v2770 = vpack.c.b16 %v2749, %v2748
      %v2771 = vpack.c.b16 %v2751, %v2750
      %v2772 = vpack.c.b16 %v2753, %v2752
      %v2773 = vpack.c.b16 %v2754, %v2754
      %vm2774 = vsmask.f32 7424
      %v2776 = vshrl.u32 %v2755, 16
      %v2778 = vshll.u32 %v2755, 16
      %v2780 = vrot.slane %v2778, 1
      %v2781 = vor.u32 %v2776, %v2780
      %v2783 = vshll.u32 %v2756, 16
      %v2785 = vrot.slane %v2783, 1
      %v2786 = vsel %vm2774, %v2781, %v2785
      %v2787 = vshrl.u32 %v2756, 16
      %v2789 = vor.u32 %v2787, %v2785
      %v2791 = vshll.u32 %v2757, 16
      %v2793 = vrot.slane %v2791, 1
      %v2794 = vsel %vm2774, %v2789, %v2793
      %v2795 = vshrl.u32 %v2757, 16
      %v2797 = vor.u32 %v2795, %v2793
      %v2799 = vshll.u32 %v2758, 16
      %v2801 = vrot.slane %v2799, 1
      %v2802 = vsel %vm2774, %v2797, %v2801
      %v2803 = vshrl.u32 %v2758, 16
      %v2805 = vor.u32 %v2803, %v2801
      %v2807 = vshll.u32 %v2759, 16
      %v2809 = vrot.slane %v2807, 1
      %v2810 = vsel %vm2774, %v2805, %v2809
      %v2811 = vshrl.u32 %v2759, 16
      %v2813 = vor.u32 %v2811, %v2809
      %v2815 = vshll.u32 %v2760, 16
      %v2817 = vrot.slane %v2815, 1
      %v2818 = vsel %vm2774, %v2813, %v2817
      %v2819 = vshrl.u32 %v2760, 16
      %v2821 = vor.u32 %v2819, %v2817
      %v2823 = vshll.u32 %v2761, 16
      %v2825 = vrot.slane %v2823, 1
      %v2826 = vsel %vm2774, %v2821, %v2825
      %v2827 = vshrl.u32 %v2761, 16
      %v2829 = vor.u32 %v2827, %v2825
      %v2831 = vshll.u32 %v2762, 16
      %v2833 = vrot.slane %v2831, 1
      %v2834 = vsel %vm2774, %v2829, %v2833
      %v2835 = vshrl.u32 %v2762, 16
      %v2837 = vor.u32 %v2835, %v2833
      %v2839 = vshll.u32 %v2763, 16
      %v2841 = vrot.slane %v2839, 1
      %v2842 = vsel %vm2774, %v2837, %v2841
      %v2843 = vshrl.u32 %v2763, 16
      %v2845 = vor.u32 %v2843, %v2841
      %v2847 = vshll.u32 %v2764, 16
      %v2849 = vrot.slane %v2847, 1
      %v2850 = vsel %vm2774, %v2845, %v2849
      %v2851 = vshrl.u32 %v2764, 16
      %v2853 = vor.u32 %v2851, %v2849
      %v2855 = vshll.u32 %v2765, 16
      %v2857 = vrot.slane %v2855, 1
      %v2858 = vsel %vm2774, %v2853, %v2857
      %v2859 = vshrl.u32 %v2765, 16
      %v2861 = vor.u32 %v2859, %v2857
      %v2863 = vshll.u32 %v2766, 16
      %v2865 = vrot.slane %v2863, 1
      %v2866 = vsel %vm2774, %v2861, %v2865
      %v2867 = vshrl.u32 %v2766, 16
      %v2869 = vor.u32 %v2867, %v2865
      %v2871 = vshll.u32 %v2767, 16
      %v2873 = vrot.slane %v2871, 1
      %v2874 = vsel %vm2774, %v2869, %v2873
      %v2875 = vshrl.u32 %v2767, 16
      %v2877 = vor.u32 %v2875, %v2873
      %v2879 = vshll.u32 %v2768, 16
      %v2881 = vrot.slane %v2879, 1
      %v2882 = vsel %vm2774, %v2877, %v2881
      %v2883 = vshrl.u32 %v2768, 16
      %v2885 = vor.u32 %v2883, %v2881
      %v2887 = vshll.u32 %v2769, 16
      %v2889 = vrot.slane %v2887, 1
      %v2890 = vsel %vm2774, %v2885, %v2889
      %v2891 = vshrl.u32 %v2769, 16
      %v2893 = vor.u32 %v2891, %v2889
      %v2895 = vshll.u32 %v2770, 16
      %v2897 = vrot.slane %v2895, 1
      %v2898 = vsel %vm2774, %v2893, %v2897
      %v2899 = vshrl.u32 %v2770, 16
      %v2901 = vor.u32 %v2899, %v2897
      %v2903 = vshll.u32 %v2771, 16
      %v2905 = vrot.slane %v2903, 1
      %v2906 = vsel %vm2774, %v2901, %v2905
      %v2907 = vshrl.u32 %v2771, 16
      %v2909 = vor.u32 %v2907, %v2905
      %v2911 = vshll.u32 %v2772, 16
      %v2913 = vrot.slane %v2911, 1
      %v2914 = vsel %vm2774, %v2909, %v2913
      %v2915 = vshrl.u32 %v2772, 16
      %v2917 = vor.u32 %v2915, %v2913
      %v2919 = vshll.u32 %v2773, 16
      %v2921 = vrot.slane %v2919, 1
      %v2922 = vsel %vm2774, %v2917, %v2921
      %v2957 = vunpack.c.l.b16 %v2665
      %v2958 = vunpack.c.l.b16 %v2666
      %v2959 = vunpack.c.l.b16 %v2667
      %v2960 = vunpack.c.l.b16 %v2668
      %v2961 = vunpack.c.l.b16 %v2669
      %v2962 = vunpack.c.l.b16 %v2670
      %v2963 = vunpack.c.l.b16 %v2671
      %v2964 = vunpack.c.l.b16 %v2672
      %v2965 = vunpack.c.l.b16 %v2673
      %v2966 = vunpack.c.l.b16 %v2674
      %v2967 = vunpack.c.l.b16 %v2675
      %v2968 = vunpack.c.l.b16 %v2676
      %v2969 = vunpack.c.l.b16 %v2677
      %v2970 = vunpack.c.l.b16 %v2678
      %v2971 = vunpack.c.l.b16 %v2679
      %v2972 = vunpack.c.l.b16 %v2680
      %v2973 = vpack.c.b16 %v2958, %v2957
      %v2974 = vpack.c.b16 %v2960, %v2959
      %v2975 = vpack.c.b16 %v2962, %v2961
      %v2976 = vpack.c.b16 %v2964, %v2963
      %v2977 = vpack.c.b16 %v2966, %v2965
      %v2978 = vpack.c.b16 %v2968, %v2967
      %v2979 = vpack.c.b16 %v2970, %v2969
      %v2980 = vpack.c.b16 %v2972, %v2971
      %2989 = vmatprep.subr.bf16.mxu0 0
      %2990 = vmatpush1.bf16.msra.mxu0 %v2980
      %2991 = vmatprep.subr.bf16.mxu0 0
      %2992 = vmatpush1.bf16.msra.mxu0 %v2979
      %2993 = vmatprep.subr.bf16.mxu0 0
      %2994 = vmatpush1.bf16.msra.mxu0 %v2978
      %2995 = vmatprep.subr.bf16.mxu0 0
      %2996 = vmatpush1.bf16.msra.mxu0 %v2977
      %2997 = vmatprep.subr.bf16.mxu0 0
      %2998 = vmatpush1.bf16.msra.mxu0 %v2976
      %2999 = vmatprep.subr.bf16.mxu0 0
      %3000 = vmatpush1.bf16.msra.mxu0 %v2975
      %3001 = vmatprep.subr.bf16.mxu0 0
      %3002 = vmatpush1.bf16.msra.mxu0 %v2974
      %3003 = vmatprep.subr.bf16.mxu0 0
      %3004 = vmatpush1.bf16.msra.mxu0 %v2973
      %3005 = vmatprep.subr.bf16.mxu0 0
      %3006 = vmatpush2.bf16.msra.mxu0 0
      %3007 = vmatprep.subr.bf16.mxu0 0
      %3008 = vmatpush2.bf16.msra.mxu0 0
      %3009 = vmatprep.subr.bf16.mxu0 0
      %3010 = vmatpush2.bf16.msra.mxu0 0
      %3011 = vmatprep.subr.bf16.mxu0 0
      %3012 = vmatpush2.bf16.msra.mxu0 0
      %3013 = vmatprep.subr.bf16.mxu0 0
      %3014 = vmatpush2.bf16.msra.mxu0 0
      %3015 = vmatprep.subr.bf16.mxu0 0
      %3016 = vmatpush2.bf16.msra.mxu0 0
      %3017 = vmatprep.subr.bf16.mxu0 0
      %3018 = vmatpush2.bf16.msra.mxu0 0
      %3019 = vmatprep.subr.bf16.mxu0 0
      %3020 = vmatpush2.bf16.msra.mxu0 0
      %3021 = vmatprep.mubr.bf16.mxu0 0
      %3022 = vmatmul.mubr.bf16.gmra.mxu0 %v2786
      %v3023 = vpop.f32.mrf.mxu0
      %v3024 = vadd.f32 0.0, %v3023
      %v3025 = vpop.f32.mrf.mxu0
      %v3026 = vpop.f32.mrf.mxu0
      %v3027 = vadd.f32 0.0, %v3026
      %v3028 = vpop.f32.mrf.mxu0
      %3029 = vmatprep.mubr.bf16.mxu0 0
      %3030 = vmatmul.mubr.bf16.gmra.mxu0 %v2794
      %v3031 = vpop.f32.mrf.mxu0
      %v3032 = vadd.f32 0.0, %v3031
      %v3033 = vpop.f32.mrf.mxu0
      %v3034 = vpop.f32.mrf.mxu0
      %v3035 = vadd.f32 0.0, %v3034
      %v3036 = vpop.f32.mrf.mxu0
      %3037 = vmatprep.mubr.bf16.mxu0 0
      %3038 = vmatmul.mubr.bf16.gmra.mxu0 %v2802
      %v3039 = vpop.f32.mrf.mxu0
      %v3040 = vadd.f32 0.0, %v3039
      %v3041 = vpop.f32.mrf.mxu0
      %v3042 = vpop.f32.mrf.mxu0
      %v3043 = vadd.f32 0.0, %v3042
      %v3044 = vpop.f32.mrf.mxu0
      %3045 = vmatprep.mubr.bf16.mxu0 0
      %3046 = vmatmul.mubr.bf16.gmra.mxu0 %v2810
      %v3047 = vpop.f32.mrf.mxu0
      %v3048 = vadd.f32 0.0, %v3047
      %v3049 = vpop.f32.mrf.mxu0
      %v3050 = vpop.f32.mrf.mxu0
      %v3051 = vadd.f32 0.0, %v3050
      %v3052 = vpop.f32.mrf.mxu0
      %3053 = vmatprep.mubr.bf16.mxu0 0
      %3054 = vmatmul.mubr.bf16.gmra.mxu0 %v2818
      %v3055 = vpop.f32.mrf.mxu0
      %v3056 = vadd.f32 0.0, %v3055
      %v3057 = vpop.f32.mrf.mxu0
      %v3058 = vpop.f32.mrf.mxu0
      %v3059 = vadd.f32 0.0, %v3058
      %v3060 = vpop.f32.mrf.mxu0
      %3061 = vmatprep.mubr.bf16.mxu0 0
      %3062 = vmatmul.mubr.bf16.gmra.mxu0 %v2826
      %v3063 = vpop.f32.mrf.mxu0
      %v3064 = vadd.f32 0.0, %v3063
      %v3065 = vpop.f32.mrf.mxu0
      %v3066 = vpop.f32.mrf.mxu0
      %v3067 = vadd.f32 0.0, %v3066
      %v3068 = vpop.f32.mrf.mxu0
      %3069 = vmatprep.mubr.bf16.mxu0 0
      %3070 = vmatmul.mubr.bf16.gmra.mxu0 %v2834
      %v3071 = vpop.f32.mrf.mxu0
      %v3072 = vadd.f32 0.0, %v3071
      %v3073 = vpop.f32.mrf.mxu0
      %v3074 = vpop.f32.mrf.mxu0
      %v3075 = vadd.f32 0.0, %v3074
      %v3076 = vpop.f32.mrf.mxu0
      %3077 = vmatprep.mubr.bf16.mxu0 0
      %3078 = vmatmul.mubr.bf16.gmra.mxu0 %v2842
      %v3079 = vpop.f32.mrf.mxu0
      %v3080 = vadd.f32 0.0, %v3079
      %v3081 = vpop.f32.mrf.mxu0
      %v3082 = vpop.f32.mrf.mxu0
      %v3083 = vadd.f32 0.0, %v3082
      %v3084 = vpop.f32.mrf.mxu0
      %3085 = vmatprep.mubr.bf16.mxu0 0
      %3086 = vmatmul.mubr.bf16.gmra.mxu0 %v2850
      %v3087 = vpop.f32.mrf.mxu0
      %v3088 = vadd.f32 0.0, %v3087
      %v3089 = vpop.f32.mrf.mxu0
      %v3090 = vpop.f32.mrf.mxu0
      %v3091 = vadd.f32 0.0, %v3090
      %v3092 = vpop.f32.mrf.mxu0
      %3093 = vmatprep.mubr.bf16.mxu0 0
      %3094 = vmatmul.mubr.bf16.gmra.mxu0 %v2858
      %v3095 = vpop.f32.mrf.mxu0
      %v3096 = vadd.f32 0.0, %v3095
      %v3097 = vpop.f32.mrf.mxu0
      %v3098 = vpop.f32.mrf.mxu0
      %v3099 = vadd.f32 0.0, %v3098
      %v3100 = vpop.f32.mrf.mxu0
      %3101 = vmatprep.mubr.bf16.mxu0 0
      %3102 = vmatmul.mubr.bf16.gmra.mxu0 %v2866
      %v3103 = vpop.f32.mrf.mxu0
      %v3104 = vadd.f32 0.0, %v3103
      %v3105 = vpop.f32.mrf.mxu0
      %v3106 = vpop.f32.mrf.mxu0
      %v3107 = vadd.f32 0.0, %v3106
      %v3108 = vpop.f32.mrf.mxu0
      %3109 = vmatprep.mubr.bf16.mxu0 0
      %3110 = vmatmul.mubr.bf16.gmra.mxu0 %v2874
      %v3111 = vpop.f32.mrf.mxu0
      %v3112 = vadd.f32 0.0, %v3111
      %v3113 = vpop.f32.mrf.mxu0
      %v3114 = vpop.f32.mrf.mxu0
      %v3115 = vadd.f32 0.0, %v3114
      %v3116 = vpop.f32.mrf.mxu0
      %3117 = vmatprep.mubr.bf16.mxu0 0
      %3118 = vmatmul.mubr.bf16.gmra.mxu0 %v2882
      %v3119 = vpop.f32.mrf.mxu0
      %v3120 = vadd.f32 0.0, %v3119
      %v3121 = vpop.f32.mrf.mxu0
      %v3122 = vpop.f32.mrf.mxu0
      %v3123 = vadd.f32 0.0, %v3122
      %v3124 = vpop.f32.mrf.mxu0
      %3125 = vmatprep.mubr.bf16.mxu0 0
      %3126 = vmatmul.mubr.bf16.gmra.mxu0 %v2890
      %v3127 = vpop.f32.mrf.mxu0
      %v3128 = vadd.f32 0.0, %v3127
      %v3129 = vpop.f32.mrf.mxu0
      %v3130 = vpop.f32.mrf.mxu0
      %v3131 = vadd.f32 0.0, %v3130
      %v3132 = vpop.f32.mrf.mxu0
      %3133 = vmatprep.mubr.bf16.mxu0 0
      %3134 = vmatmul.mubr.bf16.gmra.mxu0 %v2898
      %v3135 = vpop.f32.mrf.mxu0
      %v3136 = vadd.f32 0.0, %v3135
      %v3137 = vpop.f32.mrf.mxu0
      %v3138 = vpop.f32.mrf.mxu0
      %v3139 = vadd.f32 0.0, %v3138
      %v3140 = vpop.f32.mrf.mxu0
      %3141 = vmatprep.mubr.bf16.mxu0 0
      %3142 = vmatmul.mubr.bf16.gmra.mxu0 %v2906
      %v3143 = vpop.f32.mrf.mxu0
      %v3144 = vadd.f32 0.0, %v3143
      %v3145 = vpop.f32.mrf.mxu0
      %v3146 = vpop.f32.mrf.mxu0
      %v3147 = vadd.f32 0.0, %v3146
      %v3148 = vpop.f32.mrf.mxu0
      %3149 = vmatprep.mubr.bf16.mxu0 0
      %3150 = vmatmul.mubr.bf16.gmra.mxu0 %v2914
      %v3151 = vpop.f32.mrf.mxu0
      %v3152 = vadd.f32 0.0, %v3151
      %v3153 = vpop.f32.mrf.mxu0
      %v3154 = vpop.f32.mrf.mxu0
      %v3155 = vadd.f32 0.0, %v3154
      %v3156 = vpop.f32.mrf.mxu0
      %3157 = vmatprep.mubr.bf16.mxu0 0
      %3158 = vmatmul.mubr.bf16.gmra.mxu0 %v2922
      %v3159 = vpop.f32.mrf.mxu0
      %v3160 = vadd.f32 0.0, %v3159
      %v3161 = vpop.f32.mrf.mxu0
      %v3162 = vpop.f32.mrf.mxu0
      %v3163 = vadd.f32 0.0, %v3162
      %v3164 = vpop.f32.mrf.mxu0
      %3165 = vdwg.mxu0
      %v3166 = vadd.f32 %v2591, %v3024
      %v3167 = vadd.f32 %v2592, %v3027
      %v3168 = vadd.f32 %v2593, %v3032
      %v3169 = vadd.f32 %v2594, %v3035
      %v3170 = vadd.f32 %v2595, %v3040
      %v3171 = vadd.f32 %v2596, %v3043
      %v3172 = vadd.f32 %v2597, %v3048
      %v3173 = vadd.f32 %v2598, %v3051
      %v3174 = vadd.f32 %v2599, %v3056
      %v3175 = vadd.f32 %v2600, %v3059
      %v3176 = vadd.f32 %v2601, %v3064
      %v3177 = vadd.f32 %v2602, %v3067
      %v3178 = vadd.f32 %v2603, %v3072
      %v3179 = vadd.f32 %v2604, %v3075
      %v3180 = vadd.f32 %v2605, %v3080
      %v3181 = vadd.f32 %v2606, %v3083
      %v3182 = vadd.f32 %v2607, %v3088
      %v3183 = vadd.f32 %v2608, %v3091
      %v3184 = vadd.f32 %v2609, %v3096
      %v3185 = vadd.f32 %v2610, %v3099
      %v3186 = vadd.f32 %v2611, %v3104
      %v3187 = vadd.f32 %v2612, %v3107
      %v3188 = vadd.f32 %v2613, %v3112
      %v3189 = vadd.f32 %v2614, %v3115
      %v3190 = vadd.f32 %v2615, %v3120
      %v3191 = vadd.f32 %v2616, %v3123
      %v3192 = vadd.f32 %v2617, %v3128
      %v3193 = vadd.f32 %v2618, %v3131
      %v3194 = vadd.f32 %v2619, %v3136
      %v3195 = vadd.f32 %v2620, %v3139
      %v3196 = vadd.f32 %v2621, %v3144
      %v3197 = vadd.f32 %v2622, %v3147
      %v3198 = vadd.f32 %v2623, %v3152
      %v3199 = vadd.f32 %v2624, %v3155
      %v3200 = vadd.f32 %v2625, %v3160
      %v3201 = vadd.f32 %v2626, %v3163
      %v3202 = vld [vmem:[%s462 + $0x18] sm:$0xf]
      %v3203 = vld [vmem:[%s462 + $0x1c] sm:$0xf]
      %v3204 = vld [vmem:[%s462 + $0x20] sm:$0xf]
      %v3205 = vld [vmem:[%s462 + $0x24] sm:$0xf]
      %v3206 = vld [vmem:[%s462 + $0x28] sm:$0xf]
      %v3207 = vld [vmem:[%s462 + $0x2c] sm:$0xf]
      %v3208 = vld [vmem:[%s462 + $0x30] sm:$0xf]
      %v3209 = vld [vmem:[%s462 + $0x34] sm:$0xf]
      %v3210 = vld [vmem:[%s462 + $0x38] sm:$0xf]
      %v3211 = vld [vmem:[%s462 + $0x3c] sm:$0xf]
      %v3212 = vld [vmem:[%s462 + $0x40] sm:$0xf]
      %v3213 = vld [vmem:[%s462 + $0x44] sm:$0xf]
      %v3214 = vld [vmem:[%s462 + $0x48] sm:$0xf]
      %v3215 = vld [vmem:[%s462 + $0x4c] sm:$0xf]
      %v3216 = vld [vmem:[%s462 + $0x50] sm:$0xf]
      %v3217 = vld [vmem:[%s462 + $0x54] sm:$0xf]
      %v3218 = vld [vmem:[%s462 + $0x58] sm:$0xf]
      %v3219 = vld [vmem:[%s462 + $0x5c] sm:$0xf]
      %v3220 = vld [vmem:[%s462 + $0x60] sm:$0xf]
      %v3221 = vld [vmem:[%s462 + $0x64] sm:$0xf]
      %v3222 = vld [vmem:[%s462 + $0x68] sm:$0xf]
      %v3223 = vld [vmem:[%s462 + $0x6c] sm:$0xf]
      %v3224 = vld [vmem:[%s462 + $0x70] sm:$0xf]
      %v3225 = vld [vmem:[%s462 + $0x74] sm:$0xf]
      %v3226 = vld [vmem:[%s462 + $0x78] sm:$0xf]
      %v3227 = vld [vmem:[%s462 + $0x7c] sm:$0xf]
      %v3228 = vld [vmem:[%s462 + $0x80] sm:$0xf]
      %v3229 = vld [vmem:[%s462 + $0x84] sm:$0xf]
      %v3230 = vld [vmem:[%s462 + $0x88] sm:$0xf]
      %v3231 = vld [vmem:[%s462 + $0x8c] sm:$0xf]
      %v3232 = vld [vmem:[%s462 + $0x90] sm:$0xf]
      %v3233 = vld [vmem:[%s462 + $0x94] sm:$0xf]
      %v3234 = vld [vmem:[%s462 + $0x98] sm:$0xf]
      %v3235 = vld [vmem:[%s462 + $0x9c] sm:$0xf]
      %v3236 = vld [vmem:[%s462 + $0xa0] sm:$0xf]
      %v3237 = vld [vmem:[%s462 + $0xa4] sm:$0xf]
      %v3238 = vld [vmem:[%s462 + $0xa8] sm:$0x1]
      %s3239 = scalar_lea.vmem %s1, 384
      %v3240 = vld [vmem:[%s3239] sm:$0xf]
      %v3241 = vld [vmem:[%s3239 + $0x4] sm:$0xf]
      %v3242 = vld [vmem:[%s3239 + $0x8] sm:$0xf]
      %v3243 = vld [vmem:[%s3239 + $0xc] sm:$0xf]
      %v3244 = vld [vmem:[%s3239 + $0x10] sm:$0xf]
      %v3245 = vld [vmem:[%s3239 + $0x14] sm:$0xf]
      %v3246 = vld [vmem:[%s3239 + $0x18] sm:$0xf]
      %v3247 = vld [vmem:[%s3239 + $0x1c] sm:$0xf]
      %v3248 = vld [vmem:[%s3239 + $0x20] sm:$0xf]
      %v3249 = vld [vmem:[%s3239 + $0x24] sm:$0xf]
      %v3250 = vld [vmem:[%s3239 + $0x28] sm:$0xf]
      %v3251 = vld [vmem:[%s3239 + $0x2c] sm:$0xf]
      %v3252 = vld [vmem:[%s3239 + $0x30] sm:$0xf]
      %v3253 = vld [vmem:[%s3239 + $0x34] sm:$0xf]
      %v3254 = vld [vmem:[%s3239 + $0x38] sm:$0xf]
      %v3255 = vld [vmem:[%s3239 + $0x3c] sm:$0xf]
      %v3293 = vunpack.c.l.b16 %v3202
      %v3294 = vunpack.c.l.b16 %v3203
      %v3295 = vunpack.c.l.b16 %v3204
      %v3296 = vunpack.c.l.b16 %v3205
      %v3297 = vunpack.c.l.b16 %v3206
      %v3298 = vunpack.c.l.b16 %v3207
      %v3299 = vunpack.c.l.b16 %v3208
      %v3300 = vunpack.c.l.b16 %v3209
      %v3301 = vunpack.c.l.b16 %v3210
      %v3302 = vunpack.c.l.b16 %v3211
      %v3303 = vunpack.c.l.b16 %v3212
      %v3304 = vunpack.c.l.b16 %v3213
      %v3305 = vunpack.c.l.b16 %v3214
      %v3306 = vunpack.c.l.b16 %v3215
      %v3307 = vunpack.c.l.b16 %v3216
      %v3308 = vunpack.c.l.b16 %v3217
      %v3309 = vunpack.c.l.b16 %v3218
      %v3310 = vunpack.c.l.b16 %v3219
      %v3311 = vunpack.c.l.b16 %v3220
      %v3312 = vunpack.c.l.b16 %v3221
      %v3313 = vunpack.c.l.b16 %v3222
      %v3314 = vunpack.c.l.b16 %v3223
      %v3315 = vunpack.c.l.b16 %v3224
      %v3316 = vunpack.c.l.b16 %v3225
      %v3317 = vunpack.c.l.b16 %v3226
      %v3318 = vunpack.c.l.b16 %v3227
      %v3319 = vunpack.c.l.b16 %v3228
      %v3320 = vunpack.c.l.b16 %v3229
      %v3321 = vunpack.c.l.b16 %v3230
      %v3322 = vunpack.c.l.b16 %v3231
      %v3323 = vunpack.c.l.b16 %v3232
      %v3324 = vunpack.c.l.b16 %v3233
      %v3325 = vunpack.c.l.b16 %v3234
      %v3326 = vunpack.c.l.b16 %v3235
      %v3327 = vunpack.c.l.b16 %v3236
      %v3328 = vunpack.c.l.b16 %v3237
      %v3329 = vunpack.c.l.b16 %v3238
      %v3330 = vpack.c.b16 %v3294, %v3293
      %v3331 = vpack.c.b16 %v3296, %v3295
      %v3332 = vpack.c.b16 %v3298, %v3297
      %v3333 = vpack.c.b16 %v3300, %v3299
      %v3334 = vpack.c.b16 %v3302, %v3301
      %v3335 = vpack.c.b16 %v3304, %v3303
      %v3336 = vpack.c.b16 %v3306, %v3305
      %v3337 = vpack.c.b16 %v3308, %v3307
      %v3338 = vpack.c.b16 %v3310, %v3309
      %v3339 = vpack.c.b16 %v3312, %v3311
      %v3340 = vpack.c.b16 %v3314, %v3313
      %v3341 = vpack.c.b16 %v3316, %v3315
      %v3342 = vpack.c.b16 %v3318, %v3317
      %v3343 = vpack.c.b16 %v3320, %v3319
      %v3344 = vpack.c.b16 %v3322, %v3321
      %v3345 = vpack.c.b16 %v3324, %v3323
      %v3346 = vpack.c.b16 %v3326, %v3325
      %v3347 = vpack.c.b16 %v3328, %v3327
      %v3348 = vpack.c.b16 %v3329, %v3329
      %v3350 = vshrl.u32 %v3330, 16
      %v3352 = vshll.u32 %v3330, 16
      %v3354 = vrot.slane %v3352, 1
      %v3355 = vor.u32 %v3350, %v3354
      %v3357 = vshll.u32 %v3331, 16
      %v3359 = vrot.slane %v3357, 1
      %v3360 = vsel %vm2774, %v3355, %v3359
      %v3361 = vshrl.u32 %v3331, 16
      %v3363 = vor.u32 %v3361, %v3359
      %v3365 = vshll.u32 %v3332, 16
      %v3367 = vrot.slane %v3365, 1
      %v3368 = vsel %vm2774, %v3363, %v3367
      %v3369 = vshrl.u32 %v3332, 16
      %v3371 = vor.u32 %v3369, %v3367
      %v3373 = vshll.u32 %v3333, 16
      %v3375 = vrot.slane %v3373, 1
      %v3376 = vsel %vm2774, %v3371, %v3375
      %v3377 = vshrl.u32 %v3333, 16
      %v3379 = vor.u32 %v3377, %v3375
      %v3381 = vshll.u32 %v3334, 16
      %v3383 = vrot.slane %v3381, 1
      %v3384 = vsel %vm2774, %v3379, %v3383
      %v3385 = vshrl.u32 %v3334, 16
      %v3387 = vor.u32 %v3385, %v3383
      %v3389 = vshll.u32 %v3335, 16
      %v3391 = vrot.slane %v3389, 1
      %v3392 = vsel %vm2774, %v3387, %v3391
      %v3393 = vshrl.u32 %v3335, 16
      %v3395 = vor.u32 %v3393, %v3391
      %v3397 = vshll.u32 %v3336, 16
      %v3399 = vrot.slane %v3397, 1
      %v3400 = vsel %vm2774, %v3395, %v3399
      %v3401 = vshrl.u32 %v3336, 16
      %v3403 = vor.u32 %v3401, %v3399
      %v3405 = vshll.u32 %v3337, 16
      %v3407 = vrot.slane %v3405, 1
      %v3408 = vsel %vm2774, %v3403, %v3407
      %v3409 = vshrl.u32 %v3337, 16
      %v3411 = vor.u32 %v3409, %v3407
      %v3413 = vshll.u32 %v3338, 16
      %v3415 = vrot.slane %v3413, 1
      %v3416 = vsel %vm2774, %v3411, %v3415
      %v3417 = vshrl.u32 %v3338, 16
      %v3419 = vor.u32 %v3417, %v3415
      %v3421 = vshll.u32 %v3339, 16
      %v3423 = vrot.slane %v3421, 1
      %v3424 = vsel %vm2774, %v3419, %v3423
      %v3425 = vshrl.u32 %v3339, 16
      %v3427 = vor.u32 %v3425, %v3423
      %v3429 = vshll.u32 %v3340, 16
      %v3431 = vrot.slane %v3429, 1
      %v3432 = vsel %vm2774, %v3427, %v3431
      %v3433 = vshrl.u32 %v3340, 16
      %v3435 = vor.u32 %v3433, %v3431
      %v3437 = vshll.u32 %v3341, 16
      %v3439 = vrot.slane %v3437, 1
      %v3440 = vsel %vm2774, %v3435, %v3439
      %v3441 = vshrl.u32 %v3341, 16
      %v3443 = vor.u32 %v3441, %v3439
      %v3445 = vshll.u32 %v3342, 16
      %v3447 = vrot.slane %v3445, 1
      %v3448 = vsel %vm2774, %v3443, %v3447
      %v3449 = vshrl.u32 %v3342, 16
      %v3451 = vor.u32 %v3449, %v3447
      %v3453 = vshll.u32 %v3343, 16
      %v3455 = vrot.slane %v3453, 1
      %v3456 = vsel %vm2774, %v3451, %v3455
      %v3457 = vshrl.u32 %v3343, 16
      %v3459 = vor.u32 %v3457, %v3455
      %v3461 = vshll.u32 %v3344, 16
      %v3463 = vrot.slane %v3461, 1
      %v3464 = vsel %vm2774, %v3459, %v3463
      %v3465 = vshrl.u32 %v3344, 16
      %v3467 = vor.u32 %v3465, %v3463
      %v3469 = vshll.u32 %v3345, 16
      %v3471 = vrot.slane %v3469, 1
      %v3472 = vsel %vm2774, %v3467, %v3471
      %v3473 = vshrl.u32 %v3345, 16
      %v3475 = vor.u32 %v3473, %v3471
      %v3477 = vshll.u32 %v3346, 16
      %v3479 = vrot.slane %v3477, 1
      %v3480 = vsel %vm2774, %v3475, %v3479
      %v3481 = vshrl.u32 %v3346, 16
      %v3483 = vor.u32 %v3481, %v3479
      %v3485 = vshll.u32 %v3347, 16
      %v3487 = vrot.slane %v3485, 1
      %v3488 = vsel %vm2774, %v3483, %v3487
      %v3489 = vshrl.u32 %v3347, 16
      %v3491 = vor.u32 %v3489, %v3487
      %v3493 = vshll.u32 %v3348, 16
      %v3495 = vrot.slane %v3493, 1
      %v3496 = vsel %vm2774, %v3491, %v3495
      %v3531 = vunpack.c.l.b16 %v3240
      %v3532 = vunpack.c.l.b16 %v3241
      %v3533 = vunpack.c.l.b16 %v3242
      %v3534 = vunpack.c.l.b16 %v3243
      %v3535 = vunpack.c.l.b16 %v3244
      %v3536 = vunpack.c.l.b16 %v3245
      %v3537 = vunpack.c.l.b16 %v3246
      %v3538 = vunpack.c.l.b16 %v3247
      %v3539 = vunpack.c.l.b16 %v3248
      %v3540 = vunpack.c.l.b16 %v3249
      %v3541 = vunpack.c.l.b16 %v3250
      %v3542 = vunpack.c.l.b16 %v3251
      %v3543 = vunpack.c.l.b16 %v3252
      %v3544 = vunpack.c.l.b16 %v3253
      %v3545 = vunpack.c.l.b16 %v3254
      %v3546 = vunpack.c.l.b16 %v3255
      %v3547 = vpack.c.b16 %v3532, %v3531
      %v3548 = vpack.c.b16 %v3534, %v3533
      %v3549 = vpack.c.b16 %v3536, %v3535
      %v3550 = vpack.c.b16 %v3538, %v3537
      %v3551 = vpack.c.b16 %v3540, %v3539
      %v3552 = vpack.c.b16 %v3542, %v3541
      %v3553 = vpack.c.b16 %v3544, %v3543
      %v3554 = vpack.c.b16 %v3546, %v3545
      %3563 = vmatprep.subr.bf16.mxu0 0
      %3564 = vmatpush1.bf16.msra.mxu0 %v3554
      %3565 = vmatprep.subr.bf16.mxu0 0
      %3566 = vmatpush1.bf16.msra.mxu0 %v3553
      %3567 = vmatprep.subr.bf16.mxu0 0
      %3568 = vmatpush1.bf16.msra.mxu0 %v3552
      %3569 = vmatprep.subr.bf16.mxu0 0
      %3570 = vmatpush1.bf16.msra.mxu0 %v3551
      %3571 = vmatprep.subr.bf16.mxu0 0
      %3572 = vmatpush1.bf16.msra.mxu0 %v3550
      %3573 = vmatprep.subr.bf16.mxu0 0
      %3574 = vmatpush1.bf16.msra.mxu0 %v3549
      %3575 = vmatprep.subr.bf16.mxu0 0
      %3576 = vmatpush1.bf16.msra.mxu0 %v3548
      %3577 = vmatprep.subr.bf16.mxu0 0
      %3578 = vmatpush1.bf16.msra.mxu0 %v3547
      %3579 = vmatprep.subr.bf16.mxu0 0
      %3580 = vmatpush2.bf16.msra.mxu0 0
      %3581 = vmatprep.subr.bf16.mxu0 0
      %3582 = vmatpush2.bf16.msra.mxu0 0
      %3583 = vmatprep.subr.bf16.mxu0 0
      %3584 = vmatpush2.bf16.msra.mxu0 0
      %3585 = vmatprep.subr.bf16.mxu0 0
      %3586 = vmatpush2.bf16.msra.mxu0 0
      %3587 = vmatprep.subr.bf16.mxu0 0
      %3588 = vmatpush2.bf16.msra.mxu0 0
      %3589 = vmatprep.subr.bf16.mxu0 0
      %3590 = vmatpush2.bf16.msra.mxu0 0
      %3591 = vmatprep.subr.bf16.mxu0 0
      %3592 = vmatpush2.bf16.msra.mxu0 0
      %3593 = vmatprep.subr.bf16.mxu0 0
      %3594 = vmatpush2.bf16.msra.mxu0 0
      %3595 = vmatprep.mubr.bf16.mxu0 0
      %3596 = vmatmul.mubr.bf16.gmra.mxu0 %v3360
      %v3597 = vpop.f32.mrf.mxu0
      %v3598 = vadd.f32 0.0, %v3597
      %v3599 = vpop.f32.mrf.mxu0
      %v3600 = vpop.f32.mrf.mxu0
      %v3601 = vadd.f32 0.0, %v3600
      %v3602 = vpop.f32.mrf.mxu0
      %3603 = vmatprep.mubr.bf16.mxu0 0
      %3604 = vmatmul.mubr.bf16.gmra.mxu0 %v3368
      %v3605 = vpop.f32.mrf.mxu0
      %v3606 = vadd.f32 0.0, %v3605
      %v3607 = vpop.f32.mrf.mxu0
      %v3608 = vpop.f32.mrf.mxu0
      %v3609 = vadd.f32 0.0, %v3608
      %v3610 = vpop.f32.mrf.mxu0
      %3611 = vmatprep.mubr.bf16.mxu0 0
      %3612 = vmatmul.mubr.bf16.gmra.mxu0 %v3376
      %v3613 = vpop.f32.mrf.mxu0
      %v3614 = vadd.f32 0.0, %v3613
      %v3615 = vpop.f32.mrf.mxu0
      %v3616 = vpop.f32.mrf.mxu0
      %v3617 = vadd.f32 0.0, %v3616
      %v3618 = vpop.f32.mrf.mxu0
      %3619 = vmatprep.mubr.bf16.mxu0 0
      %3620 = vmatmul.mubr.bf16.gmra.mxu0 %v3384
      %v3621 = vpop.f32.mrf.mxu0
      %v3622 = vadd.f32 0.0, %v3621
      %v3623 = vpop.f32.mrf.mxu0
      %v3624 = vpop.f32.mrf.mxu0
      %v3625 = vadd.f32 0.0, %v3624
      %v3626 = vpop.f32.mrf.mxu0
      %3627 = vmatprep.mubr.bf16.mxu0 0
      %3628 = vmatmul.mubr.bf16.gmra.mxu0 %v3392
      %v3629 = vpop.f32.mrf.mxu0
      %v3630 = vadd.f32 0.0, %v3629
      %v3631 = vpop.f32.mrf.mxu0
      %v3632 = vpop.f32.mrf.mxu0
      %v3633 = vadd.f32 0.0, %v3632
      %v3634 = vpop.f32.mrf.mxu0
      %3635 = vmatprep.mubr.bf16.mxu0 0
      %3636 = vmatmul.mubr.bf16.gmra.mxu0 %v3400
      %v3637 = vpop.f32.mrf.mxu0
      %v3638 = vadd.f32 0.0, %v3637
      %v3639 = vpop.f32.mrf.mxu0
      %v3640 = vpop.f32.mrf.mxu0
      %v3641 = vadd.f32 0.0, %v3640
      %v3642 = vpop.f32.mrf.mxu0
      %3643 = vmatprep.mubr.bf16.mxu0 0
      %3644 = vmatmul.mubr.bf16.gmra.mxu0 %v3408
      %v3645 = vpop.f32.mrf.mxu0
      %v3646 = vadd.f32 0.0, %v3645
      %v3647 = vpop.f32.mrf.mxu0
      %v3648 = vpop.f32.mrf.mxu0
      %v3649 = vadd.f32 0.0, %v3648
      %v3650 = vpop.f32.mrf.mxu0
      %3651 = vmatprep.mubr.bf16.mxu0 0
      %3652 = vmatmul.mubr.bf16.gmra.mxu0 %v3416
      %v3653 = vpop.f32.mrf.mxu0
      %v3654 = vadd.f32 0.0, %v3653
      %v3655 = vpop.f32.mrf.mxu0
      %v3656 = vpop.f32.mrf.mxu0
      %v3657 = vadd.f32 0.0, %v3656
      %v3658 = vpop.f32.mrf.mxu0
      %3659 = vmatprep.mubr.bf16.mxu0 0
      %3660 = vmatmul.mubr.bf16.gmra.mxu0 %v3424
      %v3661 = vpop.f32.mrf.mxu0
      %v3662 = vadd.f32 0.0, %v3661
      %v3663 = vpop.f32.mrf.mxu0
      %v3664 = vpop.f32.mrf.mxu0
      %v3665 = vadd.f32 0.0, %v3664
      %v3666 = vpop.f32.mrf.mxu0
      %3667 = vmatprep.mubr.bf16.mxu0 0
      %3668 = vmatmul.mubr.bf16.gmra.mxu0 %v3432
      %v3669 = vpop.f32.mrf.mxu0
      %v3670 = vadd.f32 0.0, %v3669
      %v3671 = vpop.f32.mrf.mxu0
      %v3672 = vpop.f32.mrf.mxu0
      %v3673 = vadd.f32 0.0, %v3672
      %v3674 = vpop.f32.mrf.mxu0
      %3675 = vmatprep.mubr.bf16.mxu0 0
      %3676 = vmatmul.mubr.bf16.gmra.mxu0 %v3440
      %v3677 = vpop.f32.mrf.mxu0
      %v3678 = vadd.f32 0.0, %v3677
      %v3679 = vpop.f32.mrf.mxu0
      %v3680 = vpop.f32.mrf.mxu0
      %v3681 = vadd.f32 0.0, %v3680
      %v3682 = vpop.f32.mrf.mxu0
      %3683 = vmatprep.mubr.bf16.mxu0 0
      %3684 = vmatmul.mubr.bf16.gmra.mxu0 %v3448
      %v3685 = vpop.f32.mrf.mxu0
      %v3686 = vadd.f32 0.0, %v3685
      %v3687 = vpop.f32.mrf.mxu0
      %v3688 = vpop.f32.mrf.mxu0
      %v3689 = vadd.f32 0.0, %v3688
      %v3690 = vpop.f32.mrf.mxu0
      %3691 = vmatprep.mubr.bf16.mxu0 0
      %3692 = vmatmul.mubr.bf16.gmra.mxu0 %v3456
      %v3693 = vpop.f32.mrf.mxu0
      %v3694 = vadd.f32 0.0, %v3693
      %v3695 = vpop.f32.mrf.mxu0
      %v3696 = vpop.f32.mrf.mxu0
      %v3697 = vadd.f32 0.0, %v3696
      %v3698 = vpop.f32.mrf.mxu0
      %3699 = vmatprep.mubr.bf16.mxu0 0
      %3700 = vmatmul.mubr.bf16.gmra.mxu0 %v3464
      %v3701 = vpop.f32.mrf.mxu0
      %v3702 = vadd.f32 0.0, %v3701
      %v3703 = vpop.f32.mrf.mxu0
      %v3704 = vpop.f32.mrf.mxu0
      %v3705 = vadd.f32 0.0, %v3704
      %v3706 = vpop.f32.mrf.mxu0
      %3707 = vmatprep.mubr.bf16.mxu0 0
      %3708 = vmatmul.mubr.bf16.gmra.mxu0 %v3472
      %v3709 = vpop.f32.mrf.mxu0
      %v3710 = vadd.f32 0.0, %v3709
      %v3711 = vpop.f32.mrf.mxu0
      %v3712 = vpop.f32.mrf.mxu0
      %v3713 = vadd.f32 0.0, %v3712
      %v3714 = vpop.f32.mrf.mxu0
      %3715 = vmatprep.mubr.bf16.mxu0 0
      %3716 = vmatmul.mubr.bf16.gmra.mxu0 %v3480
      %v3717 = vpop.f32.mrf.mxu0
      %v3718 = vadd.f32 0.0, %v3717
      %v3719 = vpop.f32.mrf.mxu0
      %v3720 = vpop.f32.mrf.mxu0
      %v3721 = vadd.f32 0.0, %v3720
      %v3722 = vpop.f32.mrf.mxu0
      %3723 = vmatprep.mubr.bf16.mxu0 0
      %3724 = vmatmul.mubr.bf16.gmra.mxu0 %v3488
      %v3725 = vpop.f32.mrf.mxu0
      %v3726 = vadd.f32 0.0, %v3725
      %v3727 = vpop.f32.mrf.mxu0
      %v3728 = vpop.f32.mrf.mxu0
      %v3729 = vadd.f32 0.0, %v3728
      %v3730 = vpop.f32.mrf.mxu0
      %3731 = vmatprep.mubr.bf16.mxu0 0
      %3732 = vmatmul.mubr.bf16.gmra.mxu0 %v3496
      %v3733 = vpop.f32.mrf.mxu0
      %v3734 = vadd.f32 0.0, %v3733
      %v3735 = vpop.f32.mrf.mxu0
      %v3736 = vpop.f32.mrf.mxu0
      %v3737 = vadd.f32 0.0, %v3736
      %v3738 = vpop.f32.mrf.mxu0
      %3739 = vdwg.mxu0
      %v3740 = vadd.f32 %v3166, %v3598
      %v3741 = vadd.f32 %v3167, %v3601
      %v3742 = vadd.f32 %v3168, %v3606
      %v3743 = vadd.f32 %v3169, %v3609
      %v3744 = vadd.f32 %v3170, %v3614
      %v3745 = vadd.f32 %v3171, %v3617
      %v3746 = vadd.f32 %v3172, %v3622
      %v3747 = vadd.f32 %v3173, %v3625
      %v3748 = vadd.f32 %v3174, %v3630
      %v3749 = vadd.f32 %v3175, %v3633
      %v3750 = vadd.f32 %v3176, %v3638
      %v3751 = vadd.f32 %v3177, %v3641
      %v3752 = vadd.f32 %v3178, %v3646
      %v3753 = vadd.f32 %v3179, %v3649
      %v3754 = vadd.f32 %v3180, %v3654
      %v3755 = vadd.f32 %v3181, %v3657
      %v3756 = vadd.f32 %v3182, %v3662
      %v3757 = vadd.f32 %v3183, %v3665
      %v3758 = vadd.f32 %v3184, %v3670
      %v3759 = vadd.f32 %v3185, %v3673
      %v3760 = vadd.f32 %v3186, %v3678
      %v3761 = vadd.f32 %v3187, %v3681
      %v3762 = vadd.f32 %v3188, %v3686
      %v3763 = vadd.f32 %v3189, %v3689
      %v3764 = vadd.f32 %v3190, %v3694
      %v3765 = vadd.f32 %v3191, %v3697
      %v3766 = vadd.f32 %v3192, %v3702
      %v3767 = vadd.f32 %v3193, %v3705
      %v3768 = vadd.f32 %v3194, %v3710
      %v3769 = vadd.f32 %v3195, %v3713
      %v3770 = vadd.f32 %v3196, %v3718
      %v3771 = vadd.f32 %v3197, %v3721
      %v3772 = vadd.f32 %v3198, %v3726
      %v3773 = vadd.f32 %v3199, %v3729
      %v3774 = vadd.f32 %v3200, %v3734
      %v3775 = vadd.f32 %v3201, %v3737
      %v3776 = vld [vmem:[%s462 + $0x18] sm:$0xe]
      %s3777 = scalar_lea.vmem %s1, 448
      %v3778 = vld [vmem:[%s3777] sm:$0xf]
      %v3779 = vld [vmem:[%s3777 + $0x4] sm:$0xf]
      %v3780 = vld [vmem:[%s3777 + $0x8] sm:$0xf]
      %v3781 = vld [vmem:[%s3777 + $0xc] sm:$0xf]
      %v3782 = vld [vmem:[%s3777 + $0x10] sm:$0xf]
      %v3783 = vld [vmem:[%s3777 + $0x14] sm:$0xf]
      %v3784 = vld [vmem:[%s3777 + $0x18] sm:$0xf]
      %v3785 = vld [vmem:[%s3777 + $0x1c] sm:$0xf]
      %v3786 = vld [vmem:[%s3777 + $0x20] sm:$0xf]
      %v3787 = vld [vmem:[%s3777 + $0x24] sm:$0xf]
      %v3788 = vld [vmem:[%s3777 + $0x28] sm:$0xf]
      %v3789 = vld [vmem:[%s3777 + $0x2c] sm:$0xf]
      %v3790 = vld [vmem:[%s3777 + $0x30] sm:$0xf]
      %v3791 = vld [vmem:[%s3777 + $0x34] sm:$0xf]
      %v3792 = vld [vmem:[%s3777 + $0x38] sm:$0xf]
      %v3793 = vld [vmem:[%s3777 + $0x3c] sm:$0xf]
      %v3795 = vunpack.c.l.b16 %v3776
      %v3796 = vpack.c.b16 %v3294, %v3795
      %vm3797 = vcmask 1046528
      %v3798 = vrot.slane %v3796, 1
      %v3799 = vrot.slane %v3331, 1
      %v3800 = vsel %vm3797, %v3798, %v3799
      %v3801 = vrot.slane %v3332, 1
      %v3802 = vsel %vm3797, %v3799, %v3801
      %v3803 = vrot.slane %v3333, 1
      %v3804 = vsel %vm3797, %v3801, %v3803
      %v3805 = vrot.slane %v3334, 1
      %v3806 = vsel %vm3797, %v3803, %v3805
      %v3807 = vrot.slane %v3335, 1
      %v3808 = vsel %vm3797, %v3805, %v3807
      %v3809 = vrot.slane %v3336, 1
      %v3810 = vsel %vm3797, %v3807, %v3809
      %v3811 = vrot.slane %v3337, 1
      %v3812 = vsel %vm3797, %v3809, %v3811
      %v3813 = vrot.slane %v3338, 1
      %v3814 = vsel %vm3797, %v3811, %v3813
      %v3815 = vrot.slane %v3339, 1
      %v3816 = vsel %vm3797, %v3813, %v3815
      %v3817 = vrot.slane %v3340, 1
      %v3818 = vsel %vm3797, %v3815, %v3817
      %v3819 = vrot.slane %v3341, 1
      %v3820 = vsel %vm3797, %v3817, %v3819
      %v3821 = vrot.slane %v3342, 1
      %v3822 = vsel %vm3797, %v3819, %v3821
      %v3823 = vrot.slane %v3343, 1
      %v3824 = vsel %vm3797, %v3821, %v3823
      %v3825 = vrot.slane %v3344, 1
      %v3826 = vsel %vm3797, %v3823, %v3825
      %v3827 = vrot.slane %v3345, 1
      %v3828 = vsel %vm3797, %v3825, %v3827
      %v3829 = vrot.slane %v3346, 1
      %v3830 = vsel %vm3797, %v3827, %v3829
      %v3831 = vrot.slane %v3347, 1
      %v3832 = vsel %vm3797, %v3829, %v3831
      %v3833 = vrot.slane %v3348, 1
      %v3834 = vsel %vm3797, %v3831, %v3833
      %v3869 = vunpack.c.l.b16 %v3778
      %v3870 = vunpack.c.l.b16 %v3779
      %v3871 = vunpack.c.l.b16 %v3780
      %v3872 = vunpack.c.l.b16 %v3781
      %v3873 = vunpack.c.l.b16 %v3782
      %v3874 = vunpack.c.l.b16 %v3783
      %v3875 = vunpack.c.l.b16 %v3784
      %v3876 = vunpack.c.l.b16 %v3785
      %v3877 = vunpack.c.l.b16 %v3786
      %v3878 = vunpack.c.l.b16 %v3787
      %v3879 = vunpack.c.l.b16 %v3788
      %v3880 = vunpack.c.l.b16 %v3789
      %v3881 = vunpack.c.l.b16 %v3790
      %v3882 = vunpack.c.l.b16 %v3791
      %v3883 = vunpack.c.l.b16 %v3792
      %v3884 = vunpack.c.l.b16 %v3793
      %v3885 = vpack.c.b16 %v3870, %v3869
      %v3886 = vpack.c.b16 %v3872, %v3871
      %v3887 = vpack.c.b16 %v3874, %v3873
      %v3888 = vpack.c.b16 %v3876, %v3875
      %v3889 = vpack.c.b16 %v3878, %v3877
      %v3890 = vpack.c.b16 %v3880, %v3879
      %v3891 = vpack.c.b16 %v3882, %v3881
      %v3892 = vpack.c.b16 %v3884, %v3883
      %3901 = vmatprep.subr.bf16.mxu0 0
      %3902 = vmatpush1.bf16.msra.mxu0 %v3892
      %3903 = vmatprep.subr.bf16.mxu0 0
      %3904 = vmatpush1.bf16.msra.mxu0 %v3891
      %3905 = vmatprep.subr.bf16.mxu0 0
      %3906 = vmatpush1.bf16.msra.mxu0 %v3890
      %3907 = vmatprep.subr.bf16.mxu0 0
      %3908 = vmatpush1.bf16.msra.mxu0 %v3889
      %3909 = vmatprep.subr.bf16.mxu0 0
      %3910 = vmatpush1.bf16.msra.mxu0 %v3888
      %3911 = vmatprep.subr.bf16.mxu0 0
      %3912 = vmatpush1.bf16.msra.mxu0 %v3887
      %3913 = vmatprep.subr.bf16.mxu0 0
      %3914 = vmatpush1.bf16.msra.mxu0 %v3886
      %3915 = vmatprep.subr.bf16.mxu0 0
      %3916 = vmatpush1.bf16.msra.mxu0 %v3885
      %3917 = vmatprep.subr.bf16.mxu0 0
      %3918 = vmatpush2.bf16.msra.mxu0 0
      %3919 = vmatprep.subr.bf16.mxu0 0
      %3920 = vmatpush2.bf16.msra.mxu0 0
      %3921 = vmatprep.subr.bf16.mxu0 0
      %3922 = vmatpush2.bf16.msra.mxu0 0
      %3923 = vmatprep.subr.bf16.mxu0 0
      %3924 = vmatpush2.bf16.msra.mxu0 0
      %3925 = vmatprep.subr.bf16.mxu0 0
      %3926 = vmatpush2.bf16.msra.mxu0 0
      %3927 = vmatprep.subr.bf16.mxu0 0
      %3928 = vmatpush2.bf16.msra.mxu0 0
      %3929 = vmatprep.subr.bf16.mxu0 0
      %3930 = vmatpush2.bf16.msra.mxu0 0
      %3931 = vmatprep.subr.bf16.mxu0 0
      %3932 = vmatpush2.bf16.msra.mxu0 0
      %3933 = vmatprep.mubr.bf16.mxu0 0
      %3934 = vmatmul.mubr.bf16.gmra.mxu0 %v3800
      %v3935 = vpop.f32.mrf.mxu0
      %v3936 = vadd.f32 0.0, %v3935
      %v3937 = vpop.f32.mrf.mxu0
      %v3938 = vpop.f32.mrf.mxu0
      %v3939 = vadd.f32 0.0, %v3938
      %v3940 = vpop.f32.mrf.mxu0
      %3941 = vmatprep.mubr.bf16.mxu0 0
      %3942 = vmatmul.mubr.bf16.gmra.mxu0 %v3802
      %v3943 = vpop.f32.mrf.mxu0
      %v3944 = vadd.f32 0.0, %v3943
      %v3945 = vpop.f32.mrf.mxu0
      %v3946 = vpop.f32.mrf.mxu0
      %v3947 = vadd.f32 0.0, %v3946
      %v3948 = vpop.f32.mrf.mxu0
      %3949 = vmatprep.mubr.bf16.mxu0 0
      %3950 = vmatmul.mubr.bf16.gmra.mxu0 %v3804
      %v3951 = vpop.f32.mrf.mxu0
      %v3952 = vadd.f32 0.0, %v3951
      %v3953 = vpop.f32.mrf.mxu0
      %v3954 = vpop.f32.mrf.mxu0
      %v3955 = vadd.f32 0.0, %v3954
      %v3956 = vpop.f32.mrf.mxu0
      %3957 = vmatprep.mubr.bf16.mxu0 0
      %3958 = vmatmul.mubr.bf16.gmra.mxu0 %v3806
      %v3959 = vpop.f32.mrf.mxu0
      %v3960 = vadd.f32 0.0, %v3959
      %v3961 = vpop.f32.mrf.mxu0
      %v3962 = vpop.f32.mrf.mxu0
      %v3963 = vadd.f32 0.0, %v3962
      %v3964 = vpop.f32.mrf.mxu0
      %3965 = vmatprep.mubr.bf16.mxu0 0
      %3966 = vmatmul.mubr.bf16.gmra.mxu0 %v3808
      %v3967 = vpop.f32.mrf.mxu0
      %v3968 = vadd.f32 0.0, %v3967
      %v3969 = vpop.f32.mrf.mxu0
      %v3970 = vpop.f32.mrf.mxu0
      %v3971 = vadd.f32 0.0, %v3970
      %v3972 = vpop.f32.mrf.mxu0
      %3973 = vmatprep.mubr.bf16.mxu0 0
      %3974 = vmatmul.mubr.bf16.gmra.mxu0 %v3810
      %v3975 = vpop.f32.mrf.mxu0
      %v3976 = vadd.f32 0.0, %v3975
      %v3977 = vpop.f32.mrf.mxu0
      %v3978 = vpop.f32.mrf.mxu0
      %v3979 = vadd.f32 0.0, %v3978
      %v3980 = vpop.f32.mrf.mxu0
      %3981 = vmatprep.mubr.bf16.mxu0 0
      %3982 = vmatmul.mubr.bf16.gmra.mxu0 %v3812
      %v3983 = vpop.f32.mrf.mxu0
      %v3984 = vadd.f32 0.0, %v3983
      %v3985 = vpop.f32.mrf.mxu0
      %v3986 = vpop.f32.mrf.mxu0
      %v3987 = vadd.f32 0.0, %v3986
      %v3988 = vpop.f32.mrf.mxu0
      %3989 = vmatprep.mubr.bf16.mxu0 0
      %3990 = vmatmul.mubr.bf16.gmra.mxu0 %v3814
      %v3991 = vpop.f32.mrf.mxu0
      %v3992 = vadd.f32 0.0, %v3991
      %v3993 = vpop.f32.mrf.mxu0
      %v3994 = vpop.f32.mrf.mxu0
      %v3995 = vadd.f32 0.0, %v3994
      %v3996 = vpop.f32.mrf.mxu0
      %3997 = vmatprep.mubr.bf16.mxu0 0
      %3998 = vmatmul.mubr.bf16.gmra.mxu0 %v3816
      %v3999 = vpop.f32.mrf.mxu0
      %v4000 = vadd.f32 0.0, %v3999
      %v4001 = vpop.f32.mrf.mxu0
      %v4002 = vpop.f32.mrf.mxu0
      %v4003 = vadd.f32 0.0, %v4002
      %v4004 = vpop.f32.mrf.mxu0
      %4005 = vmatprep.mubr.bf16.mxu0 0
      %4006 = vmatmul.mubr.bf16.gmra.mxu0 %v3818
      %v4007 = vpop.f32.mrf.mxu0
      %v4008 = vadd.f32 0.0, %v4007
      %v4009 = vpop.f32.mrf.mxu0
      %v4010 = vpop.f32.mrf.mxu0
      %v4011 = vadd.f32 0.0, %v4010
      %v4012 = vpop.f32.mrf.mxu0
      %4013 = vmatprep.mubr.bf16.mxu0 0
      %4014 = vmatmul.mubr.bf16.gmra.mxu0 %v3820
      %v4015 = vpop.f32.mrf.mxu0
      %v4016 = vadd.f32 0.0, %v4015
      %v4017 = vpop.f32.mrf.mxu0
      %v4018 = vpop.f32.mrf.mxu0
      %v4019 = vadd.f32 0.0, %v4018
      %v4020 = vpop.f32.mrf.mxu0
      %4021 = vmatprep.mubr.bf16.mxu0 0
      %4022 = vmatmul.mubr.bf16.gmra.mxu0 %v3822
      %v4023 = vpop.f32.mrf.mxu0
      %v4024 = vadd.f32 0.0, %v4023
      %v4025 = vpop.f32.mrf.mxu0
      %v4026 = vpop.f32.mrf.mxu0
      %v4027 = vadd.f32 0.0, %v4026
      %v4028 = vpop.f32.mrf.mxu0
      %4029 = vmatprep.mubr.bf16.mxu0 0
      %4030 = vmatmul.mubr.bf16.gmra.mxu0 %v3824
      %v4031 = vpop.f32.mrf.mxu0
      %v4032 = vadd.f32 0.0, %v4031
      %v4033 = vpop.f32.mrf.mxu0
      %v4034 = vpop.f32.mrf.mxu0
      %v4035 = vadd.f32 0.0, %v4034
      %v4036 = vpop.f32.mrf.mxu0
      %4037 = vmatprep.mubr.bf16.mxu0 0
      %4038 = vmatmul.mubr.bf16.gmra.mxu0 %v3826
      %v4039 = vpop.f32.mrf.mxu0
      %v4040 = vadd.f32 0.0, %v4039
      %v4041 = vpop.f32.mrf.mxu0
      %v4042 = vpop.f32.mrf.mxu0
      %v4043 = vadd.f32 0.0, %v4042
      %v4044 = vpop.f32.mrf.mxu0
      %4045 = vmatprep.mubr.bf16.mxu0 0
      %4046 = vmatmul.mubr.bf16.gmra.mxu0 %v3828
      %v4047 = vpop.f32.mrf.mxu0
      %v4048 = vadd.f32 0.0, %v4047
      %v4049 = vpop.f32.mrf.mxu0
      %v4050 = vpop.f32.mrf.mxu0
      %v4051 = vadd.f32 0.0, %v4050
      %v4052 = vpop.f32.mrf.mxu0
      %4053 = vmatprep.mubr.bf16.mxu0 0
      %4054 = vmatmul.mubr.bf16.gmra.mxu0 %v3830
      %v4055 = vpop.f32.mrf.mxu0
      %v4056 = vadd.f32 0.0, %v4055
      %v4057 = vpop.f32.mrf.mxu0
      %v4058 = vpop.f32.mrf.mxu0
      %v4059 = vadd.f32 0.0, %v4058
      %v4060 = vpop.f32.mrf.mxu0
      %4061 = vmatprep.mubr.bf16.mxu0 0
      %4062 = vmatmul.mubr.bf16.gmra.mxu0 %v3832
      %v4063 = vpop.f32.mrf.mxu0
      %v4064 = vadd.f32 0.0, %v4063
      %v4065 = vpop.f32.mrf.mxu0
      %v4066 = vpop.f32.mrf.mxu0
      %v4067 = vadd.f32 0.0, %v4066
      %v4068 = vpop.f32.mrf.mxu0
      %4069 = vmatprep.mubr.bf16.mxu0 0
      %4070 = vmatmul.mubr.bf16.gmra.mxu0 %v3834
      %v4071 = vpop.f32.mrf.mxu0
      %v4072 = vadd.f32 0.0, %v4071
      %v4073 = vpop.f32.mrf.mxu0
      %v4074 = vpop.f32.mrf.mxu0
      %v4075 = vadd.f32 0.0, %v4074
      %v4076 = vpop.f32.mrf.mxu0
      %4077 = vdwg.mxu0
      %v4078 = vadd.f32 %v3740, %v3936
      %v4079 = vadd.f32 %v3741, %v3939
      %v4080 = vadd.f32 %v3742, %v3944
      %v4081 = vadd.f32 %v3743, %v3947
      %v4082 = vadd.f32 %v3744, %v3952
      %v4083 = vadd.f32 %v3745, %v3955
      %v4084 = vadd.f32 %v3746, %v3960
      %v4085 = vadd.f32 %v3747, %v3963
      %v4086 = vadd.f32 %v3748, %v3968
      %v4087 = vadd.f32 %v3749, %v3971
      %v4088 = vadd.f32 %v3750, %v3976
      %v4089 = vadd.f32 %v3751, %v3979
      %v4090 = vadd.f32 %v3752, %v3984
      %v4091 = vadd.f32 %v3753, %v3987
      %v4092 = vadd.f32 %v3754, %v3992
      %v4093 = vadd.f32 %v3755, %v3995
      %v4094 = vadd.f32 %v3756, %v4000
      %v4095 = vadd.f32 %v3757, %v4003
      %v4096 = vadd.f32 %v3758, %v4008
      %v4097 = vadd.f32 %v3759, %v4011
      %v4098 = vadd.f32 %v3760, %v4016
      %v4099 = vadd.f32 %v3761, %v4019
      %v4100 = vadd.f32 %v3762, %v4024
      %v4101 = vadd.f32 %v3763, %v4027
      %v4102 = vadd.f32 %v3764, %v4032
      %v4103 = vadd.f32 %v3765, %v4035
      %v4104 = vadd.f32 %v3766, %v4040
      %v4105 = vadd.f32 %v3767, %v4043
      %v4106 = vadd.f32 %v3768, %v4048
      %v4107 = vadd.f32 %v3769, %v4051
      %v4108 = vadd.f32 %v3770, %v4056
      %v4109 = vadd.f32 %v3771, %v4059
      %v4110 = vadd.f32 %v3772, %v4064
      %v4111 = vadd.f32 %v3773, %v4067
      %v4112 = vadd.f32 %v3774, %v4072
      %v4113 = vadd.f32 %v3775, %v4075
      %v4114 = vld [vmem:[%s462 + $0xa8] sm:$0x3]
      %s4115 = scalar_lea.vmem %s1, 512
      %v4116 = vld [vmem:[%s4115] sm:$0xf]
      %v4117 = vld [vmem:[%s4115 + $0x4] sm:$0xf]
      %v4118 = vld [vmem:[%s4115 + $0x8] sm:$0xf]
      %v4119 = vld [vmem:[%s4115 + $0xc] sm:$0xf]
      %v4120 = vld [vmem:[%s4115 + $0x10] sm:$0xf]
      %v4121 = vld [vmem:[%s4115 + $0x14] sm:$0xf]
      %v4122 = vld [vmem:[%s4115 + $0x18] sm:$0xf]
      %v4123 = vld [vmem:[%s4115 + $0x1c] sm:$0xf]
      %v4124 = vld [vmem:[%s4115 + $0x20] sm:$0xf]
      %v4125 = vld [vmem:[%s4115 + $0x24] sm:$0xf]
      %v4126 = vld [vmem:[%s4115 + $0x28] sm:$0xf]
      %v4127 = vld [vmem:[%s4115 + $0x2c] sm:$0xf]
      %v4128 = vld [vmem:[%s4115 + $0x30] sm:$0xf]
      %v4129 = vld [vmem:[%s4115 + $0x34] sm:$0xf]
      %v4130 = vld [vmem:[%s4115 + $0x38] sm:$0xf]
      %v4131 = vld [vmem:[%s4115 + $0x3c] sm:$0xf]
      %v4133 = vunpack.c.l.b16 %v4114
      %v4134 = vpack.c.b16 %v4133, %v4133
      %vm4135 = vsmask.f32 6400
      %v4137 = vshrl.u32 %v3796, 16
      %v4139 = vrot.slane %v4137, 1
      %v4140 = vshll.u32 %v3796, 16
      %v4142 = vrot.slane %v4140, 2
      %v4143 = vor.u32 %v4139, %v4142
      %v4144 = vrot.slane %v3361, 1
      %v4145 = vrot.slane %v3357, 2
      %v4146 = vor.u32 %v4144, %v4145
      %v4147 = vsel %vm4135, %v4143, %v4146
      %v4148 = vrot.slane %v3369, 1
      %v4149 = vrot.slane %v3365, 2
      %v4150 = vor.u32 %v4148, %v4149
      %v4151 = vsel %vm4135, %v4146, %v4150
      %v4152 = vrot.slane %v3377, 1
      %v4153 = vrot.slane %v3373, 2
      %v4154 = vor.u32 %v4152, %v4153
      %v4155 = vsel %vm4135, %v4150, %v4154
      %v4156 = vrot.slane %v3385, 1
      %v4157 = vrot.slane %v3381, 2
      %v4158 = vor.u32 %v4156, %v4157
      %v4159 = vsel %vm4135, %v4154, %v4158
      %v4160 = vrot.slane %v3393, 1
      %v4161 = vrot.slane %v3389, 2
      %v4162 = vor.u32 %v4160, %v4161
      %v4163 = vsel %vm4135, %v4158, %v4162
      %v4164 = vrot.slane %v3401, 1
      %v4165 = vrot.slane %v3397, 2
      %v4166 = vor.u32 %v4164, %v4165
      %v4167 = vsel %vm4135, %v4162, %v4166
      %v4168 = vrot.slane %v3409, 1
      %v4169 = vrot.slane %v3405, 2
      %v4170 = vor.u32 %v4168, %v4169
      %v4171 = vsel %vm4135, %v4166, %v4170
      %v4172 = vrot.slane %v3417, 1
      %v4173 = vrot.slane %v3413, 2
      %v4174 = vor.u32 %v4172, %v4173
      %v4175 = vsel %vm4135, %v4170, %v4174
      %v4176 = vrot.slane %v3425, 1
      %v4177 = vrot.slane %v3421, 2
      %v4178 = vor.u32 %v4176, %v4177
      %v4179 = vsel %vm4135, %v4174, %v4178
      %v4180 = vrot.slane %v3433, 1
      %v4181 = vrot.slane %v3429, 2
      %v4182 = vor.u32 %v4180, %v4181
      %v4183 = vsel %vm4135, %v4178, %v4182
      %v4184 = vrot.slane %v3441, 1
      %v4185 = vrot.slane %v3437, 2
      %v4186 = vor.u32 %v4184, %v4185
      %v4187 = vsel %vm4135, %v4182, %v4186
      %v4188 = vrot.slane %v3449, 1
      %v4189 = vrot.slane %v3445, 2
      %v4190 = vor.u32 %v4188, %v4189
      %v4191 = vsel %vm4135, %v4186, %v4190
      %v4192 = vrot.slane %v3457, 1
      %v4193 = vrot.slane %v3453, 2
      %v4194 = vor.u32 %v4192, %v4193
      %v4195 = vsel %vm4135, %v4190, %v4194
      %v4196 = vrot.slane %v3465, 1
      %v4197 = vrot.slane %v3461, 2
      %v4198 = vor.u32 %v4196, %v4197
      %v4199 = vsel %vm4135, %v4194, %v4198
      %v4200 = vrot.slane %v3473, 1
      %v4201 = vrot.slane %v3469, 2
      %v4202 = vor.u32 %v4200, %v4201
      %v4203 = vsel %vm4135, %v4198, %v4202
      %v4204 = vrot.slane %v3481, 1
      %v4205 = vrot.slane %v3477, 2
      %v4206 = vor.u32 %v4204, %v4205
      %v4207 = vsel %vm4135, %v4202, %v4206
      %v4208 = vrot.slane %v3489, 1
      %v4209 = vrot.slane %v3485, 2
      %v4210 = vor.u32 %v4208, %v4209
      %v4211 = vsel %vm4135, %v4206, %v4210
      %v4213 = vshrl.u32 %v4134, 16
      %v4215 = vrot.slane %v4213, 1
      %v4216 = vshll.u32 %v4134, 16
      %v4218 = vrot.slane %v4216, 2
      %v4219 = vor.u32 %v4215, %v4218
      %v4220 = vsel %vm4135, %v4210, %v4219
      %v4255 = vunpack.c.l.b16 %v4116
      %v4256 = vunpack.c.l.b16 %v4117
      %v4257 = vunpack.c.l.b16 %v4118
      %v4258 = vunpack.c.l.b16 %v4119
      %v4259 = vunpack.c.l.b16 %v4120
      %v4260 = vunpack.c.l.b16 %v4121
      %v4261 = vunpack.c.l.b16 %v4122
      %v4262 = vunpack.c.l.b16 %v4123
      %v4263 = vunpack.c.l.b16 %v4124
      %v4264 = vunpack.c.l.b16 %v4125
      %v4265 = vunpack.c.l.b16 %v4126
      %v4266 = vunpack.c.l.b16 %v4127
      %v4267 = vunpack.c.l.b16 %v4128
      %v4268 = vunpack.c.l.b16 %v4129
      %v4269 = vunpack.c.l.b16 %v4130
      %v4270 = vunpack.c.l.b16 %v4131
      %v4271 = vpack.c.b16 %v4256, %v4255
      %v4272 = vpack.c.b16 %v4258, %v4257
      %v4273 = vpack.c.b16 %v4260, %v4259
      %v4274 = vpack.c.b16 %v4262, %v4261
      %v4275 = vpack.c.b16 %v4264, %v4263
      %v4276 = vpack.c.b16 %v4266, %v4265
      %v4277 = vpack.c.b16 %v4268, %v4267
      %v4278 = vpack.c.b16 %v4270, %v4269
      %4287 = vmatprep.subr.bf16.mxu0 0
      %4288 = vmatpush1.bf16.msra.mxu0 %v4278
      %4289 = vmatprep.subr.bf16.mxu0 0
      %4290 = vmatpush1.bf16.msra.mxu0 %v4277
      %4291 = vmatprep.subr.bf16.mxu0 0
      %4292 = vmatpush1.bf16.msra.mxu0 %v4276
      %4293 = vmatprep.subr.bf16.mxu0 0
      %4294 = vmatpush1.bf16.msra.mxu0 %v4275
      %4295 = vmatprep.subr.bf16.mxu0 0
      %4296 = vmatpush1.bf16.msra.mxu0 %v4274
      %4297 = vmatprep.subr.bf16.mxu0 0
      %4298 = vmatpush1.bf16.msra.mxu0 %v4273
      %4299 = vmatprep.subr.bf16.mxu0 0
      %4300 = vmatpush1.bf16.msra.mxu0 %v4272
      %4301 = vmatprep.subr.bf16.mxu0 0
      %4302 = vmatpush1.bf16.msra.mxu0 %v4271
      %4303 = vmatprep.subr.bf16.mxu0 0
      %4304 = vmatpush2.bf16.msra.mxu0 0
      %4305 = vmatprep.subr.bf16.mxu0 0
      %4306 = vmatpush2.bf16.msra.mxu0 0
      %4307 = vmatprep.subr.bf16.mxu0 0
      %4308 = vmatpush2.bf16.msra.mxu0 0
      %4309 = vmatprep.subr.bf16.mxu0 0
      %4310 = vmatpush2.bf16.msra.mxu0 0
      %4311 = vmatprep.subr.bf16.mxu0 0
      %4312 = vmatpush2.bf16.msra.mxu0 0
      %4313 = vmatprep.subr.bf16.mxu0 0
      %4314 = vmatpush2.bf16.msra.mxu0 0
      %4315 = vmatprep.subr.bf16.mxu0 0
      %4316 = vmatpush2.bf16.msra.mxu0 0
      %4317 = vmatprep.subr.bf16.mxu0 0
      %4318 = vmatpush2.bf16.msra.mxu0 0
      %4319 = vmatprep.mubr.bf16.mxu0 0
      %4320 = vmatmul.mubr.bf16.gmra.mxu0 %v4147
      %v4321 = vpop.f32.mrf.mxu0
      %v4322 = vadd.f32 0.0, %v4321
      %v4323 = vpop.f32.mrf.mxu0
      %v4324 = vpop.f32.mrf.mxu0
      %v4325 = vadd.f32 0.0, %v4324
      %v4326 = vpop.f32.mrf.mxu0
      %4327 = vmatprep.mubr.bf16.mxu0 0
      %4328 = vmatmul.mubr.bf16.gmra.mxu0 %v4151
      %v4329 = vpop.f32.mrf.mxu0
      %v4330 = vadd.f32 0.0, %v4329
      %v4331 = vpop.f32.mrf.mxu0
      %v4332 = vpop.f32.mrf.mxu0
      %v4333 = vadd.f32 0.0, %v4332
      %v4334 = vpop.f32.mrf.mxu0
      %4335 = vmatprep.mubr.bf16.mxu0 0
      %4336 = vmatmul.mubr.bf16.gmra.mxu0 %v4155
      %v4337 = vpop.f32.mrf.mxu0
      %v4338 = vadd.f32 0.0, %v4337
      %v4339 = vpop.f32.mrf.mxu0
      %v4340 = vpop.f32.mrf.mxu0
      %v4341 = vadd.f32 0.0, %v4340
      %v4342 = vpop.f32.mrf.mxu0
      %4343 = vmatprep.mubr.bf16.mxu0 0
      %4344 = vmatmul.mubr.bf16.gmra.mxu0 %v4159
      %v4345 = vpop.f32.mrf.mxu0
      %v4346 = vadd.f32 0.0, %v4345
      %v4347 = vpop.f32.mrf.mxu0
      %v4348 = vpop.f32.mrf.mxu0
      %v4349 = vadd.f32 0.0, %v4348
      %v4350 = vpop.f32.mrf.mxu0
      %4351 = vmatprep.mubr.bf16.mxu0 0
      %4352 = vmatmul.mubr.bf16.gmra.mxu0 %v4163
      %v4353 = vpop.f32.mrf.mxu0
      %v4354 = vadd.f32 0.0, %v4353
      %v4355 = vpop.f32.mrf.mxu0
      %v4356 = vpop.f32.mrf.mxu0
      %v4357 = vadd.f32 0.0, %v4356
      %v4358 = vpop.f32.mrf.mxu0
      %4359 = vmatprep.mubr.bf16.mxu0 0
      %4360 = vmatmul.mubr.bf16.gmra.mxu0 %v4167
      %v4361 = vpop.f32.mrf.mxu0
      %v4362 = vadd.f32 0.0, %v4361
      %v4363 = vpop.f32.mrf.mxu0
      %v4364 = vpop.f32.mrf.mxu0
      %v4365 = vadd.f32 0.0, %v4364
      %v4366 = vpop.f32.mrf.mxu0
      %4367 = vmatprep.mubr.bf16.mxu0 0
      %4368 = vmatmul.mubr.bf16.gmra.mxu0 %v4171
      %v4369 = vpop.f32.mrf.mxu0
      %v4370 = vadd.f32 0.0, %v4369
      %v4371 = vpop.f32.mrf.mxu0
      %v4372 = vpop.f32.mrf.mxu0
      %v4373 = vadd.f32 0.0, %v4372
      %v4374 = vpop.f32.mrf.mxu0
      %4375 = vmatprep.mubr.bf16.mxu0 0
      %4376 = vmatmul.mubr.bf16.gmra.mxu0 %v4175
      %v4377 = vpop.f32.mrf.mxu0
      %v4378 = vadd.f32 0.0, %v4377
      %v4379 = vpop.f32.mrf.mxu0
      %v4380 = vpop.f32.mrf.mxu0
      %v4381 = vadd.f32 0.0, %v4380
      %v4382 = vpop.f32.mrf.mxu0
      %4383 = vmatprep.mubr.bf16.mxu0 0
      %4384 = vmatmul.mubr.bf16.gmra.mxu0 %v4179
      %v4385 = vpop.f32.mrf.mxu0
      %v4386 = vadd.f32 0.0, %v4385
      %v4387 = vpop.f32.mrf.mxu0
      %v4388 = vpop.f32.mrf.mxu0
      %v4389 = vadd.f32 0.0, %v4388
      %v4390 = vpop.f32.mrf.mxu0
      %4391 = vmatprep.mubr.bf16.mxu0 0
      %4392 = vmatmul.mubr.bf16.gmra.mxu0 %v4183
      %v4393 = vpop.f32.mrf.mxu0
      %v4394 = vadd.f32 0.0, %v4393
      %v4395 = vpop.f32.mrf.mxu0
      %v4396 = vpop.f32.mrf.mxu0
      %v4397 = vadd.f32 0.0, %v4396
      %v4398 = vpop.f32.mrf.mxu0
      %4399 = vmatprep.mubr.bf16.mxu0 0
      %4400 = vmatmul.mubr.bf16.gmra.mxu0 %v4187
      %v4401 = vpop.f32.mrf.mxu0
      %v4402 = vadd.f32 0.0, %v4401
      %v4403 = vpop.f32.mrf.mxu0
      %v4404 = vpop.f32.mrf.mxu0
      %v4405 = vadd.f32 0.0, %v4404
      %v4406 = vpop.f32.mrf.mxu0
      %4407 = vmatprep.mubr.bf16.mxu0 0
      %4408 = vmatmul.mubr.bf16.gmra.mxu0 %v4191
      %v4409 = vpop.f32.mrf.mxu0
      %v4410 = vadd.f32 0.0, %v4409
      %v4411 = vpop.f32.mrf.mxu0
      %v4412 = vpop.f32.mrf.mxu0
      %v4413 = vadd.f32 0.0, %v4412
      %v4414 = vpop.f32.mrf.mxu0
      %4415 = vmatprep.mubr.bf16.mxu0 0
      %4416 = vmatmul.mubr.bf16.gmra.mxu0 %v4195
      %v4417 = vpop.f32.mrf.mxu0
      %v4418 = vadd.f32 0.0, %v4417
      %v4419 = vpop.f32.mrf.mxu0
      %v4420 = vpop.f32.mrf.mxu0
      %v4421 = vadd.f32 0.0, %v4420
      %v4422 = vpop.f32.mrf.mxu0
      %4423 = vmatprep.mubr.bf16.mxu0 0
      %4424 = vmatmul.mubr.bf16.gmra.mxu0 %v4199
      %v4425 = vpop.f32.mrf.mxu0
      %v4426 = vadd.f32 0.0, %v4425
      %v4427 = vpop.f32.mrf.mxu0
      %v4428 = vpop.f32.mrf.mxu0
      %v4429 = vadd.f32 0.0, %v4428
      %v4430 = vpop.f32.mrf.mxu0
      %4431 = vmatprep.mubr.bf16.mxu0 0
      %4432 = vmatmul.mubr.bf16.gmra.mxu0 %v4203
      %v4433 = vpop.f32.mrf.mxu0
      %v4434 = vadd.f32 0.0, %v4433
      %v4435 = vpop.f32.mrf.mxu0
      %v4436 = vpop.f32.mrf.mxu0
      %v4437 = vadd.f32 0.0, %v4436
      %v4438 = vpop.f32.mrf.mxu0
      %4439 = vmatprep.mubr.bf16.mxu0 0
      %4440 = vmatmul.mubr.bf16.gmra.mxu0 %v4207
      %v4441 = vpop.f32.mrf.mxu0
      %v4442 = vadd.f32 0.0, %v4441
      %v4443 = vpop.f32.mrf.mxu0
      %v4444 = vpop.f32.mrf.mxu0
      %v4445 = vadd.f32 0.0, %v4444
      %v4446 = vpop.f32.mrf.mxu0
      %4447 = vmatprep.mubr.bf16.mxu0 0
      %4448 = vmatmul.mubr.bf16.gmra.mxu0 %v4211
      %v4449 = vpop.f32.mrf.mxu0
      %v4450 = vadd.f32 0.0, %v4449
      %v4451 = vpop.f32.mrf.mxu0
      %v4452 = vpop.f32.mrf.mxu0
      %v4453 = vadd.f32 0.0, %v4452
      %v4454 = vpop.f32.mrf.mxu0
      %4455 = vmatprep.mubr.bf16.mxu0 0
      %4456 = vmatmul.mubr.bf16.gmra.mxu0 %v4220
      %v4457 = vpop.f32.mrf.mxu0
      %v4458 = vadd.f32 0.0, %v4457
      %v4459 = vpop.f32.mrf.mxu0
      %v4460 = vpop.f32.mrf.mxu0
      %v4461 = vadd.f32 0.0, %v4460
      %v4462 = vpop.f32.mrf.mxu0
      %4463 = vdwg.mxu0
      %v4464 = vadd.f32 %v4078, %v4322
      %v4465 = vadd.f32 %v4079, %v4325
      %v4466 = vadd.f32 %v4080, %v4330
      %v4467 = vadd.f32 %v4081, %v4333
      %v4468 = vadd.f32 %v4082, %v4338
      %v4469 = vadd.f32 %v4083, %v4341
      %v4470 = vadd.f32 %v4084, %v4346
      %v4471 = vadd.f32 %v4085, %v4349
      %v4472 = vadd.f32 %v4086, %v4354
      %v4473 = vadd.f32 %v4087, %v4357
      %v4474 = vadd.f32 %v4088, %v4362
      %v4475 = vadd.f32 %v4089, %v4365
      %v4476 = vadd.f32 %v4090, %v4370
      %v4477 = vadd.f32 %v4091, %v4373
      %v4478 = vadd.f32 %v4092, %v4378
      %v4479 = vadd.f32 %v4093, %v4381
      %v4480 = vadd.f32 %v4094, %v4386
      %v4481 = vadd.f32 %v4095, %v4389
      %v4482 = vadd.f32 %v4096, %v4394
      %v4483 = vadd.f32 %v4097, %v4397
      %v4484 = vadd.f32 %v4098, %v4402
      %v4485 = vadd.f32 %v4099, %v4405
      %v4486 = vadd.f32 %v4100, %v4410
      %v4487 = vadd.f32 %v4101, %v4413
      %v4488 = vadd.f32 %v4102, %v4418
      %v4489 = vadd.f32 %v4103, %v4421
      %v4490 = vadd.f32 %v4104, %v4426
      %v4491 = vadd.f32 %v4105, %v4429
      %v4492 = vadd.f32 %v4106, %v4434
      %v4493 = vadd.f32 %v4107, %v4437
      %v4494 = vadd.f32 %v4108, %v4442
      %v4495 = vadd.f32 %v4109, %v4445
      %v4496 = vadd.f32 %v4110, %v4450
      %v4497 = vadd.f32 %v4111, %v4453
      %v4498 = vadd.f32 %v4112, %v4458
      %v4499 = vadd.f32 %v4113, %v4461
      %v4500 = vld [vmem:[%s3] sm:$0x1]
      %v4502 = vlaneseq
      %v4503 = vshrl.u32 %v4502, 7
      %v4504 = vsub.s32 0, %v4503
      %v4505 = vrot.slane %v4500, %v4504
      %v4507 = vmul.f32 %v4464, %v4505
      %v4508 = vmul.f32 %v4465, %v4505
      %v4509 = vmul.f32 %v4466, %v4505
      %v4510 = vmul.f32 %v4467, %v4505
      %v4511 = vmul.f32 %v4468, %v4505
      %v4512 = vmul.f32 %v4469, %v4505
      %v4513 = vmul.f32 %v4470, %v4505
      %v4514 = vmul.f32 %v4471, %v4505
      %v4515 = vmul.f32 %v4472, %v4505
      %v4516 = vmul.f32 %v4473, %v4505
      %v4517 = vmul.f32 %v4474, %v4505
      %v4518 = vmul.f32 %v4475, %v4505
      %v4519 = vmul.f32 %v4476, %v4505
      %v4520 = vmul.f32 %v4477, %v4505
      %v4521 = vmul.f32 %v4478, %v4505
      %v4522 = vmul.f32 %v4479, %v4505
      %v4523 = vmul.f32 %v4480, %v4505
      %v4524 = vmul.f32 %v4481, %v4505
      %v4525 = vmul.f32 %v4482, %v4505
      %v4526 = vmul.f32 %v4483, %v4505
      %v4527 = vmul.f32 %v4484, %v4505
      %v4528 = vmul.f32 %v4485, %v4505
      %v4529 = vmul.f32 %v4486, %v4505
      %v4530 = vmul.f32 %v4487, %v4505
      %v4531 = vmul.f32 %v4488, %v4505
      %v4532 = vmul.f32 %v4489, %v4505
      %v4533 = vmul.f32 %v4490, %v4505
      %v4534 = vmul.f32 %v4491, %v4505
      %v4535 = vmul.f32 %v4492, %v4505
      %v4536 = vmul.f32 %v4493, %v4505
      %v4537 = vmul.f32 %v4494, %v4505
      %v4538 = vmul.f32 %v4495, %v4505
      %v4539 = vmul.f32 %v4496, %v4505
      %v4540 = vmul.f32 %v4497, %v4505
      %v4541 = vmul.f32 %v4498, %v4505
      %v4542 = vmul.f32 %v4499, %v4505
      %v4543 = vld [vmem:[%s4] sm:$0x1]
      %v4545 = vlaneseq
      %v4546 = vshrl.u32 %v4545, 7
      %v4547 = vsub.s32 0, %v4546
      %v4548 = vrot.slane %v4543, %v4547
      %v4550 = vadd.f32 %v4507, %v4548
      %v4551 = vadd.f32 %v4508, %v4548
      %v4552 = vadd.f32 %v4509, %v4548
      %v4553 = vadd.f32 %v4510, %v4548
      %v4554 = vadd.f32 %v4511, %v4548
      %v4555 = vadd.f32 %v4512, %v4548
      %v4556 = vadd.f32 %v4513, %v4548
      %v4557 = vadd.f32 %v4514, %v4548
      %v4558 = vadd.f32 %v4515, %v4548
      %v4559 = vadd.f32 %v4516, %v4548
      %v4560 = vadd.f32 %v4517, %v4548
      %v4561 = vadd.f32 %v4518, %v4548
      %v4562 = vadd.f32 %v4519, %v4548
      %v4563 = vadd.f32 %v4520, %v4548
      %v4564 = vadd.f32 %v4521, %v4548
      %v4565 = vadd.f32 %v4522, %v4548
      %v4566 = vadd.f32 %v4523, %v4548
      %v4567 = vadd.f32 %v4524, %v4548
      %v4568 = vadd.f32 %v4525, %v4548
      %v4569 = vadd.f32 %v4526, %v4548
      %v4570 = vadd.f32 %v4527, %v4548
      %v4571 = vadd.f32 %v4528, %v4548
      %v4572 = vadd.f32 %v4529, %v4548
      %v4573 = vadd.f32 %v4530, %v4548
      %v4574 = vadd.f32 %v4531, %v4548
      %v4575 = vadd.f32 %v4532, %v4548
      %v4576 = vadd.f32 %v4533, %v4548
      %v4577 = vadd.f32 %v4534, %v4548
      %v4578 = vadd.f32 %v4535, %v4548
      %v4579 = vadd.f32 %v4536, %v4548
      %v4580 = vadd.f32 %v4537, %v4548
      %v4581 = vadd.f32 %v4538, %v4548
      %v4582 = vadd.f32 %v4539, %v4548
      %v4583 = vadd.f32 %v4540, %v4548
      %v4584 = vadd.f32 %v4541, %v4548
      %v4585 = vadd.f32 %v4542, %v4548
      %v4586 = vmul.f32 %v4550, 0.5
      %v4587 = vmul.f32 %v4551, 0.5
      %v4588 = vmul.f32 %v4552, 0.5
      %v4589 = vmul.f32 %v4553, 0.5
      %v4590 = vmul.f32 %v4554, 0.5
      %v4591 = vmul.f32 %v4555, 0.5
      %v4592 = vmul.f32 %v4556, 0.5
      %v4593 = vmul.f32 %v4557, 0.5
      %v4594 = vmul.f32 %v4558, 0.5
      %v4595 = vmul.f32 %v4559, 0.5
      %v4596 = vmul.f32 %v4560, 0.5
      %v4597 = vmul.f32 %v4561, 0.5
      %v4598 = vmul.f32 %v4562, 0.5
      %v4599 = vmul.f32 %v4563, 0.5
      %v4600 = vmul.f32 %v4564, 0.5
      %v4601 = vmul.f32 %v4565, 0.5
      %v4602 = vmul.f32 %v4566, 0.5
      %v4603 = vmul.f32 %v4567, 0.5
      %v4604 = vmul.f32 %v4568, 0.5
      %v4605 = vmul.f32 %v4569, 0.5
      %v4606 = vmul.f32 %v4570, 0.5
      %v4607 = vmul.f32 %v4571, 0.5
      %v4608 = vmul.f32 %v4572, 0.5
      %v4609 = vmul.f32 %v4573, 0.5
      %v4610 = vmul.f32 %v4574, 0.5
      %v4611 = vmul.f32 %v4575, 0.5
      %v4612 = vmul.f32 %v4576, 0.5
      %v4613 = vmul.f32 %v4577, 0.5
      %v4614 = vmul.f32 %v4578, 0.5
      %v4615 = vmul.f32 %v4579, 0.5
      %v4616 = vmul.f32 %v4580, 0.5
      %v4617 = vmul.f32 %v4581, 0.5
      %v4618 = vmul.f32 %v4582, 0.5
      %v4619 = vmul.f32 %v4583, 0.5
      %v4620 = vmul.f32 %v4584, 0.5
      %v4621 = vmul.f32 %v4585, 0.5
      %v4622 = vmul.f32 %v4550, 0.70710677
      %v4623 = vmul.f32 %v4551, 0.70710677
      %v4624 = vmul.f32 %v4552, 0.70710677
      %v4625 = vmul.f32 %v4553, 0.70710677
      %v4626 = vmul.f32 %v4554, 0.70710677
      %v4627 = vmul.f32 %v4555, 0.70710677
      %v4628 = vmul.f32 %v4556, 0.70710677
      %v4629 = vmul.f32 %v4557, 0.70710677
      %v4630 = vmul.f32 %v4558, 0.70710677
      %v4631 = vmul.f32 %v4559, 0.70710677
      %v4632 = vmul.f32 %v4560, 0.70710677
      %v4633 = vmul.f32 %v4561, 0.70710677
      %v4634 = vmul.f32 %v4562, 0.70710677
      %v4635 = vmul.f32 %v4563, 0.70710677
      %v4636 = vmul.f32 %v4564, 0.70710677
      %v4637 = vmul.f32 %v4565, 0.70710677
      %v4638 = vmul.f32 %v4566, 0.70710677
      %v4639 = vmul.f32 %v4567, 0.70710677
      %v4640 = vmul.f32 %v4568, 0.70710677
      %v4641 = vmul.f32 %v4569, 0.70710677
      %v4642 = vmul.f32 %v4570, 0.70710677
      %v4643 = vmul.f32 %v4571, 0.70710677
      %v4644 = vmul.f32 %v4572, 0.70710677
      %v4645 = vmul.f32 %v4573, 0.70710677
      %v4646 = vmul.f32 %v4574, 0.70710677
      %v4647 = vmul.f32 %v4575, 0.70710677
      %v4648 = vmul.f32 %v4576, 0.70710677
      %v4649 = vmul.f32 %v4577, 0.70710677
      %v4650 = vmul.f32 %v4578, 0.70710677
      %v4651 = vmul.f32 %v4579, 0.70710677
      %v4652 = vmul.f32 %v4580, 0.70710677
      %v4653 = vmul.f32 %v4581, 0.70710677
      %v4654 = vmul.f32 %v4582, 0.70710677
      %v4655 = vmul.f32 %v4583, 0.70710677
      %v4656 = vmul.f32 %v4584, 0.70710677
      %v4657 = vmul.f32 %v4585, 0.70710677
      %vm4658 = vcmp.ge.f32.partialorder %v4622, 0.0
      %vm4659 = vcmp.ge.f32.partialorder %v4623, 0.0
      %vm4660 = vcmp.ge.f32.partialorder %v4624, 0.0
      %vm4661 = vcmp.ge.f32.partialorder %v4625, 0.0
      %vm4662 = vcmp.ge.f32.partialorder %v4626, 0.0
      %vm4663 = vcmp.ge.f32.partialorder %v4627, 0.0
      %vm4664 = vcmp.ge.f32.partialorder %v4628, 0.0
      %vm4665 = vcmp.ge.f32.partialorder %v4629, 0.0
      %vm4666 = vcmp.ge.f32.partialorder %v4630, 0.0
      %vm4667 = vcmp.ge.f32.partialorder %v4631, 0.0
      %vm4668 = vcmp.ge.f32.partialorder %v4632, 0.0
      %vm4669 = vcmp.ge.f32.partialorder %v4633, 0.0
      %vm4670 = vcmp.ge.f32.partialorder %v4634, 0.0
      %vm4671 = vcmp.ge.f32.partialorder %v4635, 0.0
      %vm4672 = vcmp.ge.f32.partialorder %v4636, 0.0
      %vm4673 = vcmp.ge.f32.partialorder %v4637, 0.0
      %vm4674 = vcmp.ge.f32.partialorder %v4638, 0.0
      %vm4675 = vcmp.ge.f32.partialorder %v4639, 0.0
      %vm4676 = vcmp.ge.f32.partialorder %v4640, 0.0
      %vm4677 = vcmp.ge.f32.partialorder %v4641, 0.0
      %vm4678 = vcmp.ge.f32.partialorder %v4642, 0.0
      %vm4679 = vcmp.ge.f32.partialorder %v4643, 0.0
      %vm4680 = vcmp.ge.f32.partialorder %v4644, 0.0
      %vm4681 = vcmp.ge.f32.partialorder %v4645, 0.0
      %vm4682 = vcmp.ge.f32.partialorder %v4646, 0.0
      %vm4683 = vcmp.ge.f32.partialorder %v4647, 0.0
      %vm4684 = vcmp.ge.f32.partialorder %v4648, 0.0
      %vm4685 = vcmp.ge.f32.partialorder %v4649, 0.0
      %vm4686 = vcmp.ge.f32.partialorder %v4650, 0.0
      %vm4687 = vcmp.ge.f32.partialorder %v4651, 0.0
      %vm4688 = vcmp.ge.f32.partialorder %v4652, 0.0
      %vm4689 = vcmp.ge.f32.partialorder %v4653, 0.0
      %vm4690 = vcmp.ge.f32.partialorder %v4654, 0.0
      %vm4691 = vcmp.ge.f32.partialorder %v4655, 0.0
      %vm4692 = vcmp.ge.f32.partialorder %v4656, 0.0
      %vm4693 = vcmp.ge.f32.partialorder %v4657, 0.0
      %v4694 = vsel %vm4658, 1.0, -1.0
      %v4695 = vsel %vm4659, 1.0, -1.0
      %v4696 = vsel %vm4660, 1.0, -1.0
      %v4697 = vsel %vm4661, 1.0, -1.0
      %v4698 = vsel %vm4662, 1.0, -1.0
      %v4699 = vsel %vm4663, 1.0, -1.0
      %v4700 = vsel %vm4664, 1.0, -1.0
      %v4701 = vsel %vm4665, 1.0, -1.0
      %v4702 = vsel %vm4666, 1.0, -1.0
      %v4703 = vsel %vm4667, 1.0, -1.0
      %v4704 = vsel %vm4668, 1.0, -1.0
      %v4705 = vsel %vm4669, 1.0, -1.0
      %v4706 = vsel %vm4670, 1.0, -1.0
      %v4707 = vsel %vm4671, 1.0, -1.0
      %v4708 = vsel %vm4672, 1.0, -1.0
      %v4709 = vsel %vm4673, 1.0, -1.0
      %v4710 = vsel %vm4674, 1.0, -1.0
      %v4711 = vsel %vm4675, 1.0, -1.0
      %v4712 = vsel %vm4676, 1.0, -1.0
      %v4713 = vsel %vm4677, 1.0, -1.0
      %v4714 = vsel %vm4678, 1.0, -1.0
      %v4715 = vsel %vm4679, 1.0, -1.0
      %v4716 = vsel %vm4680, 1.0, -1.0
      %v4717 = vsel %vm4681, 1.0, -1.0
      %v4718 = vsel %vm4682, 1.0, -1.0
      %v4719 = vsel %vm4683, 1.0, -1.0
      %v4720 = vsel %vm4684, 1.0, -1.0
      %v4721 = vsel %vm4685, 1.0, -1.0
      %v4722 = vsel %vm4686, 1.0, -1.0
      %v4723 = vsel %vm4687, 1.0, -1.0
      %v4724 = vsel %vm4688, 1.0, -1.0
      %v4725 = vsel %vm4689, 1.0, -1.0
      %v4726 = vsel %vm4690, 1.0, -1.0
      %v4727 = vsel %vm4691, 1.0, -1.0
      %v4728 = vsel %vm4692, 1.0, -1.0
      %v4729 = vsel %vm4693, 1.0, -1.0
      %v4730 = vand.u32 2147483647, %v4622
      %v4731 = vand.u32 2147483647, %v4623
      %v4732 = vand.u32 2147483647, %v4624
      %v4733 = vand.u32 2147483647, %v4625
      %v4734 = vand.u32 2147483647, %v4626
      %v4735 = vand.u32 2147483647, %v4627
      %v4736 = vand.u32 2147483647, %v4628
      %v4737 = vand.u32 2147483647, %v4629
      %v4738 = vand.u32 2147483647, %v4630
      %v4739 = vand.u32 2147483647, %v4631
      %v4740 = vand.u32 2147483647, %v4632
      %v4741 = vand.u32 2147483647, %v4633
      %v4742 = vand.u32 2147483647, %v4634
      %v4743 = vand.u32 2147483647, %v4635
      %v4744 = vand.u32 2147483647, %v4636
      %v4745 = vand.u32 2147483647, %v4637
      %v4746 = vand.u32 2147483647, %v4638
      %v4747 = vand.u32 2147483647, %v4639
      %v4748 = vand.u32 2147483647, %v4640
      %v4749 = vand.u32 2147483647, %v4641
      %v4750 = vand.u32 2147483647, %v4642
      %v4751 = vand.u32 2147483647, %v4643
      %v4752 = vand.u32 2147483647, %v4644
      %v4753 = vand.u32 2147483647, %v4645
      %v4754 = vand.u32 2147483647, %v4646
      %v4755 = vand.u32 2147483647, %v4647
      %v4756 = vand.u32 2147483647, %v4648
      %v4757 = vand.u32 2147483647, %v4649
      %v4758 = vand.u32 2147483647, %v4650
      %v4759 = vand.u32 2147483647, %v4651
      %v4760 = vand.u32 2147483647, %v4652
      %v4761 = vand.u32 2147483647, %v4653
      %v4762 = vand.u32 2147483647, %v4654
      %v4763 = vand.u32 2147483647, %v4655
      %v4764 = vand.u32 2147483647, %v4656
      %v4765 = vand.u32 2147483647, %v4657
      %v4766 = vmul.f32 %v4730, 0.3275911
      %v4767 = vmul.f32 %v4731, 0.3275911
      %v4768 = vmul.f32 %v4732, 0.3275911
      %v4769 = vmul.f32 %v4733, 0.3275911
      %v4770 = vmul.f32 %v4734, 0.3275911
      %v4771 = vmul.f32 %v4735, 0.3275911
      %v4772 = vmul.f32 %v4736, 0.3275911
      %v4773 = vmul.f32 %v4737, 0.3275911
      %v4774 = vmul.f32 %v4738, 0.3275911
      %v4775 = vmul.f32 %v4739, 0.3275911
      %v4776 = vmul.f32 %v4740, 0.3275911
      %v4777 = vmul.f32 %v4741, 0.3275911
      %v4778 = vmul.f32 %v4742, 0.3275911
      %v4779 = vmul.f32 %v4743, 0.3275911
      %v4780 = vmul.f32 %v4744, 0.3275911
      %v4781 = vmul.f32 %v4745, 0.3275911
      %v4782 = vmul.f32 %v4746, 0.3275911
      %v4783 = vmul.f32 %v4747, 0.3275911
      %v4784 = vmul.f32 %v4748, 0.3275911
      %v4785 = vmul.f32 %v4749, 0.3275911
      %v4786 = vmul.f32 %v4750, 0.3275911
      %v4787 = vmul.f32 %v4751, 0.3275911
      %v4788 = vmul.f32 %v4752, 0.3275911
      %v4789 = vmul.f32 %v4753, 0.3275911
      %v4790 = vmul.f32 %v4754, 0.3275911
      %v4791 = vmul.f32 %v4755, 0.3275911
      %v4792 = vmul.f32 %v4756, 0.3275911
      %v4793 = vmul.f32 %v4757, 0.3275911
      %v4794 = vmul.f32 %v4758, 0.3275911
      %v4795 = vmul.f32 %v4759, 0.3275911
      %v4796 = vmul.f32 %v4760, 0.3275911
      %v4797 = vmul.f32 %v4761, 0.3275911
      %v4798 = vmul.f32 %v4762, 0.3275911
      %v4799 = vmul.f32 %v4763, 0.3275911
      %v4800 = vmul.f32 %v4764, 0.3275911
      %v4801 = vmul.f32 %v4765, 0.3275911
      %v4802 = vadd.f32 %v4766, 1.0
      %v4803 = vadd.f32 %v4767, 1.0
      %v4804 = vadd.f32 %v4768, 1.0
      %v4805 = vadd.f32 %v4769, 1.0
      %v4806 = vadd.f32 %v4770, 1.0
      %v4807 = vadd.f32 %v4771, 1.0
      %v4808 = vadd.f32 %v4772, 1.0
      %v4809 = vadd.f32 %v4773, 1.0
      %v4810 = vadd.f32 %v4774, 1.0
      %v4811 = vadd.f32 %v4775, 1.0
      %v4812 = vadd.f32 %v4776, 1.0
      %v4813 = vadd.f32 %v4777, 1.0
      %v4814 = vadd.f32 %v4778, 1.0
      %v4815 = vadd.f32 %v4779, 1.0
      %v4816 = vadd.f32 %v4780, 1.0
      %v4817 = vadd.f32 %v4781, 1.0
      %v4818 = vadd.f32 %v4782, 1.0
      %v4819 = vadd.f32 %v4783, 1.0
      %v4820 = vadd.f32 %v4784, 1.0
      %v4821 = vadd.f32 %v4785, 1.0
      %v4822 = vadd.f32 %v4786, 1.0
      %v4823 = vadd.f32 %v4787, 1.0
      %v4824 = vadd.f32 %v4788, 1.0
      %v4825 = vadd.f32 %v4789, 1.0
      %v4826 = vadd.f32 %v4790, 1.0
      %v4827 = vadd.f32 %v4791, 1.0
      %v4828 = vadd.f32 %v4792, 1.0
      %v4829 = vadd.f32 %v4793, 1.0
      %v4830 = vadd.f32 %v4794, 1.0
      %v4831 = vadd.f32 %v4795, 1.0
      %v4832 = vadd.f32 %v4796, 1.0
      %v4833 = vadd.f32 %v4797, 1.0
      %v4834 = vadd.f32 %v4798, 1.0
      %v4835 = vadd.f32 %v4799, 1.0
      %v4836 = vadd.f32 %v4800, 1.0
      %v4837 = vadd.f32 %v4801, 1.0
      %v4838 = vrcp.pop %v4802
      %v4839 = vrcp.pop %v4803
      %v4840 = vrcp.pop %v4804
      %v4841 = vrcp.pop %v4805
      %v4842 = vrcp.pop %v4806
      %v4843 = vrcp.pop %v4807
      %v4844 = vrcp.pop %v4808
      %v4845 = vrcp.pop %v4809
      %v4846 = vrcp.pop %v4810
      %v4847 = vrcp.pop %v4811
      %v4848 = vrcp.pop %v4812
      %v4849 = vrcp.pop %v4813
      %v4850 = vrcp.pop %v4814
      %v4851 = vrcp.pop %v4815
      %v4852 = vrcp.pop %v4816
      %v4853 = vrcp.pop %v4817
      %v4854 = vrcp.pop %v4818
      %v4855 = vrcp.pop %v4819
      %v4856 = vrcp.pop %v4820
      %v4857 = vrcp.pop %v4821
      %v4858 = vrcp.pop %v4822
      %v4859 = vrcp.pop %v4823
      %v4860 = vrcp.pop %v4824
      %v4861 = vrcp.pop %v4825
      %v4862 = vrcp.pop %v4826
      %v4863 = vrcp.pop %v4827
      %v4864 = vrcp.pop %v4828
      %v4865 = vrcp.pop %v4829
      %v4866 = vrcp.pop %v4830
      %v4867 = vrcp.pop %v4831
      %v4868 = vrcp.pop %v4832
      %v4869 = vrcp.pop %v4833
      %v4870 = vrcp.pop %v4834
      %v4871 = vrcp.pop %v4835
      %v4872 = vrcp.pop %v4836
      %v4873 = vrcp.pop %v4837
      %v4874 = vmul.f32 %v4838, 1.0614054
      %v4875 = vmul.f32 %v4839, 1.0614054
      %v4876 = vmul.f32 %v4840, 1.0614054
      %v4877 = vmul.f32 %v4841, 1.0614054
      %v4878 = vmul.f32 %v4842, 1.0614054
      %v4879 = vmul.f32 %v4843, 1.0614054
      %v4880 = vmul.f32 %v4844, 1.0614054
      %v4881 = vmul.f32 %v4845, 1.0614054
      %v4882 = vmul.f32 %v4846, 1.0614054
      %v4883 = vmul.f32 %v4847, 1.0614054
      %v4884 = vmul.f32 %v4848, 1.0614054
      %v4885 = vmul.f32 %v4849, 1.0614054
      %v4886 = vmul.f32 %v4850, 1.0614054
      %v4887 = vmul.f32 %v4851, 1.0614054
      %v4888 = vmul.f32 %v4852, 1.0614054
      %v4889 = vmul.f32 %v4853, 1.0614054
      %v4890 = vmul.f32 %v4854, 1.0614054
      %v4891 = vmul.f32 %v4855, 1.0614054
      %v4892 = vmul.f32 %v4856, 1.0614054
      %v4893 = vmul.f32 %v4857, 1.0614054
      %v4894 = vmul.f32 %v4858, 1.0614054
      %v4895 = vmul.f32 %v4859, 1.0614054
      %v4896 = vmul.f32 %v4860, 1.0614054
      %v4897 = vmul.f32 %v4861, 1.0614054
      %v4898 = vmul.f32 %v4862, 1.0614054
      %v4899 = vmul.f32 %v4863, 1.0614054
      %v4900 = vmul.f32 %v4864, 1.0614054
      %v4901 = vmul.f32 %v4865, 1.0614054
      %v4902 = vmul.f32 %v4866, 1.0614054
      %v4903 = vmul.f32 %v4867, 1.0614054
      %v4904 = vmul.f32 %v4868, 1.0614054
      %v4905 = vmul.f32 %v4869, 1.0614054
      %v4906 = vmul.f32 %v4870, 1.0614054
      %v4907 = vmul.f32 %v4871, 1.0614054
      %v4908 = vmul.f32 %v4872, 1.0614054
      %v4909 = vmul.f32 %v4873, 1.0614054
      %v4910 = vadd.f32 %v4874, -1.4531521
      %v4911 = vadd.f32 %v4875, -1.4531521
      %v4912 = vadd.f32 %v4876, -1.4531521
      %v4913 = vadd.f32 %v4877, -1.4531521
      %v4914 = vadd.f32 %v4878, -1.4531521
      %v4915 = vadd.f32 %v4879, -1.4531521
      %v4916 = vadd.f32 %v4880, -1.4531521
      %v4917 = vadd.f32 %v4881, -1.4531521
      %v4918 = vadd.f32 %v4882, -1.4531521
      %v4919 = vadd.f32 %v4883, -1.4531521
      %v4920 = vadd.f32 %v4884, -1.4531521
      %v4921 = vadd.f32 %v4885, -1.4531521
      %v4922 = vadd.f32 %v4886, -1.4531521
      %v4923 = vadd.f32 %v4887, -1.4531521
      %v4924 = vadd.f32 %v4888, -1.4531521
      %v4925 = vadd.f32 %v4889, -1.4531521
      %v4926 = vadd.f32 %v4890, -1.4531521
      %v4927 = vadd.f32 %v4891, -1.4531521
      %v4928 = vadd.f32 %v4892, -1.4531521
      %v4929 = vadd.f32 %v4893, -1.4531521
      %v4930 = vadd.f32 %v4894, -1.4531521
      %v4931 = vadd.f32 %v4895, -1.4531521
      %v4932 = vadd.f32 %v4896, -1.4531521
      %v4933 = vadd.f32 %v4897, -1.4531521
      %v4934 = vadd.f32 %v4898, -1.4531521
      %v4935 = vadd.f32 %v4899, -1.4531521
      %v4936 = vadd.f32 %v4900, -1.4531521
      %v4937 = vadd.f32 %v4901, -1.4531521
      %v4938 = vadd.f32 %v4902, -1.4531521
      %v4939 = vadd.f32 %v4903, -1.4531521
      %v4940 = vadd.f32 %v4904, -1.4531521
      %v4941 = vadd.f32 %v4905, -1.4531521
      %v4942 = vadd.f32 %v4906, -1.4531521
      %v4943 = vadd.f32 %v4907, -1.4531521
      %v4944 = vadd.f32 %v4908, -1.4531521
      %v4945 = vadd.f32 %v4909, -1.4531521
      %v4946 = vmul.f32 %v4910, %v4838
      %v4947 = vmul.f32 %v4911, %v4839
      %v4948 = vmul.f32 %v4912, %v4840
      %v4949 = vmul.f32 %v4913, %v4841
      %v4950 = vmul.f32 %v4914, %v4842
      %v4951 = vmul.f32 %v4915, %v4843
      %v4952 = vmul.f32 %v4916, %v4844
      %v4953 = vmul.f32 %v4917, %v4845
      %v4954 = vmul.f32 %v4918, %v4846
      %v4955 = vmul.f32 %v4919, %v4847
      %v4956 = vmul.f32 %v4920, %v4848
      %v4957 = vmul.f32 %v4921, %v4849
      %v4958 = vmul.f32 %v4922, %v4850
      %v4959 = vmul.f32 %v4923, %v4851
      %v4960 = vmul.f32 %v4924, %v4852
      %v4961 = vmul.f32 %v4925, %v4853
      %v4962 = vmul.f32 %v4926, %v4854
      %v4963 = vmul.f32 %v4927, %v4855
      %v4964 = vmul.f32 %v4928, %v4856
      %v4965 = vmul.f32 %v4929, %v4857
      %v4966 = vmul.f32 %v4930, %v4858
      %v4967 = vmul.f32 %v4931, %v4859
      %v4968 = vmul.f32 %v4932, %v4860
      %v4969 = vmul.f32 %v4933, %v4861
      %v4970 = vmul.f32 %v4934, %v4862
      %v4971 = vmul.f32 %v4935, %v4863
      %v4972 = vmul.f32 %v4936, %v4864
      %v4973 = vmul.f32 %v4937, %v4865
      %v4974 = vmul.f32 %v4938, %v4866
      %v4975 = vmul.f32 %v4939, %v4867
      %v4976 = vmul.f32 %v4940, %v4868
      %v4977 = vmul.f32 %v4941, %v4869
      %v4978 = vmul.f32 %v4942, %v4870
      %v4979 = vmul.f32 %v4943, %v4871
      %v4980 = vmul.f32 %v4944, %v4872
      %v4981 = vmul.f32 %v4945, %v4873
      %v4982 = vadd.f32 %v4946, 1.4214138
      %v4983 = vadd.f32 %v4947, 1.4214138
      %v4984 = vadd.f32 %v4948, 1.4214138
      %v4985 = vadd.f32 %v4949, 1.4214138
      %v4986 = vadd.f32 %v4950, 1.4214138
      %v4987 = vadd.f32 %v4951, 1.4214138
      %v4988 = vadd.f32 %v4952, 1.4214138
      %v4989 = vadd.f32 %v4953, 1.4214138
      %v4990 = vadd.f32 %v4954, 1.4214138
      %v4991 = vadd.f32 %v4955, 1.4214138
      %v4992 = vadd.f32 %v4956, 1.4214138
      %v4993 = vadd.f32 %v4957, 1.4214138
      %v4994 = vadd.f32 %v4958, 1.4214138
      %v4995 = vadd.f32 %v4959, 1.4214138
      %v4996 = vadd.f32 %v4960, 1.4214138
      %v4997 = vadd.f32 %v4961, 1.4214138
      %v4998 = vadd.f32 %v4962, 1.4214138
      %v4999 = vadd.f32 %v4963, 1.4214138
      %v5000 = vadd.f32 %v4964, 1.4214138
      %v5001 = vadd.f32 %v4965, 1.4214138
      %v5002 = vadd.f32 %v4966, 1.4214138
      %v5003 = vadd.f32 %v4967, 1.4214138
      %v5004 = vadd.f32 %v4968, 1.4214138
      %v5005 = vadd.f32 %v4969, 1.4214138
      %v5006 = vadd.f32 %v4970, 1.4214138
      %v5007 = vadd.f32 %v4971, 1.4214138
      %v5008 = vadd.f32 %v4972, 1.4214138
      %v5009 = vadd.f32 %v4973, 1.4214138
      %v5010 = vadd.f32 %v4974, 1.4214138
      %v5011 = vadd.f32 %v4975, 1.4214138
      %v5012 = vadd.f32 %v4976, 1.4214138
      %v5013 = vadd.f32 %v4977, 1.4214138
      %v5014 = vadd.f32 %v4978, 1.4214138
      %v5015 = vadd.f32 %v4979, 1.4214138
      %v5016 = vadd.f32 %v4980, 1.4214138
      %v5017 = vadd.f32 %v4981, 1.4214138
      %v5018 = vmul.f32 %v4982, %v4838
      %v5019 = vmul.f32 %v4983, %v4839
      %v5020 = vmul.f32 %v4984, %v4840
      %v5021 = vmul.f32 %v4985, %v4841
      %v5022 = vmul.f32 %v4986, %v4842
      %v5023 = vmul.f32 %v4987, %v4843
      %v5024 = vmul.f32 %v4988, %v4844
      %v5025 = vmul.f32 %v4989, %v4845
      %v5026 = vmul.f32 %v4990, %v4846
      %v5027 = vmul.f32 %v4991, %v4847
      %v5028 = vmul.f32 %v4992, %v4848
      %v5029 = vmul.f32 %v4993, %v4849
      %v5030 = vmul.f32 %v4994, %v4850
      %v5031 = vmul.f32 %v4995, %v4851
      %v5032 = vmul.f32 %v4996, %v4852
      %v5033 = vmul.f32 %v4997, %v4853
      %v5034 = vmul.f32 %v4998, %v4854
      %v5035 = vmul.f32 %v4999, %v4855
      %v5036 = vmul.f32 %v5000, %v4856
      %v5037 = vmul.f32 %v5001, %v4857
      %v5038 = vmul.f32 %v5002, %v4858
      %v5039 = vmul.f32 %v5003, %v4859
      %v5040 = vmul.f32 %v5004, %v4860
      %v5041 = vmul.f32 %v5005, %v4861
      %v5042 = vmul.f32 %v5006, %v4862
      %v5043 = vmul.f32 %v5007, %v4863
      %v5044 = vmul.f32 %v5008, %v4864
      %v5045 = vmul.f32 %v5009, %v4865
      %v5046 = vmul.f32 %v5010, %v4866
      %v5047 = vmul.f32 %v5011, %v4867
      %v5048 = vmul.f32 %v5012, %v4868
      %v5049 = vmul.f32 %v5013, %v4869
      %v5050 = vmul.f32 %v5014, %v4870
      %v5051 = vmul.f32 %v5015, %v4871
      %v5052 = vmul.f32 %v5016, %v4872
      %v5053 = vmul.f32 %v5017, %v4873
      %v5054 = vadd.f32 %v5018, -0.28449672
      %v5055 = vadd.f32 %v5019, -0.28449672
      %v5056 = vadd.f32 %v5020, -0.28449672
      %v5057 = vadd.f32 %v5021, -0.28449672
      %v5058 = vadd.f32 %v5022, -0.28449672
      %v5059 = vadd.f32 %v5023, -0.28449672
      %v5060 = vadd.f32 %v5024, -0.28449672
      %v5061 = vadd.f32 %v5025, -0.28449672
      %v5062 = vadd.f32 %v5026, -0.28449672
      %v5063 = vadd.f32 %v5027, -0.28449672
      %v5064 = vadd.f32 %v5028, -0.28449672
      %v5065 = vadd.f32 %v5029, -0.28449672
      %v5066 = vadd.f32 %v5030, -0.28449672
      %v5067 = vadd.f32 %v5031, -0.28449672
      %v5068 = vadd.f32 %v5032, -0.28449672
      %v5069 = vadd.f32 %v5033, -0.28449672
      %v5070 = vadd.f32 %v5034, -0.28449672
      %v5071 = vadd.f32 %v5035, -0.28449672
      %v5072 = vadd.f32 %v5036, -0.28449672
      %v5073 = vadd.f32 %v5037, -0.28449672
      %v5074 = vadd.f32 %v5038, -0.28449672
      %v5075 = vadd.f32 %v5039, -0.28449672
      %v5076 = vadd.f32 %v5040, -0.28449672
      %v5077 = vadd.f32 %v5041, -0.28449672
      %v5078 = vadd.f32 %v5042, -0.28449672
      %v5079 = vadd.f32 %v5043, -0.28449672
      %v5080 = vadd.f32 %v5044, -0.28449672
      %v5081 = vadd.f32 %v5045, -0.28449672
      %v5082 = vadd.f32 %v5046, -0.28449672
      %v5083 = vadd.f32 %v5047, -0.28449672
      %v5084 = vadd.f32 %v5048, -0.28449672
      %v5085 = vadd.f32 %v5049, -0.28449672
      %v5086 = vadd.f32 %v5050, -0.28449672
      %v5087 = vadd.f32 %v5051, -0.28449672
      %v5088 = vadd.f32 %v5052, -0.28449672
      %v5089 = vadd.f32 %v5053, -0.28449672
      %v5090 = vmul.f32 %v5054, %v4838
      %v5091 = vmul.f32 %v5055, %v4839
      %v5092 = vmul.f32 %v5056, %v4840
      %v5093 = vmul.f32 %v5057, %v4841
      %v5094 = vmul.f32 %v5058, %v4842
      %v5095 = vmul.f32 %v5059, %v4843
      %v5096 = vmul.f32 %v5060, %v4844
      %v5097 = vmul.f32 %v5061, %v4845
      %v5098 = vmul.f32 %v5062, %v4846
      %v5099 = vmul.f32 %v5063, %v4847
      %v5100 = vmul.f32 %v5064, %v4848
      %v5101 = vmul.f32 %v5065, %v4849
      %v5102 = vmul.f32 %v5066, %v4850
      %v5103 = vmul.f32 %v5067, %v4851
      %v5104 = vmul.f32 %v5068, %v4852
      %v5105 = vmul.f32 %v5069, %v4853
      %v5106 = vmul.f32 %v5070, %v4854
      %v5107 = vmul.f32 %v5071, %v4855
      %v5108 = vmul.f32 %v5072, %v4856
      %v5109 = vmul.f32 %v5073, %v4857
      %v5110 = vmul.f32 %v5074, %v4858
      %v5111 = vmul.f32 %v5075, %v4859
      %v5112 = vmul.f32 %v5076, %v4860
      %v5113 = vmul.f32 %v5077, %v4861
      %v5114 = vmul.f32 %v5078, %v4862
      %v5115 = vmul.f32 %v5079, %v4863
      %v5116 = vmul.f32 %v5080, %v4864
      %v5117 = vmul.f32 %v5081, %v4865
      %v5118 = vmul.f32 %v5082, %v4866
      %v5119 = vmul.f32 %v5083, %v4867
      %v5120 = vmul.f32 %v5084, %v4868
      %v5121 = vmul.f32 %v5085, %v4869
      %v5122 = vmul.f32 %v5086, %v4870
      %v5123 = vmul.f32 %v5087, %v4871
      %v5124 = vmul.f32 %v5088, %v4872
      %v5125 = vmul.f32 %v5089, %v4873
      %v5126 = vadd.f32 %v5090, 0.2548296
      %v5127 = vadd.f32 %v5091, 0.2548296
      %v5128 = vadd.f32 %v5092, 0.2548296
      %v5129 = vadd.f32 %v5093, 0.2548296
      %v5130 = vadd.f32 %v5094, 0.2548296
      %v5131 = vadd.f32 %v5095, 0.2548296
      %v5132 = vadd.f32 %v5096, 0.2548296
      %v5133 = vadd.f32 %v5097, 0.2548296
      %v5134 = vadd.f32 %v5098, 0.2548296
      %v5135 = vadd.f32 %v5099, 0.2548296
      %v5136 = vadd.f32 %v5100, 0.2548296
      %v5137 = vadd.f32 %v5101, 0.2548296
      %v5138 = vadd.f32 %v5102, 0.2548296
      %v5139 = vadd.f32 %v5103, 0.2548296
      %v5140 = vadd.f32 %v5104, 0.2548296
      %v5141 = vadd.f32 %v5105, 0.2548296
      %v5142 = vadd.f32 %v5106, 0.2548296
      %v5143 = vadd.f32 %v5107, 0.2548296
      %v5144 = vadd.f32 %v5108, 0.2548296
      %v5145 = vadd.f32 %v5109, 0.2548296
      %v5146 = vadd.f32 %v5110, 0.2548296
      %v5147 = vadd.f32 %v5111, 0.2548296
      %v5148 = vadd.f32 %v5112, 0.2548296
      %v5149 = vadd.f32 %v5113, 0.2548296
      %v5150 = vadd.f32 %v5114, 0.2548296
      %v5151 = vadd.f32 %v5115, 0.2548296
      %v5152 = vadd.f32 %v5116, 0.2548296
      %v5153 = vadd.f32 %v5117, 0.2548296
      %v5154 = vadd.f32 %v5118, 0.2548296
      %v5155 = vadd.f32 %v5119, 0.2548296
      %v5156 = vadd.f32 %v5120, 0.2548296
      %v5157 = vadd.f32 %v5121, 0.2548296
      %v5158 = vadd.f32 %v5122, 0.2548296
      %v5159 = vadd.f32 %v5123, 0.2548296
      %v5160 = vadd.f32 %v5124, 0.2548296
      %v5161 = vadd.f32 %v5125, 0.2548296
      %v5162 = vmul.f32 %v5126, %v4838
      %v5163 = vmul.f32 %v5127, %v4839
      %v5164 = vmul.f32 %v5128, %v4840
      %v5165 = vmul.f32 %v5129, %v4841
      %v5166 = vmul.f32 %v5130, %v4842
      %v5167 = vmul.f32 %v5131, %v4843
      %v5168 = vmul.f32 %v5132, %v4844
      %v5169 = vmul.f32 %v5133, %v4845
      %v5170 = vmul.f32 %v5134, %v4846
      %v5171 = vmul.f32 %v5135, %v4847
      %v5172 = vmul.f32 %v5136, %v4848
      %v5173 = vmul.f32 %v5137, %v4849
      %v5174 = vmul.f32 %v5138, %v4850
      %v5175 = vmul.f32 %v5139, %v4851
      %v5176 = vmul.f32 %v5140, %v4852
      %v5177 = vmul.f32 %v5141, %v4853
      %v5178 = vmul.f32 %v5142, %v4854
      %v5179 = vmul.f32 %v5143, %v4855
      %v5180 = vmul.f32 %v5144, %v4856
      %v5181 = vmul.f32 %v5145, %v4857
      %v5182 = vmul.f32 %v5146, %v4858
      %v5183 = vmul.f32 %v5147, %v4859
      %v5184 = vmul.f32 %v5148, %v4860
      %v5185 = vmul.f32 %v5149, %v4861
      %v5186 = vmul.f32 %v5150, %v4862
      %v5187 = vmul.f32 %v5151, %v4863
      %v5188 = vmul.f32 %v5152, %v4864
      %v5189 = vmul.f32 %v5153, %v4865
      %v5190 = vmul.f32 %v5154, %v4866
      %v5191 = vmul.f32 %v5155, %v4867
      %v5192 = vmul.f32 %v5156, %v4868
      %v5193 = vmul.f32 %v5157, %v4869
      %v5194 = vmul.f32 %v5158, %v4870
      %v5195 = vmul.f32 %v5159, %v4871
      %v5196 = vmul.f32 %v5160, %v4872
      %v5197 = vmul.f32 %v5161, %v4873
      %v5198 = vsub.f32 0.0, %v4730
      %v5199 = vsub.f32 0.0, %v4731
      %v5200 = vsub.f32 0.0, %v4732
      %v5201 = vsub.f32 0.0, %v4733
      %v5202 = vsub.f32 0.0, %v4734
      %v5203 = vsub.f32 0.0, %v4735
      %v5204 = vsub.f32 0.0, %v4736
      %v5205 = vsub.f32 0.0, %v4737
      %v5206 = vsub.f32 0.0, %v4738
      %v5207 = vsub.f32 0.0, %v4739
      %v5208 = vsub.f32 0.0, %v4740
      %v5209 = vsub.f32 0.0, %v4741
      %v5210 = vsub.f32 0.0, %v4742
      %v5211 = vsub.f32 0.0, %v4743
      %v5212 = vsub.f32 0.0, %v4744
      %v5213 = vsub.f32 0.0, %v4745
      %v5214 = vsub.f32 0.0, %v4746
      %v5215 = vsub.f32 0.0, %v4747
      %v5216 = vsub.f32 0.0, %v4748
      %v5217 = vsub.f32 0.0, %v4749
      %v5218 = vsub.f32 0.0, %v4750
      %v5219 = vsub.f32 0.0, %v4751
      %v5220 = vsub.f32 0.0, %v4752
      %v5221 = vsub.f32 0.0, %v4753
      %v5222 = vsub.f32 0.0, %v4754
      %v5223 = vsub.f32 0.0, %v4755
      %v5224 = vsub.f32 0.0, %v4756
      %v5225 = vsub.f32 0.0, %v4757
      %v5226 = vsub.f32 0.0, %v4758
      %v5227 = vsub.f32 0.0, %v4759
      %v5228 = vsub.f32 0.0, %v4760
      %v5229 = vsub.f32 0.0, %v4761
      %v5230 = vsub.f32 0.0, %v4762
      %v5231 = vsub.f32 0.0, %v4763
      %v5232 = vsub.f32 0.0, %v4764
      %v5233 = vsub.f32 0.0, %v4765
      %v5234 = vmul.f32 %v5198, %v4730
      %v5235 = vmul.f32 %v5199, %v4731
      %v5236 = vmul.f32 %v5200, %v4732
      %v5237 = vmul.f32 %v5201, %v4733
      %v5238 = vmul.f32 %v5202, %v4734
      %v5239 = vmul.f32 %v5203, %v4735
      %v5240 = vmul.f32 %v5204, %v4736
      %v5241 = vmul.f32 %v5205, %v4737
      %v5242 = vmul.f32 %v5206, %v4738
      %v5243 = vmul.f32 %v5207, %v4739
      %v5244 = vmul.f32 %v5208, %v4740
      %v5245 = vmul.f32 %v5209, %v4741
      %v5246 = vmul.f32 %v5210, %v4742
      %v5247 = vmul.f32 %v5211, %v4743
      %v5248 = vmul.f32 %v5212, %v4744
      %v5249 = vmul.f32 %v5213, %v4745
      %v5250 = vmul.f32 %v5214, %v4746
      %v5251 = vmul.f32 %v5215, %v4747
      %v5252 = vmul.f32 %v5216, %v4748
      %v5253 = vmul.f32 %v5217, %v4749
      %v5254 = vmul.f32 %v5218, %v4750
      %v5255 = vmul.f32 %v5219, %v4751
      %v5256 = vmul.f32 %v5220, %v4752
      %v5257 = vmul.f32 %v5221, %v4753
      %v5258 = vmul.f32 %v5222, %v4754
      %v5259 = vmul.f32 %v5223, %v4755
      %v5260 = vmul.f32 %v5224, %v4756
      %v5261 = vmul.f32 %v5225, %v4757
      %v5262 = vmul.f32 %v5226, %v4758
      %v5263 = vmul.f32 %v5227, %v4759
      %v5264 = vmul.f32 %v5228, %v4760
      %v5265 = vmul.f32 %v5229, %v4761
      %v5266 = vmul.f32 %v5230, %v4762
      %v5267 = vmul.f32 %v5231, %v4763
      %v5268 = vmul.f32 %v5232, %v4764
      %v5269 = vmul.f32 %v5233, %v4765
      %v5270 = vmul.f32 %v5234, 1.442695
      %v5271 = vpow.pop %v5270
      %v5272 = vmul.f32 %v5235, 1.442695
      %v5273 = vpow.pop %v5272
      %v5274 = vmul.f32 %v5236, 1.442695
      %v5275 = vpow.pop %v5274
      %v5276 = vmul.f32 %v5237, 1.442695
      %v5277 = vpow.pop %v5276
      %v5278 = vmul.f32 %v5238, 1.442695
      %v5279 = vpow.pop %v5278
      %v5280 = vmul.f32 %v5239, 1.442695
      %v5281 = vpow.pop %v5280
      %v5282 = vmul.f32 %v5240, 1.442695
      %v5283 = vpow.pop %v5282
      %v5284 = vmul.f32 %v5241, 1.442695
      %v5285 = vpow.pop %v5284
      %v5286 = vmul.f32 %v5242, 1.442695
      %v5287 = vpow.pop %v5286
      %v5288 = vmul.f32 %v5243, 1.442695
      %v5289 = vpow.pop %v5288
      %v5290 = vmul.f32 %v5244, 1.442695
      %v5291 = vpow.pop %v5290
      %v5292 = vmul.f32 %v5245, 1.442695
      %v5293 = vpow.pop %v5292
      %v5294 = vmul.f32 %v5246, 1.442695
      %v5295 = vpow.pop %v5294
      %v5296 = vmul.f32 %v5247, 1.442695
      %v5297 = vpow.pop %v5296
      %v5298 = vmul.f32 %v5248, 1.442695
      %v5299 = vpow.pop %v5298
      %v5300 = vmul.f32 %v5249, 1.442695
      %v5301 = vpow.pop %v5300
      %v5302 = vmul.f32 %v5250, 1.442695
      %v5303 = vpow.pop %v5302
      %v5304 = vmul.f32 %v5251, 1.442695
      %v5305 = vpow.pop %v5304
      %v5306 = vmul.f32 %v5252, 1.442695
      %v5307 = vpow.pop %v5306
      %v5308 = vmul.f32 %v5253, 1.442695
      %v5309 = vpow.pop %v5308
      %v5310 = vmul.f32 %v5254, 1.442695
      %v5311 = vpow.pop %v5310
      %v5312 = vmul.f32 %v5255, 1.442695
      %v5313 = vpow.pop %v5312
      %v5314 = vmul.f32 %v5256, 1.442695
      %v5315 = vpow.pop %v5314
      %v5316 = vmul.f32 %v5257, 1.442695
      %v5317 = vpow.pop %v5316
      %v5318 = vmul.f32 %v5258, 1.442695
      %v5319 = vpow.pop %v5318
      %v5320 = vmul.f32 %v5259, 1.442695
      %v5321 = vpow.pop %v5320
      %v5322 = vmul.f32 %v5260, 1.442695
      %v5323 = vpow.pop %v5322
      %v5324 = vmul.f32 %v5261, 1.442695
      %v5325 = vpow.pop %v5324
      %v5326 = vmul.f32 %v5262, 1.442695
      %v5327 = vpow.pop %v5326
      %v5328 = vmul.f32 %v5263, 1.442695
      %v5329 = vpow.pop %v5328
      %v5330 = vmul.f32 %v5264, 1.442695
      %v5331 = vpow.pop %v5330
      %v5332 = vmul.f32 %v5265, 1.442695
      %v5333 = vpow.pop %v5332
      %v5334 = vmul.f32 %v5266, 1.442695
      %v5335 = vpow.pop %v5334
      %v5336 = vmul.f32 %v5267, 1.442695
      %v5337 = vpow.pop %v5336
      %v5338 = vmul.f32 %v5268, 1.442695
      %v5339 = vpow.pop %v5338
      %v5340 = vmul.f32 %v5269, 1.442695
      %v5341 = vpow.pop %v5340
      %v5342 = vmul.f32 %v5162, %v5271
      %v5343 = vmul.f32 %v5163, %v5273
      %v5344 = vmul.f32 %v5164, %v5275
      %v5345 = vmul.f32 %v5165, %v5277
      %v5346 = vmul.f32 %v5166, %v5279
      %v5347 = vmul.f32 %v5167, %v5281
      %v5348 = vmul.f32 %v5168, %v5283
      %v5349 = vmul.f32 %v5169, %v5285
      %v5350 = vmul.f32 %v5170, %v5287
      %v5351 = vmul.f32 %v5171, %v5289
      %v5352 = vmul.f32 %v5172, %v5291
      %v5353 = vmul.f32 %v5173, %v5293
      %v5354 = vmul.f32 %v5174, %v5295
      %v5355 = vmul.f32 %v5175, %v5297
      %v5356 = vmul.f32 %v5176, %v5299
      %v5357 = vmul.f32 %v5177, %v5301
      %v5358 = vmul.f32 %v5178, %v5303
      %v5359 = vmul.f32 %v5179, %v5305
      %v5360 = vmul.f32 %v5180, %v5307
      %v5361 = vmul.f32 %v5181, %v5309
      %v5362 = vmul.f32 %v5182, %v5311
      %v5363 = vmul.f32 %v5183, %v5313
      %v5364 = vmul.f32 %v5184, %v5315
      %v5365 = vmul.f32 %v5185, %v5317
      %v5366 = vmul.f32 %v5186, %v5319
      %v5367 = vmul.f32 %v5187, %v5321
      %v5368 = vmul.f32 %v5188, %v5323
      %v5369 = vmul.f32 %v5189, %v5325
      %v5370 = vmul.f32 %v5190, %v5327
      %v5371 = vmul.f32 %v5191, %v5329
      %v5372 = vmul.f32 %v5192, %v5331
      %v5373 = vmul.f32 %v5193, %v5333
      %v5374 = vmul.f32 %v5194, %v5335
      %v5375 = vmul.f32 %v5195, %v5337
      %v5376 = vmul.f32 %v5196, %v5339
      %v5377 = vmul.f32 %v5197, %v5341
      %v5378 = vsub.f32 1.0, %v5342
      %v5379 = vsub.f32 1.0, %v5343
      %v5380 = vsub.f32 1.0, %v5344
      %v5381 = vsub.f32 1.0, %v5345
      %v5382 = vsub.f32 1.0, %v5346
      %v5383 = vsub.f32 1.0, %v5347
      %v5384 = vsub.f32 1.0, %v5348
      %v5385 = vsub.f32 1.0, %v5349
      %v5386 = vsub.f32 1.0, %v5350
      %v5387 = vsub.f32 1.0, %v5351
      %v5388 = vsub.f32 1.0, %v5352
      %v5389 = vsub.f32 1.0, %v5353
      %v5390 = vsub.f32 1.0, %v5354
      %v5391 = vsub.f32 1.0, %v5355
      %v5392 = vsub.f32 1.0, %v5356
      %v5393 = vsub.f32 1.0, %v5357
      %v5394 = vsub.f32 1.0, %v5358
      %v5395 = vsub.f32 1.0, %v5359
      %v5396 = vsub.f32 1.0, %v5360
      %v5397 = vsub.f32 1.0, %v5361
      %v5398 = vsub.f32 1.0, %v5362
      %v5399 = vsub.f32 1.0, %v5363
      %v5400 = vsub.f32 1.0, %v5364
      %v5401 = vsub.f32 1.0, %v5365
      %v5402 = vsub.f32 1.0, %v5366
      %v5403 = vsub.f32 1.0, %v5367
      %v5404 = vsub.f32 1.0, %v5368
      %v5405 = vsub.f32 1.0, %v5369
      %v5406 = vsub.f32 1.0, %v5370
      %v5407 = vsub.f32 1.0, %v5371
      %v5408 = vsub.f32 1.0, %v5372
      %v5409 = vsub.f32 1.0, %v5373
      %v5410 = vsub.f32 1.0, %v5374
      %v5411 = vsub.f32 1.0, %v5375
      %v5412 = vsub.f32 1.0, %v5376
      %v5413 = vsub.f32 1.0, %v5377
      %v5414 = vmul.f32 %v4694, %v5378
      %v5415 = vmul.f32 %v4695, %v5379
      %v5416 = vmul.f32 %v4696, %v5380
      %v5417 = vmul.f32 %v4697, %v5381
      %v5418 = vmul.f32 %v4698, %v5382
      %v5419 = vmul.f32 %v4699, %v5383
      %v5420 = vmul.f32 %v4700, %v5384
      %v5421 = vmul.f32 %v4701, %v5385
      %v5422 = vmul.f32 %v4702, %v5386
      %v5423 = vmul.f32 %v4703, %v5387
      %v5424 = vmul.f32 %v4704, %v5388
      %v5425 = vmul.f32 %v4705, %v5389
      %v5426 = vmul.f32 %v4706, %v5390
      %v5427 = vmul.f32 %v4707, %v5391
      %v5428 = vmul.f32 %v4708, %v5392
      %v5429 = vmul.f32 %v4709, %v5393
      %v5430 = vmul.f32 %v4710, %v5394
      %v5431 = vmul.f32 %v4711, %v5395
      %v5432 = vmul.f32 %v4712, %v5396
      %v5433 = vmul.f32 %v4713, %v5397
      %v5434 = vmul.f32 %v4714, %v5398
      %v5435 = vmul.f32 %v4715, %v5399
      %v5436 = vmul.f32 %v4716, %v5400
      %v5437 = vmul.f32 %v4717, %v5401
      %v5438 = vmul.f32 %v4718, %v5402
      %v5439 = vmul.f32 %v4719, %v5403
      %v5440 = vmul.f32 %v4720, %v5404
      %v5441 = vmul.f32 %v4721, %v5405
      %v5442 = vmul.f32 %v4722, %v5406
      %v5443 = vmul.f32 %v4723, %v5407
      %v5444 = vmul.f32 %v4724, %v5408
      %v5445 = vmul.f32 %v4725, %v5409
      %v5446 = vmul.f32 %v4726, %v5410
      %v5447 = vmul.f32 %v4727, %v5411
      %v5448 = vmul.f32 %v4728, %v5412
      %v5449 = vmul.f32 %v4729, %v5413
      %v5450 = vadd.f32 %v5414, 1.0
      %v5451 = vadd.f32 %v5415, 1.0
      %v5452 = vadd.f32 %v5416, 1.0
      %v5453 = vadd.f32 %v5417, 1.0
      %v5454 = vadd.f32 %v5418, 1.0
      %v5455 = vadd.f32 %v5419, 1.0
      %v5456 = vadd.f32 %v5420, 1.0
      %v5457 = vadd.f32 %v5421, 1.0
      %v5458 = vadd.f32 %v5422, 1.0
      %v5459 = vadd.f32 %v5423, 1.0
      %v5460 = vadd.f32 %v5424, 1.0
      %v5461 = vadd.f32 %v5425, 1.0
      %v5462 = vadd.f32 %v5426, 1.0
      %v5463 = vadd.f32 %v5427, 1.0
      %v5464 = vadd.f32 %v5428, 1.0
      %v5465 = vadd.f32 %v5429, 1.0
      %v5466 = vadd.f32 %v5430, 1.0
      %v5467 = vadd.f32 %v5431, 1.0
      %v5468 = vadd.f32 %v5432, 1.0
      %v5469 = vadd.f32 %v5433, 1.0
      %v5470 = vadd.f32 %v5434, 1.0
      %v5471 = vadd.f32 %v5435, 1.0
      %v5472 = vadd.f32 %v5436, 1.0
      %v5473 = vadd.f32 %v5437, 1.0
      %v5474 = vadd.f32 %v5438, 1.0
      %v5475 = vadd.f32 %v5439, 1.0
      %v5476 = vadd.f32 %v5440, 1.0
      %v5477 = vadd.f32 %v5441, 1.0
      %v5478 = vadd.f32 %v5442, 1.0
      %v5479 = vadd.f32 %v5443, 1.0
      %v5480 = vadd.f32 %v5444, 1.0
      %v5481 = vadd.f32 %v5445, 1.0
      %v5482 = vadd.f32 %v5446, 1.0
      %v5483 = vadd.f32 %v5447, 1.0
      %v5484 = vadd.f32 %v5448, 1.0
      %v5485 = vadd.f32 %v5449, 1.0
      %v5486 = vmul.f32 %v4586, %v5450
      %v5487 = vmul.f32 %v4587, %v5451
      %v5488 = vmul.f32 %v4588, %v5452
      %v5489 = vmul.f32 %v4589, %v5453
      %v5490 = vmul.f32 %v4590, %v5454
      %v5491 = vmul.f32 %v4591, %v5455
      %v5492 = vmul.f32 %v4592, %v5456
      %v5493 = vmul.f32 %v4593, %v5457
      %v5494 = vmul.f32 %v4594, %v5458
      %v5495 = vmul.f32 %v4595, %v5459
      %v5496 = vmul.f32 %v4596, %v5460
      %v5497 = vmul.f32 %v4597, %v5461
      %v5498 = vmul.f32 %v4598, %v5462
      %v5499 = vmul.f32 %v4599, %v5463
      %v5500 = vmul.f32 %v4600, %v5464
      %v5501 = vmul.f32 %v4601, %v5465
      %v5502 = vmul.f32 %v4602, %v5466
      %v5503 = vmul.f32 %v4603, %v5467
      %v5504 = vmul.f32 %v4604, %v5468
      %v5505 = vmul.f32 %v4605, %v5469
      %v5506 = vmul.f32 %v4606, %v5470
      %v5507 = vmul.f32 %v4607, %v5471
      %v5508 = vmul.f32 %v4608, %v5472
      %v5509 = vmul.f32 %v4609, %v5473
      %v5510 = vmul.f32 %v4610, %v5474
      %v5511 = vmul.f32 %v4611, %v5475
      %v5512 = vmul.f32 %v4612, %v5476
      %v5513 = vmul.f32 %v4613, %v5477
      %v5514 = vmul.f32 %v4614, %v5478
      %v5515 = vmul.f32 %v4615, %v5479
      %v5516 = vmul.f32 %v4616, %v5480
      %v5517 = vmul.f32 %v4617, %v5481
      %v5518 = vmul.f32 %v4618, %v5482
      %v5519 = vmul.f32 %v4619, %v5483
      %v5520 = vmul.f32 %v4620, %v5484
      %v5521 = vmul.f32 %v4621, %v5485
      %v5522 = vld [vmem:[%s7] sm:$0xff]
      %v5523 = vld [vmem:[%s7 + $0x8] sm:$0xff]
      %v5524 = vld [vmem:[%s7 + $0x10] sm:$0xff]
      %v5525 = vld [vmem:[%s7 + $0x18] sm:$0xff]
      %v5526 = vld [vmem:[%s7 + $0x20] sm:$0xff]
      %v5527 = vld [vmem:[%s7 + $0x28] sm:$0xff]
      %v5528 = vld [vmem:[%s7 + $0x30] sm:$0xff]
      %v5529 = vld [vmem:[%s7 + $0x38] sm:$0xff]
      %v5530 = vld [vmem:[%s7 + $0x40] sm:$0xff]
      %v5531 = vld [vmem:[%s7 + $0x48] sm:$0xff]
      %v5532 = vld [vmem:[%s7 + $0x50] sm:$0xff]
      %v5533 = vld [vmem:[%s7 + $0x58] sm:$0xff]
      %v5534 = vld [vmem:[%s7 + $0x60] sm:$0xff]
      %v5535 = vld [vmem:[%s7 + $0x68] sm:$0xff]
      %v5536 = vld [vmem:[%s7 + $0x70] sm:$0xff]
      %v5537 = vld [vmem:[%s7 + $0x78] sm:$0xff]
      %v5538 = vld [vmem:[%s7 + $0x80] sm:$0xff]
      %v5539 = vld [vmem:[%s7 + $0x88] sm:$0xff]
      %v5540 = vld [vmem:[%s7 + $0x90] sm:$0xff]
      %v5541 = vld [vmem:[%s7 + $0x98] sm:$0xff]
      %v5542 = vld [vmem:[%s7 + $0xa0] sm:$0xff]
      %v5543 = vld [vmem:[%s7 + $0xa8] sm:$0xff]
      %v5544 = vld [vmem:[%s7 + $0xb0] sm:$0xff]
      %v5545 = vld [vmem:[%s7 + $0xb8] sm:$0xff]
      %v5546 = vld [vmem:[%s7 + $0xc0] sm:$0xff]
      %v5547 = vld [vmem:[%s7 + $0xc8] sm:$0xff]
      %v5548 = vld [vmem:[%s7 + $0xd0] sm:$0xff]
      %v5549 = vld [vmem:[%s7 + $0xd8] sm:$0xff]
      %v5550 = vld [vmem:[%s7 + $0xe0] sm:$0xff]
      %v5551 = vld [vmem:[%s7 + $0xe8] sm:$0xff]
      %v5552 = vld [vmem:[%s7 + $0xf0] sm:$0xff]
      %v5553 = vld [vmem:[%s7 + $0xf8] sm:$0xff]
      %v5554 = vld [vmem:[%s7 + $0x100] sm:$0xff]
      %v5555 = vld [vmem:[%s7 + $0x108] sm:$0xff]
      %v5556 = vld [vmem:[%s7 + $0x110] sm:$0xff]
      %v5557 = vld [vmem:[%s7 + $0x118] sm:$0xff]
      %5559 = vset.pattern.permute.xlu0 0
      %5560 = vperm.xlu0 %5559, %v5522
      %v5561 = vpop.permute.xlu0 %5560
      %5564 = vset.pattern.permute.xlu0 0
      %5565 = vperm.xlu0 %5564, %v5523
      %v5566 = vpop.permute.xlu0 %5565
      %5569 = vset.pattern.permute.xlu0 0
      %5570 = vperm.xlu0 %5569, %v5524
      %v5571 = vpop.permute.xlu0 %5570
      %5574 = vset.pattern.permute.xlu0 0
      %5575 = vperm.xlu0 %5574, %v5525
      %v5576 = vpop.permute.xlu0 %5575
      %5579 = vset.pattern.permute.xlu0 0
      %5580 = vperm.xlu0 %5579, %v5526
      %v5581 = vpop.permute.xlu0 %5580
      %5584 = vset.pattern.permute.xlu0 0
      %5585 = vperm.xlu0 %5584, %v5527
      %v5586 = vpop.permute.xlu0 %5585
      %5589 = vset.pattern.permute.xlu0 0
      %5590 = vperm.xlu0 %5589, %v5528
      %v5591 = vpop.permute.xlu0 %5590
      %5594 = vset.pattern.permute.xlu0 0
      %5595 = vperm.xlu0 %5594, %v5529
      %v5596 = vpop.permute.xlu0 %5595
      %5599 = vset.pattern.permute.xlu0 0
      %5600 = vperm.xlu0 %5599, %v5530
      %v5601 = vpop.permute.xlu0 %5600
      %5604 = vset.pattern.permute.xlu0 0
      %5605 = vperm.xlu0 %5604, %v5531
      %v5606 = vpop.permute.xlu0 %5605
      %5609 = vset.pattern.permute.xlu0 0
      %5610 = vperm.xlu0 %5609, %v5532
      %v5611 = vpop.permute.xlu0 %5610
      %5614 = vset.pattern.permute.xlu0 0
      %5615 = vperm.xlu0 %5614, %v5533
      %v5616 = vpop.permute.xlu0 %5615
      %5619 = vset.pattern.permute.xlu0 0
      %5620 = vperm.xlu0 %5619, %v5534
      %v5621 = vpop.permute.xlu0 %5620
      %5624 = vset.pattern.permute.xlu0 0
      %5625 = vperm.xlu0 %5624, %v5535
      %v5626 = vpop.permute.xlu0 %5625
      %5629 = vset.pattern.permute.xlu0 0
      %5630 = vperm.xlu0 %5629, %v5536
      %v5631 = vpop.permute.xlu0 %5630
      %5634 = vset.pattern.permute.xlu0 0
      %5635 = vperm.xlu0 %5634, %v5537
      %v5636 = vpop.permute.xlu0 %5635
      %5639 = vset.pattern.permute.xlu0 0
      %5640 = vperm.xlu0 %5639, %v5538
      %v5641 = vpop.permute.xlu0 %5640
      %5644 = vset.pattern.permute.xlu0 0
      %5645 = vperm.xlu0 %5644, %v5539
      %v5646 = vpop.permute.xlu0 %5645
      %5649 = vset.pattern.permute.xlu0 0
      %5650 = vperm.xlu0 %5649, %v5540
      %v5651 = vpop.permute.xlu0 %5650
      %5654 = vset.pattern.permute.xlu0 0
      %5655 = vperm.xlu0 %5654, %v5541
      %v5656 = vpop.permute.xlu0 %5655
      %5659 = vset.pattern.permute.xlu0 0
      %5660 = vperm.xlu0 %5659, %v5542
      %v5661 = vpop.permute.xlu0 %5660
      %5664 = vset.pattern.permute.xlu0 0
      %5665 = vperm.xlu0 %5664, %v5543
      %v5666 = vpop.permute.xlu0 %5665
      %5669 = vset.pattern.permute.xlu0 0
      %5670 = vperm.xlu0 %5669, %v5544
      %v5671 = vpop.permute.xlu0 %5670
      %5674 = vset.pattern.permute.xlu0 0
      %5675 = vperm.xlu0 %5674, %v5545
      %v5676 = vpop.permute.xlu0 %5675
      %5679 = vset.pattern.permute.xlu0 0
      %5680 = vperm.xlu0 %5679, %v5546
      %v5681 = vpop.permute.xlu0 %5680
      %5684 = vset.pattern.permute.xlu0 0
      %5685 = vperm.xlu0 %5684, %v5547
      %v5686 = vpop.permute.xlu0 %5685
      %5689 = vset.pattern.permute.xlu0 0
      %5690 = vperm.xlu0 %5689, %v5548
      %v5691 = vpop.permute.xlu0 %5690
      %5694 = vset.pattern.permute.xlu0 0
      %5695 = vperm.xlu0 %5694, %v5549
      %v5696 = vpop.permute.xlu0 %5695
      %5699 = vset.pattern.permute.xlu0 0
      %5700 = vperm.xlu0 %5699, %v5550
      %v5701 = vpop.permute.xlu0 %5700
      %5704 = vset.pattern.permute.xlu0 0
      %5705 = vperm.xlu0 %5704, %v5551
      %v5706 = vpop.permute.xlu0 %5705
      %5709 = vset.pattern.permute.xlu0 0
      %5710 = vperm.xlu0 %5709, %v5552
      %v5711 = vpop.permute.xlu0 %5710
      %5714 = vset.pattern.permute.xlu0 0
      %5715 = vperm.xlu0 %5714, %v5553
      %v5716 = vpop.permute.xlu0 %5715
      %5719 = vset.pattern.permute.xlu0 0
      %5720 = vperm.xlu0 %5719, %v5554
      %v5721 = vpop.permute.xlu0 %5720
      %5724 = vset.pattern.permute.xlu0 0
      %5725 = vperm.xlu0 %5724, %v5555
      %v5726 = vpop.permute.xlu0 %5725
      %5729 = vset.pattern.permute.xlu0 0
      %5730 = vperm.xlu0 %5729, %v5556
      %v5731 = vpop.permute.xlu0 %5730
      %5734 = vset.pattern.permute.xlu0 0
      %5735 = vperm.xlu0 %5734, %v5557
      %v5736 = vpop.permute.xlu0 %5735
      %v5738 = vmul.f32 %v5486, %v5561
      %v5739 = vmul.f32 %v5487, %v5566
      %v5740 = vmul.f32 %v5488, %v5571
      %v5741 = vmul.f32 %v5489, %v5576
      %v5742 = vmul.f32 %v5490, %v5581
      %v5743 = vmul.f32 %v5491, %v5586
      %v5744 = vmul.f32 %v5492, %v5591
      %v5745 = vmul.f32 %v5493, %v5596
      %v5746 = vmul.f32 %v5494, %v5601
      %v5747 = vmul.f32 %v5495, %v5606
      %v5748 = vmul.f32 %v5496, %v5611
      %v5749 = vmul.f32 %v5497, %v5616
      %v5750 = vmul.f32 %v5498, %v5621
      %v5751 = vmul.f32 %v5499, %v5626
      %v5752 = vmul.f32 %v5500, %v5631
      %v5753 = vmul.f32 %v5501, %v5636
      %v5754 = vmul.f32 %v5502, %v5641
      %v5755 = vmul.f32 %v5503, %v5646
      %v5756 = vmul.f32 %v5504, %v5651
      %v5757 = vmul.f32 %v5505, %v5656
      %v5758 = vmul.f32 %v5506, %v5661
      %v5759 = vmul.f32 %v5507, %v5666
      %v5760 = vmul.f32 %v5508, %v5671
      %v5761 = vmul.f32 %v5509, %v5676
      %v5762 = vmul.f32 %v5510, %v5681
      %v5763 = vmul.f32 %v5511, %v5686
      %v5764 = vmul.f32 %v5512, %v5691
      %v5765 = vmul.f32 %v5513, %v5696
      %v5766 = vmul.f32 %v5514, %v5701
      %v5767 = vmul.f32 %v5515, %v5706
      %v5768 = vmul.f32 %v5516, %v5711
      %v5769 = vmul.f32 %v5517, %v5716
      %v5770 = vmul.f32 %v5518, %v5721
      %v5771 = vmul.f32 %v5519, %v5726
      %v5772 = vmul.f32 %v5520, %v5731
      %v5773 = vmul.f32 %v5521, %v5736
      %5774 = vst [vmem:[#allocation2] sm:$0xf] 0
      %5775 = vst [vmem:[#allocation2 + $0x4] sm:$0xf] 0
      %5776 = vst [vmem:[#allocation2 + $0x8] sm:$0xf] 0
      %5777 = vst [vmem:[#allocation2 + $0xc] sm:$0xf] 0
      %5778 = vst [vmem:[#allocation2 + $0xa0] sm:$0xf] 0
      %5779 = vst [vmem:[#allocation2 + $0xa4] sm:$0xf] 0
      %5780 = vst [vmem:[#allocation2 + $0xa8] sm:$0xf] 0
      %5781 = vst [vmem:[#allocation2 + $0xac] sm:$0xf] 0
      %v5782 = vpack.c.bf16 %v5739, %v5738
      %v5783 = vpack.c.bf16 %v5741, %v5740
      %v5784 = vpack.c.bf16 %v5743, %v5742
      %v5785 = vpack.c.bf16 %v5745, %v5744
      %v5786 = vpack.c.bf16 %v5747, %v5746
      %v5787 = vpack.c.bf16 %v5749, %v5748
      %v5788 = vpack.c.bf16 %v5751, %v5750
      %v5789 = vpack.c.bf16 %v5753, %v5752
      %v5790 = vpack.c.bf16 %v5755, %v5754
      %v5791 = vpack.c.bf16 %v5757, %v5756
      %v5792 = vpack.c.bf16 %v5759, %v5758
      %v5793 = vpack.c.bf16 %v5761, %v5760
      %v5794 = vpack.c.bf16 %v5763, %v5762
      %v5795 = vpack.c.bf16 %v5765, %v5764
      %v5796 = vpack.c.bf16 %v5767, %v5766
      %v5797 = vpack.c.bf16 %v5769, %v5768
      %v5798 = vpack.c.bf16 %v5771, %v5770
      %v5799 = vpack.c.bf16 %v5773, %v5772
      %v5818 = vunpack.c.l.b16 %v5782
      %v5819 = vunpack.c.h.b16 %v5782
      %v5820 = vunpack.c.l.b16 %v5783
      %v5821 = vunpack.c.h.b16 %v5783
      %v5822 = vunpack.c.l.b16 %v5784
      %v5823 = vunpack.c.h.b16 %v5784
      %v5824 = vunpack.c.l.b16 %v5785
      %v5825 = vunpack.c.h.b16 %v5785
      %v5826 = vunpack.c.l.b16 %v5786
      %v5827 = vunpack.c.h.b16 %v5786
      %v5828 = vunpack.c.l.b16 %v5787
      %v5829 = vunpack.c.h.b16 %v5787
      %v5830 = vunpack.c.l.b16 %v5788
      %v5831 = vunpack.c.h.b16 %v5788
      %v5832 = vunpack.c.l.b16 %v5789
      %v5833 = vunpack.c.h.b16 %v5789
      %v5834 = vunpack.c.l.b16 %v5790
      %v5835 = vunpack.c.h.b16 %v5790
      %v5836 = vunpack.c.l.b16 %v5791
      %v5837 = vunpack.c.h.b16 %v5791
      %v5838 = vunpack.c.l.b16 %v5792
      %v5839 = vunpack.c.h.b16 %v5792
      %v5840 = vunpack.c.l.b16 %v5793
      %v5841 = vunpack.c.h.b16 %v5793
      %v5842 = vunpack.c.l.b16 %v5794
      %v5843 = vunpack.c.h.b16 %v5794
      %v5844 = vunpack.c.l.b16 %v5795
      %v5845 = vunpack.c.h.b16 %v5795
      %v5846 = vunpack.c.l.b16 %v5796
      %v5847 = vunpack.c.h.b16 %v5796
      %v5848 = vunpack.c.l.b16 %v5797
      %v5849 = vunpack.c.h.b16 %v5797
      %v5850 = vunpack.c.l.b16 %v5798
      %v5851 = vunpack.c.h.b16 %v5798
      %v5852 = vunpack.c.l.b16 %v5799
      %v5853 = vunpack.c.h.b16 %v5799
      %v5854 = vpack.c.b16 %v5818, %v5818
      %v5855 = vpack.c.b16 %v5819, %v5819
      %v5856 = vpack.c.b16 %v5820, %v5820
      %v5857 = vpack.c.b16 %v5821, %v5821
      %v5858 = vpack.c.b16 %v5822, %v5822
      %v5859 = vpack.c.b16 %v5823, %v5823
      %v5860 = vpack.c.b16 %v5824, %v5824
      %v5861 = vpack.c.b16 %v5825, %v5825
      %v5862 = vpack.c.b16 %v5826, %v5826
      %v5863 = vpack.c.b16 %v5827, %v5827
      %v5864 = vpack.c.b16 %v5828, %v5828
      %v5865 = vpack.c.b16 %v5829, %v5829
      %v5866 = vpack.c.b16 %v5830, %v5830
      %v5867 = vpack.c.b16 %v5831, %v5831
      %v5868 = vpack.c.b16 %v5832, %v5832
      %v5869 = vpack.c.b16 %v5833, %v5833
      %v5870 = vpack.c.b16 %v5834, %v5834
      %v5871 = vpack.c.b16 %v5835, %v5835
      %v5872 = vpack.c.b16 %v5836, %v5836
      %v5873 = vpack.c.b16 %v5837, %v5837
      %v5874 = vpack.c.b16 %v5838, %v5838
      %v5875 = vpack.c.b16 %v5839, %v5839
      %v5876 = vpack.c.b16 %v5840, %v5840
      %v5877 = vpack.c.b16 %v5841, %v5841
      %v5878 = vpack.c.b16 %v5842, %v5842
      %v5879 = vpack.c.b16 %v5843, %v5843
      %v5880 = vpack.c.b16 %v5844, %v5844
      %v5881 = vpack.c.b16 %v5845, %v5845
      %v5882 = vpack.c.b16 %v5846, %v5846
      %v5883 = vpack.c.b16 %v5847, %v5847
      %v5884 = vpack.c.b16 %v5848, %v5848
      %v5885 = vpack.c.b16 %v5849, %v5849
      %v5886 = vpack.c.b16 %v5850, %v5850
      %v5887 = vpack.c.b16 %v5851, %v5851
      %v5888 = vpack.c.b16 %v5852, %v5852
      %v5889 = vpack.c.b16 %v5853, %v5853
      %5926 = vst [vmem:[#allocation2 + $0x10] sm:$0xf] %v5854
      %5927 = vst [vmem:[#allocation2 + $0x14] sm:$0xf] %v5855
      %5928 = vst [vmem:[#allocation2 + $0x18] sm:$0xf] %v5856
      %5929 = vst [vmem:[#allocation2 + $0x1c] sm:$0xf] %v5857
      %5930 = vst [vmem:[#allocation2 + $0x20] sm:$0xf] %v5858
      %5931 = vst [vmem:[#allocation2 + $0x24] sm:$0xf] %v5859
      %5932 = vst [vmem:[#allocation2 + $0x28] sm:$0xf] %v5860
      %5933 = vst [vmem:[#allocation2 + $0x2c] sm:$0xf] %v5861
      %5934 = vst [vmem:[#allocation2 + $0x30] sm:$0xf] %v5862
      %5935 = vst [vmem:[#allocation2 + $0x34] sm:$0xf] %v5863
      %5936 = vst [vmem:[#allocation2 + $0x38] sm:$0xf] %v5864
      %5937 = vst [vmem:[#allocation2 + $0x3c] sm:$0xf] %v5865
      %5938 = vst [vmem:[#allocation2 + $0x40] sm:$0xf] %v5866
      %5939 = vst [vmem:[#allocation2 + $0x44] sm:$0xf] %v5867
      %5940 = vst [vmem:[#allocation2 + $0x48] sm:$0xf] %v5868
      %5941 = vst [vmem:[#allocation2 + $0x4c] sm:$0xf] %v5869
      %5942 = vst [vmem:[#allocation2 + $0x50] sm:$0xf] %v5870
      %5943 = vst [vmem:[#allocation2 + $0x54] sm:$0xf] %v5871
      %5944 = vst [vmem:[#allocation2 + $0x58] sm:$0xf] %v5872
      %5945 = vst [vmem:[#allocation2 + $0x5c] sm:$0xf] %v5873
      %5946 = vst [vmem:[#allocation2 + $0x60] sm:$0xf] %v5874
      %5947 = vst [vmem:[#allocation2 + $0x64] sm:$0xf] %v5875
      %5948 = vst [vmem:[#allocation2 + $0x68] sm:$0xf] %v5876
      %5949 = vst [vmem:[#allocation2 + $0x6c] sm:$0xf] %v5877
      %5950 = vst [vmem:[#allocation2 + $0x70] sm:$0xf] %v5878
      %5951 = vst [vmem:[#allocation2 + $0x74] sm:$0xf] %v5879
      %5952 = vst [vmem:[#allocation2 + $0x78] sm:$0xf] %v5880
      %5953 = vst [vmem:[#allocation2 + $0x7c] sm:$0xf] %v5881
      %5954 = vst [vmem:[#allocation2 + $0x80] sm:$0xf] %v5882
      %5955 = vst [vmem:[#allocation2 + $0x84] sm:$0xf] %v5883
      %5956 = vst [vmem:[#allocation2 + $0x88] sm:$0xf] %v5884
      %5957 = vst [vmem:[#allocation2 + $0x8c] sm:$0xf] %v5885
      %5958 = vst [vmem:[#allocation2 + $0x90] sm:$0xf] %v5886
      %5959 = vst [vmem:[#allocation2 + $0x94] sm:$0xf] %v5887
      %5960 = vst [vmem:[#allocation2 + $0x98] sm:$0xf] %v5888
      %5961 = vst [vmem:[#allocation2 + $0x9c] sm:$0xf] %v5889
      %v5962 = vld [vmem:[#allocation2 + $0x4] sm:$0xc]
      %v5963 = vld [vmem:[#allocation2 + $0x8] sm:$0xf]
      %v5964 = vld [vmem:[#allocation2 + $0xc] sm:$0xf]
      %v5965 = vld [vmem:[#allocation2 + $0x10] sm:$0xf]
      %v5966 = vld [vmem:[#allocation2 + $0x14] sm:$0xf]
      %v5967 = vld [vmem:[#allocation2 + $0x18] sm:$0xf]
      %v5968 = vld [vmem:[#allocation2 + $0x1c] sm:$0xf]
      %v5969 = vld [vmem:[#allocation2 + $0x20] sm:$0xf]
      %v5970 = vld [vmem:[#allocation2 + $0x24] sm:$0xf]
      %v5971 = vld [vmem:[#allocation2 + $0x28] sm:$0xf]
      %v5972 = vld [vmem:[#allocation2 + $0x2c] sm:$0xf]
      %v5973 = vld [vmem:[#allocation2 + $0x30] sm:$0xf]
      %v5974 = vld [vmem:[#allocation2 + $0x34] sm:$0xf]
      %v5975 = vld [vmem:[#allocation2 + $0x38] sm:$0xf]
      %v5976 = vld [vmem:[#allocation2 + $0x3c] sm:$0xf]
      %v5977 = vld [vmem:[#allocation2 + $0x40] sm:$0xf]
      %v5978 = vld [vmem:[#allocation2 + $0x44] sm:$0xf]
      %v5979 = vld [vmem:[#allocation2 + $0x48] sm:$0xf]
      %v5980 = vld [vmem:[#allocation2 + $0x4c] sm:$0xf]
      %v5981 = vld [vmem:[#allocation2 + $0x50] sm:$0xf]
      %v5982 = vld [vmem:[#allocation2 + $0x54] sm:$0xf]
      %v5983 = vld [vmem:[#allocation2 + $0x58] sm:$0xf]
      %v5984 = vld [vmem:[#allocation2 + $0x5c] sm:$0xf]
      %v5985 = vld [vmem:[#allocation2 + $0x60] sm:$0xf]
      %v5986 = vld [vmem:[#allocation2 + $0x64] sm:$0xf]
      %v5987 = vld [vmem:[#allocation2 + $0x68] sm:$0xf]
      %v5988 = vld [vmem:[#allocation2 + $0x6c] sm:$0xf]
      %v5989 = vld [vmem:[#allocation2 + $0x70] sm:$0xf]
      %v5990 = vld [vmem:[#allocation2 + $0x74] sm:$0xf]
      %v5991 = vld [vmem:[#allocation2 + $0x78] sm:$0xf]
      %v5992 = vld [vmem:[#allocation2 + $0x7c] sm:$0xf]
      %v5993 = vld [vmem:[#allocation2 + $0x80] sm:$0xf]
      %v5994 = vld [vmem:[#allocation2 + $0x84] sm:$0xf]
      %v5995 = vld [vmem:[#allocation2 + $0x88] sm:$0xf]
      %v5996 = vld [vmem:[#allocation2 + $0x8c] sm:$0xf]
      %v5997 = vld [vmem:[#allocation2 + $0x90] sm:$0xf]
      %v5998 = vld [vmem:[#allocation2 + $0x94] sm:$0x7]
      %v5999 = vld [vmem:[%s2] sm:$0xf]
      %v6000 = vld [vmem:[%s2 + $0x4] sm:$0xf]
      %v6001 = vld [vmem:[%s2 + $0x8] sm:$0xf]
      %v6002 = vld [vmem:[%s2 + $0xc] sm:$0xf]
      %v6003 = vld [vmem:[%s2 + $0x10] sm:$0xf]
      %v6004 = vld [vmem:[%s2 + $0x14] sm:$0xf]
      %v6005 = vld [vmem:[%s2 + $0x18] sm:$0xf]
      %v6006 = vld [vmem:[%s2 + $0x1c] sm:$0xf]
      %v6007 = vld [vmem:[%s2 + $0x20] sm:$0xf]
      %v6008 = vld [vmem:[%s2 + $0x24] sm:$0xf]
      %v6009 = vld [vmem:[%s2 + $0x28] sm:$0xf]
      %v6010 = vld [vmem:[%s2 + $0x2c] sm:$0xf]
      %v6011 = vld [vmem:[%s2 + $0x30] sm:$0xf]
      %v6012 = vld [vmem:[%s2 + $0x34] sm:$0xf]
      %v6013 = vld [vmem:[%s2 + $0x38] sm:$0xf]
      %v6014 = vld [vmem:[%s2 + $0x3c] sm:$0xf]
      %v6015 = vld [vmem:[#allocation2 + $0x4] sm:$0x8]
      %s6016 = scalar_lea.vmem %s2, 64
      %v6017 = vld [vmem:[%s6016] sm:$0xf]
      %v6018 = vld [vmem:[%s6016 + $0x4] sm:$0xf]
      %v6019 = vld [vmem:[%s6016 + $0x8] sm:$0xf]
      %v6020 = vld [vmem:[%s6016 + $0xc] sm:$0xf]
      %v6021 = vld [vmem:[%s6016 + $0x10] sm:$0xf]
      %v6022 = vld [vmem:[%s6016 + $0x14] sm:$0xf]
      %v6023 = vld [vmem:[%s6016 + $0x18] sm:$0xf]
      %v6024 = vld [vmem:[%s6016 + $0x1c] sm:$0xf]
      %v6025 = vld [vmem:[%s6016 + $0x20] sm:$0xf]
      %v6026 = vld [vmem:[%s6016 + $0x24] sm:$0xf]
      %v6027 = vld [vmem:[%s6016 + $0x28] sm:$0xf]
      %v6028 = vld [vmem:[%s6016 + $0x2c] sm:$0xf]
      %v6029 = vld [vmem:[%s6016 + $0x30] sm:$0xf]
      %v6030 = vld [vmem:[%s6016 + $0x34] sm:$0xf]
      %v6031 = vld [vmem:[%s6016 + $0x38] sm:$0xf]
      %v6032 = vld [vmem:[%s6016 + $0x3c] sm:$0xf]
      %v6070 = vunpack.c.l.b16 %v6015
      %v6071 = vunpack.c.l.b16 %v5963
      %v6072 = vunpack.c.l.b16 %v5964
      %v6073 = vunpack.c.l.b16 %v5965
      %v6074 = vunpack.c.l.b16 %v5966
      %v6075 = vunpack.c.l.b16 %v5967
      %v6076 = vunpack.c.l.b16 %v5968
      %v6077 = vunpack.c.l.b16 %v5969
      %v6078 = vunpack.c.l.b16 %v5970
      %v6079 = vunpack.c.l.b16 %v5971
      %v6080 = vunpack.c.l.b16 %v5972
      %v6081 = vunpack.c.l.b16 %v5973
      %v6082 = vunpack.c.l.b16 %v5974
      %v6083 = vunpack.c.l.b16 %v5975
      %v6084 = vunpack.c.l.b16 %v5976
      %v6085 = vunpack.c.l.b16 %v5977
      %v6086 = vunpack.c.l.b16 %v5978
      %v6087 = vunpack.c.l.b16 %v5979
      %v6088 = vunpack.c.l.b16 %v5980
      %v6089 = vunpack.c.l.b16 %v5981
      %v6090 = vunpack.c.l.b16 %v5982
      %v6091 = vunpack.c.l.b16 %v5983
      %v6092 = vunpack.c.l.b16 %v5984
      %v6093 = vunpack.c.l.b16 %v5985
      %v6094 = vunpack.c.l.b16 %v5986
      %v6095 = vunpack.c.l.b16 %v5987
      %v6096 = vunpack.c.l.b16 %v5988
      %v6097 = vunpack.c.l.b16 %v5989
      %v6098 = vunpack.c.l.b16 %v5990
      %v6099 = vunpack.c.l.b16 %v5991
      %v6100 = vunpack.c.l.b16 %v5992
      %v6101 = vunpack.c.l.b16 %v5993
      %v6102 = vunpack.c.l.b16 %v5994
      %v6103 = vunpack.c.l.b16 %v5995
      %v6104 = vunpack.c.l.b16 %v5996
      %v6105 = vunpack.c.l.b16 %v5997
      %v6106 = vunpack.c.l.b16 %v5998
      %v6107 = vpack.c.b16 %v6071, %v6070
      %v6108 = vpack.c.b16 %v6073, %v6072
      %v6109 = vpack.c.b16 %v6075, %v6074
      %v6110 = vpack.c.b16 %v6077, %v6076
      %v6111 = vpack.c.b16 %v6079, %v6078
      %v6112 = vpack.c.b16 %v6081, %v6080
      %v6113 = vpack.c.b16 %v6083, %v6082
      %v6114 = vpack.c.b16 %v6085, %v6084
      %v6115 = vpack.c.b16 %v6087, %v6086
      %v6116 = vpack.c.b16 %v6089, %v6088
      %v6117 = vpack.c.b16 %v6091, %v6090
      %v6118 = vpack.c.b16 %v6093, %v6092
      %v6119 = vpack.c.b16 %v6095, %v6094
      %v6120 = vpack.c.b16 %v6097, %v6096
      %v6121 = vpack.c.b16 %v6099, %v6098
      %v6122 = vpack.c.b16 %v6101, %v6100
      %v6123 = vpack.c.b16 %v6103, %v6102
      %v6124 = vpack.c.b16 %v6105, %v6104
      %v6125 = vpack.c.b16 %v6106, %v6106
      %v6126 = vrot.slane %v6107, 3
      %v6127 = vrot.slane %v6108, 3
      %v6128 = vsel %vm633, %v6126, %v6127
      %v6129 = vrot.slane %v6109, 3
      %v6130 = vsel %vm633, %v6127, %v6129
      %v6131 = vrot.slane %v6110, 3
      %v6132 = vsel %vm633, %v6129, %v6131
      %v6133 = vrot.slane %v6111, 3
      %v6134 = vsel %vm633, %v6131, %v6133
      %v6135 = vrot.slane %v6112, 3
      %v6136 = vsel %vm633, %v6133, %v6135
      %v6137 = vrot.slane %v6113, 3
      %v6138 = vsel %vm633, %v6135, %v6137
      %v6139 = vrot.slane %v6114, 3
      %v6140 = vsel %vm633, %v6137, %v6139
      %v6141 = vrot.slane %v6115, 3
      %v6142 = vsel %vm633, %v6139, %v6141
      %v6143 = vrot.slane %v6116, 3
      %v6144 = vsel %vm633, %v6141, %v6143
      %v6145 = vrot.slane %v6117, 3
      %v6146 = vsel %vm633, %v6143, %v6145
      %v6147 = vrot.slane %v6118, 3
      %v6148 = vsel %vm633, %v6145, %v6147
      %v6149 = vrot.slane %v6119, 3
      %v6150 = vsel %vm633, %v6147, %v6149
      %v6151 = vrot.slane %v6120, 3
      %v6152 = vsel %vm633, %v6149, %v6151
      %v6153 = vrot.slane %v6121, 3
      %v6154 = vsel %vm633, %v6151, %v6153
      %v6155 = vrot.slane %v6122, 3
      %v6156 = vsel %vm633, %v6153, %v6155
      %v6157 = vrot.slane %v6123, 3
      %v6158 = vsel %vm633, %v6155, %v6157
      %v6159 = vrot.slane %v6124, 3
      %v6160 = vsel %vm633, %v6157, %v6159
      %v6161 = vrot.slane %v6125, 3
      %v6162 = vsel %vm633, %v6159, %v6161
      %v6197 = vunpack.c.l.b16 %v6017
      %v6198 = vunpack.c.l.b16 %v6018
      %v6199 = vunpack.c.l.b16 %v6019
      %v6200 = vunpack.c.l.b16 %v6020
      %v6201 = vunpack.c.l.b16 %v6021
      %v6202 = vunpack.c.l.b16 %v6022
      %v6203 = vunpack.c.l.b16 %v6023
      %v6204 = vunpack.c.l.b16 %v6024
      %v6205 = vunpack.c.l.b16 %v6025
      %v6206 = vunpack.c.l.b16 %v6026
      %v6207 = vunpack.c.l.b16 %v6027
      %v6208 = vunpack.c.l.b16 %v6028
      %v6209 = vunpack.c.l.b16 %v6029
      %v6210 = vunpack.c.l.b16 %v6030
      %v6211 = vunpack.c.l.b16 %v6031
      %v6212 = vunpack.c.l.b16 %v6032
      %v6213 = vpack.c.b16 %v6198, %v6197
      %v6214 = vpack.c.b16 %v6200, %v6199
      %v6215 = vpack.c.b16 %v6202, %v6201
      %v6216 = vpack.c.b16 %v6204, %v6203
      %v6217 = vpack.c.b16 %v6206, %v6205
      %v6218 = vpack.c.b16 %v6208, %v6207
      %v6219 = vpack.c.b16 %v6210, %v6209
      %v6220 = vpack.c.b16 %v6212, %v6211
      %6229 = vmatprep.subr.bf16.mxu0 0
      %6230 = vmatpush1.bf16.msra.mxu0 %v6220
      %6231 = vmatprep.subr.bf16.mxu0 0
      %6232 = vmatpush1.bf16.msra.mxu0 %v6219
      %6233 = vmatprep.subr.bf16.mxu0 0
      %6234 = vmatpush1.bf16.msra.mxu0 %v6218
      %6235 = vmatprep.subr.bf16.mxu0 0
      %6236 = vmatpush1.bf16.msra.mxu0 %v6217
      %6237 = vmatprep.subr.bf16.mxu0 0
      %6238 = vmatpush1.bf16.msra.mxu0 %v6216
      %6239 = vmatprep.subr.bf16.mxu0 0
      %6240 = vmatpush1.bf16.msra.mxu0 %v6215
      %6241 = vmatprep.subr.bf16.mxu0 0
      %6242 = vmatpush1.bf16.msra.mxu0 %v6214
      %6243 = vmatprep.subr.bf16.mxu0 0
      %6244 = vmatpush1.bf16.msra.mxu0 %v6213
      %6245 = vmatprep.subr.bf16.mxu0 0
      %6246 = vmatpush2.bf16.msra.mxu0 0
      %6247 = vmatprep.subr.bf16.mxu0 0
      %6248 = vmatpush2.bf16.msra.mxu0 0
      %6249 = vmatprep.subr.bf16.mxu0 0
      %6250 = vmatpush2.bf16.msra.mxu0 0
      %6251 = vmatprep.subr.bf16.mxu0 0
      %6252 = vmatpush2.bf16.msra.mxu0 0
      %6253 = vmatprep.subr.bf16.mxu0 0
      %6254 = vmatpush2.bf16.msra.mxu0 0
      %6255 = vmatprep.subr.bf16.mxu0 0
      %6256 = vmatpush2.bf16.msra.mxu0 0
      %6257 = vmatprep.subr.bf16.mxu0 0
      %6258 = vmatpush2.bf16.msra.mxu0 0
      %6259 = vmatprep.subr.bf16.mxu0 0
      %6260 = vmatpush2.bf16.msra.mxu0 0
      %6261 = vmatprep.mubr.bf16.mxu0 0
      %6262 = vmatmul.mubr.bf16.gmra.mxu0 %v6128
      %v6263 = vpop.f32.mrf.mxu0
      %v6264 = vadd.f32 0.0, %v6263
      %v6265 = vpop.f32.mrf.mxu0
      %v6266 = vpop.f32.mrf.mxu0
      %v6267 = vadd.f32 0.0, %v6266
      %v6268 = vpop.f32.mrf.mxu0
      %6269 = vmatprep.mubr.bf16.mxu0 0
      %6270 = vmatmul.mubr.bf16.gmra.mxu0 %v6130
      %v6271 = vpop.f32.mrf.mxu0
      %v6272 = vadd.f32 0.0, %v6271
      %v6273 = vpop.f32.mrf.mxu0
      %v6274 = vpop.f32.mrf.mxu0
      %v6275 = vadd.f32 0.0, %v6274
      %v6276 = vpop.f32.mrf.mxu0
      %6277 = vmatprep.mubr.bf16.mxu0 0
      %6278 = vmatmul.mubr.bf16.gmra.mxu0 %v6132
      %v6279 = vpop.f32.mrf.mxu0
      %v6280 = vadd.f32 0.0, %v6279
      %v6281 = vpop.f32.mrf.mxu0
      %v6282 = vpop.f32.mrf.mxu0
      %v6283 = vadd.f32 0.0, %v6282
      %v6284 = vpop.f32.mrf.mxu0
      %6285 = vmatprep.mubr.bf16.mxu0 0
      %6286 = vmatmul.mubr.bf16.gmra.mxu0 %v6134
      %v6287 = vpop.f32.mrf.mxu0
      %v6288 = vadd.f32 0.0, %v6287
      %v6289 = vpop.f32.mrf.mxu0
      %v6290 = vpop.f32.mrf.mxu0
      %v6291 = vadd.f32 0.0, %v6290
      %v6292 = vpop.f32.mrf.mxu0
      %6293 = vmatprep.mubr.bf16.mxu0 0
      %6294 = vmatmul.mubr.bf16.gmra.mxu0 %v6136
      %v6295 = vpop.f32.mrf.mxu0
      %v6296 = vadd.f32 0.0, %v6295
      %v6297 = vpop.f32.mrf.mxu0
      %v6298 = vpop.f32.mrf.mxu0
      %v6299 = vadd.f32 0.0, %v6298
      %v6300 = vpop.f32.mrf.mxu0
      %6301 = vmatprep.mubr.bf16.mxu0 0
      %6302 = vmatmul.mubr.bf16.gmra.mxu0 %v6138
      %v6303 = vpop.f32.mrf.mxu0
      %v6304 = vadd.f32 0.0, %v6303
      %v6305 = vpop.f32.mrf.mxu0
      %v6306 = vpop.f32.mrf.mxu0
      %v6307 = vadd.f32 0.0, %v6306
      %v6308 = vpop.f32.mrf.mxu0
      %6309 = vmatprep.mubr.bf16.mxu0 0
      %6310 = vmatmul.mubr.bf16.gmra.mxu0 %v6140
      %v6311 = vpop.f32.mrf.mxu0
      %v6312 = vadd.f32 0.0, %v6311
      %v6313 = vpop.f32.mrf.mxu0
      %v6314 = vpop.f32.mrf.mxu0
      %v6315 = vadd.f32 0.0, %v6314
      %v6316 = vpop.f32.mrf.mxu0
      %6317 = vmatprep.mubr.bf16.mxu0 0
      %6318 = vmatmul.mubr.bf16.gmra.mxu0 %v6142
      %v6319 = vpop.f32.mrf.mxu0
      %v6320 = vadd.f32 0.0, %v6319
      %v6321 = vpop.f32.mrf.mxu0
      %v6322 = vpop.f32.mrf.mxu0
      %v6323 = vadd.f32 0.0, %v6322
      %v6324 = vpop.f32.mrf.mxu0
      %6325 = vmatprep.mubr.bf16.mxu0 0
      %6326 = vmatmul.mubr.bf16.gmra.mxu0 %v6144
      %v6327 = vpop.f32.mrf.mxu0
      %v6328 = vadd.f32 0.0, %v6327
      %v6329 = vpop.f32.mrf.mxu0
      %v6330 = vpop.f32.mrf.mxu0
      %v6331 = vadd.f32 0.0, %v6330
      %v6332 = vpop.f32.mrf.mxu0
      %6333 = vmatprep.mubr.bf16.mxu0 0
      %6334 = vmatmul.mubr.bf16.gmra.mxu0 %v6146
      %v6335 = vpop.f32.mrf.mxu0
      %v6336 = vadd.f32 0.0, %v6335
      %v6337 = vpop.f32.mrf.mxu0
      %v6338 = vpop.f32.mrf.mxu0
      %v6339 = vadd.f32 0.0, %v6338
      %v6340 = vpop.f32.mrf.mxu0
      %6341 = vmatprep.mubr.bf16.mxu0 0
      %6342 = vmatmul.mubr.bf16.gmra.mxu0 %v6148
      %v6343 = vpop.f32.mrf.mxu0
      %v6344 = vadd.f32 0.0, %v6343
      %v6345 = vpop.f32.mrf.mxu0
      %v6346 = vpop.f32.mrf.mxu0
      %v6347 = vadd.f32 0.0, %v6346
      %v6348 = vpop.f32.mrf.mxu0
      %6349 = vmatprep.mubr.bf16.mxu0 0
      %6350 = vmatmul.mubr.bf16.gmra.mxu0 %v6150
      %v6351 = vpop.f32.mrf.mxu0
      %v6352 = vadd.f32 0.0, %v6351
      %v6353 = vpop.f32.mrf.mxu0
      %v6354 = vpop.f32.mrf.mxu0
      %v6355 = vadd.f32 0.0, %v6354
      %v6356 = vpop.f32.mrf.mxu0
      %6357 = vmatprep.mubr.bf16.mxu0 0
      %6358 = vmatmul.mubr.bf16.gmra.mxu0 %v6152
      %v6359 = vpop.f32.mrf.mxu0
      %v6360 = vadd.f32 0.0, %v6359
      %v6361 = vpop.f32.mrf.mxu0
      %v6362 = vpop.f32.mrf.mxu0
      %v6363 = vadd.f32 0.0, %v6362
      %v6364 = vpop.f32.mrf.mxu0
      %6365 = vmatprep.mubr.bf16.mxu0 0
      %6366 = vmatmul.mubr.bf16.gmra.mxu0 %v6154
      %v6367 = vpop.f32.mrf.mxu0
      %v6368 = vadd.f32 0.0, %v6367
      %v6369 = vpop.f32.mrf.mxu0
      %v6370 = vpop.f32.mrf.mxu0
      %v6371 = vadd.f32 0.0, %v6370
      %v6372 = vpop.f32.mrf.mxu0
      %6373 = vmatprep.mubr.bf16.mxu0 0
      %6374 = vmatmul.mubr.bf16.gmra.mxu0 %v6156
      %v6375 = vpop.f32.mrf.mxu0
      %v6376 = vadd.f32 0.0, %v6375
      %v6377 = vpop.f32.mrf.mxu0
      %v6378 = vpop.f32.mrf.mxu0
      %v6379 = vadd.f32 0.0, %v6378
      %v6380 = vpop.f32.mrf.mxu0
      %6381 = vmatprep.mubr.bf16.mxu0 0
      %6382 = vmatmul.mubr.bf16.gmra.mxu0 %v6158
      %v6383 = vpop.f32.mrf.mxu0
      %v6384 = vadd.f32 0.0, %v6383
      %v6385 = vpop.f32.mrf.mxu0
      %v6386 = vpop.f32.mrf.mxu0
      %v6387 = vadd.f32 0.0, %v6386
      %v6388 = vpop.f32.mrf.mxu0
      %6389 = vmatprep.mubr.bf16.mxu0 0
      %6390 = vmatmul.mubr.bf16.gmra.mxu0 %v6160
      %v6391 = vpop.f32.mrf.mxu0
      %v6392 = vadd.f32 0.0, %v6391
      %v6393 = vpop.f32.mrf.mxu0
      %v6394 = vpop.f32.mrf.mxu0
      %v6395 = vadd.f32 0.0, %v6394
      %v6396 = vpop.f32.mrf.mxu0
      %6397 = vmatprep.mubr.bf16.mxu0 0
      %6398 = vmatmul.mubr.bf16.gmra.mxu0 %v6162
      %v6399 = vpop.f32.mrf.mxu0
      %v6400 = vadd.f32 0.0, %v6399
      %v6401 = vpop.f32.mrf.mxu0
      %v6402 = vpop.f32.mrf.mxu0
      %v6403 = vadd.f32 0.0, %v6402
      %v6404 = vpop.f32.mrf.mxu0
      %6405 = vdwg.mxu0
      %v6407 = vunpack.c.l.b16 %v5962
      %v6408 = vpack.c.b16 %v6071, %v6407
      %v6410 = vshrl.u32 %v6408, 16
      %v6412 = vrot.slane %v6410, 2
      %v6413 = vshll.u32 %v6408, 16
      %v6415 = vrot.slane %v6413, 3
      %v6416 = vor.u32 %v6412, %v6415
      %v6418 = vshrl.u32 %v6108, 16
      %v6420 = vrot.slane %v6418, 2
      %v6421 = vshll.u32 %v6108, 16
      %v6423 = vrot.slane %v6421, 3
      %v6424 = vor.u32 %v6420, %v6423
      %v6425 = vsel %vm917, %v6416, %v6424
      %v6427 = vshrl.u32 %v6109, 16
      %v6429 = vrot.slane %v6427, 2
      %v6430 = vshll.u32 %v6109, 16
      %v6432 = vrot.slane %v6430, 3
      %v6433 = vor.u32 %v6429, %v6432
      %v6434 = vsel %vm917, %v6424, %v6433
      %v6436 = vshrl.u32 %v6110, 16
      %v6438 = vrot.slane %v6436, 2
      %v6439 = vshll.u32 %v6110, 16
      %v6441 = vrot.slane %v6439, 3
      %v6442 = vor.u32 %v6438, %v6441
      %v6443 = vsel %vm917, %v6433, %v6442
      %v6445 = vshrl.u32 %v6111, 16
      %v6447 = vrot.slane %v6445, 2
      %v6448 = vshll.u32 %v6111, 16
      %v6450 = vrot.slane %v6448, 3
      %v6451 = vor.u32 %v6447, %v6450
      %v6452 = vsel %vm917, %v6442, %v6451
      %v6454 = vshrl.u32 %v6112, 16
      %v6456 = vrot.slane %v6454, 2
      %v6457 = vshll.u32 %v6112, 16
      %v6459 = vrot.slane %v6457, 3
      %v6460 = vor.u32 %v6456, %v6459
      %v6461 = vsel %vm917, %v6451, %v6460
      %v6463 = vshrl.u32 %v6113, 16
      %v6465 = vrot.slane %v6463, 2
      %v6466 = vshll.u32 %v6113, 16
      %v6468 = vrot.slane %v6466, 3
      %v6469 = vor.u32 %v6465, %v6468
      %v6470 = vsel %vm917, %v6460, %v6469
      %v6472 = vshrl.u32 %v6114, 16
      %v6474 = vrot.slane %v6472, 2
      %v6475 = vshll.u32 %v6114, 16
      %v6477 = vrot.slane %v6475, 3
      %v6478 = vor.u32 %v6474, %v6477
      %v6479 = vsel %vm917, %v6469, %v6478
      %v6481 = vshrl.u32 %v6115, 16
      %v6483 = vrot.slane %v6481, 2
      %v6484 = vshll.u32 %v6115, 16
      %v6486 = vrot.slane %v6484, 3
      %v6487 = vor.u32 %v6483, %v6486
      %v6488 = vsel %vm917, %v6478, %v6487
      %v6490 = vshrl.u32 %v6116, 16
      %v6492 = vrot.slane %v6490, 2
      %v6493 = vshll.u32 %v6116, 16
      %v6495 = vrot.slane %v6493, 3
      %v6496 = vor.u32 %v6492, %v6495
      %v6497 = vsel %vm917, %v6487, %v6496
      %v6499 = vshrl.u32 %v6117, 16
      %v6501 = vrot.slane %v6499, 2
      %v6502 = vshll.u32 %v6117, 16
      %v6504 = vrot.slane %v6502, 3
      %v6505 = vor.u32 %v6501, %v6504
      %v6506 = vsel %vm917, %v6496, %v6505
      %v6508 = vshrl.u32 %v6118, 16
      %v6510 = vrot.slane %v6508, 2
      %v6511 = vshll.u32 %v6118, 16
      %v6513 = vrot.slane %v6511, 3
      %v6514 = vor.u32 %v6510, %v6513
      %v6515 = vsel %vm917, %v6505, %v6514
      %v6517 = vshrl.u32 %v6119, 16
      %v6519 = vrot.slane %v6517, 2
      %v6520 = vshll.u32 %v6119, 16
      %v6522 = vrot.slane %v6520, 3
      %v6523 = vor.u32 %v6519, %v6522
      %v6524 = vsel %vm917, %v6514, %v6523
      %v6526 = vshrl.u32 %v6120, 16
      %v6528 = vrot.slane %v6526, 2
      %v6529 = vshll.u32 %v6120, 16
      %v6531 = vrot.slane %v6529, 3
      %v6532 = vor.u32 %v6528, %v6531
      %v6533 = vsel %vm917, %v6523, %v6532
      %v6535 = vshrl.u32 %v6121, 16
      %v6537 = vrot.slane %v6535, 2
      %v6538 = vshll.u32 %v6121, 16
      %v6540 = vrot.slane %v6538, 3
      %v6541 = vor.u32 %v6537, %v6540
      %v6542 = vsel %vm917, %v6532, %v6541
      %v6544 = vshrl.u32 %v6122, 16
      %v6546 = vrot.slane %v6544, 2
      %v6547 = vshll.u32 %v6122, 16
      %v6549 = vrot.slane %v6547, 3
      %v6550 = vor.u32 %v6546, %v6549
      %v6551 = vsel %vm917, %v6541, %v6550
      %v6553 = vshrl.u32 %v6123, 16
      %v6555 = vrot.slane %v6553, 2
      %v6556 = vshll.u32 %v6123, 16
      %v6558 = vrot.slane %v6556, 3
      %v6559 = vor.u32 %v6555, %v6558
      %v6560 = vsel %vm917, %v6550, %v6559
      %v6562 = vshrl.u32 %v6124, 16
      %v6564 = vrot.slane %v6562, 2
      %v6565 = vshll.u32 %v6124, 16
      %v6567 = vrot.slane %v6565, 3
      %v6568 = vor.u32 %v6564, %v6567
      %v6569 = vsel %vm917, %v6559, %v6568
      %v6571 = vshrl.u32 %v6125, 16
      %v6573 = vrot.slane %v6571, 2
      %v6574 = vshll.u32 %v6125, 16
      %v6576 = vrot.slane %v6574, 3
      %v6577 = vor.u32 %v6573, %v6576
      %v6578 = vsel %vm917, %v6568, %v6577
      %v6613 = vunpack.c.l.b16 %v5999
      %v6614 = vunpack.c.l.b16 %v6000
      %v6615 = vunpack.c.l.b16 %v6001
      %v6616 = vunpack.c.l.b16 %v6002
      %v6617 = vunpack.c.l.b16 %v6003
      %v6618 = vunpack.c.l.b16 %v6004
      %v6619 = vunpack.c.l.b16 %v6005
      %v6620 = vunpack.c.l.b16 %v6006
      %v6621 = vunpack.c.l.b16 %v6007
      %v6622 = vunpack.c.l.b16 %v6008
      %v6623 = vunpack.c.l.b16 %v6009
      %v6624 = vunpack.c.l.b16 %v6010
      %v6625 = vunpack.c.l.b16 %v6011
      %v6626 = vunpack.c.l.b16 %v6012
      %v6627 = vunpack.c.l.b16 %v6013
      %v6628 = vunpack.c.l.b16 %v6014
      %v6629 = vpack.c.b16 %v6614, %v6613
      %v6630 = vpack.c.b16 %v6616, %v6615
      %v6631 = vpack.c.b16 %v6618, %v6617
      %v6632 = vpack.c.b16 %v6620, %v6619
      %v6633 = vpack.c.b16 %v6622, %v6621
      %v6634 = vpack.c.b16 %v6624, %v6623
      %v6635 = vpack.c.b16 %v6626, %v6625
      %v6636 = vpack.c.b16 %v6628, %v6627
      %6645 = vmatprep.subr.bf16.mxu0 0
      %6646 = vmatpush1.bf16.msra.mxu0 %v6636
      %6647 = vmatprep.subr.bf16.mxu0 0
      %6648 = vmatpush1.bf16.msra.mxu0 %v6635
      %6649 = vmatprep.subr.bf16.mxu0 0
      %6650 = vmatpush1.bf16.msra.mxu0 %v6634
      %6651 = vmatprep.subr.bf16.mxu0 0
      %6652 = vmatpush1.bf16.msra.mxu0 %v6633
      %6653 = vmatprep.subr.bf16.mxu0 0
      %6654 = vmatpush1.bf16.msra.mxu0 %v6632
      %6655 = vmatprep.subr.bf16.mxu0 0
      %6656 = vmatpush1.bf16.msra.mxu0 %v6631
      %6657 = vmatprep.subr.bf16.mxu0 0
      %6658 = vmatpush1.bf16.msra.mxu0 %v6630
      %6659 = vmatprep.subr.bf16.mxu0 0
      %6660 = vmatpush1.bf16.msra.mxu0 %v6629
      %6661 = vmatprep.subr.bf16.mxu0 0
      %6662 = vmatpush2.bf16.msra.mxu0 0
      %6663 = vmatprep.subr.bf16.mxu0 0
      %6664 = vmatpush2.bf16.msra.mxu0 0
      %6665 = vmatprep.subr.bf16.mxu0 0
      %6666 = vmatpush2.bf16.msra.mxu0 0
      %6667 = vmatprep.subr.bf16.mxu0 0
      %6668 = vmatpush2.bf16.msra.mxu0 0
      %6669 = vmatprep.subr.bf16.mxu0 0
      %6670 = vmatpush2.bf16.msra.mxu0 0
      %6671 = vmatprep.subr.bf16.mxu0 0
      %6672 = vmatpush2.bf16.msra.mxu0 0
      %6673 = vmatprep.subr.bf16.mxu0 0
      %6674 = vmatpush2.bf16.msra.mxu0 0
      %6675 = vmatprep.subr.bf16.mxu0 0
      %6676 = vmatpush2.bf16.msra.mxu0 0
      %6677 = vmatprep.mubr.bf16.mxu0 0
      %6678 = vmatmul.mubr.bf16.gmra.mxu0 %v6425
      %v6679 = vpop.f32.mrf.mxu0
      %v6680 = vadd.f32 %v6264, %v6679
      %v6681 = vpop.f32.mrf.mxu0
      %v6682 = vpop.f32.mrf.mxu0
      %v6683 = vadd.f32 %v6267, %v6682
      %v6684 = vpop.f32.mrf.mxu0
      %6685 = vmatprep.mubr.bf16.mxu0 0
      %6686 = vmatmul.mubr.bf16.gmra.mxu0 %v6434
      %v6687 = vpop.f32.mrf.mxu0
      %v6688 = vadd.f32 %v6272, %v6687
      %v6689 = vpop.f32.mrf.mxu0
      %v6690 = vpop.f32.mrf.mxu0
      %v6691 = vadd.f32 %v6275, %v6690
      %v6692 = vpop.f32.mrf.mxu0
      %6693 = vmatprep.mubr.bf16.mxu0 0
      %6694 = vmatmul.mubr.bf16.gmra.mxu0 %v6443
      %v6695 = vpop.f32.mrf.mxu0
      %v6696 = vadd.f32 %v6280, %v6695
      %v6697 = vpop.f32.mrf.mxu0
      %v6698 = vpop.f32.mrf.mxu0
      %v6699 = vadd.f32 %v6283, %v6698
      %v6700 = vpop.f32.mrf.mxu0
      %6701 = vmatprep.mubr.bf16.mxu0 0
      %6702 = vmatmul.mubr.bf16.gmra.mxu0 %v6452
      %v6703 = vpop.f32.mrf.mxu0
      %v6704 = vadd.f32 %v6288, %v6703
      %v6705 = vpop.f32.mrf.mxu0
      %v6706 = vpop.f32.mrf.mxu0
      %v6707 = vadd.f32 %v6291, %v6706
      %v6708 = vpop.f32.mrf.mxu0
      %6709 = vmatprep.mubr.bf16.mxu0 0
      %6710 = vmatmul.mubr.bf16.gmra.mxu0 %v6461
      %v6711 = vpop.f32.mrf.mxu0
      %v6712 = vadd.f32 %v6296, %v6711
      %v6713 = vpop.f32.mrf.mxu0
      %v6714 = vpop.f32.mrf.mxu0
      %v6715 = vadd.f32 %v6299, %v6714
      %v6716 = vpop.f32.mrf.mxu0
      %6717 = vmatprep.mubr.bf16.mxu0 0
      %6718 = vmatmul.mubr.bf16.gmra.mxu0 %v6470
      %v6719 = vpop.f32.mrf.mxu0
      %v6720 = vadd.f32 %v6304, %v6719
      %v6721 = vpop.f32.mrf.mxu0
      %v6722 = vpop.f32.mrf.mxu0
      %v6723 = vadd.f32 %v6307, %v6722
      %v6724 = vpop.f32.mrf.mxu0
      %6725 = vmatprep.mubr.bf16.mxu0 0
      %6726 = vmatmul.mubr.bf16.gmra.mxu0 %v6479
      %v6727 = vpop.f32.mrf.mxu0
      %v6728 = vadd.f32 %v6312, %v6727
      %v6729 = vpop.f32.mrf.mxu0
      %v6730 = vpop.f32.mrf.mxu0
      %v6731 = vadd.f32 %v6315, %v6730
      %v6732 = vpop.f32.mrf.mxu0
      %6733 = vmatprep.mubr.bf16.mxu0 0
      %6734 = vmatmul.mubr.bf16.gmra.mxu0 %v6488
      %v6735 = vpop.f32.mrf.mxu0
      %v6736 = vadd.f32 %v6320, %v6735
      %v6737 = vpop.f32.mrf.mxu0
      %v6738 = vpop.f32.mrf.mxu0
      %v6739 = vadd.f32 %v6323, %v6738
      %v6740 = vpop.f32.mrf.mxu0
      %6741 = vmatprep.mubr.bf16.mxu0 0
      %6742 = vmatmul.mubr.bf16.gmra.mxu0 %v6497
      %v6743 = vpop.f32.mrf.mxu0
      %v6744 = vadd.f32 %v6328, %v6743
      %v6745 = vpop.f32.mrf.mxu0
      %v6746 = vpop.f32.mrf.mxu0
      %v6747 = vadd.f32 %v6331, %v6746
      %v6748 = vpop.f32.mrf.mxu0
      %6749 = vmatprep.mubr.bf16.mxu0 0
      %6750 = vmatmul.mubr.bf16.gmra.mxu0 %v6506
      %v6751 = vpop.f32.mrf.mxu0
      %v6752 = vadd.f32 %v6336, %v6751
      %v6753 = vpop.f32.mrf.mxu0
      %v6754 = vpop.f32.mrf.mxu0
      %v6755 = vadd.f32 %v6339, %v6754
      %v6756 = vpop.f32.mrf.mxu0
      %6757 = vmatprep.mubr.bf16.mxu0 0
      %6758 = vmatmul.mubr.bf16.gmra.mxu0 %v6515
      %v6759 = vpop.f32.mrf.mxu0
      %v6760 = vadd.f32 %v6344, %v6759
      %v6761 = vpop.f32.mrf.mxu0
      %v6762 = vpop.f32.mrf.mxu0
      %v6763 = vadd.f32 %v6347, %v6762
      %v6764 = vpop.f32.mrf.mxu0
      %6765 = vmatprep.mubr.bf16.mxu0 0
      %6766 = vmatmul.mubr.bf16.gmra.mxu0 %v6524
      %v6767 = vpop.f32.mrf.mxu0
      %v6768 = vadd.f32 %v6352, %v6767
      %v6769 = vpop.f32.mrf.mxu0
      %v6770 = vpop.f32.mrf.mxu0
      %v6771 = vadd.f32 %v6355, %v6770
      %v6772 = vpop.f32.mrf.mxu0
      %6773 = vmatprep.mubr.bf16.mxu0 0
      %6774 = vmatmul.mubr.bf16.gmra.mxu0 %v6533
      %v6775 = vpop.f32.mrf.mxu0
      %v6776 = vadd.f32 %v6360, %v6775
      %v6777 = vpop.f32.mrf.mxu0
      %v6778 = vpop.f32.mrf.mxu0
      %v6779 = vadd.f32 %v6363, %v6778
      %v6780 = vpop.f32.mrf.mxu0
      %6781 = vmatprep.mubr.bf16.mxu0 0
      %6782 = vmatmul.mubr.bf16.gmra.mxu0 %v6542
      %v6783 = vpop.f32.mrf.mxu0
      %v6784 = vadd.f32 %v6368, %v6783
      %v6785 = vpop.f32.mrf.mxu0
      %v6786 = vpop.f32.mrf.mxu0
      %v6787 = vadd.f32 %v6371, %v6786
      %v6788 = vpop.f32.mrf.mxu0
      %6789 = vmatprep.mubr.bf16.mxu0 0
      %6790 = vmatmul.mubr.bf16.gmra.mxu0 %v6551
      %v6791 = vpop.f32.mrf.mxu0
      %v6792 = vadd.f32 %v6376, %v6791
      %v6793 = vpop.f32.mrf.mxu0
      %v6794 = vpop.f32.mrf.mxu0
      %v6795 = vadd.f32 %v6379, %v6794
      %v6796 = vpop.f32.mrf.mxu0
      %6797 = vmatprep.mubr.bf16.mxu0 0
      %6798 = vmatmul.mubr.bf16.gmra.mxu0 %v6560
      %v6799 = vpop.f32.mrf.mxu0
      %v6800 = vadd.f32 %v6384, %v6799
      %v6801 = vpop.f32.mrf.mxu0
      %v6802 = vpop.f32.mrf.mxu0
      %v6803 = vadd.f32 %v6387, %v6802
      %v6804 = vpop.f32.mrf.mxu0
      %6805 = vmatprep.mubr.bf16.mxu0 0
      %6806 = vmatmul.mubr.bf16.gmra.mxu0 %v6569
      %v6807 = vpop.f32.mrf.mxu0
      %v6808 = vadd.f32 %v6392, %v6807
      %v6809 = vpop.f32.mrf.mxu0
      %v6810 = vpop.f32.mrf.mxu0
      %v6811 = vadd.f32 %v6395, %v6810
      %v6812 = vpop.f32.mrf.mxu0
      %6813 = vmatprep.mubr.bf16.mxu0 0
      %6814 = vmatmul.mubr.bf16.gmra.mxu0 %v6578
      %v6815 = vpop.f32.mrf.mxu0
      %v6816 = vadd.f32 %v6400, %v6815
      %v6817 = vpop.f32.mrf.mxu0
      %v6818 = vpop.f32.mrf.mxu0
      %v6819 = vadd.f32 %v6403, %v6818
      %v6820 = vpop.f32.mrf.mxu0
      %6821 = vdwg.mxu0
      %v6822 = vld [vmem:[#allocation2 + $0x94] sm:$0xf]
      %s6823 = scalar_lea.vmem %s2, 128
      %v6824 = vld [vmem:[%s6823] sm:$0xf]
      %v6825 = vld [vmem:[%s6823 + $0x4] sm:$0xf]
      %v6826 = vld [vmem:[%s6823 + $0x8] sm:$0xf]
      %v6827 = vld [vmem:[%s6823 + $0xc] sm:$0xf]
      %v6828 = vld [vmem:[%s6823 + $0x10] sm:$0xf]
      %v6829 = vld [vmem:[%s6823 + $0x14] sm:$0xf]
      %v6830 = vld [vmem:[%s6823 + $0x18] sm:$0xf]
      %v6831 = vld [vmem:[%s6823 + $0x1c] sm:$0xf]
      %v6832 = vld [vmem:[%s6823 + $0x20] sm:$0xf]
      %v6833 = vld [vmem:[%s6823 + $0x24] sm:$0xf]
      %v6834 = vld [vmem:[%s6823 + $0x28] sm:$0xf]
      %v6835 = vld [vmem:[%s6823 + $0x2c] sm:$0xf]
      %v6836 = vld [vmem:[%s6823 + $0x30] sm:$0xf]
      %v6837 = vld [vmem:[%s6823 + $0x34] sm:$0xf]
      %v6838 = vld [vmem:[%s6823 + $0x38] sm:$0xf]
      %v6839 = vld [vmem:[%s6823 + $0x3c] sm:$0xf]
      %v6841 = vunpack.c.l.b16 %v6822
      %v6842 = vpack.c.b16 %v6841, %v6841
      %v6844 = vshrl.u32 %v6107, 16
      %v6846 = vrot.slane %v6844, 3
      %v6847 = vshll.u32 %v6107, 16
      %v6849 = vrot.slane %v6847, 4
      %v6850 = vor.u32 %v6846, %v6849
      %v6851 = vrot.slane %v6418, 3
      %v6852 = vrot.slane %v6421, 4
      %v6853 = vor.u32 %v6851, %v6852
      %v6854 = vsel %vm1352, %v6850, %v6853
      %v6855 = vrot.slane %v6427, 3
      %v6856 = vrot.slane %v6430, 4
      %v6857 = vor.u32 %v6855, %v6856
      %v6858 = vsel %vm1352, %v6853, %v6857
      %v6859 = vrot.slane %v6436, 3
      %v6860 = vrot.slane %v6439, 4
      %v6861 = vor.u32 %v6859, %v6860
      %v6862 = vsel %vm1352, %v6857, %v6861
      %v6863 = vrot.slane %v6445, 3
      %v6864 = vrot.slane %v6448, 4
      %v6865 = vor.u32 %v6863, %v6864
      %v6866 = vsel %vm1352, %v6861, %v6865
      %v6867 = vrot.slane %v6454, 3
      %v6868 = vrot.slane %v6457, 4
      %v6869 = vor.u32 %v6867, %v6868
      %v6870 = vsel %vm1352, %v6865, %v6869
      %v6871 = vrot.slane %v6463, 3
      %v6872 = vrot.slane %v6466, 4
      %v6873 = vor.u32 %v6871, %v6872
      %v6874 = vsel %vm1352, %v6869, %v6873
      %v6875 = vrot.slane %v6472, 3
      %v6876 = vrot.slane %v6475, 4
      %v6877 = vor.u32 %v6875, %v6876
      %v6878 = vsel %vm1352, %v6873, %v6877
      %v6879 = vrot.slane %v6481, 3
      %v6880 = vrot.slane %v6484, 4
      %v6881 = vor.u32 %v6879, %v6880
      %v6882 = vsel %vm1352, %v6877, %v6881
      %v6883 = vrot.slane %v6490, 3
      %v6884 = vrot.slane %v6493, 4
      %v6885 = vor.u32 %v6883, %v6884
      %v6886 = vsel %vm1352, %v6881, %v6885
      %v6887 = vrot.slane %v6499, 3
      %v6888 = vrot.slane %v6502, 4
      %v6889 = vor.u32 %v6887, %v6888
      %v6890 = vsel %vm1352, %v6885, %v6889
      %v6891 = vrot.slane %v6508, 3
      %v6892 = vrot.slane %v6511, 4
      %v6893 = vor.u32 %v6891, %v6892
      %v6894 = vsel %vm1352, %v6889, %v6893
      %v6895 = vrot.slane %v6517, 3
      %v6896 = vrot.slane %v6520, 4
      %v6897 = vor.u32 %v6895, %v6896
      %v6898 = vsel %vm1352, %v6893, %v6897
      %v6899 = vrot.slane %v6526, 3
      %v6900 = vrot.slane %v6529, 4
      %v6901 = vor.u32 %v6899, %v6900
      %v6902 = vsel %vm1352, %v6897, %v6901
      %v6903 = vrot.slane %v6535, 3
      %v6904 = vrot.slane %v6538, 4
      %v6905 = vor.u32 %v6903, %v6904
      %v6906 = vsel %vm1352, %v6901, %v6905
      %v6907 = vrot.slane %v6544, 3
      %v6908 = vrot.slane %v6547, 4
      %v6909 = vor.u32 %v6907, %v6908
      %v6910 = vsel %vm1352, %v6905, %v6909
      %v6911 = vrot.slane %v6553, 3
      %v6912 = vrot.slane %v6556, 4
      %v6913 = vor.u32 %v6911, %v6912
      %v6914 = vsel %vm1352, %v6909, %v6913
      %v6915 = vrot.slane %v6562, 3
      %v6916 = vrot.slane %v6565, 4
      %v6917 = vor.u32 %v6915, %v6916
      %v6918 = vsel %vm1352, %v6913, %v6917
      %v6920 = vshrl.u32 %v6842, 16
      %v6922 = vrot.slane %v6920, 3
      %v6923 = vshll.u32 %v6842, 16
      %v6925 = vrot.slane %v6923, 4
      %v6926 = vor.u32 %v6922, %v6925
      %v6927 = vsel %vm1352, %v6917, %v6926
      %v6962 = vunpack.c.l.b16 %v6824
      %v6963 = vunpack.c.l.b16 %v6825
      %v6964 = vunpack.c.l.b16 %v6826
      %v6965 = vunpack.c.l.b16 %v6827
      %v6966 = vunpack.c.l.b16 %v6828
      %v6967 = vunpack.c.l.b16 %v6829
      %v6968 = vunpack.c.l.b16 %v6830
      %v6969 = vunpack.c.l.b16 %v6831
      %v6970 = vunpack.c.l.b16 %v6832
      %v6971 = vunpack.c.l.b16 %v6833
      %v6972 = vunpack.c.l.b16 %v6834
      %v6973 = vunpack.c.l.b16 %v6835
      %v6974 = vunpack.c.l.b16 %v6836
      %v6975 = vunpack.c.l.b16 %v6837
      %v6976 = vunpack.c.l.b16 %v6838
      %v6977 = vunpack.c.l.b16 %v6839
      %v6978 = vpack.c.b16 %v6963, %v6962
      %v6979 = vpack.c.b16 %v6965, %v6964
      %v6980 = vpack.c.b16 %v6967, %v6966
      %v6981 = vpack.c.b16 %v6969, %v6968
      %v6982 = vpack.c.b16 %v6971, %v6970
      %v6983 = vpack.c.b16 %v6973, %v6972
      %v6984 = vpack.c.b16 %v6975, %v6974
      %v6985 = vpack.c.b16 %v6977, %v6976
      %6994 = vmatprep.subr.bf16.mxu0 0
      %6995 = vmatpush1.bf16.msra.mxu0 %v6985
      %6996 = vmatprep.subr.bf16.mxu0 0
      %6997 = vmatpush1.bf16.msra.mxu0 %v6984
      %6998 = vmatprep.subr.bf16.mxu0 0
      %6999 = vmatpush1.bf16.msra.mxu0 %v6983
      %7000 = vmatprep.subr.bf16.mxu0 0
      %7001 = vmatpush1.bf16.msra.mxu0 %v6982
      %7002 = vmatprep.subr.bf16.mxu0 0
      %7003 = vmatpush1.bf16.msra.mxu0 %v6981
      %7004 = vmatprep.subr.bf16.mxu0 0
      %7005 = vmatpush1.bf16.msra.mxu0 %v6980
      %7006 = vmatprep.subr.bf16.mxu0 0
      %7007 = vmatpush1.bf16.msra.mxu0 %v6979
      %7008 = vmatprep.subr.bf16.mxu0 0
      %7009 = vmatpush1.bf16.msra.mxu0 %v6978
      %7010 = vmatprep.subr.bf16.mxu0 0
      %7011 = vmatpush2.bf16.msra.mxu0 0
      %7012 = vmatprep.subr.bf16.mxu0 0
      %7013 = vmatpush2.bf16.msra.mxu0 0
      %7014 = vmatprep.subr.bf16.mxu0 0
      %7015 = vmatpush2.bf16.msra.mxu0 0
      %7016 = vmatprep.subr.bf16.mxu0 0
      %7017 = vmatpush2.bf16.msra.mxu0 0
      %7018 = vmatprep.subr.bf16.mxu0 0
      %7019 = vmatpush2.bf16.msra.mxu0 0
      %7020 = vmatprep.subr.bf16.mxu0 0
      %7021 = vmatpush2.bf16.msra.mxu0 0
      %7022 = vmatprep.subr.bf16.mxu0 0
      %7023 = vmatpush2.bf16.msra.mxu0 0
      %7024 = vmatprep.subr.bf16.mxu0 0
      %7025 = vmatpush2.bf16.msra.mxu0 0
      %7026 = vmatprep.mubr.bf16.mxu0 0
      %7027 = vmatmul.mubr.bf16.gmra.mxu0 %v6854
      %v7028 = vpop.f32.mrf.mxu0
      %v7029 = vadd.f32 0.0, %v7028
      %v7030 = vpop.f32.mrf.mxu0
      %v7031 = vpop.f32.mrf.mxu0
      %v7032 = vadd.f32 0.0, %v7031
      %v7033 = vpop.f32.mrf.mxu0
      %7034 = vmatprep.mubr.bf16.mxu0 0
      %7035 = vmatmul.mubr.bf16.gmra.mxu0 %v6858
      %v7036 = vpop.f32.mrf.mxu0
      %v7037 = vadd.f32 0.0, %v7036
      %v7038 = vpop.f32.mrf.mxu0
      %v7039 = vpop.f32.mrf.mxu0
      %v7040 = vadd.f32 0.0, %v7039
      %v7041 = vpop.f32.mrf.mxu0
      %7042 = vmatprep.mubr.bf16.mxu0 0
      %7043 = vmatmul.mubr.bf16.gmra.mxu0 %v6862
      %v7044 = vpop.f32.mrf.mxu0
      %v7045 = vadd.f32 0.0, %v7044
      %v7046 = vpop.f32.mrf.mxu0
      %v7047 = vpop.f32.mrf.mxu0
      %v7048 = vadd.f32 0.0, %v7047
      %v7049 = vpop.f32.mrf.mxu0
      %7050 = vmatprep.mubr.bf16.mxu0 0
      %7051 = vmatmul.mubr.bf16.gmra.mxu0 %v6866
      %v7052 = vpop.f32.mrf.mxu0
      %v7053 = vadd.f32 0.0, %v7052
      %v7054 = vpop.f32.mrf.mxu0
      %v7055 = vpop.f32.mrf.mxu0
      %v7056 = vadd.f32 0.0, %v7055
      %v7057 = vpop.f32.mrf.mxu0
      %7058 = vmatprep.mubr.bf16.mxu0 0
      %7059 = vmatmul.mubr.bf16.gmra.mxu0 %v6870
      %v7060 = vpop.f32.mrf.mxu0
      %v7061 = vadd.f32 0.0, %v7060
      %v7062 = vpop.f32.mrf.mxu0
      %v7063 = vpop.f32.mrf.mxu0
      %v7064 = vadd.f32 0.0, %v7063
      %v7065 = vpop.f32.mrf.mxu0
      %7066 = vmatprep.mubr.bf16.mxu0 0
      %7067 = vmatmul.mubr.bf16.gmra.mxu0 %v6874
      %v7068 = vpop.f32.mrf.mxu0
      %v7069 = vadd.f32 0.0, %v7068
      %v7070 = vpop.f32.mrf.mxu0
      %v7071 = vpop.f32.mrf.mxu0
      %v7072 = vadd.f32 0.0, %v7071
      %v7073 = vpop.f32.mrf.mxu0
      %7074 = vmatprep.mubr.bf16.mxu0 0
      %7075 = vmatmul.mubr.bf16.gmra.mxu0 %v6878
      %v7076 = vpop.f32.mrf.mxu0
      %v7077 = vadd.f32 0.0, %v7076
      %v7078 = vpop.f32.mrf.mxu0
      %v7079 = vpop.f32.mrf.mxu0
      %v7080 = vadd.f32 0.0, %v7079
      %v7081 = vpop.f32.mrf.mxu0
      %7082 = vmatprep.mubr.bf16.mxu0 0
      %7083 = vmatmul.mubr.bf16.gmra.mxu0 %v6882
      %v7084 = vpop.f32.mrf.mxu0
      %v7085 = vadd.f32 0.0, %v7084
      %v7086 = vpop.f32.mrf.mxu0
      %v7087 = vpop.f32.mrf.mxu0
      %v7088 = vadd.f32 0.0, %v7087
      %v7089 = vpop.f32.mrf.mxu0
      %7090 = vmatprep.mubr.bf16.mxu0 0
      %7091 = vmatmul.mubr.bf16.gmra.mxu0 %v6886
      %v7092 = vpop.f32.mrf.mxu0
      %v7093 = vadd.f32 0.0, %v7092
      %v7094 = vpop.f32.mrf.mxu0
      %v7095 = vpop.f32.mrf.mxu0
      %v7096 = vadd.f32 0.0, %v7095
      %v7097 = vpop.f32.mrf.mxu0
      %7098 = vmatprep.mubr.bf16.mxu0 0
      %7099 = vmatmul.mubr.bf16.gmra.mxu0 %v6890
      %v7100 = vpop.f32.mrf.mxu0
      %v7101 = vadd.f32 0.0, %v7100
      %v7102 = vpop.f32.mrf.mxu0
      %v7103 = vpop.f32.mrf.mxu0
      %v7104 = vadd.f32 0.0, %v7103
      %v7105 = vpop.f32.mrf.mxu0
      %7106 = vmatprep.mubr.bf16.mxu0 0
      %7107 = vmatmul.mubr.bf16.gmra.mxu0 %v6894
      %v7108 = vpop.f32.mrf.mxu0
      %v7109 = vadd.f32 0.0, %v7108
      %v7110 = vpop.f32.mrf.mxu0
      %v7111 = vpop.f32.mrf.mxu0
      %v7112 = vadd.f32 0.0, %v7111
      %v7113 = vpop.f32.mrf.mxu0
      %7114 = vmatprep.mubr.bf16.mxu0 0
      %7115 = vmatmul.mubr.bf16.gmra.mxu0 %v6898
      %v7116 = vpop.f32.mrf.mxu0
      %v7117 = vadd.f32 0.0, %v7116
      %v7118 = vpop.f32.mrf.mxu0
      %v7119 = vpop.f32.mrf.mxu0
      %v7120 = vadd.f32 0.0, %v7119
      %v7121 = vpop.f32.mrf.mxu0
      %7122 = vmatprep.mubr.bf16.mxu0 0
      %7123 = vmatmul.mubr.bf16.gmra.mxu0 %v6902
      %v7124 = vpop.f32.mrf.mxu0
      %v7125 = vadd.f32 0.0, %v7124
      %v7126 = vpop.f32.mrf.mxu0
      %v7127 = vpop.f32.mrf.mxu0
      %v7128 = vadd.f32 0.0, %v7127
      %v7129 = vpop.f32.mrf.mxu0
      %7130 = vmatprep.mubr.bf16.mxu0 0
      %7131 = vmatmul.mubr.bf16.gmra.mxu0 %v6906
      %v7132 = vpop.f32.mrf.mxu0
      %v7133 = vadd.f32 0.0, %v7132
      %v7134 = vpop.f32.mrf.mxu0
      %v7135 = vpop.f32.mrf.mxu0
      %v7136 = vadd.f32 0.0, %v7135
      %v7137 = vpop.f32.mrf.mxu0
      %7138 = vmatprep.mubr.bf16.mxu0 0
      %7139 = vmatmul.mubr.bf16.gmra.mxu0 %v6910
      %v7140 = vpop.f32.mrf.mxu0
      %v7141 = vadd.f32 0.0, %v7140
      %v7142 = vpop.f32.mrf.mxu0
      %v7143 = vpop.f32.mrf.mxu0
      %v7144 = vadd.f32 0.0, %v7143
      %v7145 = vpop.f32.mrf.mxu0
      %7146 = vmatprep.mubr.bf16.mxu0 0
      %7147 = vmatmul.mubr.bf16.gmra.mxu0 %v6914
      %v7148 = vpop.f32.mrf.mxu0
      %v7149 = vadd.f32 0.0, %v7148
      %v7150 = vpop.f32.mrf.mxu0
      %v7151 = vpop.f32.mrf.mxu0
      %v7152 = vadd.f32 0.0, %v7151
      %v7153 = vpop.f32.mrf.mxu0
      %7154 = vmatprep.mubr.bf16.mxu0 0
      %7155 = vmatmul.mubr.bf16.gmra.mxu0 %v6918
      %v7156 = vpop.f32.mrf.mxu0
      %v7157 = vadd.f32 0.0, %v7156
      %v7158 = vpop.f32.mrf.mxu0
      %v7159 = vpop.f32.mrf.mxu0
      %v7160 = vadd.f32 0.0, %v7159
      %v7161 = vpop.f32.mrf.mxu0
      %7162 = vmatprep.mubr.bf16.mxu0 0
      %7163 = vmatmul.mubr.bf16.gmra.mxu0 %v6927
      %v7164 = vpop.f32.mrf.mxu0
      %v7165 = vadd.f32 0.0, %v7164
      %v7166 = vpop.f32.mrf.mxu0
      %v7167 = vpop.f32.mrf.mxu0
      %v7168 = vadd.f32 0.0, %v7167
      %v7169 = vpop.f32.mrf.mxu0
      %7170 = vdwg.mxu0
      %v7171 = vadd.f32 %v6680, %v7029
      %v7172 = vadd.f32 %v6683, %v7032
      %v7173 = vadd.f32 %v6688, %v7037
      %v7174 = vadd.f32 %v6691, %v7040
      %v7175 = vadd.f32 %v6696, %v7045
      %v7176 = vadd.f32 %v6699, %v7048
      %v7177 = vadd.f32 %v6704, %v7053
      %v7178 = vadd.f32 %v6707, %v7056
      %v7179 = vadd.f32 %v6712, %v7061
      %v7180 = vadd.f32 %v6715, %v7064
      %v7181 = vadd.f32 %v6720, %v7069
      %v7182 = vadd.f32 %v6723, %v7072
      %v7183 = vadd.f32 %v6728, %v7077
      %v7184 = vadd.f32 %v6731, %v7080
      %v7185 = vadd.f32 %v6736, %v7085
      %v7186 = vadd.f32 %v6739, %v7088
      %v7187 = vadd.f32 %v6744, %v7093
      %v7188 = vadd.f32 %v6747, %v7096
      %v7189 = vadd.f32 %v6752, %v7101
      %v7190 = vadd.f32 %v6755, %v7104
      %v7191 = vadd.f32 %v6760, %v7109
      %v7192 = vadd.f32 %v6763, %v7112
      %v7193 = vadd.f32 %v6768, %v7117
      %v7194 = vadd.f32 %v6771, %v7120
      %v7195 = vadd.f32 %v6776, %v7125
      %v7196 = vadd.f32 %v6779, %v7128
      %v7197 = vadd.f32 %v6784, %v7133
      %v7198 = vadd.f32 %v6787, %v7136
      %v7199 = vadd.f32 %v6792, %v7141
      %v7200 = vadd.f32 %v6795, %v7144
      %v7201 = vadd.f32 %v6800, %v7149
      %v7202 = vadd.f32 %v6803, %v7152
      %v7203 = vadd.f32 %v6808, %v7157
      %v7204 = vadd.f32 %v6811, %v7160
      %v7205 = vadd.f32 %v6816, %v7165
      %v7206 = vadd.f32 %v6819, %v7168
      %v7207 = vld [vmem:[#allocation2 + $0xc] sm:$0x8]
      %v7208 = vld [vmem:[#allocation2 + $0x10] sm:$0xf]
      %v7209 = vld [vmem:[#allocation2 + $0x14] sm:$0xf]
      %v7210 = vld [vmem:[#allocation2 + $0x18] sm:$0xf]
      %v7211 = vld [vmem:[#allocation2 + $0x1c] sm:$0xf]
      %v7212 = vld [vmem:[#allocation2 + $0x20] sm:$0xf]
      %v7213 = vld [vmem:[#allocation2 + $0x24] sm:$0xf]
      %v7214 = vld [vmem:[#allocation2 + $0x28] sm:$0xf]
      %v7215 = vld [vmem:[#allocation2 + $0x2c] sm:$0xf]
      %v7216 = vld [vmem:[#allocation2 + $0x30] sm:$0xf]
      %v7217 = vld [vmem:[#allocation2 + $0x34] sm:$0xf]
      %v7218 = vld [vmem:[#allocation2 + $0x38] sm:$0xf]
      %v7219 = vld [vmem:[#allocation2 + $0x3c] sm:$0xf]
      %v7220 = vld [vmem:[#allocation2 + $0x40] sm:$0xf]
      %v7221 = vld [vmem:[#allocation2 + $0x44] sm:$0xf]
      %v7222 = vld [vmem:[#allocation2 + $0x48] sm:$0xf]
      %v7223 = vld [vmem:[#allocation2 + $0x4c] sm:$0xf]
      %v7224 = vld [vmem:[#allocation2 + $0x50] sm:$0xf]
      %v7225 = vld [vmem:[#allocation2 + $0x54] sm:$0xf]
      %v7226 = vld [vmem:[#allocation2 + $0x58] sm:$0xf]
      %v7227 = vld [vmem:[#allocation2 + $0x5c] sm:$0xf]
      %v7228 = vld [vmem:[#allocation2 + $0x60] sm:$0xf]
      %v7229 = vld [vmem:[#allocation2 + $0x64] sm:$0xf]
      %v7230 = vld [vmem:[#allocation2 + $0x68] sm:$0xf]
      %v7231 = vld [vmem:[#allocation2 + $0x6c] sm:$0xf]
      %v7232 = vld [vmem:[#allocation2 + $0x70] sm:$0xf]
      %v7233 = vld [vmem:[#allocation2 + $0x74] sm:$0xf]
      %v7234 = vld [vmem:[#allocation2 + $0x78] sm:$0xf]
      %v7235 = vld [vmem:[#allocation2 + $0x7c] sm:$0xf]
      %v7236 = vld [vmem:[#allocation2 + $0x80] sm:$0xf]
      %v7237 = vld [vmem:[#allocation2 + $0x84] sm:$0xf]
      %v7238 = vld [vmem:[#allocation2 + $0x88] sm:$0xf]
      %v7239 = vld [vmem:[#allocation2 + $0x8c] sm:$0xf]
      %v7240 = vld [vmem:[#allocation2 + $0x90] sm:$0xf]
      %v7241 = vld [vmem:[#allocation2 + $0x94] sm:$0xf]
      %v7242 = vld [vmem:[#allocation2 + $0x98] sm:$0xf]
      %v7243 = vld [vmem:[#allocation2 + $0x9c] sm:$0xf]
      %s7244 = scalar_lea.vmem %s2, 192
      %v7245 = vld [vmem:[%s7244] sm:$0xf]
      %v7246 = vld [vmem:[%s7244 + $0x4] sm:$0xf]
      %v7247 = vld [vmem:[%s7244 + $0x8] sm:$0xf]
      %v7248 = vld [vmem:[%s7244 + $0xc] sm:$0xf]
      %v7249 = vld [vmem:[%s7244 + $0x10] sm:$0xf]
      %v7250 = vld [vmem:[%s7244 + $0x14] sm:$0xf]
      %v7251 = vld [vmem:[%s7244 + $0x18] sm:$0xf]
      %v7252 = vld [vmem:[%s7244 + $0x1c] sm:$0xf]
      %v7253 = vld [vmem:[%s7244 + $0x20] sm:$0xf]
      %v7254 = vld [vmem:[%s7244 + $0x24] sm:$0xf]
      %v7255 = vld [vmem:[%s7244 + $0x28] sm:$0xf]
      %v7256 = vld [vmem:[%s7244 + $0x2c] sm:$0xf]
      %v7257 = vld [vmem:[%s7244 + $0x30] sm:$0xf]
      %v7258 = vld [vmem:[%s7244 + $0x34] sm:$0xf]
      %v7259 = vld [vmem:[%s7244 + $0x38] sm:$0xf]
      %v7260 = vld [vmem:[%s7244 + $0x3c] sm:$0xf]
      %v7298 = vunpack.c.l.b16 %v7207
      %v7299 = vunpack.c.l.b16 %v7208
      %v7300 = vunpack.c.l.b16 %v7209
      %v7301 = vunpack.c.l.b16 %v7210
      %v7302 = vunpack.c.l.b16 %v7211
      %v7303 = vunpack.c.l.b16 %v7212
      %v7304 = vunpack.c.l.b16 %v7213
      %v7305 = vunpack.c.l.b16 %v7214
      %v7306 = vunpack.c.l.b16 %v7215
      %v7307 = vunpack.c.l.b16 %v7216
      %v7308 = vunpack.c.l.b16 %v7217
      %v7309 = vunpack.c.l.b16 %v7218
      %v7310 = vunpack.c.l.b16 %v7219
      %v7311 = vunpack.c.l.b16 %v7220
      %v7312 = vunpack.c.l.b16 %v7221
      %v7313 = vunpack.c.l.b16 %v7222
      %v7314 = vunpack.c.l.b16 %v7223
      %v7315 = vunpack.c.l.b16 %v7224
      %v7316 = vunpack.c.l.b16 %v7225
      %v7317 = vunpack.c.l.b16 %v7226
      %v7318 = vunpack.c.l.b16 %v7227
      %v7319 = vunpack.c.l.b16 %v7228
      %v7320 = vunpack.c.l.b16 %v7229
      %v7321 = vunpack.c.l.b16 %v7230
      %v7322 = vunpack.c.l.b16 %v7231
      %v7323 = vunpack.c.l.b16 %v7232
      %v7324 = vunpack.c.l.b16 %v7233
      %v7325 = vunpack.c.l.b16 %v7234
      %v7326 = vunpack.c.l.b16 %v7235
      %v7327 = vunpack.c.l.b16 %v7236
      %v7328 = vunpack.c.l.b16 %v7237
      %v7329 = vunpack.c.l.b16 %v7238
      %v7330 = vunpack.c.l.b16 %v7239
      %v7331 = vunpack.c.l.b16 %v7240
      %v7332 = vunpack.c.l.b16 %v7241
      %v7333 = vunpack.c.l.b16 %v7242
      %v7334 = vunpack.c.l.b16 %v7243
      %v7335 = vpack.c.b16 %v7299, %v7298
      %v7336 = vpack.c.b16 %v7301, %v7300
      %v7337 = vpack.c.b16 %v7303, %v7302
      %v7338 = vpack.c.b16 %v7305, %v7304
      %v7339 = vpack.c.b16 %v7307, %v7306
      %v7340 = vpack.c.b16 %v7309, %v7308
      %v7341 = vpack.c.b16 %v7311, %v7310
      %v7342 = vpack.c.b16 %v7313, %v7312
      %v7343 = vpack.c.b16 %v7315, %v7314
      %v7344 = vpack.c.b16 %v7317, %v7316
      %v7345 = vpack.c.b16 %v7319, %v7318
      %v7346 = vpack.c.b16 %v7321, %v7320
      %v7347 = vpack.c.b16 %v7323, %v7322
      %v7348 = vpack.c.b16 %v7325, %v7324
      %v7349 = vpack.c.b16 %v7327, %v7326
      %v7350 = vpack.c.b16 %v7329, %v7328
      %v7351 = vpack.c.b16 %v7331, %v7330
      %v7352 = vpack.c.b16 %v7333, %v7332
      %v7353 = vpack.c.b16 %v7334, %v7334
      %v7355 = vshrl.u32 %v7335, 16
      %v7357 = vrot.slane %v7355, 3
      %v7358 = vshll.u32 %v7335, 16
      %v7360 = vrot.slane %v7358, 4
      %v7361 = vor.u32 %v7357, %v7360
      %v7363 = vshrl.u32 %v7336, 16
      %v7365 = vrot.slane %v7363, 3
      %v7366 = vshll.u32 %v7336, 16
      %v7368 = vrot.slane %v7366, 4
      %v7369 = vor.u32 %v7365, %v7368
      %v7370 = vsel %vm1352, %v7361, %v7369
      %v7372 = vshrl.u32 %v7337, 16
      %v7374 = vrot.slane %v7372, 3
      %v7375 = vshll.u32 %v7337, 16
      %v7377 = vrot.slane %v7375, 4
      %v7378 = vor.u32 %v7374, %v7377
      %v7379 = vsel %vm1352, %v7369, %v7378
      %v7381 = vshrl.u32 %v7338, 16
      %v7383 = vrot.slane %v7381, 3
      %v7384 = vshll.u32 %v7338, 16
      %v7386 = vrot.slane %v7384, 4
      %v7387 = vor.u32 %v7383, %v7386
      %v7388 = vsel %vm1352, %v7378, %v7387
      %v7390 = vshrl.u32 %v7339, 16
      %v7392 = vrot.slane %v7390, 3
      %v7393 = vshll.u32 %v7339, 16
      %v7395 = vrot.slane %v7393, 4
      %v7396 = vor.u32 %v7392, %v7395
      %v7397 = vsel %vm1352, %v7387, %v7396
      %v7399 = vshrl.u32 %v7340, 16
      %v7401 = vrot.slane %v7399, 3
      %v7402 = vshll.u32 %v7340, 16
      %v7404 = vrot.slane %v7402, 4
      %v7405 = vor.u32 %v7401, %v7404
      %v7406 = vsel %vm1352, %v7396, %v7405
      %v7408 = vshrl.u32 %v7341, 16
      %v7410 = vrot.slane %v7408, 3
      %v7411 = vshll.u32 %v7341, 16
      %v7413 = vrot.slane %v7411, 4
      %v7414 = vor.u32 %v7410, %v7413
      %v7415 = vsel %vm1352, %v7405, %v7414
      %v7417 = vshrl.u32 %v7342, 16
      %v7419 = vrot.slane %v7417, 3
      %v7420 = vshll.u32 %v7342, 16
      %v7422 = vrot.slane %v7420, 4
      %v7423 = vor.u32 %v7419, %v7422
      %v7424 = vsel %vm1352, %v7414, %v7423
      %v7426 = vshrl.u32 %v7343, 16
      %v7428 = vrot.slane %v7426, 3
      %v7429 = vshll.u32 %v7343, 16
      %v7431 = vrot.slane %v7429, 4
      %v7432 = vor.u32 %v7428, %v7431
      %v7433 = vsel %vm1352, %v7423, %v7432
      %v7435 = vshrl.u32 %v7344, 16
      %v7437 = vrot.slane %v7435, 3
      %v7438 = vshll.u32 %v7344, 16
      %v7440 = vrot.slane %v7438, 4
      %v7441 = vor.u32 %v7437, %v7440
      %v7442 = vsel %vm1352, %v7432, %v7441
      %v7444 = vshrl.u32 %v7345, 16
      %v7446 = vrot.slane %v7444, 3
      %v7447 = vshll.u32 %v7345, 16
      %v7449 = vrot.slane %v7447, 4
      %v7450 = vor.u32 %v7446, %v7449
      %v7451 = vsel %vm1352, %v7441, %v7450
      %v7453 = vshrl.u32 %v7346, 16
      %v7455 = vrot.slane %v7453, 3
      %v7456 = vshll.u32 %v7346, 16
      %v7458 = vrot.slane %v7456, 4
      %v7459 = vor.u32 %v7455, %v7458
      %v7460 = vsel %vm1352, %v7450, %v7459
      %v7462 = vshrl.u32 %v7347, 16
      %v7464 = vrot.slane %v7462, 3
      %v7465 = vshll.u32 %v7347, 16
      %v7467 = vrot.slane %v7465, 4
      %v7468 = vor.u32 %v7464, %v7467
      %v7469 = vsel %vm1352, %v7459, %v7468
      %v7471 = vshrl.u32 %v7348, 16
      %v7473 = vrot.slane %v7471, 3
      %v7474 = vshll.u32 %v7348, 16
      %v7476 = vrot.slane %v7474, 4
      %v7477 = vor.u32 %v7473, %v7476
      %v7478 = vsel %vm1352, %v7468, %v7477
      %v7480 = vshrl.u32 %v7349, 16
      %v7482 = vrot.slane %v7480, 3
      %v7483 = vshll.u32 %v7349, 16
      %v7485 = vrot.slane %v7483, 4
      %v7486 = vor.u32 %v7482, %v7485
      %v7487 = vsel %vm1352, %v7477, %v7486
      %v7489 = vshrl.u32 %v7350, 16
      %v7491 = vrot.slane %v7489, 3
      %v7492 = vshll.u32 %v7350, 16
      %v7494 = vrot.slane %v7492, 4
      %v7495 = vor.u32 %v7491, %v7494
      %v7496 = vsel %vm1352, %v7486, %v7495
      %v7498 = vshrl.u32 %v7351, 16
      %v7500 = vrot.slane %v7498, 3
      %v7501 = vshll.u32 %v7351, 16
      %v7503 = vrot.slane %v7501, 4
      %v7504 = vor.u32 %v7500, %v7503
      %v7505 = vsel %vm1352, %v7495, %v7504
      %v7507 = vshrl.u32 %v7352, 16
      %v7509 = vrot.slane %v7507, 3
      %v7510 = vshll.u32 %v7352, 16
      %v7512 = vrot.slane %v7510, 4
      %v7513 = vor.u32 %v7509, %v7512
      %v7514 = vsel %vm1352, %v7504, %v7513
      %v7516 = vshrl.u32 %v7353, 16
      %v7518 = vrot.slane %v7516, 3
      %v7519 = vshll.u32 %v7353, 16
      %v7521 = vrot.slane %v7519, 4
      %v7522 = vor.u32 %v7518, %v7521
      %v7523 = vsel %vm1352, %v7513, %v7522
      %v7558 = vunpack.c.l.b16 %v7245
      %v7559 = vunpack.c.l.b16 %v7246
      %v7560 = vunpack.c.l.b16 %v7247
      %v7561 = vunpack.c.l.b16 %v7248
      %v7562 = vunpack.c.l.b16 %v7249
      %v7563 = vunpack.c.l.b16 %v7250
      %v7564 = vunpack.c.l.b16 %v7251
      %v7565 = vunpack.c.l.b16 %v7252
      %v7566 = vunpack.c.l.b16 %v7253
      %v7567 = vunpack.c.l.b16 %v7254
      %v7568 = vunpack.c.l.b16 %v7255
      %v7569 = vunpack.c.l.b16 %v7256
      %v7570 = vunpack.c.l.b16 %v7257
      %v7571 = vunpack.c.l.b16 %v7258
      %v7572 = vunpack.c.l.b16 %v7259
      %v7573 = vunpack.c.l.b16 %v7260
      %v7574 = vpack.c.b16 %v7559, %v7558
      %v7575 = vpack.c.b16 %v7561, %v7560
      %v7576 = vpack.c.b16 %v7563, %v7562
      %v7577 = vpack.c.b16 %v7565, %v7564
      %v7578 = vpack.c.b16 %v7567, %v7566
      %v7579 = vpack.c.b16 %v7569, %v7568
      %v7580 = vpack.c.b16 %v7571, %v7570
      %v7581 = vpack.c.b16 %v7573, %v7572
      %7590 = vmatprep.subr.bf16.mxu0 0
      %7591 = vmatpush1.bf16.msra.mxu0 %v7581
      %7592 = vmatprep.subr.bf16.mxu0 0
      %7593 = vmatpush1.bf16.msra.mxu0 %v7580
      %7594 = vmatprep.subr.bf16.mxu0 0
      %7595 = vmatpush1.bf16.msra.mxu0 %v7579
      %7596 = vmatprep.subr.bf16.mxu0 0
      %7597 = vmatpush1.bf16.msra.mxu0 %v7578
      %7598 = vmatprep.subr.bf16.mxu0 0
      %7599 = vmatpush1.bf16.msra.mxu0 %v7577
      %7600 = vmatprep.subr.bf16.mxu0 0
      %7601 = vmatpush1.bf16.msra.mxu0 %v7576
      %7602 = vmatprep.subr.bf16.mxu0 0
      %7603 = vmatpush1.bf16.msra.mxu0 %v7575
      %7604 = vmatprep.subr.bf16.mxu0 0
      %7605 = vmatpush1.bf16.msra.mxu0 %v7574
      %7606 = vmatprep.subr.bf16.mxu0 0
      %7607 = vmatpush2.bf16.msra.mxu0 0
      %7608 = vmatprep.subr.bf16.mxu0 0
      %7609 = vmatpush2.bf16.msra.mxu0 0
      %7610 = vmatprep.subr.bf16.mxu0 0
      %7611 = vmatpush2.bf16.msra.mxu0 0
      %7612 = vmatprep.subr.bf16.mxu0 0
      %7613 = vmatpush2.bf16.msra.mxu0 0
      %7614 = vmatprep.subr.bf16.mxu0 0
      %7615 = vmatpush2.bf16.msra.mxu0 0
      %7616 = vmatprep.subr.bf16.mxu0 0
      %7617 = vmatpush2.bf16.msra.mxu0 0
      %7618 = vmatprep.subr.bf16.mxu0 0
      %7619 = vmatpush2.bf16.msra.mxu0 0
      %7620 = vmatprep.subr.bf16.mxu0 0
      %7621 = vmatpush2.bf16.msra.mxu0 0
      %7622 = vmatprep.mubr.bf16.mxu0 0
      %7623 = vmatmul.mubr.bf16.gmra.mxu0 %v7370
      %v7624 = vpop.f32.mrf.mxu0
      %v7625 = vadd.f32 0.0, %v7624
      %v7626 = vpop.f32.mrf.mxu0
      %v7627 = vpop.f32.mrf.mxu0
      %v7628 = vadd.f32 0.0, %v7627
      %v7629 = vpop.f32.mrf.mxu0
      %7630 = vmatprep.mubr.bf16.mxu0 0
      %7631 = vmatmul.mubr.bf16.gmra.mxu0 %v7379
      %v7632 = vpop.f32.mrf.mxu0
      %v7633 = vadd.f32 0.0, %v7632
      %v7634 = vpop.f32.mrf.mxu0
      %v7635 = vpop.f32.mrf.mxu0
      %v7636 = vadd.f32 0.0, %v7635
      %v7637 = vpop.f32.mrf.mxu0
      %7638 = vmatprep.mubr.bf16.mxu0 0
      %7639 = vmatmul.mubr.bf16.gmra.mxu0 %v7388
      %v7640 = vpop.f32.mrf.mxu0
      %v7641 = vadd.f32 0.0, %v7640
      %v7642 = vpop.f32.mrf.mxu0
      %v7643 = vpop.f32.mrf.mxu0
      %v7644 = vadd.f32 0.0, %v7643
      %v7645 = vpop.f32.mrf.mxu0
      %7646 = vmatprep.mubr.bf16.mxu0 0
      %7647 = vmatmul.mubr.bf16.gmra.mxu0 %v7397
      %v7648 = vpop.f32.mrf.mxu0
      %v7649 = vadd.f32 0.0, %v7648
      %v7650 = vpop.f32.mrf.mxu0
      %v7651 = vpop.f32.mrf.mxu0
      %v7652 = vadd.f32 0.0, %v7651
      %v7653 = vpop.f32.mrf.mxu0
      %7654 = vmatprep.mubr.bf16.mxu0 0
      %7655 = vmatmul.mubr.bf16.gmra.mxu0 %v7406
      %v7656 = vpop.f32.mrf.mxu0
      %v7657 = vadd.f32 0.0, %v7656
      %v7658 = vpop.f32.mrf.mxu0
      %v7659 = vpop.f32.mrf.mxu0
      %v7660 = vadd.f32 0.0, %v7659
      %v7661 = vpop.f32.mrf.mxu0
      %7662 = vmatprep.mubr.bf16.mxu0 0
      %7663 = vmatmul.mubr.bf16.gmra.mxu0 %v7415
      %v7664 = vpop.f32.mrf.mxu0
      %v7665 = vadd.f32 0.0, %v7664
      %v7666 = vpop.f32.mrf.mxu0
      %v7667 = vpop.f32.mrf.mxu0
      %v7668 = vadd.f32 0.0, %v7667
      %v7669 = vpop.f32.mrf.mxu0
      %7670 = vmatprep.mubr.bf16.mxu0 0
      %7671 = vmatmul.mubr.bf16.gmra.mxu0 %v7424
      %v7672 = vpop.f32.mrf.mxu0
      %v7673 = vadd.f32 0.0, %v7672
      %v7674 = vpop.f32.mrf.mxu0
      %v7675 = vpop.f32.mrf.mxu0
      %v7676 = vadd.f32 0.0, %v7675
      %v7677 = vpop.f32.mrf.mxu0
      %7678 = vmatprep.mubr.bf16.mxu0 0
      %7679 = vmatmul.mubr.bf16.gmra.mxu0 %v7433
      %v7680 = vpop.f32.mrf.mxu0
      %v7681 = vadd.f32 0.0, %v7680
      %v7682 = vpop.f32.mrf.mxu0
      %v7683 = vpop.f32.mrf.mxu0
      %v7684 = vadd.f32 0.0, %v7683
      %v7685 = vpop.f32.mrf.mxu0
      %7686 = vmatprep.mubr.bf16.mxu0 0
      %7687 = vmatmul.mubr.bf16.gmra.mxu0 %v7442
      %v7688 = vpop.f32.mrf.mxu0
      %v7689 = vadd.f32 0.0, %v7688
      %v7690 = vpop.f32.mrf.mxu0
      %v7691 = vpop.f32.mrf.mxu0
      %v7692 = vadd.f32 0.0, %v7691
      %v7693 = vpop.f32.mrf.mxu0
      %7694 = vmatprep.mubr.bf16.mxu0 0
      %7695 = vmatmul.mubr.bf16.gmra.mxu0 %v7451
      %v7696 = vpop.f32.mrf.mxu0
      %v7697 = vadd.f32 0.0, %v7696
      %v7698 = vpop.f32.mrf.mxu0
      %v7699 = vpop.f32.mrf.mxu0
      %v7700 = vadd.f32 0.0, %v7699
      %v7701 = vpop.f32.mrf.mxu0
      %7702 = vmatprep.mubr.bf16.mxu0 0
      %7703 = vmatmul.mubr.bf16.gmra.mxu0 %v7460
      %v7704 = vpop.f32.mrf.mxu0
      %v7705 = vadd.f32 0.0, %v7704
      %v7706 = vpop.f32.mrf.mxu0
      %v7707 = vpop.f32.mrf.mxu0
      %v7708 = vadd.f32 0.0, %v7707
      %v7709 = vpop.f32.mrf.mxu0
      %7710 = vmatprep.mubr.bf16.mxu0 0
      %7711 = vmatmul.mubr.bf16.gmra.mxu0 %v7469
      %v7712 = vpop.f32.mrf.mxu0
      %v7713 = vadd.f32 0.0, %v7712
      %v7714 = vpop.f32.mrf.mxu0
      %v7715 = vpop.f32.mrf.mxu0
      %v7716 = vadd.f32 0.0, %v7715
      %v7717 = vpop.f32.mrf.mxu0
      %7718 = vmatprep.mubr.bf16.mxu0 0
      %7719 = vmatmul.mubr.bf16.gmra.mxu0 %v7478
      %v7720 = vpop.f32.mrf.mxu0
      %v7721 = vadd.f32 0.0, %v7720
      %v7722 = vpop.f32.mrf.mxu0
      %v7723 = vpop.f32.mrf.mxu0
      %v7724 = vadd.f32 0.0, %v7723
      %v7725 = vpop.f32.mrf.mxu0
      %7726 = vmatprep.mubr.bf16.mxu0 0
      %7727 = vmatmul.mubr.bf16.gmra.mxu0 %v7487
      %v7728 = vpop.f32.mrf.mxu0
      %v7729 = vadd.f32 0.0, %v7728
      %v7730 = vpop.f32.mrf.mxu0
      %v7731 = vpop.f32.mrf.mxu0
      %v7732 = vadd.f32 0.0, %v7731
      %v7733 = vpop.f32.mrf.mxu0
      %7734 = vmatprep.mubr.bf16.mxu0 0
      %7735 = vmatmul.mubr.bf16.gmra.mxu0 %v7496
      %v7736 = vpop.f32.mrf.mxu0
      %v7737 = vadd.f32 0.0, %v7736
      %v7738 = vpop.f32.mrf.mxu0
      %v7739 = vpop.f32.mrf.mxu0
      %v7740 = vadd.f32 0.0, %v7739
      %v7741 = vpop.f32.mrf.mxu0
      %7742 = vmatprep.mubr.bf16.mxu0 0
      %7743 = vmatmul.mubr.bf16.gmra.mxu0 %v7505
      %v7744 = vpop.f32.mrf.mxu0
      %v7745 = vadd.f32 0.0, %v7744
      %v7746 = vpop.f32.mrf.mxu0
      %v7747 = vpop.f32.mrf.mxu0
      %v7748 = vadd.f32 0.0, %v7747
      %v7749 = vpop.f32.mrf.mxu0
      %7750 = vmatprep.mubr.bf16.mxu0 0
      %7751 = vmatmul.mubr.bf16.gmra.mxu0 %v7514
      %v7752 = vpop.f32.mrf.mxu0
      %v7753 = vadd.f32 0.0, %v7752
      %v7754 = vpop.f32.mrf.mxu0
      %v7755 = vpop.f32.mrf.mxu0
      %v7756 = vadd.f32 0.0, %v7755
      %v7757 = vpop.f32.mrf.mxu0
      %7758 = vmatprep.mubr.bf16.mxu0 0
      %7759 = vmatmul.mubr.bf16.gmra.mxu0 %v7523
      %v7760 = vpop.f32.mrf.mxu0
      %v7761 = vadd.f32 0.0, %v7760
      %v7762 = vpop.f32.mrf.mxu0
      %v7763 = vpop.f32.mrf.mxu0
      %v7764 = vadd.f32 0.0, %v7763
      %v7765 = vpop.f32.mrf.mxu0
      %7766 = vdwg.mxu0
      %v7767 = vadd.f32 %v7171, %v7625
      %v7768 = vadd.f32 %v7172, %v7628
      %v7769 = vadd.f32 %v7173, %v7633
      %v7770 = vadd.f32 %v7174, %v7636
      %v7771 = vadd.f32 %v7175, %v7641
      %v7772 = vadd.f32 %v7176, %v7644
      %v7773 = vadd.f32 %v7177, %v7649
      %v7774 = vadd.f32 %v7178, %v7652
      %v7775 = vadd.f32 %v7179, %v7657
      %v7776 = vadd.f32 %v7180, %v7660
      %v7777 = vadd.f32 %v7181, %v7665
      %v7778 = vadd.f32 %v7182, %v7668
      %v7779 = vadd.f32 %v7183, %v7673
      %v7780 = vadd.f32 %v7184, %v7676
      %v7781 = vadd.f32 %v7185, %v7681
      %v7782 = vadd.f32 %v7186, %v7684
      %v7783 = vadd.f32 %v7187, %v7689
      %v7784 = vadd.f32 %v7188, %v7692
      %v7785 = vadd.f32 %v7189, %v7697
      %v7786 = vadd.f32 %v7190, %v7700
      %v7787 = vadd.f32 %v7191, %v7705
      %v7788 = vadd.f32 %v7192, %v7708
      %v7789 = vadd.f32 %v7193, %v7713
      %v7790 = vadd.f32 %v7194, %v7716
      %v7791 = vadd.f32 %v7195, %v7721
      %v7792 = vadd.f32 %v7196, %v7724
      %v7793 = vadd.f32 %v7197, %v7729
      %v7794 = vadd.f32 %v7198, %v7732
      %v7795 = vadd.f32 %v7199, %v7737
      %v7796 = vadd.f32 %v7200, %v7740
      %v7797 = vadd.f32 %v7201, %v7745
      %v7798 = vadd.f32 %v7202, %v7748
      %v7799 = vadd.f32 %v7203, %v7753
      %v7800 = vadd.f32 %v7204, %v7756
      %v7801 = vadd.f32 %v7205, %v7761
      %v7802 = vadd.f32 %v7206, %v7764
      %s7803 = scalar_lea.vmem %s2, 256
      %v7804 = vld [vmem:[%s7803] sm:$0xf]
      %v7805 = vld [vmem:[%s7803 + $0x4] sm:$0xf]
      %v7806 = vld [vmem:[%s7803 + $0x8] sm:$0xf]
      %v7807 = vld [vmem:[%s7803 + $0xc] sm:$0xf]
      %v7808 = vld [vmem:[%s7803 + $0x10] sm:$0xf]
      %v7809 = vld [vmem:[%s7803 + $0x14] sm:$0xf]
      %v7810 = vld [vmem:[%s7803 + $0x18] sm:$0xf]
      %v7811 = vld [vmem:[%s7803 + $0x1c] sm:$0xf]
      %v7812 = vld [vmem:[%s7803 + $0x20] sm:$0xf]
      %v7813 = vld [vmem:[%s7803 + $0x24] sm:$0xf]
      %v7814 = vld [vmem:[%s7803 + $0x28] sm:$0xf]
      %v7815 = vld [vmem:[%s7803 + $0x2c] sm:$0xf]
      %v7816 = vld [vmem:[%s7803 + $0x30] sm:$0xf]
      %v7817 = vld [vmem:[%s7803 + $0x34] sm:$0xf]
      %v7818 = vld [vmem:[%s7803 + $0x38] sm:$0xf]
      %v7819 = vld [vmem:[%s7803 + $0x3c] sm:$0xf]
      %v7820 = vpack.c.b16 %v7300, %v7299
      %v7821 = vpack.c.b16 %v7302, %v7301
      %v7822 = vpack.c.b16 %v7304, %v7303
      %v7823 = vpack.c.b16 %v7306, %v7305
      %v7824 = vpack.c.b16 %v7308, %v7307
      %v7825 = vpack.c.b16 %v7310, %v7309
      %v7826 = vpack.c.b16 %v7312, %v7311
      %v7827 = vpack.c.b16 %v7314, %v7313
      %v7828 = vpack.c.b16 %v7316, %v7315
      %v7829 = vpack.c.b16 %v7318, %v7317
      %v7830 = vpack.c.b16 %v7320, %v7319
      %v7831 = vpack.c.b16 %v7322, %v7321
      %v7832 = vpack.c.b16 %v7324, %v7323
      %v7833 = vpack.c.b16 %v7326, %v7325
      %v7834 = vpack.c.b16 %v7328, %v7327
      %v7835 = vpack.c.b16 %v7330, %v7329
      %v7836 = vpack.c.b16 %v7332, %v7331
      %v7837 = vpack.c.b16 %v7334, %v7333
      %v7872 = vunpack.c.l.b16 %v7804
      %v7873 = vunpack.c.l.b16 %v7805
      %v7874 = vunpack.c.l.b16 %v7806
      %v7875 = vunpack.c.l.b16 %v7807
      %v7876 = vunpack.c.l.b16 %v7808
      %v7877 = vunpack.c.l.b16 %v7809
      %v7878 = vunpack.c.l.b16 %v7810
      %v7879 = vunpack.c.l.b16 %v7811
      %v7880 = vunpack.c.l.b16 %v7812
      %v7881 = vunpack.c.l.b16 %v7813
      %v7882 = vunpack.c.l.b16 %v7814
      %v7883 = vunpack.c.l.b16 %v7815
      %v7884 = vunpack.c.l.b16 %v7816
      %v7885 = vunpack.c.l.b16 %v7817
      %v7886 = vunpack.c.l.b16 %v7818
      %v7887 = vunpack.c.l.b16 %v7819
      %v7888 = vpack.c.b16 %v7873, %v7872
      %v7889 = vpack.c.b16 %v7875, %v7874
      %v7890 = vpack.c.b16 %v7877, %v7876
      %v7891 = vpack.c.b16 %v7879, %v7878
      %v7892 = vpack.c.b16 %v7881, %v7880
      %v7893 = vpack.c.b16 %v7883, %v7882
      %v7894 = vpack.c.b16 %v7885, %v7884
      %v7895 = vpack.c.b16 %v7887, %v7886
      %7904 = vmatprep.subr.bf16.mxu0 0
      %7905 = vmatpush1.bf16.msra.mxu0 %v7895
      %7906 = vmatprep.subr.bf16.mxu0 0
      %7907 = vmatpush1.bf16.msra.mxu0 %v7894
      %7908 = vmatprep.subr.bf16.mxu0 0
      %7909 = vmatpush1.bf16.msra.mxu0 %v7893
      %7910 = vmatprep.subr.bf16.mxu0 0
      %7911 = vmatpush1.bf16.msra.mxu0 %v7892
      %7912 = vmatprep.subr.bf16.mxu0 0
      %7913 = vmatpush1.bf16.msra.mxu0 %v7891
      %7914 = vmatprep.subr.bf16.mxu0 0
      %7915 = vmatpush1.bf16.msra.mxu0 %v7890
      %7916 = vmatprep.subr.bf16.mxu0 0
      %7917 = vmatpush1.bf16.msra.mxu0 %v7889
      %7918 = vmatprep.subr.bf16.mxu0 0
      %7919 = vmatpush1.bf16.msra.mxu0 %v7888
      %7920 = vmatprep.subr.bf16.mxu0 0
      %7921 = vmatpush2.bf16.msra.mxu0 0
      %7922 = vmatprep.subr.bf16.mxu0 0
      %7923 = vmatpush2.bf16.msra.mxu0 0
      %7924 = vmatprep.subr.bf16.mxu0 0
      %7925 = vmatpush2.bf16.msra.mxu0 0
      %7926 = vmatprep.subr.bf16.mxu0 0
      %7927 = vmatpush2.bf16.msra.mxu0 0
      %7928 = vmatprep.subr.bf16.mxu0 0
      %7929 = vmatpush2.bf16.msra.mxu0 0
      %7930 = vmatprep.subr.bf16.mxu0 0
      %7931 = vmatpush2.bf16.msra.mxu0 0
      %7932 = vmatprep.subr.bf16.mxu0 0
      %7933 = vmatpush2.bf16.msra.mxu0 0
      %7934 = vmatprep.subr.bf16.mxu0 0
      %7935 = vmatpush2.bf16.msra.mxu0 0
      %7936 = vmatprep.mubr.bf16.mxu0 0
      %7937 = vmatmul.mubr.bf16.gmra.mxu0 %v7820
      %v7938 = vpop.f32.mrf.mxu0
      %v7939 = vadd.f32 0.0, %v7938
      %v7940 = vpop.f32.mrf.mxu0
      %v7941 = vpop.f32.mrf.mxu0
      %v7942 = vadd.f32 0.0, %v7941
      %v7943 = vpop.f32.mrf.mxu0
      %7944 = vmatprep.mubr.bf16.mxu0 0
      %7945 = vmatmul.mubr.bf16.gmra.mxu0 %v7821
      %v7946 = vpop.f32.mrf.mxu0
      %v7947 = vadd.f32 0.0, %v7946
      %v7948 = vpop.f32.mrf.mxu0
      %v7949 = vpop.f32.mrf.mxu0
      %v7950 = vadd.f32 0.0, %v7949
      %v7951 = vpop.f32.mrf.mxu0
      %7952 = vmatprep.mubr.bf16.mxu0 0
      %7953 = vmatmul.mubr.bf16.gmra.mxu0 %v7822
      %v7954 = vpop.f32.mrf.mxu0
      %v7955 = vadd.f32 0.0, %v7954
      %v7956 = vpop.f32.mrf.mxu0
      %v7957 = vpop.f32.mrf.mxu0
      %v7958 = vadd.f32 0.0, %v7957
      %v7959 = vpop.f32.mrf.mxu0
      %7960 = vmatprep.mubr.bf16.mxu0 0
      %7961 = vmatmul.mubr.bf16.gmra.mxu0 %v7823
      %v7962 = vpop.f32.mrf.mxu0
      %v7963 = vadd.f32 0.0, %v7962
      %v7964 = vpop.f32.mrf.mxu0
      %v7965 = vpop.f32.mrf.mxu0
      %v7966 = vadd.f32 0.0, %v7965
      %v7967 = vpop.f32.mrf.mxu0
      %7968 = vmatprep.mubr.bf16.mxu0 0
      %7969 = vmatmul.mubr.bf16.gmra.mxu0 %v7824
      %v7970 = vpop.f32.mrf.mxu0
      %v7971 = vadd.f32 0.0, %v7970
      %v7972 = vpop.f32.mrf.mxu0
      %v7973 = vpop.f32.mrf.mxu0
      %v7974 = vadd.f32 0.0, %v7973
      %v7975 = vpop.f32.mrf.mxu0
      %7976 = vmatprep.mubr.bf16.mxu0 0
      %7977 = vmatmul.mubr.bf16.gmra.mxu0 %v7825
      %v7978 = vpop.f32.mrf.mxu0
      %v7979 = vadd.f32 0.0, %v7978
      %v7980 = vpop.f32.mrf.mxu0
      %v7981 = vpop.f32.mrf.mxu0
      %v7982 = vadd.f32 0.0, %v7981
      %v7983 = vpop.f32.mrf.mxu0
      %7984 = vmatprep.mubr.bf16.mxu0 0
      %7985 = vmatmul.mubr.bf16.gmra.mxu0 %v7826
      %v7986 = vpop.f32.mrf.mxu0
      %v7987 = vadd.f32 0.0, %v7986
      %v7988 = vpop.f32.mrf.mxu0
      %v7989 = vpop.f32.mrf.mxu0
      %v7990 = vadd.f32 0.0, %v7989
      %v7991 = vpop.f32.mrf.mxu0
      %7992 = vmatprep.mubr.bf16.mxu0 0
      %7993 = vmatmul.mubr.bf16.gmra.mxu0 %v7827
      %v7994 = vpop.f32.mrf.mxu0
      %v7995 = vadd.f32 0.0, %v7994
      %v7996 = vpop.f32.mrf.mxu0
      %v7997 = vpop.f32.mrf.mxu0
      %v7998 = vadd.f32 0.0, %v7997
      %v7999 = vpop.f32.mrf.mxu0
      %8000 = vmatprep.mubr.bf16.mxu0 0
      %8001 = vmatmul.mubr.bf16.gmra.mxu0 %v7828
      %v8002 = vpop.f32.mrf.mxu0
      %v8003 = vadd.f32 0.0, %v8002
      %v8004 = vpop.f32.mrf.mxu0
      %v8005 = vpop.f32.mrf.mxu0
      %v8006 = vadd.f32 0.0, %v8005
      %v8007 = vpop.f32.mrf.mxu0
      %8008 = vmatprep.mubr.bf16.mxu0 0
      %8009 = vmatmul.mubr.bf16.gmra.mxu0 %v7829
      %v8010 = vpop.f32.mrf.mxu0
      %v8011 = vadd.f32 0.0, %v8010
      %v8012 = vpop.f32.mrf.mxu0
      %v8013 = vpop.f32.mrf.mxu0
      %v8014 = vadd.f32 0.0, %v8013
      %v8015 = vpop.f32.mrf.mxu0
      %8016 = vmatprep.mubr.bf16.mxu0 0
      %8017 = vmatmul.mubr.bf16.gmra.mxu0 %v7830
      %v8018 = vpop.f32.mrf.mxu0
      %v8019 = vadd.f32 0.0, %v8018
      %v8020 = vpop.f32.mrf.mxu0
      %v8021 = vpop.f32.mrf.mxu0
      %v8022 = vadd.f32 0.0, %v8021
      %v8023 = vpop.f32.mrf.mxu0
      %8024 = vmatprep.mubr.bf16.mxu0 0
      %8025 = vmatmul.mubr.bf16.gmra.mxu0 %v7831
      %v8026 = vpop.f32.mrf.mxu0
      %v8027 = vadd.f32 0.0, %v8026
      %v8028 = vpop.f32.mrf.mxu0
      %v8029 = vpop.f32.mrf.mxu0
      %v8030 = vadd.f32 0.0, %v8029
      %v8031 = vpop.f32.mrf.mxu0
      %8032 = vmatprep.mubr.bf16.mxu0 0
      %8033 = vmatmul.mubr.bf16.gmra.mxu0 %v7832
      %v8034 = vpop.f32.mrf.mxu0
      %v8035 = vadd.f32 0.0, %v8034
      %v8036 = vpop.f32.mrf.mxu0
      %v8037 = vpop.f32.mrf.mxu0
      %v8038 = vadd.f32 0.0, %v8037
      %v8039 = vpop.f32.mrf.mxu0
      %8040 = vmatprep.mubr.bf16.mxu0 0
      %8041 = vmatmul.mubr.bf16.gmra.mxu0 %v7833
      %v8042 = vpop.f32.mrf.mxu0
      %v8043 = vadd.f32 0.0, %v8042
      %v8044 = vpop.f32.mrf.mxu0
      %v8045 = vpop.f32.mrf.mxu0
      %v8046 = vadd.f32 0.0, %v8045
      %v8047 = vpop.f32.mrf.mxu0
      %8048 = vmatprep.mubr.bf16.mxu0 0
      %8049 = vmatmul.mubr.bf16.gmra.mxu0 %v7834
      %v8050 = vpop.f32.mrf.mxu0
      %v8051 = vadd.f32 0.0, %v8050
      %v8052 = vpop.f32.mrf.mxu0
      %v8053 = vpop.f32.mrf.mxu0
      %v8054 = vadd.f32 0.0, %v8053
      %v8055 = vpop.f32.mrf.mxu0
      %8056 = vmatprep.mubr.bf16.mxu0 0
      %8057 = vmatmul.mubr.bf16.gmra.mxu0 %v7835
      %v8058 = vpop.f32.mrf.mxu0
      %v8059 = vadd.f32 0.0, %v8058
      %v8060 = vpop.f32.mrf.mxu0
      %v8061 = vpop.f32.mrf.mxu0
      %v8062 = vadd.f32 0.0, %v8061
      %v8063 = vpop.f32.mrf.mxu0
      %8064 = vmatprep.mubr.bf16.mxu0 0
      %8065 = vmatmul.mubr.bf16.gmra.mxu0 %v7836
      %v8066 = vpop.f32.mrf.mxu0
      %v8067 = vadd.f32 0.0, %v8066
      %v8068 = vpop.f32.mrf.mxu0
      %v8069 = vpop.f32.mrf.mxu0
      %v8070 = vadd.f32 0.0, %v8069
      %v8071 = vpop.f32.mrf.mxu0
      %8072 = vmatprep.mubr.bf16.mxu0 0
      %8073 = vmatmul.mubr.bf16.gmra.mxu0 %v7837
      %v8074 = vpop.f32.mrf.mxu0
      %v8075 = vadd.f32 0.0, %v8074
      %v8076 = vpop.f32.mrf.mxu0
      %v8077 = vpop.f32.mrf.mxu0
      %v8078 = vadd.f32 0.0, %v8077
      %v8079 = vpop.f32.mrf.mxu0
      %8080 = vdwg.mxu0
      %v8081 = vadd.f32 %v7767, %v7939
      %v8082 = vadd.f32 %v7768, %v7942
      %v8083 = vadd.f32 %v7769, %v7947
      %v8084 = vadd.f32 %v7770, %v7950
      %v8085 = vadd.f32 %v7771, %v7955
      %v8086 = vadd.f32 %v7772, %v7958
      %v8087 = vadd.f32 %v7773, %v7963
      %v8088 = vadd.f32 %v7774, %v7966
      %v8089 = vadd.f32 %v7775, %v7971
      %v8090 = vadd.f32 %v7776, %v7974
      %v8091 = vadd.f32 %v7777, %v7979
      %v8092 = vadd.f32 %v7778, %v7982
      %v8093 = vadd.f32 %v7779, %v7987
      %v8094 = vadd.f32 %v7780, %v7990
      %v8095 = vadd.f32 %v7781, %v7995
      %v8096 = vadd.f32 %v7782, %v7998
      %v8097 = vadd.f32 %v7783, %v8003
      %v8098 = vadd.f32 %v7784, %v8006
      %v8099 = vadd.f32 %v7785, %v8011
      %v8100 = vadd.f32 %v7786, %v8014
      %v8101 = vadd.f32 %v7787, %v8019
      %v8102 = vadd.f32 %v7788, %v8022
      %v8103 = vadd.f32 %v7789, %v8027
      %v8104 = vadd.f32 %v7790, %v8030
      %v8105 = vadd.f32 %v7791, %v8035
      %v8106 = vadd.f32 %v7792, %v8038
      %v8107 = vadd.f32 %v7793, %v8043
      %v8108 = vadd.f32 %v7794, %v8046
      %v8109 = vadd.f32 %v7795, %v8051
      %v8110 = vadd.f32 %v7796, %v8054
      %v8111 = vadd.f32 %v7797, %v8059
      %v8112 = vadd.f32 %v7798, %v8062
      %v8113 = vadd.f32 %v7799, %v8067
      %v8114 = vadd.f32 %v7800, %v8070
      %v8115 = vadd.f32 %v7801, %v8075
      %v8116 = vadd.f32 %v7802, %v8078
      %v8117 = vld [vmem:[#allocation2 + $0x10] sm:$0xf]
      %v8118 = vld [vmem:[#allocation2 + $0x14] sm:$0xf]
      %v8119 = vld [vmem:[#allocation2 + $0x18] sm:$0xf]
      %v8120 = vld [vmem:[#allocation2 + $0x1c] sm:$0xf]
      %v8121 = vld [vmem:[#allocation2 + $0x20] sm:$0xf]
      %v8122 = vld [vmem:[#allocation2 + $0x24] sm:$0xf]
      %v8123 = vld [vmem:[#allocation2 + $0x28] sm:$0xf]
      %v8124 = vld [vmem:[#allocation2 + $0x2c] sm:$0xf]
      %v8125 = vld [vmem:[#allocation2 + $0x30] sm:$0xf]
      %v8126 = vld [vmem:[#allocation2 + $0x34] sm:$0xf]
      %v8127 = vld [vmem:[#allocation2 + $0x38] sm:$0xf]
      %v8128 = vld [vmem:[#allocation2 + $0x3c] sm:$0xf]
      %v8129 = vld [vmem:[#allocation2 + $0x40] sm:$0xf]
      %v8130 = vld [vmem:[#allocation2 + $0x44] sm:$0xf]
      %v8131 = vld [vmem:[#allocation2 + $0x48] sm:$0xf]
      %v8132 = vld [vmem:[#allocation2 + $0x4c] sm:$0xf]
      %v8133 = vld [vmem:[#allocation2 + $0x50] sm:$0xf]
      %v8134 = vld [vmem:[#allocation2 + $0x54] sm:$0xf]
      %v8135 = vld [vmem:[#allocation2 + $0x58] sm:$0xf]
      %v8136 = vld [vmem:[#allocation2 + $0x5c] sm:$0xf]
      %v8137 = vld [vmem:[#allocation2 + $0x60] sm:$0xf]
      %v8138 = vld [vmem:[#allocation2 + $0x64] sm:$0xf]
      %v8139 = vld [vmem:[#allocation2 + $0x68] sm:$0xf]
      %v8140 = vld [vmem:[#allocation2 + $0x6c] sm:$0xf]
      %v8141 = vld [vmem:[#allocation2 + $0x70] sm:$0xf]
      %v8142 = vld [vmem:[#allocation2 + $0x74] sm:$0xf]
      %v8143 = vld [vmem:[#allocation2 + $0x78] sm:$0xf]
      %v8144 = vld [vmem:[#allocation2 + $0x7c] sm:$0xf]
      %v8145 = vld [vmem:[#allocation2 + $0x80] sm:$0xf]
      %v8146 = vld [vmem:[#allocation2 + $0x84] sm:$0xf]
      %v8147 = vld [vmem:[#allocation2 + $0x88] sm:$0xf]
      %v8148 = vld [vmem:[#allocation2 + $0x8c] sm:$0xf]
      %v8149 = vld [vmem:[#allocation2 + $0x90] sm:$0xf]
      %v8150 = vld [vmem:[#allocation2 + $0x94] sm:$0xf]
      %v8151 = vld [vmem:[#allocation2 + $0x98] sm:$0xf]
      %v8152 = vld [vmem:[#allocation2 + $0x9c] sm:$0xf]
      %v8153 = vld [vmem:[#allocation2 + $0xa0] sm:$0x1]
      %s8154 = scalar_lea.vmem %s2, 320
      %v8155 = vld [vmem:[%s8154] sm:$0xf]
      %v8156 = vld [vmem:[%s8154 + $0x4] sm:$0xf]
      %v8157 = vld [vmem:[%s8154 + $0x8] sm:$0xf]
      %v8158 = vld [vmem:[%s8154 + $0xc] sm:$0xf]
      %v8159 = vld [vmem:[%s8154 + $0x10] sm:$0xf]
      %v8160 = vld [vmem:[%s8154 + $0x14] sm:$0xf]
      %v8161 = vld [vmem:[%s8154 + $0x18] sm:$0xf]
      %v8162 = vld [vmem:[%s8154 + $0x1c] sm:$0xf]
      %v8163 = vld [vmem:[%s8154 + $0x20] sm:$0xf]
      %v8164 = vld [vmem:[%s8154 + $0x24] sm:$0xf]
      %v8165 = vld [vmem:[%s8154 + $0x28] sm:$0xf]
      %v8166 = vld [vmem:[%s8154 + $0x2c] sm:$0xf]
      %v8167 = vld [vmem:[%s8154 + $0x30] sm:$0xf]
      %v8168 = vld [vmem:[%s8154 + $0x34] sm:$0xf]
      %v8169 = vld [vmem:[%s8154 + $0x38] sm:$0xf]
      %v8170 = vld [vmem:[%s8154 + $0x3c] sm:$0xf]
      %v8208 = vunpack.c.l.b16 %v8117
      %v8209 = vunpack.c.l.b16 %v8118
      %v8210 = vunpack.c.l.b16 %v8119
      %v8211 = vunpack.c.l.b16 %v8120
      %v8212 = vunpack.c.l.b16 %v8121
      %v8213 = vunpack.c.l.b16 %v8122
      %v8214 = vunpack.c.l.b16 %v8123
      %v8215 = vunpack.c.l.b16 %v8124
      %v8216 = vunpack.c.l.b16 %v8125
      %v8217 = vunpack.c.l.b16 %v8126
      %v8218 = vunpack.c.l.b16 %v8127
      %v8219 = vunpack.c.l.b16 %v8128
      %v8220 = vunpack.c.l.b16 %v8129
      %v8221 = vunpack.c.l.b16 %v8130
      %v8222 = vunpack.c.l.b16 %v8131
      %v8223 = vunpack.c.l.b16 %v8132
      %v8224 = vunpack.c.l.b16 %v8133
      %v8225 = vunpack.c.l.b16 %v8134
      %v8226 = vunpack.c.l.b16 %v8135
      %v8227 = vunpack.c.l.b16 %v8136
      %v8228 = vunpack.c.l.b16 %v8137
      %v8229 = vunpack.c.l.b16 %v8138
      %v8230 = vunpack.c.l.b16 %v8139
      %v8231 = vunpack.c.l.b16 %v8140
      %v8232 = vunpack.c.l.b16 %v8141
      %v8233 = vunpack.c.l.b16 %v8142
      %v8234 = vunpack.c.l.b16 %v8143
      %v8235 = vunpack.c.l.b16 %v8144
      %v8236 = vunpack.c.l.b16 %v8145
      %v8237 = vunpack.c.l.b16 %v8146
      %v8238 = vunpack.c.l.b16 %v8147
      %v8239 = vunpack.c.l.b16 %v8148
      %v8240 = vunpack.c.l.b16 %v8149
      %v8241 = vunpack.c.l.b16 %v8150
      %v8242 = vunpack.c.l.b16 %v8151
      %v8243 = vunpack.c.l.b16 %v8152
      %v8244 = vunpack.c.l.b16 %v8153
      %v8245 = vpack.c.b16 %v8209, %v8208
      %v8246 = vpack.c.b16 %v8211, %v8210
      %v8247 = vpack.c.b16 %v8213, %v8212
      %v8248 = vpack.c.b16 %v8215, %v8214
      %v8249 = vpack.c.b16 %v8217, %v8216
      %v8250 = vpack.c.b16 %v8219, %v8218
      %v8251 = vpack.c.b16 %v8221, %v8220
      %v8252 = vpack.c.b16 %v8223, %v8222
      %v8253 = vpack.c.b16 %v8225, %v8224
      %v8254 = vpack.c.b16 %v8227, %v8226
      %v8255 = vpack.c.b16 %v8229, %v8228
      %v8256 = vpack.c.b16 %v8231, %v8230
      %v8257 = vpack.c.b16 %v8233, %v8232
      %v8258 = vpack.c.b16 %v8235, %v8234
      %v8259 = vpack.c.b16 %v8237, %v8236
      %v8260 = vpack.c.b16 %v8239, %v8238
      %v8261 = vpack.c.b16 %v8241, %v8240
      %v8262 = vpack.c.b16 %v8243, %v8242
      %v8263 = vpack.c.b16 %v8244, %v8244
      %v8265 = vshrl.u32 %v8245, 16
      %v8267 = vshll.u32 %v8245, 16
      %v8269 = vrot.slane %v8267, 1
      %v8270 = vor.u32 %v8265, %v8269
      %v8272 = vshll.u32 %v8246, 16
      %v8274 = vrot.slane %v8272, 1
      %v8275 = vsel %vm2774, %v8270, %v8274
      %v8276 = vshrl.u32 %v8246, 16
      %v8278 = vor.u32 %v8276, %v8274
      %v8280 = vshll.u32 %v8247, 16
      %v8282 = vrot.slane %v8280, 1
      %v8283 = vsel %vm2774, %v8278, %v8282
      %v8284 = vshrl.u32 %v8247, 16
      %v8286 = vor.u32 %v8284, %v8282
      %v8288 = vshll.u32 %v8248, 16
      %v8290 = vrot.slane %v8288, 1
      %v8291 = vsel %vm2774, %v8286, %v8290
      %v8292 = vshrl.u32 %v8248, 16
      %v8294 = vor.u32 %v8292, %v8290
      %v8296 = vshll.u32 %v8249, 16
      %v8298 = vrot.slane %v8296, 1
      %v8299 = vsel %vm2774, %v8294, %v8298
      %v8300 = vshrl.u32 %v8249, 16
      %v8302 = vor.u32 %v8300, %v8298
      %v8304 = vshll.u32 %v8250, 16
      %v8306 = vrot.slane %v8304, 1
      %v8307 = vsel %vm2774, %v8302, %v8306
      %v8308 = vshrl.u32 %v8250, 16
      %v8310 = vor.u32 %v8308, %v8306
      %v8312 = vshll.u32 %v8251, 16
      %v8314 = vrot.slane %v8312, 1
      %v8315 = vsel %vm2774, %v8310, %v8314
      %v8316 = vshrl.u32 %v8251, 16
      %v8318 = vor.u32 %v8316, %v8314
      %v8320 = vshll.u32 %v8252, 16
      %v8322 = vrot.slane %v8320, 1
      %v8323 = vsel %vm2774, %v8318, %v8322
      %v8324 = vshrl.u32 %v8252, 16
      %v8326 = vor.u32 %v8324, %v8322
      %v8328 = vshll.u32 %v8253, 16
      %v8330 = vrot.slane %v8328, 1
      %v8331 = vsel %vm2774, %v8326, %v8330
      %v8332 = vshrl.u32 %v8253, 16
      %v8334 = vor.u32 %v8332, %v8330
      %v8336 = vshll.u32 %v8254, 16
      %v8338 = vrot.slane %v8336, 1
      %v8339 = vsel %vm2774, %v8334, %v8338
      %v8340 = vshrl.u32 %v8254, 16
      %v8342 = vor.u32 %v8340, %v8338
      %v8344 = vshll.u32 %v8255, 16
      %v8346 = vrot.slane %v8344, 1
      %v8347 = vsel %vm2774, %v8342, %v8346
      %v8348 = vshrl.u32 %v8255, 16
      %v8350 = vor.u32 %v8348, %v8346
      %v8352 = vshll.u32 %v8256, 16
      %v8354 = vrot.slane %v8352, 1
      %v8355 = vsel %vm2774, %v8350, %v8354
      %v8356 = vshrl.u32 %v8256, 16
      %v8358 = vor.u32 %v8356, %v8354
      %v8360 = vshll.u32 %v8257, 16
      %v8362 = vrot.slane %v8360, 1
      %v8363 = vsel %vm2774, %v8358, %v8362
      %v8364 = vshrl.u32 %v8257, 16
      %v8366 = vor.u32 %v8364, %v8362
      %v8368 = vshll.u32 %v8258, 16
      %v8370 = vrot.slane %v8368, 1
      %v8371 = vsel %vm2774, %v8366, %v8370
      %v8372 = vshrl.u32 %v8258, 16
      %v8374 = vor.u32 %v8372, %v8370
      %v8376 = vshll.u32 %v8259, 16
      %v8378 = vrot.slane %v8376, 1
      %v8379 = vsel %vm2774, %v8374, %v8378
      %v8380 = vshrl.u32 %v8259, 16
      %v8382 = vor.u32 %v8380, %v8378
      %v8384 = vshll.u32 %v8260, 16
      %v8386 = vrot.slane %v8384, 1
      %v8387 = vsel %vm2774, %v8382, %v8386
      %v8388 = vshrl.u32 %v8260, 16
      %v8390 = vor.u32 %v8388, %v8386
      %v8392 = vshll.u32 %v8261, 16
      %v8394 = vrot.slane %v8392, 1
      %v8395 = vsel %vm2774, %v8390, %v8394
      %v8396 = vshrl.u32 %v8261, 16
      %v8398 = vor.u32 %v8396, %v8394
      %v8400 = vshll.u32 %v8262, 16
      %v8402 = vrot.slane %v8400, 1
      %v8403 = vsel %vm2774, %v8398, %v8402
      %v8404 = vshrl.u32 %v8262, 16
      %v8406 = vor.u32 %v8404, %v8402
      %v8408 = vshll.u32 %v8263, 16
      %v8410 = vrot.slane %v8408, 1
      %v8411 = vsel %vm2774, %v8406, %v8410
      %v8446 = vunpack.c.l.b16 %v8155
      %v8447 = vunpack.c.l.b16 %v8156
      %v8448 = vunpack.c.l.b16 %v8157
      %v8449 = vunpack.c.l.b16 %v8158
      %v8450 = vunpack.c.l.b16 %v8159
      %v8451 = vunpack.c.l.b16 %v8160
      %v8452 = vunpack.c.l.b16 %v8161
      %v8453 = vunpack.c.l.b16 %v8162
      %v8454 = vunpack.c.l.b16 %v8163
      %v8455 = vunpack.c.l.b16 %v8164
      %v8456 = vunpack.c.l.b16 %v8165
      %v8457 = vunpack.c.l.b16 %v8166
      %v8458 = vunpack.c.l.b16 %v8167
      %v8459 = vunpack.c.l.b16 %v8168
      %v8460 = vunpack.c.l.b16 %v8169
      %v8461 = vunpack.c.l.b16 %v8170
      %v8462 = vpack.c.b16 %v8447, %v8446
      %v8463 = vpack.c.b16 %v8449, %v8448
      %v8464 = vpack.c.b16 %v8451, %v8450
      %v8465 = vpack.c.b16 %v8453, %v8452
      %v8466 = vpack.c.b16 %v8455, %v8454
      %v8467 = vpack.c.b16 %v8457, %v8456
      %v8468 = vpack.c.b16 %v8459, %v8458
      %v8469 = vpack.c.b16 %v8461, %v8460
      %8478 = vmatprep.subr.bf16.mxu0 0
      %8479 = vmatpush1.bf16.msra.mxu0 %v8469
      %8480 = vmatprep.subr.bf16.mxu0 0
      %8481 = vmatpush1.bf16.msra.mxu0 %v8468
      %8482 = vmatprep.subr.bf16.mxu0 0
      %8483 = vmatpush1.bf16.msra.mxu0 %v8467
      %8484 = vmatprep.subr.bf16.mxu0 0
      %8485 = vmatpush1.bf16.msra.mxu0 %v8466
      %8486 = vmatprep.subr.bf16.mxu0 0
      %8487 = vmatpush1.bf16.msra.mxu0 %v8465
      %8488 = vmatprep.subr.bf16.mxu0 0
      %8489 = vmatpush1.bf16.msra.mxu0 %v8464
      %8490 = vmatprep.subr.bf16.mxu0 0
      %8491 = vmatpush1.bf16.msra.mxu0 %v8463
      %8492 = vmatprep.subr.bf16.mxu0 0
      %8493 = vmatpush1.bf16.msra.mxu0 %v8462
      %8494 = vmatprep.subr.bf16.mxu0 0
      %8495 = vmatpush2.bf16.msra.mxu0 0
      %8496 = vmatprep.subr.bf16.mxu0 0
      %8497 = vmatpush2.bf16.msra.mxu0 0
      %8498 = vmatprep.subr.bf16.mxu0 0
      %8499 = vmatpush2.bf16.msra.mxu0 0
      %8500 = vmatprep.subr.bf16.mxu0 0
      %8501 = vmatpush2.bf16.msra.mxu0 0
      %8502 = vmatprep.subr.bf16.mxu0 0
      %8503 = vmatpush2.bf16.msra.mxu0 0
      %8504 = vmatprep.subr.bf16.mxu0 0
      %8505 = vmatpush2.bf16.msra.mxu0 0
      %8506 = vmatprep.subr.bf16.mxu0 0
      %8507 = vmatpush2.bf16.msra.mxu0 0
      %8508 = vmatprep.subr.bf16.mxu0 0
      %8509 = vmatpush2.bf16.msra.mxu0 0
      %8510 = vmatprep.mubr.bf16.mxu0 0
      %8511 = vmatmul.mubr.bf16.gmra.mxu0 %v8275
      %v8512 = vpop.f32.mrf.mxu0
      %v8513 = vadd.f32 0.0, %v8512
      %v8514 = vpop.f32.mrf.mxu0
      %v8515 = vpop.f32.mrf.mxu0
      %v8516 = vadd.f32 0.0, %v8515
      %v8517 = vpop.f32.mrf.mxu0
      %8518 = vmatprep.mubr.bf16.mxu0 0
      %8519 = vmatmul.mubr.bf16.gmra.mxu0 %v8283
      %v8520 = vpop.f32.mrf.mxu0
      %v8521 = vadd.f32 0.0, %v8520
      %v8522 = vpop.f32.mrf.mxu0
      %v8523 = vpop.f32.mrf.mxu0
      %v8524 = vadd.f32 0.0, %v8523
      %v8525 = vpop.f32.mrf.mxu0
      %8526 = vmatprep.mubr.bf16.mxu0 0
      %8527 = vmatmul.mubr.bf16.gmra.mxu0 %v8291
      %v8528 = vpop.f32.mrf.mxu0
      %v8529 = vadd.f32 0.0, %v8528
      %v8530 = vpop.f32.mrf.mxu0
      %v8531 = vpop.f32.mrf.mxu0
      %v8532 = vadd.f32 0.0, %v8531
      %v8533 = vpop.f32.mrf.mxu0
      %8534 = vmatprep.mubr.bf16.mxu0 0
      %8535 = vmatmul.mubr.bf16.gmra.mxu0 %v8299
      %v8536 = vpop.f32.mrf.mxu0
      %v8537 = vadd.f32 0.0, %v8536
      %v8538 = vpop.f32.mrf.mxu0
      %v8539 = vpop.f32.mrf.mxu0
      %v8540 = vadd.f32 0.0, %v8539
      %v8541 = vpop.f32.mrf.mxu0
      %8542 = vmatprep.mubr.bf16.mxu0 0
      %8543 = vmatmul.mubr.bf16.gmra.mxu0 %v8307
      %v8544 = vpop.f32.mrf.mxu0
      %v8545 = vadd.f32 0.0, %v8544
      %v8546 = vpop.f32.mrf.mxu0
      %v8547 = vpop.f32.mrf.mxu0
      %v8548 = vadd.f32 0.0, %v8547
      %v8549 = vpop.f32.mrf.mxu0
      %8550 = vmatprep.mubr.bf16.mxu0 0
      %8551 = vmatmul.mubr.bf16.gmra.mxu0 %v8315
      %v8552 = vpop.f32.mrf.mxu0
      %v8553 = vadd.f32 0.0, %v8552
      %v8554 = vpop.f32.mrf.mxu0
      %v8555 = vpop.f32.mrf.mxu0
      %v8556 = vadd.f32 0.0, %v8555
      %v8557 = vpop.f32.mrf.mxu0
      %8558 = vmatprep.mubr.bf16.mxu0 0
      %8559 = vmatmul.mubr.bf16.gmra.mxu0 %v8323
      %v8560 = vpop.f32.mrf.mxu0
      %v8561 = vadd.f32 0.0, %v8560
      %v8562 = vpop.f32.mrf.mxu0
      %v8563 = vpop.f32.mrf.mxu0
      %v8564 = vadd.f32 0.0, %v8563
      %v8565 = vpop.f32.mrf.mxu0
      %8566 = vmatprep.mubr.bf16.mxu0 0
      %8567 = vmatmul.mubr.bf16.gmra.mxu0 %v8331
      %v8568 = vpop.f32.mrf.mxu0
      %v8569 = vadd.f32 0.0, %v8568
      %v8570 = vpop.f32.mrf.mxu0
      %v8571 = vpop.f32.mrf.mxu0
      %v8572 = vadd.f32 0.0, %v8571
      %v8573 = vpop.f32.mrf.mxu0
      %8574 = vmatprep.mubr.bf16.mxu0 0
      %8575 = vmatmul.mubr.bf16.gmra.mxu0 %v8339
      %v8576 = vpop.f32.mrf.mxu0
      %v8577 = vadd.f32 0.0, %v8576
      %v8578 = vpop.f32.mrf.mxu0
      %v8579 = vpop.f32.mrf.mxu0
      %v8580 = vadd.f32 0.0, %v8579
      %v8581 = vpop.f32.mrf.mxu0
      %8582 = vmatprep.mubr.bf16.mxu0 0
      %8583 = vmatmul.mubr.bf16.gmra.mxu0 %v8347
      %v8584 = vpop.f32.mrf.mxu0
      %v8585 = vadd.f32 0.0, %v8584
      %v8586 = vpop.f32.mrf.mxu0
      %v8587 = vpop.f32.mrf.mxu0
      %v8588 = vadd.f32 0.0, %v8587
      %v8589 = vpop.f32.mrf.mxu0
      %8590 = vmatprep.mubr.bf16.mxu0 0
      %8591 = vmatmul.mubr.bf16.gmra.mxu0 %v8355
      %v8592 = vpop.f32.mrf.mxu0
      %v8593 = vadd.f32 0.0, %v8592
      %v8594 = vpop.f32.mrf.mxu0
      %v8595 = vpop.f32.mrf.mxu0
      %v8596 = vadd.f32 0.0, %v8595
      %v8597 = vpop.f32.mrf.mxu0
      %8598 = vmatprep.mubr.bf16.mxu0 0
      %8599 = vmatmul.mubr.bf16.gmra.mxu0 %v8363
      %v8600 = vpop.f32.mrf.mxu0
      %v8601 = vadd.f32 0.0, %v8600
      %v8602 = vpop.f32.mrf.mxu0
      %v8603 = vpop.f32.mrf.mxu0
      %v8604 = vadd.f32 0.0, %v8603
      %v8605 = vpop.f32.mrf.mxu0
      %8606 = vmatprep.mubr.bf16.mxu0 0
      %8607 = vmatmul.mubr.bf16.gmra.mxu0 %v8371
      %v8608 = vpop.f32.mrf.mxu0
      %v8609 = vadd.f32 0.0, %v8608
      %v8610 = vpop.f32.mrf.mxu0
      %v8611 = vpop.f32.mrf.mxu0
      %v8612 = vadd.f32 0.0, %v8611
      %v8613 = vpop.f32.mrf.mxu0
      %8614 = vmatprep.mubr.bf16.mxu0 0
      %8615 = vmatmul.mubr.bf16.gmra.mxu0 %v8379
      %v8616 = vpop.f32.mrf.mxu0
      %v8617 = vadd.f32 0.0, %v8616
      %v8618 = vpop.f32.mrf.mxu0
      %v8619 = vpop.f32.mrf.mxu0
      %v8620 = vadd.f32 0.0, %v8619
      %v8621 = vpop.f32.mrf.mxu0
      %8622 = vmatprep.mubr.bf16.mxu0 0
      %8623 = vmatmul.mubr.bf16.gmra.mxu0 %v8387
      %v8624 = vpop.f32.mrf.mxu0
      %v8625 = vadd.f32 0.0, %v8624
      %v8626 = vpop.f32.mrf.mxu0
      %v8627 = vpop.f32.mrf.mxu0
      %v8628 = vadd.f32 0.0, %v8627
      %v8629 = vpop.f32.mrf.mxu0
      %8630 = vmatprep.mubr.bf16.mxu0 0
      %8631 = vmatmul.mubr.bf16.gmra.mxu0 %v8395
      %v8632 = vpop.f32.mrf.mxu0
      %v8633 = vadd.f32 0.0, %v8632
      %v8634 = vpop.f32.mrf.mxu0
      %v8635 = vpop.f32.mrf.mxu0
      %v8636 = vadd.f32 0.0, %v8635
      %v8637 = vpop.f32.mrf.mxu0
      %8638 = vmatprep.mubr.bf16.mxu0 0
      %8639 = vmatmul.mubr.bf16.gmra.mxu0 %v8403
      %v8640 = vpop.f32.mrf.mxu0
      %v8641 = vadd.f32 0.0, %v8640
      %v8642 = vpop.f32.mrf.mxu0
      %v8643 = vpop.f32.mrf.mxu0
      %v8644 = vadd.f32 0.0, %v8643
      %v8645 = vpop.f32.mrf.mxu0
      %8646 = vmatprep.mubr.bf16.mxu0 0
      %8647 = vmatmul.mubr.bf16.gmra.mxu0 %v8411
      %v8648 = vpop.f32.mrf.mxu0
      %v8649 = vadd.f32 0.0, %v8648
      %v8650 = vpop.f32.mrf.mxu0
      %v8651 = vpop.f32.mrf.mxu0
      %v8652 = vadd.f32 0.0, %v8651
      %v8653 = vpop.f32.mrf.mxu0
      %8654 = vdwg.mxu0
      %v8655 = vadd.f32 %v8081, %v8513
      %v8656 = vadd.f32 %v8082, %v8516
      %v8657 = vadd.f32 %v8083, %v8521
      %v8658 = vadd.f32 %v8084, %v8524
      %v8659 = vadd.f32 %v8085, %v8529
      %v8660 = vadd.f32 %v8086, %v8532
      %v8661 = vadd.f32 %v8087, %v8537
      %v8662 = vadd.f32 %v8088, %v8540
      %v8663 = vadd.f32 %v8089, %v8545
      %v8664 = vadd.f32 %v8090, %v8548
      %v8665 = vadd.f32 %v8091, %v8553
      %v8666 = vadd.f32 %v8092, %v8556
      %v8667 = vadd.f32 %v8093, %v8561
      %v8668 = vadd.f32 %v8094, %v8564
      %v8669 = vadd.f32 %v8095, %v8569
      %v8670 = vadd.f32 %v8096, %v8572
      %v8671 = vadd.f32 %v8097, %v8577
      %v8672 = vadd.f32 %v8098, %v8580
      %v8673 = vadd.f32 %v8099, %v8585
      %v8674 = vadd.f32 %v8100, %v8588
      %v8675 = vadd.f32 %v8101, %v8593
      %v8676 = vadd.f32 %v8102, %v8596
      %v8677 = vadd.f32 %v8103, %v8601
      %v8678 = vadd.f32 %v8104, %v8604
      %v8679 = vadd.f32 %v8105, %v8609
      %v8680 = vadd.f32 %v8106, %v8612
      %v8681 = vadd.f32 %v8107, %v8617
      %v8682 = vadd.f32 %v8108, %v8620
      %v8683 = vadd.f32 %v8109, %v8625
      %v8684 = vadd.f32 %v8110, %v8628
      %v8685 = vadd.f32 %v8111, %v8633
      %v8686 = vadd.f32 %v8112, %v8636
      %v8687 = vadd.f32 %v8113, %v8641
      %v8688 = vadd.f32 %v8114, %v8644
      %v8689 = vadd.f32 %v8115, %v8649
      %v8690 = vadd.f32 %v8116, %v8652
      %v8691 = vld [vmem:[#allocation2 + $0x18] sm:$0xf]
      %v8692 = vld [vmem:[#allocation2 + $0x1c] sm:$0xf]
      %v8693 = vld [vmem:[#allocation2 + $0x20] sm:$0xf]
      %v8694 = vld [vmem:[#allocation2 + $0x24] sm:$0xf]
      %v8695 = vld [vmem:[#allocation2 + $0x28] sm:$0xf]
      %v8696 = vld [vmem:[#allocation2 + $0x2c] sm:$0xf]
      %v8697 = vld [vmem:[#allocation2 + $0x30] sm:$0xf]
      %v8698 = vld [vmem:[#allocation2 + $0x34] sm:$0xf]
      %v8699 = vld [vmem:[#allocation2 + $0x38] sm:$0xf]
      %v8700 = vld [vmem:[#allocation2 + $0x3c] sm:$0xf]
      %v8701 = vld [vmem:[#allocation2 + $0x40] sm:$0xf]
      %v8702 = vld [vmem:[#allocation2 + $0x44] sm:$0xf]
      %v8703 = vld [vmem:[#allocation2 + $0x48] sm:$0xf]
      %v8704 = vld [vmem:[#allocation2 + $0x4c] sm:$0xf]
      %v8705 = vld [vmem:[#allocation2 + $0x50] sm:$0xf]
      %v8706 = vld [vmem:[#allocation2 + $0x54] sm:$0xf]
      %v8707 = vld [vmem:[#allocation2 + $0x58] sm:$0xf]
      %v8708 = vld [vmem:[#allocation2 + $0x5c] sm:$0xf]
      %v8709 = vld [vmem:[#allocation2 + $0x60] sm:$0xf]
      %v8710 = vld [vmem:[#allocation2 + $0x64] sm:$0xf]
      %v8711 = vld [vmem:[#allocation2 + $0x68] sm:$0xf]
      %v8712 = vld [vmem:[#allocation2 + $0x6c] sm:$0xf]
      %v8713 = vld [vmem:[#allocation2 + $0x70] sm:$0xf]
      %v8714 = vld [vmem:[#allocation2 + $0x74] sm:$0xf]
      %v8715 = vld [vmem:[#allocation2 + $0x78] sm:$0xf]
      %v8716 = vld [vmem:[#allocation2 + $0x7c] sm:$0xf]
      %v8717 = vld [vmem:[#allocation2 + $0x80] sm:$0xf]
      %v8718 = vld [vmem:[#allocation2 + $0x84] sm:$0xf]
      %v8719 = vld [vmem:[#allocation2 + $0x88] sm:$0xf]
      %v8720 = vld [vmem:[#allocation2 + $0x8c] sm:$0xf]
      %v8721 = vld [vmem:[#allocation2 + $0x90] sm:$0xf]
      %v8722 = vld [vmem:[#allocation2 + $0x94] sm:$0xf]
      %v8723 = vld [vmem:[#allocation2 + $0x98] sm:$0xf]
      %v8724 = vld [vmem:[#allocation2 + $0x9c] sm:$0xf]
      %v8725 = vld [vmem:[#allocation2 + $0xa0] sm:$0xf]
      %v8726 = vld [vmem:[#allocation2 + $0xa4] sm:$0xf]
      %v8727 = vld [vmem:[#allocation2 + $0xa8] sm:$0x1]
      %s8728 = scalar_lea.vmem %s2, 384
      %v8729 = vld [vmem:[%s8728] sm:$0xf]
      %v8730 = vld [vmem:[%s8728 + $0x4] sm:$0xf]
      %v8731 = vld [vmem:[%s8728 + $0x8] sm:$0xf]
      %v8732 = vld [vmem:[%s8728 + $0xc] sm:$0xf]
      %v8733 = vld [vmem:[%s8728 + $0x10] sm:$0xf]
      %v8734 = vld [vmem:[%s8728 + $0x14] sm:$0xf]
      %v8735 = vld [vmem:[%s8728 + $0x18] sm:$0xf]
      %v8736 = vld [vmem:[%s8728 + $0x1c] sm:$0xf]
      %v8737 = vld [vmem:[%s8728 + $0x20] sm:$0xf]
      %v8738 = vld [vmem:[%s8728 + $0x24] sm:$0xf]
      %v8739 = vld [vmem:[%s8728 + $0x28] sm:$0xf]
      %v8740 = vld [vmem:[%s8728 + $0x2c] sm:$0xf]
      %v8741 = vld [vmem:[%s8728 + $0x30] sm:$0xf]
      %v8742 = vld [vmem:[%s8728 + $0x34] sm:$0xf]
      %v8743 = vld [vmem:[%s8728 + $0x38] sm:$0xf]
      %v8744 = vld [vmem:[%s8728 + $0x3c] sm:$0xf]
      %v8782 = vunpack.c.l.b16 %v8691
      %v8783 = vunpack.c.l.b16 %v8692
      %v8784 = vunpack.c.l.b16 %v8693
      %v8785 = vunpack.c.l.b16 %v8694
      %v8786 = vunpack.c.l.b16 %v8695
      %v8787 = vunpack.c.l.b16 %v8696
      %v8788 = vunpack.c.l.b16 %v8697
      %v8789 = vunpack.c.l.b16 %v8698
      %v8790 = vunpack.c.l.b16 %v8699
      %v8791 = vunpack.c.l.b16 %v8700
      %v8792 = vunpack.c.l.b16 %v8701
      %v8793 = vunpack.c.l.b16 %v8702
      %v8794 = vunpack.c.l.b16 %v8703
      %v8795 = vunpack.c.l.b16 %v8704
      %v8796 = vunpack.c.l.b16 %v8705
      %v8797 = vunpack.c.l.b16 %v8706
      %v8798 = vunpack.c.l.b16 %v8707
      %v8799 = vunpack.c.l.b16 %v8708
      %v8800 = vunpack.c.l.b16 %v8709
      %v8801 = vunpack.c.l.b16 %v8710
      %v8802 = vunpack.c.l.b16 %v8711
      %v8803 = vunpack.c.l.b16 %v8712
      %v8804 = vunpack.c.l.b16 %v8713
      %v8805 = vunpack.c.l.b16 %v8714
      %v8806 = vunpack.c.l.b16 %v8715
      %v8807 = vunpack.c.l.b16 %v8716
      %v8808 = vunpack.c.l.b16 %v8717
      %v8809 = vunpack.c.l.b16 %v8718
      %v8810 = vunpack.c.l.b16 %v8719
      %v8811 = vunpack.c.l.b16 %v8720
      %v8812 = vunpack.c.l.b16 %v8721
      %v8813 = vunpack.c.l.b16 %v8722
      %v8814 = vunpack.c.l.b16 %v8723
      %v8815 = vunpack.c.l.b16 %v8724
      %v8816 = vunpack.c.l.b16 %v8725
      %v8817 = vunpack.c.l.b16 %v8726
      %v8818 = vunpack.c.l.b16 %v8727
      %v8819 = vpack.c.b16 %v8783, %v8782
      %v8820 = vpack.c.b16 %v8785, %v8784
      %v8821 = vpack.c.b16 %v8787, %v8786
      %v8822 = vpack.c.b16 %v8789, %v8788
      %v8823 = vpack.c.b16 %v8791, %v8790
      %v8824 = vpack.c.b16 %v8793, %v8792
      %v8825 = vpack.c.b16 %v8795, %v8794
      %v8826 = vpack.c.b16 %v8797, %v8796
      %v8827 = vpack.c.b16 %v8799, %v8798
      %v8828 = vpack.c.b16 %v8801, %v8800
      %v8829 = vpack.c.b16 %v8803, %v8802
      %v8830 = vpack.c.b16 %v8805, %v8804
      %v8831 = vpack.c.b16 %v8807, %v8806
      %v8832 = vpack.c.b16 %v8809, %v8808
      %v8833 = vpack.c.b16 %v8811, %v8810
      %v8834 = vpack.c.b16 %v8813, %v8812
      %v8835 = vpack.c.b16 %v8815, %v8814
      %v8836 = vpack.c.b16 %v8817, %v8816
      %v8837 = vpack.c.b16 %v8818, %v8818
      %v8839 = vshrl.u32 %v8819, 16
      %v8841 = vshll.u32 %v8819, 16
      %v8843 = vrot.slane %v8841, 1
      %v8844 = vor.u32 %v8839, %v8843
      %v8846 = vshll.u32 %v8820, 16
      %v8848 = vrot.slane %v8846, 1
      %v8849 = vsel %vm2774, %v8844, %v8848
      %v8850 = vshrl.u32 %v8820, 16
      %v8852 = vor.u32 %v8850, %v8848
      %v8854 = vshll.u32 %v8821, 16
      %v8856 = vrot.slane %v8854, 1
      %v8857 = vsel %vm2774, %v8852, %v8856
      %v8858 = vshrl.u32 %v8821, 16
      %v8860 = vor.u32 %v8858, %v8856
      %v8862 = vshll.u32 %v8822, 16
      %v8864 = vrot.slane %v8862, 1
      %v8865 = vsel %vm2774, %v8860, %v8864
      %v8866 = vshrl.u32 %v8822, 16
      %v8868 = vor.u32 %v8866, %v8864
      %v8870 = vshll.u32 %v8823, 16
      %v8872 = vrot.slane %v8870, 1
      %v8873 = vsel %vm2774, %v8868, %v8872
      %v8874 = vshrl.u32 %v8823, 16
      %v8876 = vor.u32 %v8874, %v8872
      %v8878 = vshll.u32 %v8824, 16
      %v8880 = vrot.slane %v8878, 1
      %v8881 = vsel %vm2774, %v8876, %v8880
      %v8882 = vshrl.u32 %v8824, 16
      %v8884 = vor.u32 %v8882, %v8880
      %v8886 = vshll.u32 %v8825, 16
      %v8888 = vrot.slane %v8886, 1
      %v8889 = vsel %vm2774, %v8884, %v8888
      %v8890 = vshrl.u32 %v8825, 16
      %v8892 = vor.u32 %v8890, %v8888
      %v8894 = vshll.u32 %v8826, 16
      %v8896 = vrot.slane %v8894, 1
      %v8897 = vsel %vm2774, %v8892, %v8896
      %v8898 = vshrl.u32 %v8826, 16
      %v8900 = vor.u32 %v8898, %v8896
      %v8902 = vshll.u32 %v8827, 16
      %v8904 = vrot.slane %v8902, 1
      %v8905 = vsel %vm2774, %v8900, %v8904
      %v8906 = vshrl.u32 %v8827, 16
      %v8908 = vor.u32 %v8906, %v8904
      %v8910 = vshll.u32 %v8828, 16
      %v8912 = vrot.slane %v8910, 1
      %v8913 = vsel %vm2774, %v8908, %v8912
      %v8914 = vshrl.u32 %v8828, 16
      %v8916 = vor.u32 %v8914, %v8912
      %v8918 = vshll.u32 %v8829, 16
      %v8920 = vrot.slane %v8918, 1
      %v8921 = vsel %vm2774, %v8916, %v8920
      %v8922 = vshrl.u32 %v8829, 16
      %v8924 = vor.u32 %v8922, %v8920
      %v8926 = vshll.u32 %v8830, 16
      %v8928 = vrot.slane %v8926, 1
      %v8929 = vsel %vm2774, %v8924, %v8928
      %v8930 = vshrl.u32 %v8830, 16
      %v8932 = vor.u32 %v8930, %v8928
      %v8934 = vshll.u32 %v8831, 16
      %v8936 = vrot.slane %v8934, 1
      %v8937 = vsel %vm2774, %v8932, %v8936
      %v8938 = vshrl.u32 %v8831, 16
      %v8940 = vor.u32 %v8938, %v8936
      %v8942 = vshll.u32 %v8832, 16
      %v8944 = vrot.slane %v8942, 1
      %v8945 = vsel %vm2774, %v8940, %v8944
      %v8946 = vshrl.u32 %v8832, 16
      %v8948 = vor.u32 %v8946, %v8944
      %v8950 = vshll.u32 %v8833, 16
      %v8952 = vrot.slane %v8950, 1
      %v8953 = vsel %vm2774, %v8948, %v8952
      %v8954 = vshrl.u32 %v8833, 16
      %v8956 = vor.u32 %v8954, %v8952
      %v8958 = vshll.u32 %v8834, 16
      %v8960 = vrot.slane %v8958, 1
      %v8961 = vsel %vm2774, %v8956, %v8960
      %v8962 = vshrl.u32 %v8834, 16
      %v8964 = vor.u32 %v8962, %v8960
      %v8966 = vshll.u32 %v8835, 16
      %v8968 = vrot.slane %v8966, 1
      %v8969 = vsel %vm2774, %v8964, %v8968
      %v8970 = vshrl.u32 %v8835, 16
      %v8972 = vor.u32 %v8970, %v8968
      %v8974 = vshll.u32 %v8836, 16
      %v8976 = vrot.slane %v8974, 1
      %v8977 = vsel %vm2774, %v8972, %v8976
      %v8978 = vshrl.u32 %v8836, 16
      %v8980 = vor.u32 %v8978, %v8976
      %v8982 = vshll.u32 %v8837, 16
      %v8984 = vrot.slane %v8982, 1
      %v8985 = vsel %vm2774, %v8980, %v8984
      %v9020 = vunpack.c.l.b16 %v8729
      %v9021 = vunpack.c.l.b16 %v8730
      %v9022 = vunpack.c.l.b16 %v8731
      %v9023 = vunpack.c.l.b16 %v8732
      %v9024 = vunpack.c.l.b16 %v8733
      %v9025 = vunpack.c.l.b16 %v8734
      %v9026 = vunpack.c.l.b16 %v8735
      %v9027 = vunpack.c.l.b16 %v8736
      %v9028 = vunpack.c.l.b16 %v8737
      %v9029 = vunpack.c.l.b16 %v8738
      %v9030 = vunpack.c.l.b16 %v8739
      %v9031 = vunpack.c.l.b16 %v8740
      %v9032 = vunpack.c.l.b16 %v8741
      %v9033 = vunpack.c.l.b16 %v8742
      %v9034 = vunpack.c.l.b16 %v8743
      %v9035 = vunpack.c.l.b16 %v8744
      %v9036 = vpack.c.b16 %v9021, %v9020
      %v9037 = vpack.c.b16 %v9023, %v9022
      %v9038 = vpack.c.b16 %v9025, %v9024
      %v9039 = vpack.c.b16 %v9027, %v9026
      %v9040 = vpack.c.b16 %v9029, %v9028
      %v9041 = vpack.c.b16 %v9031, %v9030
      %v9042 = vpack.c.b16 %v9033, %v9032
      %v9043 = vpack.c.b16 %v9035, %v9034
      %9052 = vmatprep.subr.bf16.mxu0 0
      %9053 = vmatpush1.bf16.msra.mxu0 %v9043
      %9054 = vmatprep.subr.bf16.mxu0 0
      %9055 = vmatpush1.bf16.msra.mxu0 %v9042
      %9056 = vmatprep.subr.bf16.mxu0 0
      %9057 = vmatpush1.bf16.msra.mxu0 %v9041
      %9058 = vmatprep.subr.bf16.mxu0 0
      %9059 = vmatpush1.bf16.msra.mxu0 %v9040
      %9060 = vmatprep.subr.bf16.mxu0 0
      %9061 = vmatpush1.bf16.msra.mxu0 %v9039
      %9062 = vmatprep.subr.bf16.mxu0 0
      %9063 = vmatpush1.bf16.msra.mxu0 %v9038
      %9064 = vmatprep.subr.bf16.mxu0 0
      %9065 = vmatpush1.bf16.msra.mxu0 %v9037
      %9066 = vmatprep.subr.bf16.mxu0 0
      %9067 = vmatpush1.bf16.msra.mxu0 %v9036
      %9068 = vmatprep.subr.bf16.mxu0 0
      %9069 = vmatpush2.bf16.msra.mxu0 0
      %9070 = vmatprep.subr.bf16.mxu0 0
      %9071 = vmatpush2.bf16.msra.mxu0 0
      %9072 = vmatprep.subr.bf16.mxu0 0
      %9073 = vmatpush2.bf16.msra.mxu0 0
      %9074 = vmatprep.subr.bf16.mxu0 0
      %9075 = vmatpush2.bf16.msra.mxu0 0
      %9076 = vmatprep.subr.bf16.mxu0 0
      %9077 = vmatpush2.bf16.msra.mxu0 0
      %9078 = vmatprep.subr.bf16.mxu0 0
      %9079 = vmatpush2.bf16.msra.mxu0 0
      %9080 = vmatprep.subr.bf16.mxu0 0
      %9081 = vmatpush2.bf16.msra.mxu0 0
      %9082 = vmatprep.subr.bf16.mxu0 0
      %9083 = vmatpush2.bf16.msra.mxu0 0
      %9084 = vmatprep.mubr.bf16.mxu0 0
      %9085 = vmatmul.mubr.bf16.gmra.mxu0 %v8849
      %v9086 = vpop.f32.mrf.mxu0
      %v9087 = vadd.f32 0.0, %v9086
      %v9088 = vpop.f32.mrf.mxu0
      %v9089 = vpop.f32.mrf.mxu0
      %v9090 = vadd.f32 0.0, %v9089
      %v9091 = vpop.f32.mrf.mxu0
      %9092 = vmatprep.mubr.bf16.mxu0 0
      %9093 = vmatmul.mubr.bf16.gmra.mxu0 %v8857
      %v9094 = vpop.f32.mrf.mxu0
      %v9095 = vadd.f32 0.0, %v9094
      %v9096 = vpop.f32.mrf.mxu0
      %v9097 = vpop.f32.mrf.mxu0
      %v9098 = vadd.f32 0.0, %v9097
      %v9099 = vpop.f32.mrf.mxu0
      %9100 = vmatprep.mubr.bf16.mxu0 0
      %9101 = vmatmul.mubr.bf16.gmra.mxu0 %v8865
      %v9102 = vpop.f32.mrf.mxu0
      %v9103 = vadd.f32 0.0, %v9102
      %v9104 = vpop.f32.mrf.mxu0
      %v9105 = vpop.f32.mrf.mxu0
      %v9106 = vadd.f32 0.0, %v9105
      %v9107 = vpop.f32.mrf.mxu0
      %9108 = vmatprep.mubr.bf16.mxu0 0
      %9109 = vmatmul.mubr.bf16.gmra.mxu0 %v8873
      %v9110 = vpop.f32.mrf.mxu0
      %v9111 = vadd.f32 0.0, %v9110
      %v9112 = vpop.f32.mrf.mxu0
      %v9113 = vpop.f32.mrf.mxu0
      %v9114 = vadd.f32 0.0, %v9113
      %v9115 = vpop.f32.mrf.mxu0
      %9116 = vmatprep.mubr.bf16.mxu0 0
      %9117 = vmatmul.mubr.bf16.gmra.mxu0 %v8881
      %v9118 = vpop.f32.mrf.mxu0
      %v9119 = vadd.f32 0.0, %v9118
      %v9120 = vpop.f32.mrf.mxu0
      %v9121 = vpop.f32.mrf.mxu0
      %v9122 = vadd.f32 0.0, %v9121
      %v9123 = vpop.f32.mrf.mxu0
      %9124 = vmatprep.mubr.bf16.mxu0 0
      %9125 = vmatmul.mubr.bf16.gmra.mxu0 %v8889
      %v9126 = vpop.f32.mrf.mxu0
      %v9127 = vadd.f32 0.0, %v9126
      %v9128 = vpop.f32.mrf.mxu0
      %v9129 = vpop.f32.mrf.mxu0
      %v9130 = vadd.f32 0.0, %v9129
      %v9131 = vpop.f32.mrf.mxu0
      %9132 = vmatprep.mubr.bf16.mxu0 0
      %9133 = vmatmul.mubr.bf16.gmra.mxu0 %v8897
      %v9134 = vpop.f32.mrf.mxu0
      %v9135 = vadd.f32 0.0, %v9134
      %v9136 = vpop.f32.mrf.mxu0
      %v9137 = vpop.f32.mrf.mxu0
      %v9138 = vadd.f32 0.0, %v9137
      %v9139 = vpop.f32.mrf.mxu0
      %9140 = vmatprep.mubr.bf16.mxu0 0
      %9141 = vmatmul.mubr.bf16.gmra.mxu0 %v8905
      %v9142 = vpop.f32.mrf.mxu0
      %v9143 = vadd.f32 0.0, %v9142
      %v9144 = vpop.f32.mrf.mxu0
      %v9145 = vpop.f32.mrf.mxu0
      %v9146 = vadd.f32 0.0, %v9145
      %v9147 = vpop.f32.mrf.mxu0
      %9148 = vmatprep.mubr.bf16.mxu0 0
      %9149 = vmatmul.mubr.bf16.gmra.mxu0 %v8913
      %v9150 = vpop.f32.mrf.mxu0
      %v9151 = vadd.f32 0.0, %v9150
      %v9152 = vpop.f32.mrf.mxu0
      %v9153 = vpop.f32.mrf.mxu0
      %v9154 = vadd.f32 0.0, %v9153
      %v9155 = vpop.f32.mrf.mxu0
      %9156 = vmatprep.mubr.bf16.mxu0 0
      %9157 = vmatmul.mubr.bf16.gmra.mxu0 %v8921
      %v9158 = vpop.f32.mrf.mxu0
      %v9159 = vadd.f32 0.0, %v9158
      %v9160 = vpop.f32.mrf.mxu0
      %v9161 = vpop.f32.mrf.mxu0
      %v9162 = vadd.f32 0.0, %v9161
      %v9163 = vpop.f32.mrf.mxu0
      %9164 = vmatprep.mubr.bf16.mxu0 0
      %9165 = vmatmul.mubr.bf16.gmra.mxu0 %v8929
      %v9166 = vpop.f32.mrf.mxu0
      %v9167 = vadd.f32 0.0, %v9166
      %v9168 = vpop.f32.mrf.mxu0
      %v9169 = vpop.f32.mrf.mxu0
      %v9170 = vadd.f32 0.0, %v9169
      %v9171 = vpop.f32.mrf.mxu0
      %9172 = vmatprep.mubr.bf16.mxu0 0
      %9173 = vmatmul.mubr.bf16.gmra.mxu0 %v8937
      %v9174 = vpop.f32.mrf.mxu0
      %v9175 = vadd.f32 0.0, %v9174
      %v9176 = vpop.f32.mrf.mxu0
      %v9177 = vpop.f32.mrf.mxu0
      %v9178 = vadd.f32 0.0, %v9177
      %v9179 = vpop.f32.mrf.mxu0
      %9180 = vmatprep.mubr.bf16.mxu0 0
      %9181 = vmatmul.mubr.bf16.gmra.mxu0 %v8945
      %v9182 = vpop.f32.mrf.mxu0
      %v9183 = vadd.f32 0.0, %v9182
      %v9184 = vpop.f32.mrf.mxu0
      %v9185 = vpop.f32.mrf.mxu0
      %v9186 = vadd.f32 0.0, %v9185
      %v9187 = vpop.f32.mrf.mxu0
      %9188 = vmatprep.mubr.bf16.mxu0 0
      %9189 = vmatmul.mubr.bf16.gmra.mxu0 %v8953
      %v9190 = vpop.f32.mrf.mxu0
      %v9191 = vadd.f32 0.0, %v9190
      %v9192 = vpop.f32.mrf.mxu0
      %v9193 = vpop.f32.mrf.mxu0
      %v9194 = vadd.f32 0.0, %v9193
      %v9195 = vpop.f32.mrf.mxu0
      %9196 = vmatprep.mubr.bf16.mxu0 0
      %9197 = vmatmul.mubr.bf16.gmra.mxu0 %v8961
      %v9198 = vpop.f32.mrf.mxu0
      %v9199 = vadd.f32 0.0, %v9198
      %v9200 = vpop.f32.mrf.mxu0
      %v9201 = vpop.f32.mrf.mxu0
      %v9202 = vadd.f32 0.0, %v9201
      %v9203 = vpop.f32.mrf.mxu0
      %9204 = vmatprep.mubr.bf16.mxu0 0
      %9205 = vmatmul.mubr.bf16.gmra.mxu0 %v8969
      %v9206 = vpop.f32.mrf.mxu0
      %v9207 = vadd.f32 0.0, %v9206
      %v9208 = vpop.f32.mrf.mxu0
      %v9209 = vpop.f32.mrf.mxu0
      %v9210 = vadd.f32 0.0, %v9209
      %v9211 = vpop.f32.mrf.mxu0
      %9212 = vmatprep.mubr.bf16.mxu0 0
      %9213 = vmatmul.mubr.bf16.gmra.mxu0 %v8977
      %v9214 = vpop.f32.mrf.mxu0
      %v9215 = vadd.f32 0.0, %v9214
      %v9216 = vpop.f32.mrf.mxu0
      %v9217 = vpop.f32.mrf.mxu0
      %v9218 = vadd.f32 0.0, %v9217
      %v9219 = vpop.f32.mrf.mxu0
      %9220 = vmatprep.mubr.bf16.mxu0 0
      %9221 = vmatmul.mubr.bf16.gmra.mxu0 %v8985
      %v9222 = vpop.f32.mrf.mxu0
      %v9223 = vadd.f32 0.0, %v9222
      %v9224 = vpop.f32.mrf.mxu0
      %v9225 = vpop.f32.mrf.mxu0
      %v9226 = vadd.f32 0.0, %v9225
      %v9227 = vpop.f32.mrf.mxu0
      %9228 = vdwg.mxu0
      %v9229 = vadd.f32 %v8655, %v9087
      %v9230 = vadd.f32 %v8656, %v9090
      %v9231 = vadd.f32 %v8657, %v9095
      %v9232 = vadd.f32 %v8658, %v9098
      %v9233 = vadd.f32 %v8659, %v9103
      %v9234 = vadd.f32 %v8660, %v9106
      %v9235 = vadd.f32 %v8661, %v9111
      %v9236 = vadd.f32 %v8662, %v9114
      %v9237 = vadd.f32 %v8663, %v9119
      %v9238 = vadd.f32 %v8664, %v9122
      %v9239 = vadd.f32 %v8665, %v9127
      %v9240 = vadd.f32 %v8666, %v9130
      %v9241 = vadd.f32 %v8667, %v9135
      %v9242 = vadd.f32 %v8668, %v9138
      %v9243 = vadd.f32 %v8669, %v9143
      %v9244 = vadd.f32 %v8670, %v9146
      %v9245 = vadd.f32 %v8671, %v9151
      %v9246 = vadd.f32 %v8672, %v9154
      %v9247 = vadd.f32 %v8673, %v9159
      %v9248 = vadd.f32 %v8674, %v9162
      %v9249 = vadd.f32 %v8675, %v9167
      %v9250 = vadd.f32 %v8676, %v9170
      %v9251 = vadd.f32 %v8677, %v9175
      %v9252 = vadd.f32 %v8678, %v9178
      %v9253 = vadd.f32 %v8679, %v9183
      %v9254 = vadd.f32 %v8680, %v9186
      %v9255 = vadd.f32 %v8681, %v9191
      %v9256 = vadd.f32 %v8682, %v9194
      %v9257 = vadd.f32 %v8683, %v9199
      %v9258 = vadd.f32 %v8684, %v9202
      %v9259 = vadd.f32 %v8685, %v9207
      %v9260 = vadd.f32 %v8686, %v9210
      %v9261 = vadd.f32 %v8687, %v9215
      %v9262 = vadd.f32 %v8688, %v9218
      %v9263 = vadd.f32 %v8689, %v9223
      %v9264 = vadd.f32 %v8690, %v9226
      %v9265 = vld [vmem:[#allocation2 + $0x18] sm:$0xe]
      %s9266 = scalar_lea.vmem %s2, 448
      %v9267 = vld [vmem:[%s9266] sm:$0xf]
      %v9268 = vld [vmem:[%s9266 + $0x4] sm:$0xf]
      %v9269 = vld [vmem:[%s9266 + $0x8] sm:$0xf]
      %v9270 = vld [vmem:[%s9266 + $0xc] sm:$0xf]
      %v9271 = vld [vmem:[%s9266 + $0x10] sm:$0xf]
      %v9272 = vld [vmem:[%s9266 + $0x14] sm:$0xf]
      %v9273 = vld [vmem:[%s9266 + $0x18] sm:$0xf]
      %v9274 = vld [vmem:[%s9266 + $0x1c] sm:$0xf]
      %v9275 = vld [vmem:[%s9266 + $0x20] sm:$0xf]
      %v9276 = vld [vmem:[%s9266 + $0x24] sm:$0xf]
      %v9277 = vld [vmem:[%s9266 + $0x28] sm:$0xf]
      %v9278 = vld [vmem:[%s9266 + $0x2c] sm:$0xf]
      %v9279 = vld [vmem:[%s9266 + $0x30] sm:$0xf]
      %v9280 = vld [vmem:[%s9266 + $0x34] sm:$0xf]
      %v9281 = vld [vmem:[%s9266 + $0x38] sm:$0xf]
      %v9282 = vld [vmem:[%s9266 + $0x3c] sm:$0xf]
      %v9284 = vunpack.c.l.b16 %v9265
      %v9285 = vpack.c.b16 %v8783, %v9284
      %v9286 = vrot.slane %v9285, 1
      %v9287 = vrot.slane %v8820, 1
      %v9288 = vsel %vm3797, %v9286, %v9287
      %v9289 = vrot.slane %v8821, 1
      %v9290 = vsel %vm3797, %v9287, %v9289
      %v9291 = vrot.slane %v8822, 1
      %v9292 = vsel %vm3797, %v9289, %v9291
      %v9293 = vrot.slane %v8823, 1
      %v9294 = vsel %vm3797, %v9291, %v9293
      %v9295 = vrot.slane %v8824, 1
      %v9296 = vsel %vm3797, %v9293, %v9295
      %v9297 = vrot.slane %v8825, 1
      %v9298 = vsel %vm3797, %v9295, %v9297
      %v9299 = vrot.slane %v8826, 1
      %v9300 = vsel %vm3797, %v9297, %v9299
      %v9301 = vrot.slane %v8827, 1
      %v9302 = vsel %vm3797, %v9299, %v9301
      %v9303 = vrot.slane %v8828, 1
      %v9304 = vsel %vm3797, %v9301, %v9303
      %v9305 = vrot.slane %v8829, 1
      %v9306 = vsel %vm3797, %v9303, %v9305
      %v9307 = vrot.slane %v8830, 1
      %v9308 = vsel %vm3797, %v9305, %v9307
      %v9309 = vrot.slane %v8831, 1
      %v9310 = vsel %vm3797, %v9307, %v9309
      %v9311 = vrot.slane %v8832, 1
      %v9312 = vsel %vm3797, %v9309, %v9311
      %v9313 = vrot.slane %v8833, 1
      %v9314 = vsel %vm3797, %v9311, %v9313
      %v9315 = vrot.slane %v8834, 1
      %v9316 = vsel %vm3797, %v9313, %v9315
      %v9317 = vrot.slane %v8835, 1
      %v9318 = vsel %vm3797, %v9315, %v9317
      %v9319 = vrot.slane %v8836, 1
      %v9320 = vsel %vm3797, %v9317, %v9319
      %v9321 = vrot.slane %v8837, 1
      %v9322 = vsel %vm3797, %v9319, %v9321
      %v9357 = vunpack.c.l.b16 %v9267
      %v9358 = vunpack.c.l.b16 %v9268
      %v9359 = vunpack.c.l.b16 %v9269
      %v9360 = vunpack.c.l.b16 %v9270
      %v9361 = vunpack.c.l.b16 %v9271
      %v9362 = vunpack.c.l.b16 %v9272
      %v9363 = vunpack.c.l.b16 %v9273
      %v9364 = vunpack.c.l.b16 %v9274
      %v9365 = vunpack.c.l.b16 %v9275
      %v9366 = vunpack.c.l.b16 %v9276
      %v9367 = vunpack.c.l.b16 %v9277
      %v9368 = vunpack.c.l.b16 %v9278
      %v9369 = vunpack.c.l.b16 %v9279
      %v9370 = vunpack.c.l.b16 %v9280
      %v9371 = vunpack.c.l.b16 %v9281
      %v9372 = vunpack.c.l.b16 %v9282
      %v9373 = vpack.c.b16 %v9358, %v9357
      %v9374 = vpack.c.b16 %v9360, %v9359
      %v9375 = vpack.c.b16 %v9362, %v9361
      %v9376 = vpack.c.b16 %v9364, %v9363
      %v9377 = vpack.c.b16 %v9366, %v9365
      %v9378 = vpack.c.b16 %v9368, %v9367
      %v9379 = vpack.c.b16 %v9370, %v9369
      %v9380 = vpack.c.b16 %v9372, %v9371
      %9389 = vmatprep.subr.bf16.mxu0 0
      %9390 = vmatpush1.bf16.msra.mxu0 %v9380
      %9391 = vmatprep.subr.bf16.mxu0 0
      %9392 = vmatpush1.bf16.msra.mxu0 %v9379
      %9393 = vmatprep.subr.bf16.mxu0 0
      %9394 = vmatpush1.bf16.msra.mxu0 %v9378
      %9395 = vmatprep.subr.bf16.mxu0 0
      %9396 = vmatpush1.bf16.msra.mxu0 %v9377
      %9397 = vmatprep.subr.bf16.mxu0 0
      %9398 = vmatpush1.bf16.msra.mxu0 %v9376
      %9399 = vmatprep.subr.bf16.mxu0 0
      %9400 = vmatpush1.bf16.msra.mxu0 %v9375
      %9401 = vmatprep.subr.bf16.mxu0 0
      %9402 = vmatpush1.bf16.msra.mxu0 %v9374
      %9403 = vmatprep.subr.bf16.mxu0 0
      %9404 = vmatpush1.bf16.msra.mxu0 %v9373
      %9405 = vmatprep.subr.bf16.mxu0 0
      %9406 = vmatpush2.bf16.msra.mxu0 0
      %9407 = vmatprep.subr.bf16.mxu0 0
      %9408 = vmatpush2.bf16.msra.mxu0 0
      %9409 = vmatprep.subr.bf16.mxu0 0
      %9410 = vmatpush2.bf16.msra.mxu0 0
      %9411 = vmatprep.subr.bf16.mxu0 0
      %9412 = vmatpush2.bf16.msra.mxu0 0
      %9413 = vmatprep.subr.bf16.mxu0 0
      %9414 = vmatpush2.bf16.msra.mxu0 0
      %9415 = vmatprep.subr.bf16.mxu0 0
      %9416 = vmatpush2.bf16.msra.mxu0 0
      %9417 = vmatprep.subr.bf16.mxu0 0
      %9418 = vmatpush2.bf16.msra.mxu0 0
      %9419 = vmatprep.subr.bf16.mxu0 0
      %9420 = vmatpush2.bf16.msra.mxu0 0
      %9421 = vmatprep.mubr.bf16.mxu0 0
      %9422 = vmatmul.mubr.bf16.gmra.mxu0 %v9288
      %v9423 = vpop.f32.mrf.mxu0
      %v9424 = vadd.f32 0.0, %v9423
      %v9425 = vpop.f32.mrf.mxu0
      %v9426 = vpop.f32.mrf.mxu0
      %v9427 = vadd.f32 0.0, %v9426
      %v9428 = vpop.f32.mrf.mxu0
      %9429 = vmatprep.mubr.bf16.mxu0 0
      %9430 = vmatmul.mubr.bf16.gmra.mxu0 %v9290
      %v9431 = vpop.f32.mrf.mxu0
      %v9432 = vadd.f32 0.0, %v9431
      %v9433 = vpop.f32.mrf.mxu0
      %v9434 = vpop.f32.mrf.mxu0
      %v9435 = vadd.f32 0.0, %v9434
      %v9436 = vpop.f32.mrf.mxu0
      %9437 = vmatprep.mubr.bf16.mxu0 0
      %9438 = vmatmul.mubr.bf16.gmra.mxu0 %v9292
      %v9439 = vpop.f32.mrf.mxu0
      %v9440 = vadd.f32 0.0, %v9439
      %v9441 = vpop.f32.mrf.mxu0
      %v9442 = vpop.f32.mrf.mxu0
      %v9443 = vadd.f32 0.0, %v9442
      %v9444 = vpop.f32.mrf.mxu0
      %9445 = vmatprep.mubr.bf16.mxu0 0
      %9446 = vmatmul.mubr.bf16.gmra.mxu0 %v9294
      %v9447 = vpop.f32.mrf.mxu0
      %v9448 = vadd.f32 0.0, %v9447
      %v9449 = vpop.f32.mrf.mxu0
      %v9450 = vpop.f32.mrf.mxu0
      %v9451 = vadd.f32 0.0, %v9450
      %v9452 = vpop.f32.mrf.mxu0
      %9453 = vmatprep.mubr.bf16.mxu0 0
      %9454 = vmatmul.mubr.bf16.gmra.mxu0 %v9296
      %v9455 = vpop.f32.mrf.mxu0
      %v9456 = vadd.f32 0.0, %v9455
      %v9457 = vpop.f32.mrf.mxu0
      %v9458 = vpop.f32.mrf.mxu0
      %v9459 = vadd.f32 0.0, %v9458
      %v9460 = vpop.f32.mrf.mxu0
      %9461 = vmatprep.mubr.bf16.mxu0 0
      %9462 = vmatmul.mubr.bf16.gmra.mxu0 %v9298
      %v9463 = vpop.f32.mrf.mxu0
      %v9464 = vadd.f32 0.0, %v9463
      %v9465 = vpop.f32.mrf.mxu0
      %v9466 = vpop.f32.mrf.mxu0
      %v9467 = vadd.f32 0.0, %v9466
      %v9468 = vpop.f32.mrf.mxu0
      %9469 = vmatprep.mubr.bf16.mxu0 0
      %9470 = vmatmul.mubr.bf16.gmra.mxu0 %v9300
      %v9471 = vpop.f32.mrf.mxu0
      %v9472 = vadd.f32 0.0, %v9471
      %v9473 = vpop.f32.mrf.mxu0
      %v9474 = vpop.f32.mrf.mxu0
      %v9475 = vadd.f32 0.0, %v9474
      %v9476 = vpop.f32.mrf.mxu0
      %9477 = vmatprep.mubr.bf16.mxu0 0
      %9478 = vmatmul.mubr.bf16.gmra.mxu0 %v9302
      %v9479 = vpop.f32.mrf.mxu0
      %v9480 = vadd.f32 0.0, %v9479
      %v9481 = vpop.f32.mrf.mxu0
      %v9482 = vpop.f32.mrf.mxu0
      %v9483 = vadd.f32 0.0, %v9482
      %v9484 = vpop.f32.mrf.mxu0
      %9485 = vmatprep.mubr.bf16.mxu0 0
      %9486 = vmatmul.mubr.bf16.gmra.mxu0 %v9304
      %v9487 = vpop.f32.mrf.mxu0
      %v9488 = vadd.f32 0.0, %v9487
      %v9489 = vpop.f32.mrf.mxu0
      %v9490 = vpop.f32.mrf.mxu0
      %v9491 = vadd.f32 0.0, %v9490
      %v9492 = vpop.f32.mrf.mxu0
      %9493 = vmatprep.mubr.bf16.mxu0 0
      %9494 = vmatmul.mubr.bf16.gmra.mxu0 %v9306
      %v9495 = vpop.f32.mrf.mxu0
      %v9496 = vadd.f32 0.0, %v9495
      %v9497 = vpop.f32.mrf.mxu0
      %v9498 = vpop.f32.mrf.mxu0
      %v9499 = vadd.f32 0.0, %v9498
      %v9500 = vpop.f32.mrf.mxu0
      %9501 = vmatprep.mubr.bf16.mxu0 0
      %9502 = vmatmul.mubr.bf16.gmra.mxu0 %v9308
      %v9503 = vpop.f32.mrf.mxu0
      %v9504 = vadd.f32 0.0, %v9503
      %v9505 = vpop.f32.mrf.mxu0
      %v9506 = vpop.f32.mrf.mxu0
      %v9507 = vadd.f32 0.0, %v9506
      %v9508 = vpop.f32.mrf.mxu0
      %9509 = vmatprep.mubr.bf16.mxu0 0
      %9510 = vmatmul.mubr.bf16.gmra.mxu0 %v9310
      %v9511 = vpop.f32.mrf.mxu0
      %v9512 = vadd.f32 0.0, %v9511
      %v9513 = vpop.f32.mrf.mxu0
      %v9514 = vpop.f32.mrf.mxu0
      %v9515 = vadd.f32 0.0, %v9514
      %v9516 = vpop.f32.mrf.mxu0
      %9517 = vmatprep.mubr.bf16.mxu0 0
      %9518 = vmatmul.mubr.bf16.gmra.mxu0 %v9312
      %v9519 = vpop.f32.mrf.mxu0
      %v9520 = vadd.f32 0.0, %v9519
      %v9521 = vpop.f32.mrf.mxu0
      %v9522 = vpop.f32.mrf.mxu0
      %v9523 = vadd.f32 0.0, %v9522
      %v9524 = vpop.f32.mrf.mxu0
      %9525 = vmatprep.mubr.bf16.mxu0 0
      %9526 = vmatmul.mubr.bf16.gmra.mxu0 %v9314
      %v9527 = vpop.f32.mrf.mxu0
      %v9528 = vadd.f32 0.0, %v9527
      %v9529 = vpop.f32.mrf.mxu0
      %v9530 = vpop.f32.mrf.mxu0
      %v9531 = vadd.f32 0.0, %v9530
      %v9532 = vpop.f32.mrf.mxu0
      %9533 = vmatprep.mubr.bf16.mxu0 0
      %9534 = vmatmul.mubr.bf16.gmra.mxu0 %v9316
      %v9535 = vpop.f32.mrf.mxu0
      %v9536 = vadd.f32 0.0, %v9535
      %v9537 = vpop.f32.mrf.mxu0
      %v9538 = vpop.f32.mrf.mxu0
      %v9539 = vadd.f32 0.0, %v9538
      %v9540 = vpop.f32.mrf.mxu0
      %9541 = vmatprep.mubr.bf16.mxu0 0
      %9542 = vmatmul.mubr.bf16.gmra.mxu0 %v9318
      %v9543 = vpop.f32.mrf.mxu0
      %v9544 = vadd.f32 0.0, %v9543
      %v9545 = vpop.f32.mrf.mxu0
      %v9546 = vpop.f32.mrf.mxu0
      %v9547 = vadd.f32 0.0, %v9546
      %v9548 = vpop.f32.mrf.mxu0
      %9549 = vmatprep.mubr.bf16.mxu0 0
      %9550 = vmatmul.mubr.bf16.gmra.mxu0 %v9320
      %v9551 = vpop.f32.mrf.mxu0
      %v9552 = vadd.f32 0.0, %v9551
      %v9553 = vpop.f32.mrf.mxu0
      %v9554 = vpop.f32.mrf.mxu0
      %v9555 = vadd.f32 0.0, %v9554
      %v9556 = vpop.f32.mrf.mxu0
      %9557 = vmatprep.mubr.bf16.mxu0 0
      %9558 = vmatmul.mubr.bf16.gmra.mxu0 %v9322
      %v9559 = vpop.f32.mrf.mxu0
      %v9560 = vadd.f32 0.0, %v9559
      %v9561 = vpop.f32.mrf.mxu0
      %v9562 = vpop.f32.mrf.mxu0
      %v9563 = vadd.f32 0.0, %v9562
      %v9564 = vpop.f32.mrf.mxu0
      %9565 = vdwg.mxu0
      %v9566 = vadd.f32 %v9229, %v9424
      %v9567 = vadd.f32 %v9230, %v9427
      %v9568 = vadd.f32 %v9231, %v9432
      %v9569 = vadd.f32 %v9232, %v9435
      %v9570 = vadd.f32 %v9233, %v9440
      %v9571 = vadd.f32 %v9234, %v9443
      %v9572 = vadd.f32 %v9235, %v9448
      %v9573 = vadd.f32 %v9236, %v9451
      %v9574 = vadd.f32 %v9237, %v9456
      %v9575 = vadd.f32 %v9238, %v9459
      %v9576 = vadd.f32 %v9239, %v9464
      %v9577 = vadd.f32 %v9240, %v9467
      %v9578 = vadd.f32 %v9241, %v9472
      %v9579 = vadd.f32 %v9242, %v9475
      %v9580 = vadd.f32 %v9243, %v9480
      %v9581 = vadd.f32 %v9244, %v9483
      %v9582 = vadd.f32 %v9245, %v9488
      %v9583 = vadd.f32 %v9246, %v9491
      %v9584 = vadd.f32 %v9247, %v9496
      %v9585 = vadd.f32 %v9248, %v9499
      %v9586 = vadd.f32 %v9249, %v9504
      %v9587 = vadd.f32 %v9250, %v9507
      %v9588 = vadd.f32 %v9251, %v9512
      %v9589 = vadd.f32 %v9252, %v9515
      %v9590 = vadd.f32 %v9253, %v9520
      %v9591 = vadd.f32 %v9254, %v9523
      %v9592 = vadd.f32 %v9255, %v9528
      %v9593 = vadd.f32 %v9256, %v9531
      %v9594 = vadd.f32 %v9257, %v9536
      %v9595 = vadd.f32 %v9258, %v9539
      %v9596 = vadd.f32 %v9259, %v9544
      %v9597 = vadd.f32 %v9260, %v9547
      %v9598 = vadd.f32 %v9261, %v9552
      %v9599 = vadd.f32 %v9262, %v9555
      %v9600 = vadd.f32 %v9263, %v9560
      %v9601 = vadd.f32 %v9264, %v9563
      %v9602 = vld [vmem:[#allocation2 + $0xa8] sm:$0x3]
      %s9603 = scalar_lea.vmem %s2, 512
      %v9604 = vld [vmem:[%s9603] sm:$0xf]
      %v9605 = vld [vmem:[%s9603 + $0x4] sm:$0xf]
      %v9606 = vld [vmem:[%s9603 + $0x8] sm:$0xf]
      %v9607 = vld [vmem:[%s9603 + $0xc] sm:$0xf]
      %v9608 = vld [vmem:[%s9603 + $0x10] sm:$0xf]
      %v9609 = vld [vmem:[%s9603 + $0x14] sm:$0xf]
      %v9610 = vld [vmem:[%s9603 + $0x18] sm:$0xf]
      %v9611 = vld [vmem:[%s9603 + $0x1c] sm:$0xf]
      %v9612 = vld [vmem:[%s9603 + $0x20] sm:$0xf]
      %v9613 = vld [vmem:[%s9603 + $0x24] sm:$0xf]
      %v9614 = vld [vmem:[%s9603 + $0x28] sm:$0xf]
      %v9615 = vld [vmem:[%s9603 + $0x2c] sm:$0xf]
      %v9616 = vld [vmem:[%s9603 + $0x30] sm:$0xf]
      %v9617 = vld [vmem:[%s9603 + $0x34] sm:$0xf]
      %v9618 = vld [vmem:[%s9603 + $0x38] sm:$0xf]
      %v9619 = vld [vmem:[%s9603 + $0x3c] sm:$0xf]
      %v9621 = vunpack.c.l.b16 %v9602
      %v9622 = vpack.c.b16 %v9621, %v9621
      %v9624 = vshrl.u32 %v9285, 16
      %v9626 = vrot.slane %v9624, 1
      %v9627 = vshll.u32 %v9285, 16
      %v9629 = vrot.slane %v9627, 2
      %v9630 = vor.u32 %v9626, %v9629
      %v9631 = vrot.slane %v8850, 1
      %v9632 = vrot.slane %v8846, 2
      %v9633 = vor.u32 %v9631, %v9632
      %v9634 = vsel %vm4135, %v9630, %v9633
      %v9635 = vrot.slane %v8858, 1
      %v9636 = vrot.slane %v8854, 2
      %v9637 = vor.u32 %v9635, %v9636
      %v9638 = vsel %vm4135, %v9633, %v9637
      %v9639 = vrot.slane %v8866, 1
      %v9640 = vrot.slane %v8862, 2
      %v9641 = vor.u32 %v9639, %v9640
      %v9642 = vsel %vm4135, %v9637, %v9641
      %v9643 = vrot.slane %v8874, 1
      %v9644 = vrot.slane %v8870, 2
      %v9645 = vor.u32 %v9643, %v9644
      %v9646 = vsel %vm4135, %v9641, %v9645
      %v9647 = vrot.slane %v8882, 1
      %v9648 = vrot.slane %v8878, 2
      %v9649 = vor.u32 %v9647, %v9648
      %v9650 = vsel %vm4135, %v9645, %v9649
      %v9651 = vrot.slane %v8890, 1
      %v9652 = vrot.slane %v8886, 2
      %v9653 = vor.u32 %v9651, %v9652
      %v9654 = vsel %vm4135, %v9649, %v9653
      %v9655 = vrot.slane %v8898, 1
      %v9656 = vrot.slane %v8894, 2
      %v9657 = vor.u32 %v9655, %v9656
      %v9658 = vsel %vm4135, %v9653, %v9657
      %v9659 = vrot.slane %v8906, 1
      %v9660 = vrot.slane %v8902, 2
      %v9661 = vor.u32 %v9659, %v9660
      %v9662 = vsel %vm4135, %v9657, %v9661
      %v9663 = vrot.slane %v8914, 1
      %v9664 = vrot.slane %v8910, 2
      %v9665 = vor.u32 %v9663, %v9664
      %v9666 = vsel %vm4135, %v9661, %v9665
      %v9667 = vrot.slane %v8922, 1
      %v9668 = vrot.slane %v8918, 2
      %v9669 = vor.u32 %v9667, %v9668
      %v9670 = vsel %vm4135, %v9665, %v9669
      %v9671 = vrot.slane %v8930, 1
      %v9672 = vrot.slane %v8926, 2
      %v9673 = vor.u32 %v9671, %v9672
      %v9674 = vsel %vm4135, %v9669, %v9673
      %v9675 = vrot.slane %v8938, 1
      %v9676 = vrot.slane %v8934, 2
      %v9677 = vor.u32 %v9675, %v9676
      %v9678 = vsel %vm4135, %v9673, %v9677
      %v9679 = vrot.slane %v8946, 1
      %v9680 = vrot.slane %v8942, 2
      %v9681 = vor.u32 %v9679, %v9680
      %v9682 = vsel %vm4135, %v9677, %v9681
      %v9683 = vrot.slane %v8954, 1
      %v9684 = vrot.slane %v8950, 2
      %v9685 = vor.u32 %v9683, %v9684
      %v9686 = vsel %vm4135, %v9681, %v9685
      %v9687 = vrot.slane %v8962, 1
      %v9688 = vrot.slane %v8958, 2
      %v9689 = vor.u32 %v9687, %v9688
      %v9690 = vsel %vm4135, %v9685, %v9689
      %v9691 = vrot.slane %v8970, 1
      %v9692 = vrot.slane %v8966, 2
      %v9693 = vor.u32 %v9691, %v9692
      %v9694 = vsel %vm4135, %v9689, %v9693
      %v9695 = vrot.slane %v8978, 1
      %v9696 = vrot.slane %v8974, 2
      %v9697 = vor.u32 %v9695, %v9696
      %v9698 = vsel %vm4135, %v9693, %v9697
      %v9700 = vshrl.u32 %v9622, 16
      %v9702 = vrot.slane %v9700, 1
      %v9703 = vshll.u32 %v9622, 16
      %v9705 = vrot.slane %v9703, 2
      %v9706 = vor.u32 %v9702, %v9705
      %v9707 = vsel %vm4135, %v9697, %v9706
      %v9742 = vunpack.c.l.b16 %v9604
      %v9743 = vunpack.c.l.b16 %v9605
      %v9744 = vunpack.c.l.b16 %v9606
      %v9745 = vunpack.c.l.b16 %v9607
      %v9746 = vunpack.c.l.b16 %v9608
      %v9747 = vunpack.c.l.b16 %v9609
      %v9748 = vunpack.c.l.b16 %v9610
      %v9749 = vunpack.c.l.b16 %v9611
      %v9750 = vunpack.c.l.b16 %v9612
      %v9751 = vunpack.c.l.b16 %v9613
      %v9752 = vunpack.c.l.b16 %v9614
      %v9753 = vunpack.c.l.b16 %v9615
      %v9754 = vunpack.c.l.b16 %v9616
      %v9755 = vunpack.c.l.b16 %v9617
      %v9756 = vunpack.c.l.b16 %v9618
      %v9757 = vunpack.c.l.b16 %v9619
      %v9758 = vpack.c.b16 %v9743, %v9742
      %v9759 = vpack.c.b16 %v9745, %v9744
      %v9760 = vpack.c.b16 %v9747, %v9746
      %v9761 = vpack.c.b16 %v9749, %v9748
      %v9762 = vpack.c.b16 %v9751, %v9750
      %v9763 = vpack.c.b16 %v9753, %v9752
      %v9764 = vpack.c.b16 %v9755, %v9754
      %v9765 = vpack.c.b16 %v9757, %v9756
      %9774 = vmatprep.subr.bf16.mxu0 0
      %9775 = vmatpush1.bf16.msra.mxu0 %v9765
      %9776 = vmatprep.subr.bf16.mxu0 0
      %9777 = vmatpush1.bf16.msra.mxu0 %v9764
      %9778 = vmatprep.subr.bf16.mxu0 0
      %9779 = vmatpush1.bf16.msra.mxu0 %v9763
      %9780 = vmatprep.subr.bf16.mxu0 0
      %9781 = vmatpush1.bf16.msra.mxu0 %v9762
      %9782 = vmatprep.subr.bf16.mxu0 0
      %9783 = vmatpush1.bf16.msra.mxu0 %v9761
      %9784 = vmatprep.subr.bf16.mxu0 0
      %9785 = vmatpush1.bf16.msra.mxu0 %v9760
      %9786 = vmatprep.subr.bf16.mxu0 0
      %9787 = vmatpush1.bf16.msra.mxu0 %v9759
      %9788 = vmatprep.subr.bf16.mxu0 0
      %9789 = vmatpush1.bf16.msra.mxu0 %v9758
      %9790 = vmatprep.subr.bf16.mxu0 0
      %9791 = vmatpush2.bf16.msra.mxu0 0
      %9792 = vmatprep.subr.bf16.mxu0 0
      %9793 = vmatpush2.bf16.msra.mxu0 0
      %9794 = vmatprep.subr.bf16.mxu0 0
      %9795 = vmatpush2.bf16.msra.mxu0 0
      %9796 = vmatprep.subr.bf16.mxu0 0
      %9797 = vmatpush2.bf16.msra.mxu0 0
      %9798 = vmatprep.subr.bf16.mxu0 0
      %9799 = vmatpush2.bf16.msra.mxu0 0
      %9800 = vmatprep.subr.bf16.mxu0 0
      %9801 = vmatpush2.bf16.msra.mxu0 0
      %9802 = vmatprep.subr.bf16.mxu0 0
      %9803 = vmatpush2.bf16.msra.mxu0 0
      %9804 = vmatprep.subr.bf16.mxu0 0
      %9805 = vmatpush2.bf16.msra.mxu0 0
      %9806 = vmatprep.mubr.bf16.mxu0 0
      %9807 = vmatmul.mubr.bf16.gmra.mxu0 %v9634
      %v9808 = vpop.f32.mrf.mxu0
      %v9809 = vadd.f32 0.0, %v9808
      %v9810 = vpop.f32.mrf.mxu0
      %v9811 = vpop.f32.mrf.mxu0
      %v9812 = vadd.f32 0.0, %v9811
      %v9813 = vpop.f32.mrf.mxu0
      %9814 = vmatprep.mubr.bf16.mxu0 0
      %9815 = vmatmul.mubr.bf16.gmra.mxu0 %v9638
      %v9816 = vpop.f32.mrf.mxu0
      %v9817 = vadd.f32 0.0, %v9816
      %v9818 = vpop.f32.mrf.mxu0
      %v9819 = vpop.f32.mrf.mxu0
      %v9820 = vadd.f32 0.0, %v9819
      %v9821 = vpop.f32.mrf.mxu0
      %9822 = vmatprep.mubr.bf16.mxu0 0
      %9823 = vmatmul.mubr.bf16.gmra.mxu0 %v9642
      %v9824 = vpop.f32.mrf.mxu0
      %v9825 = vadd.f32 0.0, %v9824
      %v9826 = vpop.f32.mrf.mxu0
      %v9827 = vpop.f32.mrf.mxu0
      %v9828 = vadd.f32 0.0, %v9827
      %v9829 = vpop.f32.mrf.mxu0
      %9830 = vmatprep.mubr.bf16.mxu0 0
      %9831 = vmatmul.mubr.bf16.gmra.mxu0 %v9646
      %v9832 = vpop.f32.mrf.mxu0
      %v9833 = vadd.f32 0.0, %v9832
      %v9834 = vpop.f32.mrf.mxu0
      %v9835 = vpop.f32.mrf.mxu0
      %v9836 = vadd.f32 0.0, %v9835
      %v9837 = vpop.f32.mrf.mxu0
      %9838 = vmatprep.mubr.bf16.mxu0 0
      %9839 = vmatmul.mubr.bf16.gmra.mxu0 %v9650
      %v9840 = vpop.f32.mrf.mxu0
      %v9841 = vadd.f32 0.0, %v9840
      %v9842 = vpop.f32.mrf.mxu0
      %v9843 = vpop.f32.mrf.mxu0
      %v9844 = vadd.f32 0.0, %v9843
      %v9845 = vpop.f32.mrf.mxu0
      %9846 = vmatprep.mubr.bf16.mxu0 0
      %9847 = vmatmul.mubr.bf16.gmra.mxu0 %v9654
      %v9848 = vpop.f32.mrf.mxu0
      %v9849 = vadd.f32 0.0, %v9848
      %v9850 = vpop.f32.mrf.mxu0
      %v9851 = vpop.f32.mrf.mxu0
      %v9852 = vadd.f32 0.0, %v9851
      %v9853 = vpop.f32.mrf.mxu0
      %9854 = vmatprep.mubr.bf16.mxu0 0
      %9855 = vmatmul.mubr.bf16.gmra.mxu0 %v9658
      %v9856 = vpop.f32.mrf.mxu0
      %v9857 = vadd.f32 0.0, %v9856
      %v9858 = vpop.f32.mrf.mxu0
      %v9859 = vpop.f32.mrf.mxu0
      %v9860 = vadd.f32 0.0, %v9859
      %v9861 = vpop.f32.mrf.mxu0
      %9862 = vmatprep.mubr.bf16.mxu0 0
      %9863 = vmatmul.mubr.bf16.gmra.mxu0 %v9662
      %v9864 = vpop.f32.mrf.mxu0
      %v9865 = vadd.f32 0.0, %v9864
      %v9866 = vpop.f32.mrf.mxu0
      %v9867 = vpop.f32.mrf.mxu0
      %v9868 = vadd.f32 0.0, %v9867
      %v9869 = vpop.f32.mrf.mxu0
      %9870 = vmatprep.mubr.bf16.mxu0 0
      %9871 = vmatmul.mubr.bf16.gmra.mxu0 %v9666
      %v9872 = vpop.f32.mrf.mxu0
      %v9873 = vadd.f32 0.0, %v9872
      %v9874 = vpop.f32.mrf.mxu0
      %v9875 = vpop.f32.mrf.mxu0
      %v9876 = vadd.f32 0.0, %v9875
      %v9877 = vpop.f32.mrf.mxu0
      %9878 = vmatprep.mubr.bf16.mxu0 0
      %9879 = vmatmul.mubr.bf16.gmra.mxu0 %v9670
      %v9880 = vpop.f32.mrf.mxu0
      %v9881 = vadd.f32 0.0, %v9880
      %v9882 = vpop.f32.mrf.mxu0
      %v9883 = vpop.f32.mrf.mxu0
      %v9884 = vadd.f32 0.0, %v9883
      %v9885 = vpop.f32.mrf.mxu0
      %9886 = vmatprep.mubr.bf16.mxu0 0
      %9887 = vmatmul.mubr.bf16.gmra.mxu0 %v9674
      %v9888 = vpop.f32.mrf.mxu0
      %v9889 = vadd.f32 0.0, %v9888
      %v9890 = vpop.f32.mrf.mxu0
      %v9891 = vpop.f32.mrf.mxu0
      %v9892 = vadd.f32 0.0, %v9891
      %v9893 = vpop.f32.mrf.mxu0
      %9894 = vmatprep.mubr.bf16.mxu0 0
      %9895 = vmatmul.mubr.bf16.gmra.mxu0 %v9678
      %v9896 = vpop.f32.mrf.mxu0
      %v9897 = vadd.f32 0.0, %v9896
      %v9898 = vpop.f32.mrf.mxu0
      %v9899 = vpop.f32.mrf.mxu0
      %v9900 = vadd.f32 0.0, %v9899
      %v9901 = vpop.f32.mrf.mxu0
      %9902 = vmatprep.mubr.bf16.mxu0 0
      %9903 = vmatmul.mubr.bf16.gmra.mxu0 %v9682
      %v9904 = vpop.f32.mrf.mxu0
      %v9905 = vadd.f32 0.0, %v9904
      %v9906 = vpop.f32.mrf.mxu0
      %v9907 = vpop.f32.mrf.mxu0
      %v9908 = vadd.f32 0.0, %v9907
      %v9909 = vpop.f32.mrf.mxu0
      %9910 = vmatprep.mubr.bf16.mxu0 0
      %9911 = vmatmul.mubr.bf16.gmra.mxu0 %v9686
      %v9912 = vpop.f32.mrf.mxu0
      %v9913 = vadd.f32 0.0, %v9912
      %v9914 = vpop.f32.mrf.mxu0
      %v9915 = vpop.f32.mrf.mxu0
      %v9916 = vadd.f32 0.0, %v9915
      %v9917 = vpop.f32.mrf.mxu0
      %9918 = vmatprep.mubr.bf16.mxu0 0
      %9919 = vmatmul.mubr.bf16.gmra.mxu0 %v9690
      %v9920 = vpop.f32.mrf.mxu0
      %v9921 = vadd.f32 0.0, %v9920
      %v9922 = vpop.f32.mrf.mxu0
      %v9923 = vpop.f32.mrf.mxu0
      %v9924 = vadd.f32 0.0, %v9923
      %v9925 = vpop.f32.mrf.mxu0
      %9926 = vmatprep.mubr.bf16.mxu0 0
      %9927 = vmatmul.mubr.bf16.gmra.mxu0 %v9694
      %v9928 = vpop.f32.mrf.mxu0
      %v9929 = vadd.f32 0.0, %v9928
      %v9930 = vpop.f32.mrf.mxu0
      %v9931 = vpop.f32.mrf.mxu0
      %v9932 = vadd.f32 0.0, %v9931
      %v9933 = vpop.f32.mrf.mxu0
      %9934 = vmatprep.mubr.bf16.mxu0 0
      %9935 = vmatmul.mubr.bf16.gmra.mxu0 %v9698
      %v9936 = vpop.f32.mrf.mxu0
      %v9937 = vadd.f32 0.0, %v9936
      %v9938 = vpop.f32.mrf.mxu0
      %v9939 = vpop.f32.mrf.mxu0
      %v9940 = vadd.f32 0.0, %v9939
      %v9941 = vpop.f32.mrf.mxu0
      %9942 = vmatprep.mubr.bf16.mxu0 0
      %9943 = vmatmul.mubr.bf16.gmra.mxu0 %v9707
      %v9944 = vpop.f32.mrf.mxu0
      %v9945 = vadd.f32 0.0, %v9944
      %v9946 = vpop.f32.mrf.mxu0
      %v9947 = vpop.f32.mrf.mxu0
      %v9948 = vadd.f32 0.0, %v9947
      %v9949 = vpop.f32.mrf.mxu0
      %9950 = vdwg.mxu0
      %v9951 = vadd.f32 %v9566, %v9809
      %v9952 = vadd.f32 %v9567, %v9812
      %v9953 = vadd.f32 %v9568, %v9817
      %v9954 = vadd.f32 %v9569, %v9820
      %v9955 = vadd.f32 %v9570, %v9825
      %v9956 = vadd.f32 %v9571, %v9828
      %v9957 = vadd.f32 %v9572, %v9833
      %v9958 = vadd.f32 %v9573, %v9836
      %v9959 = vadd.f32 %v9574, %v9841
      %v9960 = vadd.f32 %v9575, %v9844
      %v9961 = vadd.f32 %v9576, %v9849
      %v9962 = vadd.f32 %v9577, %v9852
      %v9963 = vadd.f32 %v9578, %v9857
      %v9964 = vadd.f32 %v9579, %v9860
      %v9965 = vadd.f32 %v9580, %v9865
      %v9966 = vadd.f32 %v9581, %v9868
      %v9967 = vadd.f32 %v9582, %v9873
      %v9968 = vadd.f32 %v9583, %v9876
      %v9969 = vadd.f32 %v9584, %v9881
      %v9970 = vadd.f32 %v9585, %v9884
      %v9971 = vadd.f32 %v9586, %v9889
      %v9972 = vadd.f32 %v9587, %v9892
      %v9973 = vadd.f32 %v9588, %v9897
      %v9974 = vadd.f32 %v9589, %v9900
      %v9975 = vadd.f32 %v9590, %v9905
      %v9976 = vadd.f32 %v9591, %v9908
      %v9977 = vadd.f32 %v9592, %v9913
      %v9978 = vadd.f32 %v9593, %v9916
      %v9979 = vadd.f32 %v9594, %v9921
      %v9980 = vadd.f32 %v9595, %v9924
      %v9981 = vadd.f32 %v9596, %v9929
      %v9982 = vadd.f32 %v9597, %v9932
      %v9983 = vadd.f32 %v9598, %v9937
      %v9984 = vadd.f32 %v9599, %v9940
      %v9985 = vadd.f32 %v9600, %v9945
      %v9986 = vadd.f32 %v9601, %v9948
      %v9987 = vld [vmem:[%s5] sm:$0x1]
      %v9989 = vlaneseq
      %v9990 = vshrl.u32 %v9989, 7
      %v9991 = vsub.s32 0, %v9990
      %v9992 = vrot.slane %v9987, %v9991
      %v9994 = vmul.f32 %v9951, %v9992
      %v9995 = vmul.f32 %v9952, %v9992
      %v9996 = vmul.f32 %v9953, %v9992
      %v9997 = vmul.f32 %v9954, %v9992
      %v9998 = vmul.f32 %v9955, %v9992
      %v9999 = vmul.f32 %v9956, %v9992
      %v10000 = vmul.f32 %v9957, %v9992
      %v10001 = vmul.f32 %v9958, %v9992
      %v10002 = vmul.f32 %v9959, %v9992
      %v10003 = vmul.f32 %v9960, %v9992
      %v10004 = vmul.f32 %v9961, %v9992
      %v10005 = vmul.f32 %v9962, %v9992
      %v10006 = vmul.f32 %v9963, %v9992
      %v10007 = vmul.f32 %v9964, %v9992
      %v10008 = vmul.f32 %v9965, %v9992
      %v10009 = vmul.f32 %v9966, %v9992
      %v10010 = vmul.f32 %v9967, %v9992
      %v10011 = vmul.f32 %v9968, %v9992
      %v10012 = vmul.f32 %v9969, %v9992
      %v10013 = vmul.f32 %v9970, %v9992
      %v10014 = vmul.f32 %v9971, %v9992
      %v10015 = vmul.f32 %v9972, %v9992
      %v10016 = vmul.f32 %v9973, %v9992
      %v10017 = vmul.f32 %v9974, %v9992
      %v10018 = vmul.f32 %v9975, %v9992
      %v10019 = vmul.f32 %v9976, %v9992
      %v10020 = vmul.f32 %v9977, %v9992
      %v10021 = vmul.f32 %v9978, %v9992
      %v10022 = vmul.f32 %v9979, %v9992
      %v10023 = vmul.f32 %v9980, %v9992
      %v10024 = vmul.f32 %v9981, %v9992
      %v10025 = vmul.f32 %v9982, %v9992
      %v10026 = vmul.f32 %v9983, %v9992
      %v10027 = vmul.f32 %v9984, %v9992
      %v10028 = vmul.f32 %v9985, %v9992
      %v10029 = vmul.f32 %v9986, %v9992
      %v10030 = vld [vmem:[%s6] sm:$0x1]
      %v10032 = vlaneseq
      %v10033 = vshrl.u32 %v10032, 7
      %v10034 = vsub.s32 0, %v10033
      %v10035 = vrot.slane %v10030, %v10034
      %v10037 = vadd.f32 %v9994, %v10035
      %v10038 = vadd.f32 %v9995, %v10035
      %v10039 = vadd.f32 %v9996, %v10035
      %v10040 = vadd.f32 %v9997, %v10035
      %v10041 = vadd.f32 %v9998, %v10035
      %v10042 = vadd.f32 %v9999, %v10035
      %v10043 = vadd.f32 %v10000, %v10035
      %v10044 = vadd.f32 %v10001, %v10035
      %v10045 = vadd.f32 %v10002, %v10035
      %v10046 = vadd.f32 %v10003, %v10035
      %v10047 = vadd.f32 %v10004, %v10035
      %v10048 = vadd.f32 %v10005, %v10035
      %v10049 = vadd.f32 %v10006, %v10035
      %v10050 = vadd.f32 %v10007, %v10035
      %v10051 = vadd.f32 %v10008, %v10035
      %v10052 = vadd.f32 %v10009, %v10035
      %v10053 = vadd.f32 %v10010, %v10035
      %v10054 = vadd.f32 %v10011, %v10035
      %v10055 = vadd.f32 %v10012, %v10035
      %v10056 = vadd.f32 %v10013, %v10035
      %v10057 = vadd.f32 %v10014, %v10035
      %v10058 = vadd.f32 %v10015, %v10035
      %v10059 = vadd.f32 %v10016, %v10035
      %v10060 = vadd.f32 %v10017, %v10035
      %v10061 = vadd.f32 %v10018, %v10035
      %v10062 = vadd.f32 %v10019, %v10035
      %v10063 = vadd.f32 %v10020, %v10035
      %v10064 = vadd.f32 %v10021, %v10035
      %v10065 = vadd.f32 %v10022, %v10035
      %v10066 = vadd.f32 %v10023, %v10035
      %v10067 = vadd.f32 %v10024, %v10035
      %v10068 = vadd.f32 %v10025, %v10035
      %v10069 = vadd.f32 %v10026, %v10035
      %v10070 = vadd.f32 %v10027, %v10035
      %v10071 = vadd.f32 %v10028, %v10035
      %v10072 = vadd.f32 %v10029, %v10035
      %10073 = vst [vmem:[#allocation3] sm:$0xff] %v10037
      %10074 = vst [vmem:[#allocation3 + $0x8] sm:$0xff] %v10038
      %10075 = vst [vmem:[#allocation3 + $0x10] sm:$0xff] %v10039
      %10076 = vst [vmem:[#allocation3 + $0x18] sm:$0xff] %v10040
      %10077 = vst [vmem:[#allocation3 + $0x20] sm:$0xff] %v10041
      %10078 = vst [vmem:[#allocation3 + $0x28] sm:$0xff] %v10042
      %10079 = vst [vmem:[#allocation3 + $0x30] sm:$0xff] %v10043
      %10080 = vst [vmem:[#allocation3 + $0x38] sm:$0xff] %v10044
      %10081 = vst [vmem:[#allocation3 + $0x40] sm:$0xff] %v10045
      %10082 = vst [vmem:[#allocation3 + $0x48] sm:$0xff] %v10046
      %10083 = vst [vmem:[#allocation3 + $0x50] sm:$0xff] %v10047
      %10084 = vst [vmem:[#allocation3 + $0x58] sm:$0xff] %v10048
      %10085 = vst [vmem:[#allocation3 + $0x60] sm:$0xff] %v10049
      %10086 = vst [vmem:[#allocation3 + $0x68] sm:$0xff] %v10050
      %10087 = vst [vmem:[#allocation3 + $0x70] sm:$0xff] %v10051
      %10088 = vst [vmem:[#allocation3 + $0x78] sm:$0xff] %v10052
      %10089 = vst [vmem:[#allocation3 + $0x80] sm:$0xff] %v10053
      %10090 = vst [vmem:[#allocation3 + $0x88] sm:$0xff] %v10054
      %10091 = vst [vmem:[#allocation3 + $0x90] sm:$0xff] %v10055
      %10092 = vst [vmem:[#allocation3 + $0x98] sm:$0xff] %v10056
      %10093 = vst [vmem:[#allocation3 + $0xa0] sm:$0xff] %v10057
      %10094 = vst [vmem:[#allocation3 + $0xa8] sm:$0xff] %v10058
      %10095 = vst [vmem:[#allocation3 + $0xb0] sm:$0xff] %v10059
      %10096 = vst [vmem:[#allocation3 + $0xb8] sm:$0xff] %v10060
      %10097 = vst [vmem:[#allocation3 + $0xc0] sm:$0xff] %v10061
      %10098 = vst [vmem:[#allocation3 + $0xc8] sm:$0xff] %v10062
      %10099 = vst [vmem:[#allocation3 + $0xd0] sm:$0xff] %v10063
      %10100 = vst [vmem:[#allocation3 + $0xd8] sm:$0xff] %v10064
      %10101 = vst [vmem:[#allocation3 + $0xe0] sm:$0xff] %v10065
      %10102 = vst [vmem:[#allocation3 + $0xe8] sm:$0xff] %v10066
      %10103 = vst [vmem:[#allocation3 + $0xf0] sm:$0xff] %v10067
      %10104 = vst [vmem:[#allocation3 + $0xf8] sm:$0xff] %v10068
      %10105 = vst [vmem:[#allocation3 + $0x100] sm:$0xff] %v10069
      %10106 = vst [vmem:[#allocation3 + $0x108] sm:$0xff] %v10070
      %10107 = vst [vmem:[#allocation3 + $0x110] sm:$0xff] %v10071
      %10108 = vst [vmem:[#allocation3 + $0x118] sm:$0xff] %v10072
      %v10109 = vld [vmem:[%s8] sm:$0xff]
      %v10110 = vld [vmem:[%s8 + $0x8] sm:$0xff]
      %v10111 = vld [vmem:[%s8 + $0x10] sm:$0xff]
      %v10112 = vld [vmem:[%s8 + $0x18] sm:$0xff]
      %v10113 = vld [vmem:[%s8 + $0x20] sm:$0xff]
      %v10114 = vld [vmem:[%s8 + $0x28] sm:$0xff]
      %v10115 = vld [vmem:[#allocation3] sm:$0xff]
      %v10116 = vld [vmem:[#allocation3 + $0x8] sm:$0xff]
      %v10117 = vld [vmem:[#allocation3 + $0x10] sm:$0xff]
      %v10118 = vld [vmem:[#allocation3 + $0x18] sm:$0xff]
      %v10119 = vld [vmem:[#allocation3 + $0x20] sm:$0xff]
      %v10120 = vld [vmem:[#allocation3 + $0x28] sm:$0xff]
      %v10121 = vld [vmem:[#allocation3 + $0x30] sm:$0xff]
      %v10122 = vld [vmem:[#allocation3 + $0x38] sm:$0xff]
      %v10123 = vld [vmem:[#allocation3 + $0x40] sm:$0xff]
      %v10124 = vld [vmem:[#allocation3 + $0x48] sm:$0xff]
      %v10125 = vld [vmem:[#allocation3 + $0x50] sm:$0xff]
      %v10126 = vld [vmem:[#allocation3 + $0x58] sm:$0xff]
      %v10127 = vld [vmem:[#allocation3 + $0x60] sm:$0xff]
      %v10128 = vld [vmem:[#allocation3 + $0x68] sm:$0xff]
      %v10129 = vld [vmem:[#allocation3 + $0x70] sm:$0xff]
      %v10130 = vld [vmem:[#allocation3 + $0x78] sm:$0xff]
      %v10131 = vld [vmem:[#allocation3 + $0x80] sm:$0xff]
      %v10132 = vld [vmem:[#allocation3 + $0x88] sm:$0xff]
      %v10133 = vld [vmem:[#allocation3 + $0x90] sm:$0xff]
      %v10134 = vld [vmem:[#allocation3 + $0x98] sm:$0xff]
      %v10135 = vld [vmem:[#allocation3 + $0xa0] sm:$0xff]
      %v10136 = vld [vmem:[#allocation3 + $0xa8] sm:$0xff]
      %v10137 = vld [vmem:[#allocation3 + $0xb0] sm:$0xff]
      %v10138 = vld [vmem:[#allocation3 + $0xb8] sm:$0xff]
      %v10139 = vld [vmem:[#allocation3 + $0xc0] sm:$0xff]
      %v10140 = vld [vmem:[#allocation3 + $0xc8] sm:$0xff]
      %v10141 = vld [vmem:[#allocation3 + $0xd0] sm:$0xff]
      %v10142 = vld [vmem:[#allocation3 + $0xd8] sm:$0xff]
      %v10143 = vld [vmem:[#allocation3 + $0xe0] sm:$0xff]
      %v10144 = vld [vmem:[#allocation3 + $0xe8] sm:$0xff]
      %v10145 = vld [vmem:[#allocation3 + $0xf0] sm:$0xff]
      %v10146 = vld [vmem:[#allocation3 + $0xf8] sm:$0xff]
      %v10147 = vld [vmem:[#allocation3 + $0x100] sm:$0xff]
      %v10148 = vld [vmem:[#allocation3 + $0x108] sm:$0xff]
      %v10149 = vld [vmem:[#allocation3 + $0x110] sm:$0xff]
      %v10150 = vld [vmem:[#allocation3 + $0x118] sm:$0xff]
      %vm10151 = vcmask 261120
      %v10153 = vsel %vm10151, %v10111, 0
      %v10156 = vsel %vm10151, %v10114, 0
      %10158 = vmatprep.subr.mxu0 0.0
      %10159 = vmatpush1.msra.mxu0 %v10130
      %10160 = vmatprep.subr.mxu0 0.0
      %10161 = vmatpush1.msra.mxu0 %v10129
      %10162 = vmatprep.subr.mxu0 0.0
      %10163 = vmatpush1.msra.mxu0 %v10128
      %10164 = vmatprep.subr.mxu0 0.0
      %10165 = vmatpush1.msra.mxu0 %v10127
      %10166 = vmatprep.subr.mxu0 0.0
      %10167 = vmatpush1.msra.mxu0 %v10126
      %10168 = vmatprep.subr.mxu0 0.0
      %10169 = vmatpush1.msra.mxu0 %v10125
      %10170 = vmatprep.subr.mxu0 0.0
      %10171 = vmatpush1.msra.mxu0 %v10124
      %10172 = vmatprep.subr.mxu0 0.0
      %10173 = vmatpush1.msra.mxu0 %v10123
      %10174 = vmatprep.subr.mxu0 0.0
      %10175 = vmatpush1.msra.mxu0 %v10122
      %10176 = vmatprep.subr.mxu0 0.0
      %10177 = vmatpush1.msra.mxu0 %v10121
      %10178 = vmatprep.subr.mxu0 0.0
      %10179 = vmatpush1.msra.mxu0 %v10120
      %10180 = vmatprep.subr.mxu0 0.0
      %10181 = vmatpush1.msra.mxu0 %v10119
      %10182 = vmatprep.subr.mxu0 0.0
      %10183 = vmatpush1.msra.mxu0 %v10118
      %10184 = vmatprep.subr.mxu0 0.0
      %10185 = vmatpush1.msra.mxu0 %v10117
      %10186 = vmatprep.subr.mxu0 0.0
      %10187 = vmatpush1.msra.mxu0 %v10116
      %10188 = vmatprep.subr.mxu0 0.0
      %10189 = vmatpush1.msra.mxu0 %v10115
      %10190 = vmatprep.subr.mxu0 0.0
      %10191 = vmatpush2.msra.mxu0 %v10146
      %10192 = vmatprep.subr.mxu0 0.0
      %10193 = vmatpush2.msra.mxu0 %v10145
      %10194 = vmatprep.subr.mxu0 0.0
      %10195 = vmatpush2.msra.mxu0 %v10144
      %10196 = vmatprep.subr.mxu0 0.0
      %10197 = vmatpush2.msra.mxu0 %v10143
      %10198 = vmatprep.subr.mxu0 0.0
      %10199 = vmatpush2.msra.mxu0 %v10142
      %10200 = vmatprep.subr.mxu0 0.0
      %10201 = vmatpush2.msra.mxu0 %v10141
      %10202 = vmatprep.subr.mxu0 0.0
      %10203 = vmatpush2.msra.mxu0 %v10140
      %10204 = vmatprep.subr.mxu0 0.0
      %10205 = vmatpush2.msra.mxu0 %v10139
      %10206 = vmatprep.subr.mxu0 0.0
      %10207 = vmatpush2.msra.mxu0 %v10138
      %10208 = vmatprep.subr.mxu0 0.0
      %10209 = vmatpush2.msra.mxu0 %v10137
      %10210 = vmatprep.subr.mxu0 0.0
      %10211 = vmatpush2.msra.mxu0 %v10136
      %10212 = vmatprep.subr.mxu0 0.0
      %10213 = vmatpush2.msra.mxu0 %v10135
      %10214 = vmatprep.subr.mxu0 0.0
      %10215 = vmatpush2.msra.mxu0 %v10134
      %10216 = vmatprep.subr.mxu0 0.0
      %10217 = vmatpush2.msra.mxu0 %v10133
      %10218 = vmatprep.subr.mxu0 0.0
      %10219 = vmatpush2.msra.mxu0 %v10132
      %10220 = vmatprep.subr.mxu0 0.0
      %10221 = vmatpush2.msra.mxu0 %v10131
      %10222 = vmatprep.mubr.f32.mxu0 %v10110
      %10223 = vmatmul.mubr.f32.gmra.mxu0 %v10109
      %v10224 = vpop.f32.mrf.mxu0
      %v10225 = vadd.f32 0.0, %v10224
      %v10226 = vpop.f32.mrf.mxu0
      %10227 = vmatprep.mubr.f32.mxu0 %v10113
      %10228 = vmatmul.mubr.f32.gmra.mxu0 %v10112
      %v10229 = vpop.f32.mrf.mxu0
      %v10230 = vadd.f32 0.0, %v10229
      %v10231 = vpop.f32.mrf.mxu0
      %10232 = vdwg.mxu0
      %10233 = vmatprep.subr.mxu0 0.0
      %10234 = vmatpush1.msra.mxu0 0.0
      %10235 = vmatprep.subr.mxu0 0.0
      %10236 = vmatpush1.msra.mxu0 0.0
      %10237 = vmatprep.subr.mxu0 0.0
      %10238 = vmatpush1.msra.mxu0 0.0
      %10239 = vmatprep.subr.mxu0 0.0
      %10240 = vmatpush1.msra.mxu0 0.0
      %10241 = vmatprep.subr.mxu0 0.0
      %10242 = vmatpush1.msra.mxu0 0.0
      %10243 = vmatprep.subr.mxu0 0.0
      %10244 = vmatpush1.msra.mxu0 0.0
      %10245 = vmatprep.subr.mxu0 0.0
      %10246 = vmatpush1.msra.mxu0 0.0
      %10247 = vmatprep.subr.mxu0 0.0
      %10248 = vmatpush1.msra.mxu0 0.0
      %10249 = vmatprep.subr.mxu0 0.0
      %10250 = vmatpush1.msra.mxu0 0.0
      %10251 = vmatprep.subr.mxu0 0.0
      %10252 = vmatpush1.msra.mxu0 0.0
      %10253 = vmatprep.subr.mxu0 0.0
      %10254 = vmatpush1.msra.mxu0 0.0
      %10255 = vmatprep.subr.mxu0 0.0
      %10256 = vmatpush1.msra.mxu0 0.0
      %10257 = vmatprep.subr.mxu0 0.0
      %10258 = vmatpush1.msra.mxu0 %v10150
      %10259 = vmatprep.subr.mxu0 0.0
      %10260 = vmatpush1.msra.mxu0 %v10149
      %10261 = vmatprep.subr.mxu0 0.0
      %10262 = vmatpush1.msra.mxu0 %v10148
      %10263 = vmatprep.subr.mxu0 0.0
      %10264 = vmatpush1.msra.mxu0 %v10147
      %10265 = vmatprep.subr.mxu0 0.0
      %10266 = vmatpush2.msra.mxu0 0.0
      %10267 = vmatprep.subr.mxu0 0.0
      %10268 = vmatpush2.msra.mxu0 0.0
      %10269 = vmatprep.subr.mxu0 0.0
      %10270 = vmatpush2.msra.mxu0 0.0
      %10271 = vmatprep.subr.mxu0 0.0
      %10272 = vmatpush2.msra.mxu0 0.0
      %10273 = vmatprep.subr.mxu0 0.0
      %10274 = vmatpush2.msra.mxu0 0.0
      %10275 = vmatprep.subr.mxu0 0.0
      %10276 = vmatpush2.msra.mxu0 0.0
      %10277 = vmatprep.subr.mxu0 0.0
      %10278 = vmatpush2.msra.mxu0 0.0
      %10279 = vmatprep.subr.mxu0 0.0
      %10280 = vmatpush2.msra.mxu0 0.0
      %10281 = vmatprep.subr.mxu0 0.0
      %10282 = vmatpush2.msra.mxu0 0.0
      %10283 = vmatprep.subr.mxu0 0.0
      %10284 = vmatpush2.msra.mxu0 0.0
      %10285 = vmatprep.subr.mxu0 0.0
      %10286 = vmatpush2.msra.mxu0 0.0
      %10287 = vmatprep.subr.mxu0 0.0
      %10288 = vmatpush2.msra.mxu0 0.0
      %10289 = vmatprep.subr.mxu0 0.0
      %10290 = vmatpush2.msra.mxu0 0.0
      %10291 = vmatprep.subr.mxu0 0.0
      %10292 = vmatpush2.msra.mxu0 0.0
      %10293 = vmatprep.subr.mxu0 0.0
      %10294 = vmatpush2.msra.mxu0 0.0
      %10295 = vmatprep.subr.mxu0 0.0
      %10296 = vmatpush2.msra.mxu0 0.0
      %10297 = vmatprep.mubr.f32.mxu0 0.0
      %10298 = vmatmul.mubr.f32.gmra.mxu0 %v10153
      %v10299 = vpop.f32.mrf.mxu0
      %v10300 = vadd.f32 %v10225, %v10299
      %v10301 = vpop.f32.mrf.mxu0
      %10302 = vmatprep.mubr.f32.mxu0 0.0
      %10303 = vmatmul.mubr.f32.gmra.mxu0 %v10156
      %v10304 = vpop.f32.mrf.mxu0
      %v10305 = vadd.f32 %v10230, %v10304
      %v10306 = vpop.f32.mrf.mxu0
      %10307 = vdwg.mxu0
      %10308 = vadd.xlane.f32.xlu0 %v10300
      %v10309 = vpop.xlane.xlu0 %10308
      %10310 = vadd.xlane.f32.xlu0 %v10305
      %v10311 = vpop.xlane.xlu0 %10310
      %v10312 = vmul.f32 %v10309, 0.015625
      %v10313 = vmul.f32 %v10311, 0.015625
      %v10314 = vld [vmem:[%s10] sm:$0xff]
      %v10315 = vld [vmem:[%s10 + $0x8] sm:$0xff]
      %v10316 = vmul.f32 %v10314, %v10312
      %v10317 = vmul.f32 %v10315, %v10313
      %vm10318 = vcmask 64512
      %v10319 = vsel %vm10318, %v10316, 0.0
      %v10320 = vsel %vm10318, %v10317, 0.0
      %v10321 = vadd.f32 %v10319, %v10320
      %v10322 = vrot.slane %v10321, 4
      %v10323 = vadd.f32 %v10321, %v10322
      %v10324 = vrot.slane %v10323, 2
      %v10325 = vadd.f32 %v10323, %v10324
      %v10326 = vrot.slane %v10325, 1
      %v10327 = vadd.f32 %v10325, %v10326
      %v10328 = vld [vmem:[%s11] sm:$0x1]
      %v10329 = vadd.f32 %v10327, %v10328
      %v10330 = vmul.f32 %v10329, 0.5
      %v10331 = vmul.f32 %v10329, 0.70710677
      %vm10332 = vcmp.ge.f32.partialorder %v10331, 0.0
      %v10333 = vsel %vm10332, 1.0, -1.0
      %v10334 = vand.u32 2147483647, %v10331
      %v10335 = vmul.f32 %v10334, 0.3275911
      %v10336 = vadd.f32 %v10335, 1.0
      %v10337 = vrcp.pop %v10336
      %v10338 = vmul.f32 %v10337, 1.0614054
      %v10339 = vadd.f32 %v10338, -1.4531521
      %v10340 = vmul.f32 %v10339, %v10337
      %v10341 = vadd.f32 %v10340, 1.4214138
      %v10342 = vmul.f32 %v10341, %v10337
      %v10343 = vadd.f32 %v10342, -0.28449672
      %v10344 = vmul.f32 %v10343, %v10337
      %v10345 = vadd.f32 %v10344, 0.2548296
      %v10346 = vmul.f32 %v10345, %v10337
      %v10347 = vsub.f32 0.0, %v10334
      %v10348 = vmul.f32 %v10347, %v10334
      %v10349 = vmul.f32 %v10348, 1.442695
      %v10350 = vpow.pop %v10349
      %v10351 = vmul.f32 %v10346, %v10350
      %v10352 = vsub.f32 1.0, %v10351
      %v10353 = vmul.f32 %v10333, %v10352
      %v10354 = vadd.f32 %v10353, 1.0
      %v10355 = vmul.f32 %v10330, %v10354
      %v10356 = vld [vmem:[%s12] sm:$0xff]
      %v10357 = vld [vmem:[%s12 + $0x8] sm:$0xff]
      %v10358 = vlaneseq
      %v10359 = vshrl.u32 %v10358, 7
      %v10360 = vsub.s32 0, %v10359
      %v10361 = vrot.slane %v10355, %v10360
      %v10362 = vmul.f32 %v10356, %v10361
      %v10363 = vmul.f32 %v10357, %v10361
      %v10364 = vsel %vm10318, %v10362, 0.0
      %10365 = vadd.xlane.f32.xlu0 %v10364
      %v10366 = vpop.xlane.xlu0 %10365
      %v10367 = vsel %vm10318, %v10363, 0.0
      %10368 = vadd.xlane.f32.xlu0 %v10367
      %v10369 = vpop.xlane.xlu0 %10368
      %v10370 = vld [vmem:[%s13] sm:$0xff]
      %v10371 = vld [vmem:[%s13 + $0x8] sm:$0xff]
      %v10372 = vadd.f32 %v10366, %v10370
      %v10373 = vadd.f32 %v10369, %v10371
      %v10374 = vsub.f32 0.0, %v10372
      %v10375 = vsub.f32 0.0, %v10373
      %v10376 = vmul.f32 %v10374, 1.442695
      %v10377 = vpow.pop %v10376
      %v10378 = vmul.f32 %v10375, 1.442695
      %v10379 = vpow.pop %v10378
      %v10380 = vadd.f32 %v10377, 1.0
      %v10381 = vadd.f32 %v10379, 1.0
      %v10382 = vrcp.pop %v10380
      %v10383 = vrcp.pop %v10381
      %v10384 = vld [vmem:[%s9] sm:$0xff]
      %v10385 = vld [vmem:[%s9 + $0x8] sm:$0xff]
      %v10386 = vld [vmem:[%s9 + $0x10] sm:$0xff]
      %v10387 = vld [vmem:[%s9 + $0x18] sm:$0xff]
      %v10388 = vld [vmem:[%s9 + $0x20] sm:$0xff]
      %v10389 = vld [vmem:[%s9 + $0x28] sm:$0xff]
      %v10390 = vld [vmem:[%s9 + $0x30] sm:$0xff]
      %v10391 = vld [vmem:[%s9 + $0x38] sm:$0xff]
      %v10392 = vld [vmem:[%s9 + $0x40] sm:$0xff]
      %v10393 = vld [vmem:[%s9 + $0x48] sm:$0xff]
      %v10394 = vld [vmem:[%s9 + $0x50] sm:$0xff]
      %v10395 = vld [vmem:[%s9 + $0x58] sm:$0xff]
      %v10396 = vld [vmem:[%s9 + $0x60] sm:$0xff]
      %v10397 = vld [vmem:[%s9 + $0x68] sm:$0xff]
      %v10398 = vld [vmem:[%s9 + $0x70] sm:$0xff]
      %v10399 = vld [vmem:[%s9 + $0x78] sm:$0xff]
      %v10400 = vld [vmem:[%s9 + $0x80] sm:$0xff]
      %v10401 = vld [vmem:[%s9 + $0x88] sm:$0xff]
      %v10402 = vld [vmem:[%s9 + $0x90] sm:$0xff]
      %v10403 = vld [vmem:[%s9 + $0x98] sm:$0xff]
      %v10404 = vld [vmem:[%s9 + $0xa0] sm:$0xff]
      %v10405 = vld [vmem:[%s9 + $0xa8] sm:$0xff]
      %v10406 = vld [vmem:[%s9 + $0xb0] sm:$0xff]
      %v10407 = vld [vmem:[%s9 + $0xb8] sm:$0xff]
      %v10408 = vld [vmem:[%s9 + $0xc0] sm:$0xff]
      %v10409 = vld [vmem:[%s9 + $0xc8] sm:$0xff]
      %v10410 = vld [vmem:[%s9 + $0xd0] sm:$0xff]
      %v10411 = vld [vmem:[%s9 + $0xd8] sm:$0xff]
      %v10412 = vld [vmem:[%s9 + $0xe0] sm:$0xff]
      %v10413 = vld [vmem:[%s9 + $0xe8] sm:$0xff]
      %v10414 = vld [vmem:[%s9 + $0xf0] sm:$0xff]
      %v10415 = vld [vmem:[%s9 + $0xf8] sm:$0xff]
      %v10416 = vld [vmem:[%s9 + $0x100] sm:$0xff]
      %v10417 = vld [vmem:[%s9 + $0x108] sm:$0xff]
      %v10418 = vld [vmem:[%s9 + $0x110] sm:$0xff]
      %v10419 = vld [vmem:[%s9 + $0x118] sm:$0xff]
      %10421 = vset.pattern.permute.xlu0 0
      %10422 = vperm.xlu0 %10421, %v10382
      %v10423 = vpop.permute.xlu0 %10422
      %10426 = vset.pattern.permute.xlu0 0
      %10427 = vperm.xlu0 %10426, %v10383
      %v10428 = vpop.permute.xlu0 %10427
      %vm10430 = vcmask 130048
      %v10432 = vsel %vm10430, %v10384, 0
      %v10435 = vsel %vm10430, %v10385, 0
      %v10438 = vsel %vm10430, %v10386, 0
      %v10441 = vsel %vm10430, %v10387, 0
      %v10444 = vsel %vm10430, %v10388, 0
      %v10447 = vsel %vm10430, %v10389, 0
      %v10450 = vsel %vm10430, %v10390, 0
      %v10453 = vsel %vm10430, %v10391, 0
      %v10456 = vsel %vm10430, %v10392, 0
      %v10459 = vsel %vm10430, %v10393, 0
      %v10462 = vsel %vm10430, %v10394, 0
      %v10465 = vsel %vm10430, %v10395, 0
      %v10468 = vsel %vm10430, %v10396, 0
      %v10471 = vsel %vm10430, %v10397, 0
      %v10474 = vsel %vm10430, %v10398, 0
      %v10477 = vsel %vm10430, %v10399, 0
      %v10480 = vsel %vm10430, %v10400, 0
      %v10483 = vsel %vm10430, %v10401, 0
      %v10486 = vsel %vm10430, %v10402, 0
      %v10489 = vsel %vm10430, %v10403, 0
      %v10492 = vsel %vm10430, %v10404, 0
      %v10495 = vsel %vm10430, %v10405, 0
      %v10498 = vsel %vm10430, %v10406, 0
      %v10501 = vsel %vm10430, %v10407, 0
      %v10504 = vsel %vm10430, %v10408, 0
      %v10507 = vsel %vm10430, %v10409, 0
      %v10510 = vsel %vm10430, %v10410, 0
      %v10513 = vsel %vm10430, %v10411, 0
      %v10516 = vsel %vm10430, %v10412, 0
      %v10519 = vsel %vm10430, %v10413, 0
      %v10522 = vsel %vm10430, %v10414, 0
      %v10525 = vsel %vm10430, %v10415, 0
      %v10528 = vsel %vm10430, %v10416, 0
      %v10531 = vsel %vm10430, %v10417, 0
      %v10534 = vsel %vm10430, %v10418, 0
      %v10537 = vsel %vm10430, %v10419, 0
      %10539 = vmatprep.subr.mxu0 0.0
      %10540 = vmatpush1.msra.mxu0 0.0
      %10541 = vmatprep.subr.mxu0 0.0
      %10542 = vmatpush1.msra.mxu0 0.0
      %10543 = vmatprep.subr.mxu0 0.0
      %10544 = vmatpush1.msra.mxu0 0.0
      %10545 = vmatprep.subr.mxu0 0.0
      %10546 = vmatpush1.msra.mxu0 0.0
      %10547 = vmatprep.subr.mxu0 0.0
      %10548 = vmatpush1.msra.mxu0 0.0
      %10549 = vmatprep.subr.mxu0 0.0
      %10550 = vmatpush1.msra.mxu0 0.0
      %10551 = vmatprep.subr.mxu0 0.0
      %10552 = vmatpush1.msra.mxu0 0.0
      %10553 = vmatprep.subr.mxu0 0.0
      %10554 = vmatpush1.msra.mxu0 0.0
      %10555 = vmatprep.subr.mxu0 0.0
      %10556 = vmatpush1.msra.mxu0 0.0
      %10557 = vmatprep.subr.mxu0 0.0
      %10558 = vmatpush1.msra.mxu0 0.0
      %10559 = vmatprep.subr.mxu0 0.0
      %10560 = vmatpush1.msra.mxu0 0.0
      %10561 = vmatprep.subr.mxu0 0.0
      %10562 = vmatpush1.msra.mxu0 0.0
      %10563 = vmatprep.subr.mxu0 0.0
      %10564 = vmatpush1.msra.mxu0 0.0
      %10565 = vmatprep.subr.mxu0 0.0
      %10566 = vmatpush1.msra.mxu0 0.0
      %10567 = vmatprep.subr.mxu0 0.0
      %10568 = vmatpush1.msra.mxu0 %v10428
      %10569 = vmatprep.subr.mxu0 0.0
      %10570 = vmatpush1.msra.mxu0 %v10423
      %10571 = vmatprep.subr.mxu0 0.0
      %10572 = vmatpush2.msra.mxu0 0.0
      %10573 = vmatprep.subr.mxu0 0.0
      %10574 = vmatpush2.msra.mxu0 0.0
      %10575 = vmatprep.subr.mxu0 0.0
      %10576 = vmatpush2.msra.mxu0 0.0
      %10577 = vmatprep.subr.mxu0 0.0
      %10578 = vmatpush2.msra.mxu0 0.0
      %10579 = vmatprep.subr.mxu0 0.0
      %10580 = vmatpush2.msra.mxu0 0.0
      %10581 = vmatprep.subr.mxu0 0.0
      %10582 = vmatpush2.msra.mxu0 0.0
      %10583 = vmatprep.subr.mxu0 0.0
      %10584 = vmatpush2.msra.mxu0 0.0
      %10585 = vmatprep.subr.mxu0 0.0
      %10586 = vmatpush2.msra.mxu0 0.0
      %10587 = vmatprep.subr.mxu0 0.0
      %10588 = vmatpush2.msra.mxu0 0.0
      %10589 = vmatprep.subr.mxu0 0.0
      %10590 = vmatpush2.msra.mxu0 0.0
      %10591 = vmatprep.subr.mxu0 0.0
      %10592 = vmatpush2.msra.mxu0 0.0
      %10593 = vmatprep.subr.mxu0 0.0
      %10594 = vmatpush2.msra.mxu0 0.0
      %10595 = vmatprep.subr.mxu0 0.0
      %10596 = vmatpush2.msra.mxu0 0.0
      %10597 = vmatprep.subr.mxu0 0.0
      %10598 = vmatpush2.msra.mxu0 0.0
      %10599 = vmatprep.subr.mxu0 0.0
      %10600 = vmatpush2.msra.mxu0 0.0
      %10601 = vmatprep.subr.mxu0 0.0
      %10602 = vmatpush2.msra.mxu0 0.0
      %10603 = vmatprep.mubr.f32.mxu0 0.0
      %10604 = vmatmul.mubr.f32.gmra.mxu0 %v10432
      %v10605 = vpop.f32.mrf.mxu0
      %v10606 = vadd.f32 0.0, %v10605
      %v10607 = vpop.f32.mrf.mxu0
      %10608 = vmatprep.mubr.f32.mxu0 0.0
      %10609 = vmatmul.mubr.f32.gmra.mxu0 %v10435
      %v10610 = vpop.f32.mrf.mxu0
      %v10611 = vadd.f32 0.0, %v10610
      %v10612 = vpop.f32.mrf.mxu0
      %10613 = vmatprep.mubr.f32.mxu0 0.0
      %10614 = vmatmul.mubr.f32.gmra.mxu0 %v10438
      %v10615 = vpop.f32.mrf.mxu0
      %v10616 = vadd.f32 0.0, %v10615
      %v10617 = vpop.f32.mrf.mxu0
      %10618 = vmatprep.mubr.f32.mxu0 0.0
      %10619 = vmatmul.mubr.f32.gmra.mxu0 %v10441
      %v10620 = vpop.f32.mrf.mxu0
      %v10621 = vadd.f32 0.0, %v10620
      %v10622 = vpop.f32.mrf.mxu0
      %10623 = vmatprep.mubr.f32.mxu0 0.0
      %10624 = vmatmul.mubr.f32.gmra.mxu0 %v10444
      %v10625 = vpop.f32.mrf.mxu0
      %v10626 = vadd.f32 0.0, %v10625
      %v10627 = vpop.f32.mrf.mxu0
      %10628 = vmatprep.mubr.f32.mxu0 0.0
      %10629 = vmatmul.mubr.f32.gmra.mxu0 %v10447
      %v10630 = vpop.f32.mrf.mxu0
      %v10631 = vadd.f32 0.0, %v10630
      %v10632 = vpop.f32.mrf.mxu0
      %10633 = vmatprep.mubr.f32.mxu0 0.0
      %10634 = vmatmul.mubr.f32.gmra.mxu0 %v10450
      %v10635 = vpop.f32.mrf.mxu0
      %v10636 = vadd.f32 0.0, %v10635
      %v10637 = vpop.f32.mrf.mxu0
      %10638 = vmatprep.mubr.f32.mxu0 0.0
      %10639 = vmatmul.mubr.f32.gmra.mxu0 %v10453
      %v10640 = vpop.f32.mrf.mxu0
      %v10641 = vadd.f32 0.0, %v10640
      %v10642 = vpop.f32.mrf.mxu0
      %10643 = vmatprep.mubr.f32.mxu0 0.0
      %10644 = vmatmul.mubr.f32.gmra.mxu0 %v10456
      %v10645 = vpop.f32.mrf.mxu0
      %v10646 = vadd.f32 0.0, %v10645
      %v10647 = vpop.f32.mrf.mxu0
      %10648 = vmatprep.mubr.f32.mxu0 0.0
      %10649 = vmatmul.mubr.f32.gmra.mxu0 %v10459
      %v10650 = vpop.f32.mrf.mxu0
      %v10651 = vadd.f32 0.0, %v10650
      %v10652 = vpop.f32.mrf.mxu0
      %10653 = vmatprep.mubr.f32.mxu0 0.0
      %10654 = vmatmul.mubr.f32.gmra.mxu0 %v10462
      %v10655 = vpop.f32.mrf.mxu0
      %v10656 = vadd.f32 0.0, %v10655
      %v10657 = vpop.f32.mrf.mxu0
      %10658 = vmatprep.mubr.f32.mxu0 0.0
      %10659 = vmatmul.mubr.f32.gmra.mxu0 %v10465
      %v10660 = vpop.f32.mrf.mxu0
      %v10661 = vadd.f32 0.0, %v10660
      %v10662 = vpop.f32.mrf.mxu0
      %10663 = vmatprep.mubr.f32.mxu0 0.0
      %10664 = vmatmul.mubr.f32.gmra.mxu0 %v10468
      %v10665 = vpop.f32.mrf.mxu0
      %v10666 = vadd.f32 0.0, %v10665
      %v10667 = vpop.f32.mrf.mxu0
      %10668 = vmatprep.mubr.f32.mxu0 0.0
      %10669 = vmatmul.mubr.f32.gmra.mxu0 %v10471
      %v10670 = vpop.f32.mrf.mxu0
      %v10671 = vadd.f32 0.0, %v10670
      %v10672 = vpop.f32.mrf.mxu0
      %10673 = vmatprep.mubr.f32.mxu0 0.0
      %10674 = vmatmul.mubr.f32.gmra.mxu0 %v10474
      %v10675 = vpop.f32.mrf.mxu0
      %v10676 = vadd.f32 0.0, %v10675
      %v10677 = vpop.f32.mrf.mxu0
      %10678 = vmatprep.mubr.f32.mxu0 0.0
      %10679 = vmatmul.mubr.f32.gmra.mxu0 %v10477
      %v10680 = vpop.f32.mrf.mxu0
      %v10681 = vadd.f32 0.0, %v10680
      %v10682 = vpop.f32.mrf.mxu0
      %10683 = vmatprep.mubr.f32.mxu0 0.0
      %10684 = vmatmul.mubr.f32.gmra.mxu0 %v10480
      %v10685 = vpop.f32.mrf.mxu0
      %v10686 = vadd.f32 0.0, %v10685
      %v10687 = vpop.f32.mrf.mxu0
      %10688 = vmatprep.mubr.f32.mxu0 0.0
      %10689 = vmatmul.mubr.f32.gmra.mxu0 %v10483
      %v10690 = vpop.f32.mrf.mxu0
      %v10691 = vadd.f32 0.0, %v10690
      %v10692 = vpop.f32.mrf.mxu0
      %10693 = vmatprep.mubr.f32.mxu0 0.0
      %10694 = vmatmul.mubr.f32.gmra.mxu0 %v10486
      %v10695 = vpop.f32.mrf.mxu0
      %v10696 = vadd.f32 0.0, %v10695
      %v10697 = vpop.f32.mrf.mxu0
      %10698 = vmatprep.mubr.f32.mxu0 0.0
      %10699 = vmatmul.mubr.f32.gmra.mxu0 %v10489
      %v10700 = vpop.f32.mrf.mxu0
      %v10701 = vadd.f32 0.0, %v10700
      %v10702 = vpop.f32.mrf.mxu0
      %10703 = vmatprep.mubr.f32.mxu0 0.0
      %10704 = vmatmul.mubr.f32.gmra.mxu0 %v10492
      %v10705 = vpop.f32.mrf.mxu0
      %v10706 = vadd.f32 0.0, %v10705
      %v10707 = vpop.f32.mrf.mxu0
      %10708 = vmatprep.mubr.f32.mxu0 0.0
      %10709 = vmatmul.mubr.f32.gmra.mxu0 %v10495
      %v10710 = vpop.f32.mrf.mxu0
      %v10711 = vadd.f32 0.0, %v10710
      %v10712 = vpop.f32.mrf.mxu0
      %10713 = vmatprep.mubr.f32.mxu0 0.0
      %10714 = vmatmul.mubr.f32.gmra.mxu0 %v10498
      %v10715 = vpop.f32.mrf.mxu0
      %v10716 = vadd.f32 0.0, %v10715
      %v10717 = vpop.f32.mrf.mxu0
      %10718 = vmatprep.mubr.f32.mxu0 0.0
      %10719 = vmatmul.mubr.f32.gmra.mxu0 %v10501
      %v10720 = vpop.f32.mrf.mxu0
      %v10721 = vadd.f32 0.0, %v10720
      %v10722 = vpop.f32.mrf.mxu0
      %10723 = vmatprep.mubr.f32.mxu0 0.0
      %10724 = vmatmul.mubr.f32.gmra.mxu0 %v10504
      %v10725 = vpop.f32.mrf.mxu0
      %v10726 = vadd.f32 0.0, %v10725
      %v10727 = vpop.f32.mrf.mxu0
      %10728 = vmatprep.mubr.f32.mxu0 0.0
      %10729 = vmatmul.mubr.f32.gmra.mxu0 %v10507
      %v10730 = vpop.f32.mrf.mxu0
      %v10731 = vadd.f32 0.0, %v10730
      %v10732 = vpop.f32.mrf.mxu0
      %10733 = vmatprep.mubr.f32.mxu0 0.0
      %10734 = vmatmul.mubr.f32.gmra.mxu0 %v10510
      %v10735 = vpop.f32.mrf.mxu0
      %v10736 = vadd.f32 0.0, %v10735
      %v10737 = vpop.f32.mrf.mxu0
      %10738 = vmatprep.mubr.f32.mxu0 0.0
      %10739 = vmatmul.mubr.f32.gmra.mxu0 %v10513
      %v10740 = vpop.f32.mrf.mxu0
      %v10741 = vadd.f32 0.0, %v10740
      %v10742 = vpop.f32.mrf.mxu0
      %10743 = vmatprep.mubr.f32.mxu0 0.0
      %10744 = vmatmul.mubr.f32.gmra.mxu0 %v10516
      %v10745 = vpop.f32.mrf.mxu0
      %v10746 = vadd.f32 0.0, %v10745
      %v10747 = vpop.f32.mrf.mxu0
      %10748 = vmatprep.mubr.f32.mxu0 0.0
      %10749 = vmatmul.mubr.f32.gmra.mxu0 %v10519
      %v10750 = vpop.f32.mrf.mxu0
      %v10751 = vadd.f32 0.0, %v10750
      %v10752 = vpop.f32.mrf.mxu0
      %10753 = vmatprep.mubr.f32.mxu0 0.0
      %10754 = vmatmul.mubr.f32.gmra.mxu0 %v10522
      %v10755 = vpop.f32.mrf.mxu0
      %v10756 = vadd.f32 0.0, %v10755
      %v10757 = vpop.f32.mrf.mxu0
      %10758 = vmatprep.mubr.f32.mxu0 0.0
      %10759 = vmatmul.mubr.f32.gmra.mxu0 %v10525
      %v10760 = vpop.f32.mrf.mxu0
      %v10761 = vadd.f32 0.0, %v10760
      %v10762 = vpop.f32.mrf.mxu0
      %10763 = vmatprep.mubr.f32.mxu0 0.0
      %10764 = vmatmul.mubr.f32.gmra.mxu0 %v10528
      %v10765 = vpop.f32.mrf.mxu0
      %v10766 = vadd.f32 0.0, %v10765
      %v10767 = vpop.f32.mrf.mxu0
      %10768 = vmatprep.mubr.f32.mxu0 0.0
      %10769 = vmatmul.mubr.f32.gmra.mxu0 %v10531
      %v10770 = vpop.f32.mrf.mxu0
      %v10771 = vadd.f32 0.0, %v10770
      %v10772 = vpop.f32.mrf.mxu0
      %10773 = vmatprep.mubr.f32.mxu0 0.0
      %10774 = vmatmul.mubr.f32.gmra.mxu0 %v10534
      %v10775 = vpop.f32.mrf.mxu0
      %v10776 = vadd.f32 0.0, %v10775
      %v10777 = vpop.f32.mrf.mxu0
      %10778 = vmatprep.mubr.f32.mxu0 0.0
      %10779 = vmatmul.mubr.f32.gmra.mxu0 %v10537
      %v10780 = vpop.f32.mrf.mxu0
      %v10781 = vadd.f32 0.0, %v10780
      %v10782 = vpop.f32.mrf.mxu0
      %10783 = vdwg.mxu0
      %v10784 = vld [vmem:[%s462 + $0x10] sm:$0xf]
      %v10785 = vld [vmem:[%s462 + $0x14] sm:$0xf]
      %v10786 = vld [vmem:[%s462 + $0x18] sm:$0xf]
      %v10787 = vld [vmem:[%s462 + $0x1c] sm:$0xf]
      %v10788 = vld [vmem:[%s462 + $0x20] sm:$0xf]
      %v10789 = vld [vmem:[%s462 + $0x24] sm:$0xf]
      %v10790 = vld [vmem:[%s462 + $0x28] sm:$0xf]
      %v10791 = vld [vmem:[%s462 + $0x2c] sm:$0xf]
      %v10792 = vld [vmem:[%s462 + $0x30] sm:$0xf]
      %v10793 = vld [vmem:[%s462 + $0x34] sm:$0xf]
      %v10794 = vld [vmem:[%s462 + $0x38] sm:$0xf]
      %v10795 = vld [vmem:[%s462 + $0x3c] sm:$0xf]
      %v10796 = vld [vmem:[%s462 + $0x40] sm:$0xf]
      %v10797 = vld [vmem:[%s462 + $0x44] sm:$0xf]
      %v10798 = vld [vmem:[%s462 + $0x48] sm:$0xf]
      %v10799 = vld [vmem:[%s462 + $0x4c] sm:$0xf]
      %v10800 = vld [vmem:[%s462 + $0x50] sm:$0xf]
      %v10801 = vld [vmem:[%s462 + $0x54] sm:$0xf]
      %v10802 = vld [vmem:[%s462 + $0x58] sm:$0xf]
      %v10803 = vld [vmem:[%s462 + $0x5c] sm:$0xf]
      %v10804 = vld [vmem:[%s462 + $0x60] sm:$0xf]
      %v10805 = vld [vmem:[%s462 + $0x64] sm:$0xf]
      %v10806 = vld [vmem:[%s462 + $0x68] sm:$0xf]
      %v10807 = vld [vmem:[%s462 + $0x6c] sm:$0xf]
      %v10808 = vld [vmem:[%s462 + $0x70] sm:$0xf]
      %v10809 = vld [vmem:[%s462 + $0x74] sm:$0xf]
      %v10810 = vld [vmem:[%s462 + $0x78] sm:$0xf]
      %v10811 = vld [vmem:[%s462 + $0x7c] sm:$0xf]
      %v10812 = vld [vmem:[%s462 + $0x80] sm:$0xf]
      %v10813 = vld [vmem:[%s462 + $0x84] sm:$0xf]
      %v10814 = vld [vmem:[%s462 + $0x88] sm:$0xf]
      %v10815 = vld [vmem:[%s462 + $0x8c] sm:$0xf]
      %v10816 = vld [vmem:[%s462 + $0x90] sm:$0xf]
      %v10817 = vld [vmem:[%s462 + $0x94] sm:$0xf]
      %v10818 = vld [vmem:[%s462 + $0x98] sm:$0xf]
      %v10819 = vld [vmem:[%s462 + $0x9c] sm:$0xf]
      %v10820 = vunpack.c.l.bf16 %v10784
      %v10821 = vunpack.c.l.bf16 %v10785
      %v10822 = vunpack.c.l.bf16 %v10786
      %v10823 = vunpack.c.l.bf16 %v10787
      %v10824 = vunpack.c.l.bf16 %v10788
      %v10825 = vunpack.c.l.bf16 %v10789
      %v10826 = vunpack.c.l.bf16 %v10790
      %v10827 = vunpack.c.l.bf16 %v10791
      %v10828 = vunpack.c.l.bf16 %v10792
      %v10829 = vunpack.c.l.bf16 %v10793
      %v10830 = vunpack.c.l.bf16 %v10794
      %v10831 = vunpack.c.l.bf16 %v10795
      %v10832 = vunpack.c.l.bf16 %v10796
      %v10833 = vunpack.c.l.bf16 %v10797
      %v10834 = vunpack.c.l.bf16 %v10798
      %v10835 = vunpack.c.l.bf16 %v10799
      %v10836 = vunpack.c.l.bf16 %v10800
      %v10837 = vunpack.c.l.bf16 %v10801
      %v10838 = vunpack.c.l.bf16 %v10802
      %v10839 = vunpack.c.l.bf16 %v10803
      %v10840 = vunpack.c.l.bf16 %v10804
      %v10841 = vunpack.c.l.bf16 %v10805
      %v10842 = vunpack.c.l.bf16 %v10806
      %v10843 = vunpack.c.l.bf16 %v10807
      %v10844 = vunpack.c.l.bf16 %v10808
      %v10845 = vunpack.c.l.bf16 %v10809
      %v10846 = vunpack.c.l.bf16 %v10810
      %v10847 = vunpack.c.l.bf16 %v10811
      %v10848 = vunpack.c.l.bf16 %v10812
      %v10849 = vunpack.c.l.bf16 %v10813
      %v10850 = vunpack.c.l.bf16 %v10814
      %v10851 = vunpack.c.l.bf16 %v10815
      %v10852 = vunpack.c.l.bf16 %v10816
      %v10853 = vunpack.c.l.bf16 %v10817
      %v10854 = vunpack.c.l.bf16 %v10818
      %v10855 = vunpack.c.l.bf16 %v10819
      %v10856 = vmul.f32 %v10115, %v10606
      %v10857 = vmul.f32 %v10116, %v10611
      %v10858 = vmul.f32 %v10117, %v10616
      %v10859 = vmul.f32 %v10118, %v10621
      %v10860 = vmul.f32 %v10119, %v10626
      %v10861 = vmul.f32 %v10120, %v10631
      %v10862 = vmul.f32 %v10121, %v10636
      %v10863 = vmul.f32 %v10122, %v10641
      %v10864 = vmul.f32 %v10123, %v10646
      %v10865 = vmul.f32 %v10124, %v10651
      %v10866 = vmul.f32 %v10125, %v10656
      %v10867 = vmul.f32 %v10126, %v10661
      %v10868 = vmul.f32 %v10127, %v10666
      %v10869 = vmul.f32 %v10128, %v10671
      %v10870 = vmul.f32 %v10129, %v10676
      %v10871 = vmul.f32 %v10130, %v10681
      %v10872 = vmul.f32 %v10131, %v10686
      %v10873 = vmul.f32 %v10132, %v10691
      %v10874 = vmul.f32 %v10133, %v10696
      %v10875 = vmul.f32 %v10134, %v10701
      %v10876 = vmul.f32 %v10135, %v10706
      %v10877 = vmul.f32 %v10136, %v10711
      %v10878 = vmul.f32 %v10137, %v10716
      %v10879 = vmul.f32 %v10138, %v10721
      %v10880 = vmul.f32 %v10139, %v10726
      %v10881 = vmul.f32 %v10140, %v10731
      %v10882 = vmul.f32 %v10141, %v10736
      %v10883 = vmul.f32 %v10142, %v10741
      %v10884 = vmul.f32 %v10143, %v10746
      %v10885 = vmul.f32 %v10144, %v10751
      %v10886 = vmul.f32 %v10145, %v10756
      %v10887 = vmul.f32 %v10146, %v10761
      %v10888 = vmul.f32 %v10147, %v10766
      %v10889 = vmul.f32 %v10148, %v10771
      %v10890 = vmul.f32 %v10149, %v10776
      %v10891 = vmul.f32 %v10150, %v10781
      %v10892 = vadd.f32 %v10856, %v10820
      %v10893 = vadd.f32 %v10857, %v10821
      %v10894 = vadd.f32 %v10858, %v10822
      %v10895 = vadd.f32 %v10859, %v10823
      %v10896 = vadd.f32 %v10860, %v10824
      %v10897 = vadd.f32 %v10861, %v10825
      %v10898 = vadd.f32 %v10862, %v10826
      %v10899 = vadd.f32 %v10863, %v10827
      %v10900 = vadd.f32 %v10864, %v10828
      %v10901 = vadd.f32 %v10865, %v10829
      %v10902 = vadd.f32 %v10866, %v10830
      %v10903 = vadd.f32 %v10867, %v10831
      %v10904 = vadd.f32 %v10868, %v10832
      %v10905 = vadd.f32 %v10869, %v10833
      %v10906 = vadd.f32 %v10870, %v10834
      %v10907 = vadd.f32 %v10871, %v10835
      %v10908 = vadd.f32 %v10872, %v10836
      %v10909 = vadd.f32 %v10873, %v10837
      %v10910 = vadd.f32 %v10874, %v10838
      %v10911 = vadd.f32 %v10875, %v10839
      %v10912 = vadd.f32 %v10876, %v10840
      %v10913 = vadd.f32 %v10877, %v10841
      %v10914 = vadd.f32 %v10878, %v10842
      %v10915 = vadd.f32 %v10879, %v10843
      %v10916 = vadd.f32 %v10880, %v10844
      %v10917 = vadd.f32 %v10881, %v10845
      %v10918 = vadd.f32 %v10882, %v10846
      %v10919 = vadd.f32 %v10883, %v10847
      %v10920 = vadd.f32 %v10884, %v10848
      %v10921 = vadd.f32 %v10885, %v10849
      %v10922 = vadd.f32 %v10886, %v10850
      %v10923 = vadd.f32 %v10887, %v10851
      %v10924 = vadd.f32 %v10888, %v10852
      %v10925 = vadd.f32 %v10889, %v10853
      %v10926 = vadd.f32 %v10890, %v10854
      %v10927 = vadd.f32 %v10891, %v10855
      %v10928 = vmul.f32 %v10892, 0.5
      %v10929 = vmul.f32 %v10893, 0.5
      %v10930 = vmul.f32 %v10894, 0.5
      %v10931 = vmul.f32 %v10895, 0.5
      %v10932 = vmul.f32 %v10896, 0.5
      %v10933 = vmul.f32 %v10897, 0.5
      %v10934 = vmul.f32 %v10898, 0.5
      %v10935 = vmul.f32 %v10899, 0.5
      %v10936 = vmul.f32 %v10900, 0.5
      %v10937 = vmul.f32 %v10901, 0.5
      %v10938 = vmul.f32 %v10902, 0.5
      %v10939 = vmul.f32 %v10903, 0.5
      %v10940 = vmul.f32 %v10904, 0.5
      %v10941 = vmul.f32 %v10905, 0.5
      %v10942 = vmul.f32 %v10906, 0.5
      %v10943 = vmul.f32 %v10907, 0.5
      %v10944 = vmul.f32 %v10908, 0.5
      %v10945 = vmul.f32 %v10909, 0.5
      %v10946 = vmul.f32 %v10910, 0.5
      %v10947 = vmul.f32 %v10911, 0.5
      %v10948 = vmul.f32 %v10912, 0.5
      %v10949 = vmul.f32 %v10913, 0.5
      %v10950 = vmul.f32 %v10914, 0.5
      %v10951 = vmul.f32 %v10915, 0.5
      %v10952 = vmul.f32 %v10916, 0.5
      %v10953 = vmul.f32 %v10917, 0.5
      %v10954 = vmul.f32 %v10918, 0.5
      %v10955 = vmul.f32 %v10919, 0.5
      %v10956 = vmul.f32 %v10920, 0.5
      %v10957 = vmul.f32 %v10921, 0.5
      %v10958 = vmul.f32 %v10922, 0.5
      %v10959 = vmul.f32 %v10923, 0.5
      %v10960 = vmul.f32 %v10924, 0.5
      %v10961 = vmul.f32 %v10925, 0.5
      %v10962 = vmul.f32 %v10926, 0.5
      %v10963 = vmul.f32 %v10927, 0.5
      %v10964 = vmul.f32 %v10892, 0.70710677
      %v10965 = vmul.f32 %v10893, 0.70710677
      %v10966 = vmul.f32 %v10894, 0.70710677
      %v10967 = vmul.f32 %v10895, 0.70710677
      %v10968 = vmul.f32 %v10896, 0.70710677
      %v10969 = vmul.f32 %v10897, 0.70710677
      %v10970 = vmul.f32 %v10898, 0.70710677
      %v10971 = vmul.f32 %v10899, 0.70710677
      %v10972 = vmul.f32 %v10900, 0.70710677
      %v10973 = vmul.f32 %v10901, 0.70710677
      %v10974 = vmul.f32 %v10902, 0.70710677
      %v10975 = vmul.f32 %v10903, 0.70710677
      %v10976 = vmul.f32 %v10904, 0.70710677
      %v10977 = vmul.f32 %v10905, 0.70710677
      %v10978 = vmul.f32 %v10906, 0.70710677
      %v10979 = vmul.f32 %v10907, 0.70710677
      %v10980 = vmul.f32 %v10908, 0.70710677
      %v10981 = vmul.f32 %v10909, 0.70710677
      %v10982 = vmul.f32 %v10910, 0.70710677
      %v10983 = vmul.f32 %v10911, 0.70710677
      %v10984 = vmul.f32 %v10912, 0.70710677
      %v10985 = vmul.f32 %v10913, 0.70710677
      %v10986 = vmul.f32 %v10914, 0.70710677
      %v10987 = vmul.f32 %v10915, 0.70710677
      %v10988 = vmul.f32 %v10916, 0.70710677
      %v10989 = vmul.f32 %v10917, 0.70710677
      %v10990 = vmul.f32 %v10918, 0.70710677
      %v10991 = vmul.f32 %v10919, 0.70710677
      %v10992 = vmul.f32 %v10920, 0.70710677
      %v10993 = vmul.f32 %v10921, 0.70710677
      %v10994 = vmul.f32 %v10922, 0.70710677
      %v10995 = vmul.f32 %v10923, 0.70710677
      %v10996 = vmul.f32 %v10924, 0.70710677
      %v10997 = vmul.f32 %v10925, 0.70710677
      %v10998 = vmul.f32 %v10926, 0.70710677
      %v10999 = vmul.f32 %v10927, 0.70710677
      %vm11000 = vcmp.ge.f32.partialorder %v10964, 0.0
      %vm11001 = vcmp.ge.f32.partialorder %v10965, 0.0
      %vm11002 = vcmp.ge.f32.partialorder %v10966, 0.0
      %vm11003 = vcmp.ge.f32.partialorder %v10967, 0.0
      %vm11004 = vcmp.ge.f32.partialorder %v10968, 0.0
      %vm11005 = vcmp.ge.f32.partialorder %v10969, 0.0
      %vm11006 = vcmp.ge.f32.partialorder %v10970, 0.0
      %vm11007 = vcmp.ge.f32.partialorder %v10971, 0.0
      %vm11008 = vcmp.ge.f32.partialorder %v10972, 0.0
      %vm11009 = vcmp.ge.f32.partialorder %v10973, 0.0
      %vm11010 = vcmp.ge.f32.partialorder %v10974, 0.0
      %vm11011 = vcmp.ge.f32.partialorder %v10975, 0.0
      %vm11012 = vcmp.ge.f32.partialorder %v10976, 0.0
      %vm11013 = vcmp.ge.f32.partialorder %v10977, 0.0
      %vm11014 = vcmp.ge.f32.partialorder %v10978, 0.0
      %vm11015 = vcmp.ge.f32.partialorder %v10979, 0.0
      %vm11016 = vcmp.ge.f32.partialorder %v10980, 0.0
      %vm11017 = vcmp.ge.f32.partialorder %v10981, 0.0
      %vm11018 = vcmp.ge.f32.partialorder %v10982, 0.0
      %vm11019 = vcmp.ge.f32.partialorder %v10983, 0.0
      %vm11020 = vcmp.ge.f32.partialorder %v10984, 0.0
      %vm11021 = vcmp.ge.f32.partialorder %v10985, 0.0
      %vm11022 = vcmp.ge.f32.partialorder %v10986, 0.0
      %vm11023 = vcmp.ge.f32.partialorder %v10987, 0.0
      %vm11024 = vcmp.ge.f32.partialorder %v10988, 0.0
      %vm11025 = vcmp.ge.f32.partialorder %v10989, 0.0
      %vm11026 = vcmp.ge.f32.partialorder %v10990, 0.0
      %vm11027 = vcmp.ge.f32.partialorder %v10991, 0.0
      %vm11028 = vcmp.ge.f32.partialorder %v10992, 0.0
      %vm11029 = vcmp.ge.f32.partialorder %v10993, 0.0
      %vm11030 = vcmp.ge.f32.partialorder %v10994, 0.0
      %vm11031 = vcmp.ge.f32.partialorder %v10995, 0.0
      %vm11032 = vcmp.ge.f32.partialorder %v10996, 0.0
      %vm11033 = vcmp.ge.f32.partialorder %v10997, 0.0
      %vm11034 = vcmp.ge.f32.partialorder %v10998, 0.0
      %vm11035 = vcmp.ge.f32.partialorder %v10999, 0.0
      %v11036 = vsel %vm11000, 1.0, -1.0
      %v11037 = vsel %vm11001, 1.0, -1.0
      %v11038 = vsel %vm11002, 1.0, -1.0
      %v11039 = vsel %vm11003, 1.0, -1.0
      %v11040 = vsel %vm11004, 1.0, -1.0
      %v11041 = vsel %vm11005, 1.0, -1.0
      %v11042 = vsel %vm11006, 1.0, -1.0
      %v11043 = vsel %vm11007, 1.0, -1.0
      %v11044 = vsel %vm11008, 1.0, -1.0
      %v11045 = vsel %vm11009, 1.0, -1.0
      %v11046 = vsel %vm11010, 1.0, -1.0
      %v11047 = vsel %vm11011, 1.0, -1.0
      %v11048 = vsel %vm11012, 1.0, -1.0
      %v11049 = vsel %vm11013, 1.0, -1.0
      %v11050 = vsel %vm11014, 1.0, -1.0
      %v11051 = vsel %vm11015, 1.0, -1.0
      %v11052 = vsel %vm11016, 1.0, -1.0
      %v11053 = vsel %vm11017, 1.0, -1.0
      %v11054 = vsel %vm11018, 1.0, -1.0
      %v11055 = vsel %vm11019, 1.0, -1.0
      %v11056 = vsel %vm11020, 1.0, -1.0
      %v11057 = vsel %vm11021, 1.0, -1.0
      %v11058 = vsel %vm11022, 1.0, -1.0
      %v11059 = vsel %vm11023, 1.0, -1.0
      %v11060 = vsel %vm11024, 1.0, -1.0
      %v11061 = vsel %vm11025, 1.0, -1.0
      %v11062 = vsel %vm11026, 1.0, -1.0
      %v11063 = vsel %vm11027, 1.0, -1.0
      %v11064 = vsel %vm11028, 1.0, -1.0
      %v11065 = vsel %vm11029, 1.0, -1.0
      %v11066 = vsel %vm11030, 1.0, -1.0
      %v11067 = vsel %vm11031, 1.0, -1.0
      %v11068 = vsel %vm11032, 1.0, -1.0
      %v11069 = vsel %vm11033, 1.0, -1.0
      %v11070 = vsel %vm11034, 1.0, -1.0
      %v11071 = vsel %vm11035, 1.0, -1.0
      %v11072 = vand.u32 2147483647, %v10964
      %v11073 = vand.u32 2147483647, %v10965
      %v11074 = vand.u32 2147483647, %v10966
      %v11075 = vand.u32 2147483647, %v10967
      %v11076 = vand.u32 2147483647, %v10968
      %v11077 = vand.u32 2147483647, %v10969
      %v11078 = vand.u32 2147483647, %v10970
      %v11079 = vand.u32 2147483647, %v10971
      %v11080 = vand.u32 2147483647, %v10972
      %v11081 = vand.u32 2147483647, %v10973
      %v11082 = vand.u32 2147483647, %v10974
      %v11083 = vand.u32 2147483647, %v10975
      %v11084 = vand.u32 2147483647, %v10976
      %v11085 = vand.u32 2147483647, %v10977
      %v11086 = vand.u32 2147483647, %v10978
      %v11087 = vand.u32 2147483647, %v10979
      %v11088 = vand.u32 2147483647, %v10980
      %v11089 = vand.u32 2147483647, %v10981
      %v11090 = vand.u32 2147483647, %v10982
      %v11091 = vand.u32 2147483647, %v10983
      %v11092 = vand.u32 2147483647, %v10984
      %v11093 = vand.u32 2147483647, %v10985
      %v11094 = vand.u32 2147483647, %v10986
      %v11095 = vand.u32 2147483647, %v10987
      %v11096 = vand.u32 2147483647, %v10988
      %v11097 = vand.u32 2147483647, %v10989
      %v11098 = vand.u32 2147483647, %v10990
      %v11099 = vand.u32 2147483647, %v10991
      %v11100 = vand.u32 2147483647, %v10992
      %v11101 = vand.u32 2147483647, %v10993
      %v11102 = vand.u32 2147483647, %v10994
      %v11103 = vand.u32 2147483647, %v10995
      %v11104 = vand.u32 2147483647, %v10996
      %v11105 = vand.u32 2147483647, %v10997
      %v11106 = vand.u32 2147483647, %v10998
      %v11107 = vand.u32 2147483647, %v10999
      %v11108 = vmul.f32 %v11072, 0.3275911
      %v11109 = vmul.f32 %v11073, 0.3275911
      %v11110 = vmul.f32 %v11074, 0.3275911
      %v11111 = vmul.f32 %v11075, 0.3275911
      %v11112 = vmul.f32 %v11076, 0.3275911
      %v11113 = vmul.f32 %v11077, 0.3275911
      %v11114 = vmul.f32 %v11078, 0.3275911
      %v11115 = vmul.f32 %v11079, 0.3275911
      %v11116 = vmul.f32 %v11080, 0.3275911
      %v11117 = vmul.f32 %v11081, 0.3275911
      %v11118 = vmul.f32 %v11082, 0.3275911
      %v11119 = vmul.f32 %v11083, 0.3275911
      %v11120 = vmul.f32 %v11084, 0.3275911
      %v11121 = vmul.f32 %v11085, 0.3275911
      %v11122 = vmul.f32 %v11086, 0.3275911
      %v11123 = vmul.f32 %v11087, 0.3275911
      %v11124 = vmul.f32 %v11088, 0.3275911
      %v11125 = vmul.f32 %v11089, 0.3275911
      %v11126 = vmul.f32 %v11090, 0.3275911
      %v11127 = vmul.f32 %v11091, 0.3275911
      %v11128 = vmul.f32 %v11092, 0.3275911
      %v11129 = vmul.f32 %v11093, 0.3275911
      %v11130 = vmul.f32 %v11094, 0.3275911
      %v11131 = vmul.f32 %v11095, 0.3275911
      %v11132 = vmul.f32 %v11096, 0.3275911
      %v11133 = vmul.f32 %v11097, 0.3275911
      %v11134 = vmul.f32 %v11098, 0.3275911
      %v11135 = vmul.f32 %v11099, 0.3275911
      %v11136 = vmul.f32 %v11100, 0.3275911
      %v11137 = vmul.f32 %v11101, 0.3275911
      %v11138 = vmul.f32 %v11102, 0.3275911
      %v11139 = vmul.f32 %v11103, 0.3275911
      %v11140 = vmul.f32 %v11104, 0.3275911
      %v11141 = vmul.f32 %v11105, 0.3275911
      %v11142 = vmul.f32 %v11106, 0.3275911
      %v11143 = vmul.f32 %v11107, 0.3275911
      %v11144 = vadd.f32 %v11108, 1.0
      %v11145 = vadd.f32 %v11109, 1.0
      %v11146 = vadd.f32 %v11110, 1.0
      %v11147 = vadd.f32 %v11111, 1.0
      %v11148 = vadd.f32 %v11112, 1.0
      %v11149 = vadd.f32 %v11113, 1.0
      %v11150 = vadd.f32 %v11114, 1.0
      %v11151 = vadd.f32 %v11115, 1.0
      %v11152 = vadd.f32 %v11116, 1.0
      %v11153 = vadd.f32 %v11117, 1.0
      %v11154 = vadd.f32 %v11118, 1.0
      %v11155 = vadd.f32 %v11119, 1.0
      %v11156 = vadd.f32 %v11120, 1.0
      %v11157 = vadd.f32 %v11121, 1.0
      %v11158 = vadd.f32 %v11122, 1.0
      %v11159 = vadd.f32 %v11123, 1.0
      %v11160 = vadd.f32 %v11124, 1.0
      %v11161 = vadd.f32 %v11125, 1.0
      %v11162 = vadd.f32 %v11126, 1.0
      %v11163 = vadd.f32 %v11127, 1.0
      %v11164 = vadd.f32 %v11128, 1.0
      %v11165 = vadd.f32 %v11129, 1.0
      %v11166 = vadd.f32 %v11130, 1.0
      %v11167 = vadd.f32 %v11131, 1.0
      %v11168 = vadd.f32 %v11132, 1.0
      %v11169 = vadd.f32 %v11133, 1.0
      %v11170 = vadd.f32 %v11134, 1.0
      %v11171 = vadd.f32 %v11135, 1.0
      %v11172 = vadd.f32 %v11136, 1.0
      %v11173 = vadd.f32 %v11137, 1.0
      %v11174 = vadd.f32 %v11138, 1.0
      %v11175 = vadd.f32 %v11139, 1.0
      %v11176 = vadd.f32 %v11140, 1.0
      %v11177 = vadd.f32 %v11141, 1.0
      %v11178 = vadd.f32 %v11142, 1.0
      %v11179 = vadd.f32 %v11143, 1.0
      %v11180 = vrcp.pop %v11144
      %v11181 = vrcp.pop %v11145
      %v11182 = vrcp.pop %v11146
      %v11183 = vrcp.pop %v11147
      %v11184 = vrcp.pop %v11148
      %v11185 = vrcp.pop %v11149
      %v11186 = vrcp.pop %v11150
      %v11187 = vrcp.pop %v11151
      %v11188 = vrcp.pop %v11152
      %v11189 = vrcp.pop %v11153
      %v11190 = vrcp.pop %v11154
      %v11191 = vrcp.pop %v11155
      %v11192 = vrcp.pop %v11156
      %v11193 = vrcp.pop %v11157
      %v11194 = vrcp.pop %v11158
      %v11195 = vrcp.pop %v11159
      %v11196 = vrcp.pop %v11160
      %v11197 = vrcp.pop %v11161
      %v11198 = vrcp.pop %v11162
      %v11199 = vrcp.pop %v11163
      %v11200 = vrcp.pop %v11164
      %v11201 = vrcp.pop %v11165
      %v11202 = vrcp.pop %v11166
      %v11203 = vrcp.pop %v11167
      %v11204 = vrcp.pop %v11168
      %v11205 = vrcp.pop %v11169
      %v11206 = vrcp.pop %v11170
      %v11207 = vrcp.pop %v11171
      %v11208 = vrcp.pop %v11172
      %v11209 = vrcp.pop %v11173
      %v11210 = vrcp.pop %v11174
      %v11211 = vrcp.pop %v11175
      %v11212 = vrcp.pop %v11176
      %v11213 = vrcp.pop %v11177
      %v11214 = vrcp.pop %v11178
      %v11215 = vrcp.pop %v11179
      %v11216 = vmul.f32 %v11180, 1.0614054
      %v11217 = vmul.f32 %v11181, 1.0614054
      %v11218 = vmul.f32 %v11182, 1.0614054
      %v11219 = vmul.f32 %v11183, 1.0614054
      %v11220 = vmul.f32 %v11184, 1.0614054
      %v11221 = vmul.f32 %v11185, 1.0614054
      %v11222 = vmul.f32 %v11186, 1.0614054
      %v11223 = vmul.f32 %v11187, 1.0614054
      %v11224 = vmul.f32 %v11188, 1.0614054
      %v11225 = vmul.f32 %v11189, 1.0614054
      %v11226 = vmul.f32 %v11190, 1.0614054
      %v11227 = vmul.f32 %v11191, 1.0614054
      %v11228 = vmul.f32 %v11192, 1.0614054
      %v11229 = vmul.f32 %v11193, 1.0614054
      %v11230 = vmul.f32 %v11194, 1.0614054
      %v11231 = vmul.f32 %v11195, 1.0614054
      %v11232 = vmul.f32 %v11196, 1.0614054
      %v11233 = vmul.f32 %v11197, 1.0614054
      %v11234 = vmul.f32 %v11198, 1.0614054
      %v11235 = vmul.f32 %v11199, 1.0614054
      %v11236 = vmul.f32 %v11200, 1.0614054
      %v11237 = vmul.f32 %v11201, 1.0614054
      %v11238 = vmul.f32 %v11202, 1.0614054
      %v11239 = vmul.f32 %v11203, 1.0614054
      %v11240 = vmul.f32 %v11204, 1.0614054
      %v11241 = vmul.f32 %v11205, 1.0614054
      %v11242 = vmul.f32 %v11206, 1.0614054
      %v11243 = vmul.f32 %v11207, 1.0614054
      %v11244 = vmul.f32 %v11208, 1.0614054
      %v11245 = vmul.f32 %v11209, 1.0614054
      %v11246 = vmul.f32 %v11210, 1.0614054
      %v11247 = vmul.f32 %v11211, 1.0614054
      %v11248 = vmul.f32 %v11212, 1.0614054
      %v11249 = vmul.f32 %v11213, 1.0614054
      %v11250 = vmul.f32 %v11214, 1.0614054
      %v11251 = vmul.f32 %v11215, 1.0614054
      %v11252 = vadd.f32 %v11216, -1.4531521
      %v11253 = vadd.f32 %v11217, -1.4531521
      %v11254 = vadd.f32 %v11218, -1.4531521
      %v11255 = vadd.f32 %v11219, -1.4531521
      %v11256 = vadd.f32 %v11220, -1.4531521
      %v11257 = vadd.f32 %v11221, -1.4531521
      %v11258 = vadd.f32 %v11222, -1.4531521
      %v11259 = vadd.f32 %v11223, -1.4531521
      %v11260 = vadd.f32 %v11224, -1.4531521
      %v11261 = vadd.f32 %v11225, -1.4531521
      %v11262 = vadd.f32 %v11226, -1.4531521
      %v11263 = vadd.f32 %v11227, -1.4531521
      %v11264 = vadd.f32 %v11228, -1.4531521
      %v11265 = vadd.f32 %v11229, -1.4531521
      %v11266 = vadd.f32 %v11230, -1.4531521
      %v11267 = vadd.f32 %v11231, -1.4531521
      %v11268 = vadd.f32 %v11232, -1.4531521
      %v11269 = vadd.f32 %v11233, -1.4531521
      %v11270 = vadd.f32 %v11234, -1.4531521
      %v11271 = vadd.f32 %v11235, -1.4531521
      %v11272 = vadd.f32 %v11236, -1.4531521
      %v11273 = vadd.f32 %v11237, -1.4531521
      %v11274 = vadd.f32 %v11238, -1.4531521
      %v11275 = vadd.f32 %v11239, -1.4531521
      %v11276 = vadd.f32 %v11240, -1.4531521
      %v11277 = vadd.f32 %v11241, -1.4531521
      %v11278 = vadd.f32 %v11242, -1.4531521
      %v11279 = vadd.f32 %v11243, -1.4531521
      %v11280 = vadd.f32 %v11244, -1.4531521
      %v11281 = vadd.f32 %v11245, -1.4531521
      %v11282 = vadd.f32 %v11246, -1.4531521
      %v11283 = vadd.f32 %v11247, -1.4531521
      %v11284 = vadd.f32 %v11248, -1.4531521
      %v11285 = vadd.f32 %v11249, -1.4531521
      %v11286 = vadd.f32 %v11250, -1.4531521
      %v11287 = vadd.f32 %v11251, -1.4531521
      %v11288 = vmul.f32 %v11252, %v11180
      %v11289 = vmul.f32 %v11253, %v11181
      %v11290 = vmul.f32 %v11254, %v11182
      %v11291 = vmul.f32 %v11255, %v11183
      %v11292 = vmul.f32 %v11256, %v11184
      %v11293 = vmul.f32 %v11257, %v11185
      %v11294 = vmul.f32 %v11258, %v11186
      %v11295 = vmul.f32 %v11259, %v11187
      %v11296 = vmul.f32 %v11260, %v11188
      %v11297 = vmul.f32 %v11261, %v11189
      %v11298 = vmul.f32 %v11262, %v11190
      %v11299 = vmul.f32 %v11263, %v11191
      %v11300 = vmul.f32 %v11264, %v11192
      %v11301 = vmul.f32 %v11265, %v11193
      %v11302 = vmul.f32 %v11266, %v11194
      %v11303 = vmul.f32 %v11267, %v11195
      %v11304 = vmul.f32 %v11268, %v11196
      %v11305 = vmul.f32 %v11269, %v11197
      %v11306 = vmul.f32 %v11270, %v11198
      %v11307 = vmul.f32 %v11271, %v11199
      %v11308 = vmul.f32 %v11272, %v11200
      %v11309 = vmul.f32 %v11273, %v11201
      %v11310 = vmul.f32 %v11274, %v11202
      %v11311 = vmul.f32 %v11275, %v11203
      %v11312 = vmul.f32 %v11276, %v11204
      %v11313 = vmul.f32 %v11277, %v11205
      %v11314 = vmul.f32 %v11278, %v11206
      %v11315 = vmul.f32 %v11279, %v11207
      %v11316 = vmul.f32 %v11280, %v11208
      %v11317 = vmul.f32 %v11281, %v11209
      %v11318 = vmul.f32 %v11282, %v11210
      %v11319 = vmul.f32 %v11283, %v11211
      %v11320 = vmul.f32 %v11284, %v11212
      %v11321 = vmul.f32 %v11285, %v11213
      %v11322 = vmul.f32 %v11286, %v11214
      %v11323 = vmul.f32 %v11287, %v11215
      %v11324 = vadd.f32 %v11288, 1.4214138
      %v11325 = vadd.f32 %v11289, 1.4214138
      %v11326 = vadd.f32 %v11290, 1.4214138
      %v11327 = vadd.f32 %v11291, 1.4214138
      %v11328 = vadd.f32 %v11292, 1.4214138
      %v11329 = vadd.f32 %v11293, 1.4214138
      %v11330 = vadd.f32 %v11294, 1.4214138
      %v11331 = vadd.f32 %v11295, 1.4214138
      %v11332 = vadd.f32 %v11296, 1.4214138
      %v11333 = vadd.f32 %v11297, 1.4214138
      %v11334 = vadd.f32 %v11298, 1.4214138
      %v11335 = vadd.f32 %v11299, 1.4214138
      %v11336 = vadd.f32 %v11300, 1.4214138
      %v11337 = vadd.f32 %v11301, 1.4214138
      %v11338 = vadd.f32 %v11302, 1.4214138
      %v11339 = vadd.f32 %v11303, 1.4214138
      %v11340 = vadd.f32 %v11304, 1.4214138
      %v11341 = vadd.f32 %v11305, 1.4214138
      %v11342 = vadd.f32 %v11306, 1.4214138
      %v11343 = vadd.f32 %v11307, 1.4214138
      %v11344 = vadd.f32 %v11308, 1.4214138
      %v11345 = vadd.f32 %v11309, 1.4214138
      %v11346 = vadd.f32 %v11310, 1.4214138
      %v11347 = vadd.f32 %v11311, 1.4214138
      %v11348 = vadd.f32 %v11312, 1.4214138
      %v11349 = vadd.f32 %v11313, 1.4214138
      %v11350 = vadd.f32 %v11314, 1.4214138
      %v11351 = vadd.f32 %v11315, 1.4214138
      %v11352 = vadd.f32 %v11316, 1.4214138
      %v11353 = vadd.f32 %v11317, 1.4214138
      %v11354 = vadd.f32 %v11318, 1.4214138
      %v11355 = vadd.f32 %v11319, 1.4214138
      %v11356 = vadd.f32 %v11320, 1.4214138
      %v11357 = vadd.f32 %v11321, 1.4214138
      %v11358 = vadd.f32 %v11322, 1.4214138
      %v11359 = vadd.f32 %v11323, 1.4214138
      %v11360 = vmul.f32 %v11324, %v11180
      %v11361 = vmul.f32 %v11325, %v11181
      %v11362 = vmul.f32 %v11326, %v11182
      %v11363 = vmul.f32 %v11327, %v11183
      %v11364 = vmul.f32 %v11328, %v11184
      %v11365 = vmul.f32 %v11329, %v11185
      %v11366 = vmul.f32 %v11330, %v11186
      %v11367 = vmul.f32 %v11331, %v11187
      %v11368 = vmul.f32 %v11332, %v11188
      %v11369 = vmul.f32 %v11333, %v11189
      %v11370 = vmul.f32 %v11334, %v11190
      %v11371 = vmul.f32 %v11335, %v11191
      %v11372 = vmul.f32 %v11336, %v11192
      %v11373 = vmul.f32 %v11337, %v11193
      %v11374 = vmul.f32 %v11338, %v11194
      %v11375 = vmul.f32 %v11339, %v11195
      %v11376 = vmul.f32 %v11340, %v11196
      %v11377 = vmul.f32 %v11341, %v11197
      %v11378 = vmul.f32 %v11342, %v11198
      %v11379 = vmul.f32 %v11343, %v11199
      %v11380 = vmul.f32 %v11344, %v11200
      %v11381 = vmul.f32 %v11345, %v11201
      %v11382 = vmul.f32 %v11346, %v11202
      %v11383 = vmul.f32 %v11347, %v11203
      %v11384 = vmul.f32 %v11348, %v11204
      %v11385 = vmul.f32 %v11349, %v11205
      %v11386 = vmul.f32 %v11350, %v11206
      %v11387 = vmul.f32 %v11351, %v11207
      %v11388 = vmul.f32 %v11352, %v11208
      %v11389 = vmul.f32 %v11353, %v11209
      %v11390 = vmul.f32 %v11354, %v11210
      %v11391 = vmul.f32 %v11355, %v11211
      %v11392 = vmul.f32 %v11356, %v11212
      %v11393 = vmul.f32 %v11357, %v11213
      %v11394 = vmul.f32 %v11358, %v11214
      %v11395 = vmul.f32 %v11359, %v11215
      %v11396 = vadd.f32 %v11360, -0.28449672
      %v11397 = vadd.f32 %v11361, -0.28449672
      %v11398 = vadd.f32 %v11362, -0.28449672
      %v11399 = vadd.f32 %v11363, -0.28449672
      %v11400 = vadd.f32 %v11364, -0.28449672
      %v11401 = vadd.f32 %v11365, -0.28449672
      %v11402 = vadd.f32 %v11366, -0.28449672
      %v11403 = vadd.f32 %v11367, -0.28449672
      %v11404 = vadd.f32 %v11368, -0.28449672
      %v11405 = vadd.f32 %v11369, -0.28449672
      %v11406 = vadd.f32 %v11370, -0.28449672
      %v11407 = vadd.f32 %v11371, -0.28449672
      %v11408 = vadd.f32 %v11372, -0.28449672
      %v11409 = vadd.f32 %v11373, -0.28449672
      %v11410 = vadd.f32 %v11374, -0.28449672
      %v11411 = vadd.f32 %v11375, -0.28449672
      %v11412 = vadd.f32 %v11376, -0.28449672
      %v11413 = vadd.f32 %v11377, -0.28449672
      %v11414 = vadd.f32 %v11378, -0.28449672
      %v11415 = vadd.f32 %v11379, -0.28449672
      %v11416 = vadd.f32 %v11380, -0.28449672
      %v11417 = vadd.f32 %v11381, -0.28449672
      %v11418 = vadd.f32 %v11382, -0.28449672
      %v11419 = vadd.f32 %v11383, -0.28449672
      %v11420 = vadd.f32 %v11384, -0.28449672
      %v11421 = vadd.f32 %v11385, -0.28449672
      %v11422 = vadd.f32 %v11386, -0.28449672
      %v11423 = vadd.f32 %v11387, -0.28449672
      %v11424 = vadd.f32 %v11388, -0.28449672
      %v11425 = vadd.f32 %v11389, -0.28449672
      %v11426 = vadd.f32 %v11390, -0.28449672
      %v11427 = vadd.f32 %v11391, -0.28449672
      %v11428 = vadd.f32 %v11392, -0.28449672
      %v11429 = vadd.f32 %v11393, -0.28449672
      %v11430 = vadd.f32 %v11394, -0.28449672
      %v11431 = vadd.f32 %v11395, -0.28449672
      %v11432 = vmul.f32 %v11396, %v11180
      %v11433 = vmul.f32 %v11397, %v11181
      %v11434 = vmul.f32 %v11398, %v11182
      %v11435 = vmul.f32 %v11399, %v11183
      %v11436 = vmul.f32 %v11400, %v11184
      %v11437 = vmul.f32 %v11401, %v11185
      %v11438 = vmul.f32 %v11402, %v11186
      %v11439 = vmul.f32 %v11403, %v11187
      %v11440 = vmul.f32 %v11404, %v11188
      %v11441 = vmul.f32 %v11405, %v11189
      %v11442 = vmul.f32 %v11406, %v11190
      %v11443 = vmul.f32 %v11407, %v11191
      %v11444 = vmul.f32 %v11408, %v11192
      %v11445 = vmul.f32 %v11409, %v11193
      %v11446 = vmul.f32 %v11410, %v11194
      %v11447 = vmul.f32 %v11411, %v11195
      %v11448 = vmul.f32 %v11412, %v11196
      %v11449 = vmul.f32 %v11413, %v11197
      %v11450 = vmul.f32 %v11414, %v11198
      %v11451 = vmul.f32 %v11415, %v11199
      %v11452 = vmul.f32 %v11416, %v11200
      %v11453 = vmul.f32 %v11417, %v11201
      %v11454 = vmul.f32 %v11418, %v11202
      %v11455 = vmul.f32 %v11419, %v11203
      %v11456 = vmul.f32 %v11420, %v11204
      %v11457 = vmul.f32 %v11421, %v11205
      %v11458 = vmul.f32 %v11422, %v11206
      %v11459 = vmul.f32 %v11423, %v11207
      %v11460 = vmul.f32 %v11424, %v11208
      %v11461 = vmul.f32 %v11425, %v11209
      %v11462 = vmul.f32 %v11426, %v11210
      %v11463 = vmul.f32 %v11427, %v11211
      %v11464 = vmul.f32 %v11428, %v11212
      %v11465 = vmul.f32 %v11429, %v11213
      %v11466 = vmul.f32 %v11430, %v11214
      %v11467 = vmul.f32 %v11431, %v11215
      %v11468 = vadd.f32 %v11432, 0.2548296
      %v11469 = vadd.f32 %v11433, 0.2548296
      %v11470 = vadd.f32 %v11434, 0.2548296
      %v11471 = vadd.f32 %v11435, 0.2548296
      %v11472 = vadd.f32 %v11436, 0.2548296
      %v11473 = vadd.f32 %v11437, 0.2548296
      %v11474 = vadd.f32 %v11438, 0.2548296
      %v11475 = vadd.f32 %v11439, 0.2548296
      %v11476 = vadd.f32 %v11440, 0.2548296
      %v11477 = vadd.f32 %v11441, 0.2548296
      %v11478 = vadd.f32 %v11442, 0.2548296
      %v11479 = vadd.f32 %v11443, 0.2548296
      %v11480 = vadd.f32 %v11444, 0.2548296
      %v11481 = vadd.f32 %v11445, 0.2548296
      %v11482 = vadd.f32 %v11446, 0.2548296
      %v11483 = vadd.f32 %v11447, 0.2548296
      %v11484 = vadd.f32 %v11448, 0.2548296
      %v11485 = vadd.f32 %v11449, 0.2548296
      %v11486 = vadd.f32 %v11450, 0.2548296
      %v11487 = vadd.f32 %v11451, 0.2548296
      %v11488 = vadd.f32 %v11452, 0.2548296
      %v11489 = vadd.f32 %v11453, 0.2548296
      %v11490 = vadd.f32 %v11454, 0.2548296
      %v11491 = vadd.f32 %v11455, 0.2548296
      %v11492 = vadd.f32 %v11456, 0.2548296
      %v11493 = vadd.f32 %v11457, 0.2548296
      %v11494 = vadd.f32 %v11458, 0.2548296
      %v11495 = vadd.f32 %v11459, 0.2548296
      %v11496 = vadd.f32 %v11460, 0.2548296
      %v11497 = vadd.f32 %v11461, 0.2548296
      %v11498 = vadd.f32 %v11462, 0.2548296
      %v11499 = vadd.f32 %v11463, 0.2548296
      %v11500 = vadd.f32 %v11464, 0.2548296
      %v11501 = vadd.f32 %v11465, 0.2548296
      %v11502 = vadd.f32 %v11466, 0.2548296
      %v11503 = vadd.f32 %v11467, 0.2548296
      %v11504 = vmul.f32 %v11468, %v11180
      %v11505 = vmul.f32 %v11469, %v11181
      %v11506 = vmul.f32 %v11470, %v11182
      %v11507 = vmul.f32 %v11471, %v11183
      %v11508 = vmul.f32 %v11472, %v11184
      %v11509 = vmul.f32 %v11473, %v11185
      %v11510 = vmul.f32 %v11474, %v11186
      %v11511 = vmul.f32 %v11475, %v11187
      %v11512 = vmul.f32 %v11476, %v11188
      %v11513 = vmul.f32 %v11477, %v11189
      %v11514 = vmul.f32 %v11478, %v11190
      %v11515 = vmul.f32 %v11479, %v11191
      %v11516 = vmul.f32 %v11480, %v11192
      %v11517 = vmul.f32 %v11481, %v11193
      %v11518 = vmul.f32 %v11482, %v11194
      %v11519 = vmul.f32 %v11483, %v11195
      %v11520 = vmul.f32 %v11484, %v11196
      %v11521 = vmul.f32 %v11485, %v11197
      %v11522 = vmul.f32 %v11486, %v11198
      %v11523 = vmul.f32 %v11487, %v11199
      %v11524 = vmul.f32 %v11488, %v11200
      %v11525 = vmul.f32 %v11489, %v11201
      %v11526 = vmul.f32 %v11490, %v11202
      %v11527 = vmul.f32 %v11491, %v11203
      %v11528 = vmul.f32 %v11492, %v11204
      %v11529 = vmul.f32 %v11493, %v11205
      %v11530 = vmul.f32 %v11494, %v11206
      %v11531 = vmul.f32 %v11495, %v11207
      %v11532 = vmul.f32 %v11496, %v11208
      %v11533 = vmul.f32 %v11497, %v11209
      %v11534 = vmul.f32 %v11498, %v11210
      %v11535 = vmul.f32 %v11499, %v11211
      %v11536 = vmul.f32 %v11500, %v11212
      %v11537 = vmul.f32 %v11501, %v11213
      %v11538 = vmul.f32 %v11502, %v11214
      %v11539 = vmul.f32 %v11503, %v11215
      %v11540 = vsub.f32 0.0, %v11072
      %v11541 = vsub.f32 0.0, %v11073
      %v11542 = vsub.f32 0.0, %v11074
      %v11543 = vsub.f32 0.0, %v11075
      %v11544 = vsub.f32 0.0, %v11076
      %v11545 = vsub.f32 0.0, %v11077
      %v11546 = vsub.f32 0.0, %v11078
      %v11547 = vsub.f32 0.0, %v11079
      %v11548 = vsub.f32 0.0, %v11080
      %v11549 = vsub.f32 0.0, %v11081
      %v11550 = vsub.f32 0.0, %v11082
      %v11551 = vsub.f32 0.0, %v11083
      %v11552 = vsub.f32 0.0, %v11084
      %v11553 = vsub.f32 0.0, %v11085
      %v11554 = vsub.f32 0.0, %v11086
      %v11555 = vsub.f32 0.0, %v11087
      %v11556 = vsub.f32 0.0, %v11088
      %v11557 = vsub.f32 0.0, %v11089
      %v11558 = vsub.f32 0.0, %v11090
      %v11559 = vsub.f32 0.0, %v11091
      %v11560 = vsub.f32 0.0, %v11092
      %v11561 = vsub.f32 0.0, %v11093
      %v11562 = vsub.f32 0.0, %v11094
      %v11563 = vsub.f32 0.0, %v11095
      %v11564 = vsub.f32 0.0, %v11096
      %v11565 = vsub.f32 0.0, %v11097
      %v11566 = vsub.f32 0.0, %v11098
      %v11567 = vsub.f32 0.0, %v11099
      %v11568 = vsub.f32 0.0, %v11100
      %v11569 = vsub.f32 0.0, %v11101
      %v11570 = vsub.f32 0.0, %v11102
      %v11571 = vsub.f32 0.0, %v11103
      %v11572 = vsub.f32 0.0, %v11104
      %v11573 = vsub.f32 0.0, %v11105
      %v11574 = vsub.f32 0.0, %v11106
      %v11575 = vsub.f32 0.0, %v11107
      %v11576 = vmul.f32 %v11540, %v11072
      %v11577 = vmul.f32 %v11541, %v11073
      %v11578 = vmul.f32 %v11542, %v11074
      %v11579 = vmul.f32 %v11543, %v11075
      %v11580 = vmul.f32 %v11544, %v11076
      %v11581 = vmul.f32 %v11545, %v11077
      %v11582 = vmul.f32 %v11546, %v11078
      %v11583 = vmul.f32 %v11547, %v11079
      %v11584 = vmul.f32 %v11548, %v11080
      %v11585 = vmul.f32 %v11549, %v11081
      %v11586 = vmul.f32 %v11550, %v11082
      %v11587 = vmul.f32 %v11551, %v11083
      %v11588 = vmul.f32 %v11552, %v11084
      %v11589 = vmul.f32 %v11553, %v11085
      %v11590 = vmul.f32 %v11554, %v11086
      %v11591 = vmul.f32 %v11555, %v11087
      %v11592 = vmul.f32 %v11556, %v11088
      %v11593 = vmul.f32 %v11557, %v11089
      %v11594 = vmul.f32 %v11558, %v11090
      %v11595 = vmul.f32 %v11559, %v11091
      %v11596 = vmul.f32 %v11560, %v11092
      %v11597 = vmul.f32 %v11561, %v11093
      %v11598 = vmul.f32 %v11562, %v11094
      %v11599 = vmul.f32 %v11563, %v11095
      %v11600 = vmul.f32 %v11564, %v11096
      %v11601 = vmul.f32 %v11565, %v11097
      %v11602 = vmul.f32 %v11566, %v11098
      %v11603 = vmul.f32 %v11567, %v11099
      %v11604 = vmul.f32 %v11568, %v11100
      %v11605 = vmul.f32 %v11569, %v11101
      %v11606 = vmul.f32 %v11570, %v11102
      %v11607 = vmul.f32 %v11571, %v11103
      %v11608 = vmul.f32 %v11572, %v11104
      %v11609 = vmul.f32 %v11573, %v11105
      %v11610 = vmul.f32 %v11574, %v11106
      %v11611 = vmul.f32 %v11575, %v11107
      %v11612 = vmul.f32 %v11576, 1.442695
      %v11613 = vpow.pop %v11612
      %v11614 = vmul.f32 %v11577, 1.442695
      %v11615 = vpow.pop %v11614
      %v11616 = vmul.f32 %v11578, 1.442695
      %v11617 = vpow.pop %v11616
      %v11618 = vmul.f32 %v11579, 1.442695
      %v11619 = vpow.pop %v11618
      %v11620 = vmul.f32 %v11580, 1.442695
      %v11621 = vpow.pop %v11620
      %v11622 = vmul.f32 %v11581, 1.442695
      %v11623 = vpow.pop %v11622
      %v11624 = vmul.f32 %v11582, 1.442695
      %v11625 = vpow.pop %v11624
      %v11626 = vmul.f32 %v11583, 1.442695
      %v11627 = vpow.pop %v11626
      %v11628 = vmul.f32 %v11584, 1.442695
      %v11629 = vpow.pop %v11628
      %v11630 = vmul.f32 %v11585, 1.442695
      %v11631 = vpow.pop %v11630
      %v11632 = vmul.f32 %v11586, 1.442695
      %v11633 = vpow.pop %v11632
      %v11634 = vmul.f32 %v11587, 1.442695
      %v11635 = vpow.pop %v11634
      %v11636 = vmul.f32 %v11588, 1.442695
      %v11637 = vpow.pop %v11636
      %v11638 = vmul.f32 %v11589, 1.442695
      %v11639 = vpow.pop %v11638
      %v11640 = vmul.f32 %v11590, 1.442695
      %v11641 = vpow.pop %v11640
      %v11642 = vmul.f32 %v11591, 1.442695
      %v11643 = vpow.pop %v11642
      %v11644 = vmul.f32 %v11592, 1.442695
      %v11645 = vpow.pop %v11644
      %v11646 = vmul.f32 %v11593, 1.442695
      %v11647 = vpow.pop %v11646
      %v11648 = vmul.f32 %v11594, 1.442695
      %v11649 = vpow.pop %v11648
      %v11650 = vmul.f32 %v11595, 1.442695
      %v11651 = vpow.pop %v11650
      %v11652 = vmul.f32 %v11596, 1.442695
      %v11653 = vpow.pop %v11652
      %v11654 = vmul.f32 %v11597, 1.442695
      %v11655 = vpow.pop %v11654
      %v11656 = vmul.f32 %v11598, 1.442695
      %v11657 = vpow.pop %v11656
      %v11658 = vmul.f32 %v11599, 1.442695
      %v11659 = vpow.pop %v11658
      %v11660 = vmul.f32 %v11600, 1.442695
      %v11661 = vpow.pop %v11660
      %v11662 = vmul.f32 %v11601, 1.442695
      %v11663 = vpow.pop %v11662
      %v11664 = vmul.f32 %v11602, 1.442695
      %v11665 = vpow.pop %v11664
      %v11666 = vmul.f32 %v11603, 1.442695
      %v11667 = vpow.pop %v11666
      %v11668 = vmul.f32 %v11604, 1.442695
      %v11669 = vpow.pop %v11668
      %v11670 = vmul.f32 %v11605, 1.442695
      %v11671 = vpow.pop %v11670
      %v11672 = vmul.f32 %v11606, 1.442695
      %v11673 = vpow.pop %v11672
      %v11674 = vmul.f32 %v11607, 1.442695
      %v11675 = vpow.pop %v11674
      %v11676 = vmul.f32 %v11608, 1.442695
      %v11677 = vpow.pop %v11676
      %v11678 = vmul.f32 %v11609, 1.442695
      %v11679 = vpow.pop %v11678
      %v11680 = vmul.f32 %v11610, 1.442695
      %v11681 = vpow.pop %v11680
      %v11682 = vmul.f32 %v11611, 1.442695
      %v11683 = vpow.pop %v11682
      %v11684 = vmul.f32 %v11504, %v11613
      %v11685 = vmul.f32 %v11505, %v11615
      %v11686 = vmul.f32 %v11506, %v11617
      %v11687 = vmul.f32 %v11507, %v11619
      %v11688 = vmul.f32 %v11508, %v11621
      %v11689 = vmul.f32 %v11509, %v11623
      %v11690 = vmul.f32 %v11510, %v11625
      %v11691 = vmul.f32 %v11511, %v11627
      %v11692 = vmul.f32 %v11512, %v11629
      %v11693 = vmul.f32 %v11513, %v11631
      %v11694 = vmul.f32 %v11514, %v11633
      %v11695 = vmul.f32 %v11515, %v11635
      %v11696 = vmul.f32 %v11516, %v11637
      %v11697 = vmul.f32 %v11517, %v11639
      %v11698 = vmul.f32 %v11518, %v11641
      %v11699 = vmul.f32 %v11519, %v11643
      %v11700 = vmul.f32 %v11520, %v11645
      %v11701 = vmul.f32 %v11521, %v11647
      %v11702 = vmul.f32 %v11522, %v11649
      %v11703 = vmul.f32 %v11523, %v11651
      %v11704 = vmul.f32 %v11524, %v11653
      %v11705 = vmul.f32 %v11525, %v11655
      %v11706 = vmul.f32 %v11526, %v11657
      %v11707 = vmul.f32 %v11527, %v11659
      %v11708 = vmul.f32 %v11528, %v11661
      %v11709 = vmul.f32 %v11529, %v11663
      %v11710 = vmul.f32 %v11530, %v11665
      %v11711 = vmul.f32 %v11531, %v11667
      %v11712 = vmul.f32 %v11532, %v11669
      %v11713 = vmul.f32 %v11533, %v11671
      %v11714 = vmul.f32 %v11534, %v11673
      %v11715 = vmul.f32 %v11535, %v11675
      %v11716 = vmul.f32 %v11536, %v11677
      %v11717 = vmul.f32 %v11537, %v11679
      %v11718 = vmul.f32 %v11538, %v11681
      %v11719 = vmul.f32 %v11539, %v11683
      %v11720 = vsub.f32 1.0, %v11684
      %v11721 = vsub.f32 1.0, %v11685
      %v11722 = vsub.f32 1.0, %v11686
      %v11723 = vsub.f32 1.0, %v11687
      %v11724 = vsub.f32 1.0, %v11688
      %v11725 = vsub.f32 1.0, %v11689
      %v11726 = vsub.f32 1.0, %v11690
      %v11727 = vsub.f32 1.0, %v11691
      %v11728 = vsub.f32 1.0, %v11692
      %v11729 = vsub.f32 1.0, %v11693
      %v11730 = vsub.f32 1.0, %v11694
      %v11731 = vsub.f32 1.0, %v11695
      %v11732 = vsub.f32 1.0, %v11696
      %v11733 = vsub.f32 1.0, %v11697
      %v11734 = vsub.f32 1.0, %v11698
      %v11735 = vsub.f32 1.0, %v11699
      %v11736 = vsub.f32 1.0, %v11700
      %v11737 = vsub.f32 1.0, %v11701
      %v11738 = vsub.f32 1.0, %v11702
      %v11739 = vsub.f32 1.0, %v11703
      %v11740 = vsub.f32 1.0, %v11704
      %v11741 = vsub.f32 1.0, %v11705
      %v11742 = vsub.f32 1.0, %v11706
      %v11743 = vsub.f32 1.0, %v11707
      %v11744 = vsub.f32 1.0, %v11708
      %v11745 = vsub.f32 1.0, %v11709
      %v11746 = vsub.f32 1.0, %v11710
      %v11747 = vsub.f32 1.0, %v11711
      %v11748 = vsub.f32 1.0, %v11712
      %v11749 = vsub.f32 1.0, %v11713
      %v11750 = vsub.f32 1.0, %v11714
      %v11751 = vsub.f32 1.0, %v11715
      %v11752 = vsub.f32 1.0, %v11716
      %v11753 = vsub.f32 1.0, %v11717
      %v11754 = vsub.f32 1.0, %v11718
      %v11755 = vsub.f32 1.0, %v11719
      %v11756 = vmul.f32 %v11036, %v11720
      %v11757 = vmul.f32 %v11037, %v11721
      %v11758 = vmul.f32 %v11038, %v11722
      %v11759 = vmul.f32 %v11039, %v11723
      %v11760 = vmul.f32 %v11040, %v11724
      %v11761 = vmul.f32 %v11041, %v11725
      %v11762 = vmul.f32 %v11042, %v11726
      %v11763 = vmul.f32 %v11043, %v11727
      %v11764 = vmul.f32 %v11044, %v11728
      %v11765 = vmul.f32 %v11045, %v11729
      %v11766 = vmul.f32 %v11046, %v11730
      %v11767 = vmul.f32 %v11047, %v11731
      %v11768 = vmul.f32 %v11048, %v11732
      %v11769 = vmul.f32 %v11049, %v11733
      %v11770 = vmul.f32 %v11050, %v11734
      %v11771 = vmul.f32 %v11051, %v11735
      %v11772 = vmul.f32 %v11052, %v11736
      %v11773 = vmul.f32 %v11053, %v11737
      %v11774 = vmul.f32 %v11054, %v11738
      %v11775 = vmul.f32 %v11055, %v11739
      %v11776 = vmul.f32 %v11056, %v11740
      %v11777 = vmul.f32 %v11057, %v11741
      %v11778 = vmul.f32 %v11058, %v11742
      %v11779 = vmul.f32 %v11059, %v11743
      %v11780 = vmul.f32 %v11060, %v11744
      %v11781 = vmul.f32 %v11061, %v11745
      %v11782 = vmul.f32 %v11062, %v11746
      %v11783 = vmul.f32 %v11063, %v11747
      %v11784 = vmul.f32 %v11064, %v11748
      %v11785 = vmul.f32 %v11065, %v11749
      %v11786 = vmul.f32 %v11066, %v11750
      %v11787 = vmul.f32 %v11067, %v11751
      %v11788 = vmul.f32 %v11068, %v11752
      %v11789 = vmul.f32 %v11069, %v11753
      %v11790 = vmul.f32 %v11070, %v11754
      %v11791 = vmul.f32 %v11071, %v11755
      %v11792 = vadd.f32 %v11756, 1.0
      %v11793 = vadd.f32 %v11757, 1.0
      %v11794 = vadd.f32 %v11758, 1.0
      %v11795 = vadd.f32 %v11759, 1.0
      %v11796 = vadd.f32 %v11760, 1.0
      %v11797 = vadd.f32 %v11761, 1.0
      %v11798 = vadd.f32 %v11762, 1.0
      %v11799 = vadd.f32 %v11763, 1.0
      %v11800 = vadd.f32 %v11764, 1.0
      %v11801 = vadd.f32 %v11765, 1.0
      %v11802 = vadd.f32 %v11766, 1.0
      %v11803 = vadd.f32 %v11767, 1.0
      %v11804 = vadd.f32 %v11768, 1.0
      %v11805 = vadd.f32 %v11769, 1.0
      %v11806 = vadd.f32 %v11770, 1.0
      %v11807 = vadd.f32 %v11771, 1.0
      %v11808 = vadd.f32 %v11772, 1.0
      %v11809 = vadd.f32 %v11773, 1.0
      %v11810 = vadd.f32 %v11774, 1.0
      %v11811 = vadd.f32 %v11775, 1.0
      %v11812 = vadd.f32 %v11776, 1.0
      %v11813 = vadd.f32 %v11777, 1.0
      %v11814 = vadd.f32 %v11778, 1.0
      %v11815 = vadd.f32 %v11779, 1.0
      %v11816 = vadd.f32 %v11780, 1.0
      %v11817 = vadd.f32 %v11781, 1.0
      %v11818 = vadd.f32 %v11782, 1.0
      %v11819 = vadd.f32 %v11783, 1.0
      %v11820 = vadd.f32 %v11784, 1.0
      %v11821 = vadd.f32 %v11785, 1.0
      %v11822 = vadd.f32 %v11786, 1.0
      %v11823 = vadd.f32 %v11787, 1.0
      %v11824 = vadd.f32 %v11788, 1.0
      %v11825 = vadd.f32 %v11789, 1.0
      %v11826 = vadd.f32 %v11790, 1.0
      %v11827 = vadd.f32 %v11791, 1.0
      %v11828 = vmul.f32 %v10928, %v11792
      %v11829 = vmul.f32 %v10929, %v11793
      %v11830 = vmul.f32 %v10930, %v11794
      %v11831 = vmul.f32 %v10931, %v11795
      %v11832 = vmul.f32 %v10932, %v11796
      %v11833 = vmul.f32 %v10933, %v11797
      %v11834 = vmul.f32 %v10934, %v11798
      %v11835 = vmul.f32 %v10935, %v11799
      %v11836 = vmul.f32 %v10936, %v11800
      %v11837 = vmul.f32 %v10937, %v11801
      %v11838 = vmul.f32 %v10938, %v11802
      %v11839 = vmul.f32 %v10939, %v11803
      %v11840 = vmul.f32 %v10940, %v11804
      %v11841 = vmul.f32 %v10941, %v11805
      %v11842 = vmul.f32 %v10942, %v11806
      %v11843 = vmul.f32 %v10943, %v11807
      %v11844 = vmul.f32 %v10944, %v11808
      %v11845 = vmul.f32 %v10945, %v11809
      %v11846 = vmul.f32 %v10946, %v11810
      %v11847 = vmul.f32 %v10947, %v11811
      %v11848 = vmul.f32 %v10948, %v11812
      %v11849 = vmul.f32 %v10949, %v11813
      %v11850 = vmul.f32 %v10950, %v11814
      %v11851 = vmul.f32 %v10951, %v11815
      %v11852 = vmul.f32 %v10952, %v11816
      %v11853 = vmul.f32 %v10953, %v11817
      %v11854 = vmul.f32 %v10954, %v11818
      %v11855 = vmul.f32 %v10955, %v11819
      %v11856 = vmul.f32 %v10956, %v11820
      %v11857 = vmul.f32 %v10957, %v11821
      %v11858 = vmul.f32 %v10958, %v11822
      %v11859 = vmul.f32 %v10959, %v11823
      %v11860 = vmul.f32 %v10960, %v11824
      %v11861 = vmul.f32 %v10961, %v11825
      %v11862 = vmul.f32 %v10962, %v11826
      %v11863 = vmul.f32 %v10963, %v11827
      %11864 = vst [vmem:[%s467] sm:$0xff] %v11828
      %11865 = vst [vmem:[%s467 + $0x8] sm:$0xff] %v11829
      %11866 = vst [vmem:[%s467 + $0x10] sm:$0xff] %v11830
      %11867 = vst [vmem:[%s467 + $0x18] sm:$0xff] %v11831
      %11868 = vst [vmem:[%s467 + $0x20] sm:$0xff] %v11832
      %11869 = vst [vmem:[%s467 + $0x28] sm:$0xff] %v11833
      %11870 = vst [vmem:[%s467 + $0x30] sm:$0xff] %v11834
      %11871 = vst [vmem:[%s467 + $0x38] sm:$0xff] %v11835
      %11872 = vst [vmem:[%s467 + $0x40] sm:$0xff] %v11836
      %11873 = vst [vmem:[%s467 + $0x48] sm:$0xff] %v11837
      %11874 = vst [vmem:[%s467 + $0x50] sm:$0xff] %v11838
      %11875 = vst [vmem:[%s467 + $0x58] sm:$0xff] %v11839
      %11876 = vst [vmem:[%s467 + $0x60] sm:$0xff] %v11840
      %11877 = vst [vmem:[%s467 + $0x68] sm:$0xff] %v11841
      %11878 = vst [vmem:[%s467 + $0x70] sm:$0xff] %v11842
      %11879 = vst [vmem:[%s467 + $0x78] sm:$0xff] %v11843
      %11880 = vst [vmem:[%s467 + $0x80] sm:$0xff] %v11844
      %11881 = vst [vmem:[%s467 + $0x88] sm:$0xff] %v11845
      %11882 = vst [vmem:[%s467 + $0x90] sm:$0xff] %v11846
      %11883 = vst [vmem:[%s467 + $0x98] sm:$0xff] %v11847
      %11884 = vst [vmem:[%s467 + $0xa0] sm:$0xff] %v11848
      %11885 = vst [vmem:[%s467 + $0xa8] sm:$0xff] %v11849
      %11886 = vst [vmem:[%s467 + $0xb0] sm:$0xff] %v11850
      %11887 = vst [vmem:[%s467 + $0xb8] sm:$0xff] %v11851
      %11888 = vst [vmem:[%s467 + $0xc0] sm:$0xff] %v11852
      %11889 = vst [vmem:[%s467 + $0xc8] sm:$0xff] %v11853
      %11890 = vst [vmem:[%s467 + $0xd0] sm:$0xff] %v11854
      %11891 = vst [vmem:[%s467 + $0xd8] sm:$0xff] %v11855
      %11892 = vst [vmem:[%s467 + $0xe0] sm:$0xff] %v11856
      %11893 = vst [vmem:[%s467 + $0xe8] sm:$0xff] %v11857
      %11894 = vst [vmem:[%s467 + $0xf0] sm:$0xff] %v11858
      %11895 = vst [vmem:[%s467 + $0xf8] sm:$0xff] %v11859
      %11896 = vst [vmem:[%s467 + $0x100] sm:$0xff] %v11860
      %11897 = vst [vmem:[%s467 + $0x108] sm:$0xff] %v11861
      %11898 = vst [vmem:[%s467 + $0x110] sm:$0xff] %v11862
      %11899 = vst [vmem:[%s467 + $0x118] sm:$0xff] %v11863
      %p11900 = scmp.lt.s32.totalorder %s25, 1
      %s11901 = scalar_select %p11900, %s25, 1
      %s11902 = smul.addr %s11901, 36
      %s11903 = smul.addr %s11902, 8
      %s11904 = scalar_lea.vmem %s14, %s11903
      // Predicated region
      $region77: #{se_basic_block_forward.1} parent=75 // pred_check
        %p11905 = pneg %p342
      $region78: #{se_basic_block_forward.1} parent=75 // pred_check_branch
        %11907 = sbr.rel (%p11905) target = $region80
      $region79: #{se_basic_block_forward.1} parent=75 // pred_region
        _
      $region80: #{se_basic_block_forward.1} parent=75 // pred_fallthru
        _
    $region76: #{se_basic_block_forward.1} parent=5 // pred_fallthru
      _
    %p11908 = scmp.le.s32.totalorder 2, %s20
    // Predicated region
    $region81: #{se_basic_block_forward.1} parent=5 // pred_check
      %p11909 = pneg %p11908
    $region82: #{se_basic_block_forward.1} parent=5 // pred_check_branch
      %11911 = sbr.rel (%p11909) target = $region84
    $region83: #{se_basic_block_forward.1} parent=5 // pred_region
      %s11912 = ssub.s32 %s20, 2
      // Predicated region
      $region85: #{se_basic_block_forward.1} parent=83 // pred_check
        %p11913 = pneg %p348
      $region86: #{se_basic_block_forward.1} parent=83 // pred_check_branch
        %11915 = sbr.rel (%p11913) target = $region88
      $region87: #{se_basic_block_forward.1} parent=83 // pred_region
        %p11916 = scmp.lt.s32.totalorder %s26, 1
        %s11917 = scalar_select %p11916, %s26, 1
        %s11918 = smul.addr %s11917, 36
        %s11919 = smul.addr %s11918, 8
        %s11920 = scalar_lea.vmem %s14, %s11919
      $region88: #{se_basic_block_forward.1} parent=83 // pred_fallthru
        _
    $region84: #{se_basic_block_forward.1} parent=5 // pred_fallthru
      _
  $region6: #{se_basic_block_forward.1} parent=0 // loop_footer
    %s24 = sadd.s32 1, %s20
  $region7: #{se_basic_block_forward.1} parent=0 // loop_footer_branch
    %19 = sbr.rel target = $region3
  $region8: #{se_basic_block_forward.1} parent=0 // loop_exit
    _

</llo_original>
